<compile_context>
chip_gen: v6e
topology: v6e:2x2x1
jax: 0.10.0
libtpu: 0.0.40
codegen_flags: <defaults>
</compile_context>

<pallas_src>
import functools

import jax
import jax.numpy as jnp
from jax.experimental import pallas as pl
from jax.experimental.pallas import tpu as pltpu


# ----------------------------------------------------------------------------
# Kernel 1: TimeEmbedding  silu(x @ W1 + b1) @ W2 + b2
# Single grid axis = "parallel" split of the W2 output columns (megacore on
# v7x). No reduction axis, no scratch, no init/finalize phases.
# ----------------------------------------------------------------------------
def _time_embedding_kernel(x_ref, w1_ref, b1_ref, w2_ref, b2_ref, o_ref):
    # First linear over the FULL hidden dim (cheap: 320x1280 bf16), f32 acc.
    h = jnp.dot(x_ref[...], w1_ref[...], preferred_element_type=jnp.float32)
    h = h + b1_ref[...]
    # SiLU kept in f32 (v5e has no bf16 VPU/EUP); exp sits on the EUP slot.
    h = h * jax.nn.sigmoid(h)

    # Second linear: only this grid step's column block of W2.
    acc = jnp.dot(h.astype(w2_ref.dtype), w2_ref[...],
                  preferred_element_type=jnp.float32)
    o_ref[...] = (acc + b2_ref[...]).astype(o_ref.dtype)


def time_embedding(t, w1, b1, w2, b2):
    """t: (B, n_embed); w1: (n_embed, 4n); w2: (4n, 4n); biases broadcastable to (1, 4n)."""
    B, n_embed = t.shape
    hidden = w1.shape[1]
    out_dim = w2.shape[1]

    # Pad batch rows to 16 (bf16 vreg packs (16, 128) sublanes).
    m_pad = max(16, ((B + 15) // 16) * 16)
    x = jnp.pad(t.astype(jnp.bfloat16), ((0, m_pad - B), (0, 0)))

    # bf16 weights (halve HBM traffic, 2x MXU rate); biases stay f32.
    w1b = w1.astype(jnp.bfloat16)
    w2b = w2.astype(jnp.bfloat16)
    b1f = b1.reshape(1, hidden).astype(jnp.float32)
    b2f = b2.reshape(1, out_dim).astype(jnp.float32)

    # 2 parallel column tiles when legal (gives v7x both TensorCores work);
    # otherwise a single fat step.
    if out_dim % 2 == 0 and (out_dim // 2) % 128 == 0:
        n_tiles = 2
    else:
        n_tiles = 1
    tn = out_dim // n_tiles

    out = pl.pallas_call(
        _time_embedding_kernel,
        out_shape=jax.ShapeDtypeStruct((m_pad, out_dim), t.dtype),
        grid_spec=pltpu.PrefetchScalarGridSpec(
            num_scalar_prefetch=0,
            grid=(n_tiles,),
            in_specs=[
                pl.BlockSpec((m_pad, n_embed), lambda j: (0, 0)),  # x (resident)
                pl.BlockSpec((n_embed, hidden), lambda j: (0, 0)),  # W1 (resident)
                pl.BlockSpec((1, hidden), lambda j: (0, 0)),        # b1 (resident)
                pl.BlockSpec((hidden, tn), lambda j: (0, j)),       # W2 column half
                pl.BlockSpec((1, tn), lambda j: (0, j)),            # b2 column half
            ],
            out_specs=pl.BlockSpec((m_pad, tn), lambda j: (0, j)),
        ),
        compiler_params=pltpu.CompilerParams(
            dimension_semantics=("parallel",)),
    )(x, w1b, b1f, w2b, b2f)
    return out[:B]


# ----------------------------------------------------------------------------
# Kernel 2: 3x3 "same" conv as a single im2col matmul.
# Wrapper builds the (M, 9*Cin) patch matrix (no K zero-padding); kernel is one
# MXU matmul + bias per row tile with a lane-dense (multiple-of-128) Cout.
# ----------------------------------------------------------------------------
def _matmul_bias_kernel(x_ref, w_ref, b_ref, o_ref):
    acc = jnp.dot(x_ref[...], w_ref[...], preferred_element_type=jnp.float32)
    o_ref[...] = (acc + b_ref[...]).astype(o_ref.dtype)


def conv2d_3x3_same(x_nchw, w_oihw, b):
    """3x3 stride-1 'same' conv. x: (B,Cin,H,W) NCHW; w: (Cout,Cin,3,3); b: (Cout,)."""
    B, Cin, H, W = x_nchw.shape
    Cout = w_oihw.shape[0]
    K = 9 * Cin

    # ---- wrapper-side layout plumbing (fused by jit): NCHW -> NHWC, pad, im2col ----
    x_nhwc = jnp.transpose(x_nchw, (0, 2, 3, 1))
    xp = jnp.pad(x_nhwc, ((0, 0), (1, 1), (1, 1), (0, 0)))
    taps = []
    for ky in range(3):
        for kx in range(3):
            taps.append(xp[:, ky:ky + H, kx:kx + W, :])
    patches = jnp.concatenate(taps, axis=-1).reshape(B * H * W, K)

    M = B * H * W
    # Size-aware row tile: big tiles amortize per-step overhead, but keep >=2
    # parallel tiles for v7x's two TensorCores when possible.
    if M >= 2048:
        tm = 1024
    elif M > 256:
        tm = 256
    else:
        tm = max(8, ((M + 7) // 8) * 8)
    m_tiles = max(1, (M + tm - 1) // tm)
    M_pad = m_tiles * tm

    lhs = jnp.pad(patches.astype(jnp.bfloat16), ((0, M_pad - M), (0, 0)))

    # Lane-dense output width: pad Cout up to a multiple of 128 (320 -> 384).
    N_pad = ((Cout + 127) // 128) * 128
    # (Cout, Cin, 3, 3) -> (ky, kx, Cin, Cout) -> (9*Cin, Cout) -> pad N columns.
    w_k = jnp.transpose(w_oihw, (2, 3, 1, 0)).reshape(K, Cout).astype(jnp.bfloat16)
    w_pad = jnp.pad(w_k, ((0, 0), (0, N_pad - Cout)))
    b_pad = jnp.pad(b.reshape(1, Cout).astype(jnp.float32),
                    ((0, 0), (0, N_pad - Cout)))

    # ---- Pallas: row-tiled matmul + bias, "parallel" grid (pipelined / megacore) ----
    out_flat = pl.pallas_call(
        _matmul_bias_kernel,
        out_shape=jax.ShapeDtypeStruct((M_pad, N_pad), x_nchw.dtype),
        grid_spec=pltpu.PrefetchScalarGridSpec(
            num_scalar_prefetch=0,
            grid=(m_tiles,),
            in_specs=[
                pl.BlockSpec((tm, K), lambda i: (i, 0)),      # im2col row tile (K=36, full dim)
                pl.BlockSpec((K, N_pad), lambda i: (0, 0)),   # weight (resident)
                pl.BlockSpec((1, N_pad), lambda i: (0, 0)),   # bias   (resident)
            ],
            out_specs=pl.BlockSpec((tm, N_pad), lambda i: (i, 0)),
        ),
        compiler_params=pltpu.CompilerParams(
            dimension_semantics=("parallel",)),
    )(lhs, w_pad, b_pad)

    # Slice off row/column padding; flat (M, Cout) -> NHWC -> NCHW.
    out_nhwc = out_flat[:M, :Cout].reshape(B, H, W, Cout)
    return jnp.transpose(out_nhwc, (0, 3, 1, 2))


# ----------------------------------------------------------------------------
# Diffusion forward (implementable portion), jitted so wrapper plumbing fuses.
# ----------------------------------------------------------------------------
@functools.partial(jax.jit)
def diffusion_forward(latent, context, time, params):
    # time = self.time_embedding(time)
    t_emb = time_embedding(time, params["te_w1"], params["te_b1"],
                           params["te_w2"], params["te_b2"])

    # UNET.encoders[0]: SwitchSequential(Conv2d(4, 320, kernel_size=3, padding=1))
    h = conv2d_3x3_same(latent, params["enc0_w"], params["enc0_b"])

    # TODO(synk): UNET_ResidualBlock / UNET_AttentionBlock / UNET_OutputLayer and the
    # UNET encoder/bottleneck/decoder forward are undefined in the reference source,
    # so the remainder of the network and `self.final` cannot be translated.
    return h, t_emb


# ----------------------------------------------------------------------------
# Deterministic parameter init + example run
# ----------------------------------------------------------------------------
def init_params(key):
    n_embed = 320
    ks = jax.random.split(key, 6)

    def uniform(k, shape, fan_in):
        bound = 1.0 / jnp.sqrt(fan_in)
        return jax.random.uniform(k, shape, jnp.float32, -bound, bound)

    return {
        # TimeEmbedding: Linear(320, 1280), Linear(1280, 1280); stored as (in, out)
        "te_w1": uniform(ks[0], (n_embed, 4 * n_embed), n_embed),
        "te_b1": uniform(ks[1], (1, 4 * n_embed), n_embed),
        "te_w2": uniform(ks[2], (4 * n_embed, 4 * n_embed), 4 * n_embed),
        "te_b2": uniform(ks[3], (1, 4 * n_embed), 4 * n_embed),
        # UNET.encoders[0]: Conv2d(4, 320, 3, padding=1), PyTorch OIHW weight
        "enc0_w": uniform(ks[4], (320, 4, 3, 3), 4 * 3 * 3),
        "enc0_b": uniform(ks[5], (320,), 4 * 3 * 3),
    }


if __name__ == "__main__":
    key = jax.random.PRNGKey(0)
    k_lat, k_ctx, k_time, k_params = jax.random.split(key, 4)

    latent = jax.random.normal(k_lat, (2, 4, 16, 16), jnp.float32)    # NCHW
    context = jax.random.normal(k_ctx, (2, 8, 32), jnp.float32)       # unused (attention undefined)
    time = jax.random.normal(k_time, (1, 320), jnp.float32)

    params = init_params(k_params)

    h, t_emb = diffusion_forward(latent, context, time, params)
    jax.block_until_ready((h, t_emb))

    assert h.shape == (2, 320, 16, 16)
    assert t_emb.shape == (1, 1280)
    print("KERNEL_OK")
</pallas_src>

<mosaic_0001>
module attributes {stable_mosaic.version = 11 : i64} {
  func.func @_matmul_bias_kernel(%arg0: i32, %arg1: memref<256x36xbf16, #tpu.memory_space<vmem>>, %arg2: memref<36x384xbf16, #tpu.memory_space<vmem>>, %arg3: memref<1x384xf32, #tpu.memory_space<vmem>>, %arg4: memref<256x384xf32, #tpu.memory_space<vmem>>) attributes {dimension_semantics = [#tpu.dimension_semantics<parallel>], iteration_bounds = array<i64: 2>, scalar_prefetch = 0 : i64, scratch_operands = 0 : i64, tpu.core_type = #tpu.core_type<tc>, window_params = [{transform_indices = @transform_0, window_bounds = array<i64: 256, 36>}, {pipeline_mode = #tpu.pipeline_mode<synchronous>, transform_indices = @transform_1, window_bounds = array<i64: 36, 384>}, {pipeline_mode = #tpu.pipeline_mode<synchronous>, transform_indices = @transform_2, window_bounds = array<i64: 1, 384>}, {transform_indices = @transform_3, window_bounds = array<i64: 256, 384>}]} {
    %c0 = arith.constant 0 : index
    %c0_0 = arith.constant 0 : index
    %0 = vector.load %arg1[%c0, %c0_0] : memref<256x36xbf16, #tpu.memory_space<vmem>>, vector<256x36xbf16>
    %c0_1 = arith.constant 0 : index
    %c0_2 = arith.constant 0 : index
    %1 = vector.load %arg2[%c0_1, %c0_2] : memref<36x384xbf16, #tpu.memory_space<vmem>>, vector<36x384xbf16>
    %cst = arith.constant dense<0.000000e+00> : vector<256x384xf32>
    %2 = tpu.matmul %0, %1, %cst {dimension_numbers = #tpu.dot_dimension_numbers<[1], [0], [0], [1], [0, 0, 1, 1], [], []>} : vector<256x36xbf16>, vector<36x384xbf16>, vector<256x384xf32> -> vector<256x384xf32>
    %c0_3 = arith.constant 0 : index
    %c0_4 = arith.constant 0 : index
    %3 = vector.load %arg3[%c0_3, %c0_4] : memref<1x384xf32, #tpu.memory_space<vmem>>, vector<1x384xf32>
    %4 = vector.broadcast %3 : vector<1x384xf32> to vector<256x384xf32>
    %5 = arith.addf %2, %4 : vector<256x384xf32>
    %c0_5 = arith.constant 0 : index
    %c0_6 = arith.constant 0 : index
    %6 = vector.load %arg4[%c0_5, %c0_6] : memref<256x384xf32, #tpu.memory_space<vmem>>, vector<256x384xf32>
    tpu.vector_store %arg4[%c0_5, %c0_6], %5 {strides = array<i32>} : memref<256x384xf32, #tpu.memory_space<vmem>>, vector<256x384xf32>,
    return
  }
  func.func @transform_0(%arg0: i32) -> (i32, i32) {
    %c0_i32 = arith.constant 0 : i32
    %c0_i32_0 = arith.constant 0 : i32
    return %arg0, %c0_i32 : i32, i32
  }
  func.func @transform_1(%arg0: i32) -> (i32, i32) {
    %c0_i32 = arith.constant 0 : i32
    %c0_i32_0 = arith.constant 0 : i32
    %c0_i32_1 = arith.constant 0 : i32
    return %c0_i32, %c0_i32_0 : i32, i32
  }
  func.func @transform_2(%arg0: i32) -> (i32, i32) {
    %c0_i32 = arith.constant 0 : i32
    %c0_i32_0 = arith.constant 0 : i32
    %c0_i32_1 = arith.constant 0 : i32
    return %c0_i32, %c0_i32_0 : i32, i32
  }
  func.func @transform_3(%arg0: i32) -> (i32, i32) {
    %c0_i32 = arith.constant 0 : i32
    %c0_i32_0 = arith.constant 0 : i32
    return %arg0, %c0_i32 : i32, i32
  }
}

module attributes {stable_mosaic.version = 11 : i64} {
  func.func @_time_embedding_kernel(%arg0: i32, %arg1: memref<16x320xbf16, #tpu.memory_space<vmem>>, %arg2: memref<320x1280xbf16, #tpu.memory_space<vmem>>, %arg3: memref<1x1280xf32, #tpu.memory_space<vmem>>, %arg4: memref<1280x640xbf16, #tpu.memory_space<vmem>>, %arg5: memref<1x640xf32, #tpu.memory_space<vmem>>, %arg6: memref<16x640xf32, #tpu.memory_space<vmem>>) attributes {dimension_semantics = [#tpu.dimension_semantics<parallel>], iteration_bounds = array<i64: 2>, scalar_prefetch = 0 : i64, scratch_operands = 0 : i64, tpu.core_type = #tpu.core_type<tc>, window_params = [{pipeline_mode = #tpu.pipeline_mode<synchronous>, transform_indices = @transform_0, window_bounds = array<i64: 16, 320>}, {pipeline_mode = #tpu.pipeline_mode<synchronous>, transform_indices = @transform_1, window_bounds = array<i64: 320, 1280>}, {pipeline_mode = #tpu.pipeline_mode<synchronous>, transform_indices = @transform_2, window_bounds = array<i64: 1, 1280>}, {transform_indices = @transform_3, window_bounds = array<i64: 1280, 640>}, {transform_indices = @transform_4, window_bounds = array<i64: 1, 640>}, {transform_indices = @transform_5, window_bounds = array<i64: 16, 640>}]} {
    %c0 = arith.constant 0 : index
    %c0_0 = arith.constant 0 : index
    %0 = vector.load %arg1[%c0, %c0_0] : memref<16x320xbf16, #tpu.memory_space<vmem>>, vector<16x320xbf16>
    %c0_1 = arith.constant 0 : index
    %c0_2 = arith.constant 0 : index
    %1 = vector.load %arg2[%c0_1, %c0_2] : memref<320x1280xbf16, #tpu.memory_space<vmem>>, vector<320x1280xbf16>
    %cst = arith.constant dense<0.000000e+00> : vector<16x1280xf32>
    %2 = tpu.matmul %0, %1, %cst {dimension_numbers = #tpu.dot_dimension_numbers<[1], [0], [0], [1], [0, 0, 1, 1], [], []>} : vector<16x320xbf16>, vector<320x1280xbf16>, vector<16x1280xf32> -> vector<16x1280xf32>
    %c0_3 = arith.constant 0 : index
    %c0_4 = arith.constant 0 : index
    %3 = vector.load %arg3[%c0_3, %c0_4] : memref<1x1280xf32, #tpu.memory_space<vmem>>, vector<1x1280xf32>
    %4 = vector.broadcast %3 : vector<1x1280xf32> to vector<16x1280xf32>
    %5 = arith.addf %2, %4 : vector<16x1280xf32>
    %6 = arith.negf %5 : vector<16x1280xf32>
    %7 = math.exp %6 : vector<16x1280xf32>
    %cst_5 = arith.constant 1.000000e+00 : f32
    %8 = vector.broadcast %cst_5 : f32 to vector<16x1280xf32>
    %9 = arith.addf %8, %7 : vector<16x1280xf32>
    %10 = arith.divf %8, %9 : vector<16x1280xf32>
    %11 = arith.mulf %5, %10 : vector<16x1280xf32>
    %12 = arith.truncf %11 : vector<16x1280xf32> to vector<16x1280xbf16>
    %c0_6 = arith.constant 0 : index
    %c0_7 = arith.constant 0 : index
    %13 = vector.load %arg4[%c0_6, %c0_7] : memref<1280x640xbf16, #tpu.memory_space<vmem>>, vector<1280x640xbf16>
    %cst_8 = arith.constant dense<0.000000e+00> : vector<16x640xf32>
    %14 = tpu.matmul %12, %13, %cst_8 {dimension_numbers = #tpu.dot_dimension_numbers<[1], [0], [0], [1], [0, 0, 1, 1], [], []>} : vector<16x1280xbf16>, vector<1280x640xbf16>, vector<16x640xf32> -> vector<16x640xf32>
    %c0_9 = arith.constant 0 : index
    %c0_10 = arith.constant 0 : index
    %15 = vector.load %arg5[%c0_9, %c0_10] : memref<1x640xf32, #tpu.memory_space<vmem>>, vector<1x640xf32>
    %16 = vector.broadcast %15 : vector<1x640xf32> to vector<16x640xf32>
    %17 = arith.addf %14, %16 : vector<16x640xf32>
    %c0_11 = arith.constant 0 : index
    %c0_12 = arith.constant 0 : index
    %18 = vector.load %arg6[%c0_11, %c0_12] : memref<16x640xf32, #tpu.memory_space<vmem>>, vector<16x640xf32>
    tpu.vector_store %arg6[%c0_11, %c0_12], %17 {strides = array<i32>} : memref<16x640xf32, #tpu.memory_space<vmem>>, vector<16x640xf32>,
    return
  }
  func.func @transform_0(%arg0: i32) -> (i32, i32) {
    %c0_i32 = arith.constant 0 : i32
    %c0_i32_0 = arith.constant 0 : i32
    %c0_i32_1 = arith.constant 0 : i32
    return %c0_i32, %c0_i32_0 : i32, i32
  }
  func.func @transform_1(%arg0: i32) -> (i32, i32) {
    %c0_i32 = arith.constant 0 : i32
    %c0_i32_0 = arith.constant 0 : i32
    %c0_i32_1 = arith.constant 0 : i32
    return %c0_i32, %c0_i32_0 : i32, i32
  }
  func.func @transform_2(%arg0: i32) -> (i32, i32) {
    %c0_i32 = arith.constant 0 : i32
    %c0_i32_0 = arith.constant 0 : i32
    %c0_i32_1 = arith.constant 0 : i32
    return %c0_i32, %c0_i32_0 : i32, i32
  }
  func.func @transform_3(%arg0: i32) -> (i32, i32) {
    %c0_i32 = arith.constant 0 : i32
    %c0_i32_0 = arith.constant 0 : i32
    return %c0_i32, %arg0 : i32, i32
  }
  func.func @transform_4(%arg0: i32) -> (i32, i32) {
    %c0_i32 = arith.constant 0 : i32
    %c0_i32_0 = arith.constant 0 : i32
    return %c0_i32, %arg0 : i32, i32
  }
  func.func @transform_5(%arg0: i32) -> (i32, i32) {
    %c0_i32 = arith.constant 0 : i32
    %c0_i32_0 = arith.constant 0 : i32
    return %c0_i32, %arg0 : i32, i32
  }
}

</mosaic_0001>

<llo_original>
// kernel: diffusion_forward.3
$region0: #{diffusion_forward.3}
  #allocation0 [shape = 'u32[]', space=smem, size = 0x4, offset = 0x4, fixed_abs, tag = 'smem constant byte address 0x4 - core index']
  #allocation1 [shape = 'u32[144,128]{1,0:T(1,128)}', space=vmem, size = 0x12000, scoped, tag = 'internal scratch']
  %s0 = inlined_call_operand.vmem [shape: bf16[512,36], index: 0, kind: input, shape index: {}]
  %s1 = inlined_call_operand.vmem [shape: bf16[36,384], index: 1, kind: input, shape index: {}]
  %s2 = inlined_call_operand.vmem [shape: f32[1,384], index: 2, kind: input, shape index: {}]
  %s3 = inlined_call_operand.hbm [shape: f32[512,384], index: 3, kind: output, shape index: {}]
  %s4 = sld [smem:[#allocation0]]
  $region45: #{diffusion_forward.3} parent=0
    _
  %s6 = ssub.s32 1, %s4
  %s7 = scalar_select 0, %s6, %s4
  $region1: #{diffusion_forward.3} parent=0
    #allocation2 [shape = 'u8[786432]{0}', space=vmem, size = 0xc0000, scoped, tag = 'output window, operand 0']
    #allocation3 [shape = 's32[2]{0}', space=sflag, size = 0x8, scoped, tag = 'scoped memory for diffusion_forward.3']
    %8 = vsyncpa [#allocation3], 0
    %s9 = scalar_lea.sflag [#allocation3], 1
    %10 = vsyncpa %s9, 0
    loop: start=0, step=1, limit=4
    $region2: #{diffusion_forward.3} parent=1 // loop_pre_header
      _
    $region3: #{diffusion_forward.3} parent=1 // loop_header
      %s12 = sphi 0, %s16
      %p13 = scmp.ge.s32.totalorder %s12, 4
      %s22 = sphi 0, %s24
      %s25 = sphi 0, %s22
      %s26 = sphi 0, %s25
      %s42 = sphi 0, %s26
      %s46 = sphi 0, %s46
      %s48 = sphi 0, %s46
      %s49 = sphi 0, %s48
      %s63 = sphi 0, %s49
      %s67 = sphi 0, %s67
      %s69 = sphi 0, %s67
      %s70 = sphi 0, %s69
      %s84 = sphi 0, %s70
      %s90 = sphi 0, %s92
      %s93 = sphi 0, %s90
      %s94 = sphi 0, %s93
      %s110 = sphi 0, %s94
    $region4: #{diffusion_forward.3} parent=1 // loop_header_branch
      %15 = sbr.rel (%p13) target = $region8
    $region5: #{diffusion_forward.3} parent=1 // loop_body
      %s17 = ssub.s32 %s12, 1
      %s18 = ssub.s32 %s12, 2
      %s19 = sadd.s32 %s12, 1
      %s20 = ssub.s32 %s12, %s19
      %p21 = scmp.eq.s32.totalorder %s20, 0
      %s23 = sadd.s32 %s22, 1
      %s24 = scalar_select %p21, %s22, %s23
      %p27 = pneg %p21
      %p28 = scmp.eq.s32.totalorder %s12, 1
      %p29 = por %p27, %p28
      %p30 = scmp.ne.s32.totalorder %s22, %s25
      %p31 = scmp.eq.s32.totalorder %s12, 0
      %p32 = por %p30, %p31
      %p33 = scmp.ne.s32.totalorder %s22, %s25
      %p34 = scmp.eq.s32.totalorder %s17, 1
      %p35 = por %p33, %p34
      %p36 = scmp.ne.s32.totalorder %s25, %s26
      %p37 = scmp.eq.s32.totalorder %s17, 0
      %p38 = por %p36, %p37
      %p39 = scmp.ne.s32.totalorder %s25, %s26
      %p40 = scmp.eq.s32.totalorder %s18, 1
      %p41 = por %p39, %p40
      %p43 = scmp.ne.s32.totalorder %s26, %s42
      %p44 = scmp.eq.s32.totalorder %s18, 0
      %p45 = por %p43, %p44
      %s47 = sadd.s32 %s46, 1
      %p50 = scmp.eq.s32.totalorder %s12, 1
      %p51 = scmp.ne.s32.totalorder %s46, %s48
      %p52 = scmp.eq.s32.totalorder %s12, 0
      %p53 = por %p51, %p52
      %p54 = scmp.ne.s32.totalorder %s46, %s48
      %p55 = scmp.eq.s32.totalorder %s17, 1
      %p56 = por %p54, %p55
      %p57 = scmp.ne.s32.totalorder %s48, %s49
      %p58 = scmp.eq.s32.totalorder %s17, 0
      %p59 = por %p57, %p58
      %p60 = scmp.ne.s32.totalorder %s48, %s49
      %p61 = scmp.eq.s32.totalorder %s18, 1
      %p62 = por %p60, %p61
      %p64 = scmp.ne.s32.totalorder %s49, %s63
      %p65 = scmp.eq.s32.totalorder %s18, 0
      %p66 = por %p64, %p65
      %s68 = sadd.s32 %s67, 1
      %p71 = scmp.eq.s32.totalorder %s12, 1
      %p72 = scmp.ne.s32.totalorder %s67, %s69
      %p73 = scmp.eq.s32.totalorder %s12, 0
      %p74 = por %p72, %p73
      %p75 = scmp.ne.s32.totalorder %s67, %s69
      %p76 = scmp.eq.s32.totalorder %s17, 1
      %p77 = por %p75, %p76
      %p78 = scmp.ne.s32.totalorder %s69, %s70
      %p79 = scmp.eq.s32.totalorder %s17, 0
      %p80 = por %p78, %p79
      %p81 = scmp.ne.s32.totalorder %s69, %s70
      %p82 = scmp.eq.s32.totalorder %s18, 1
      %p83 = por %p81, %p82
      %p85 = scmp.ne.s32.totalorder %s70, %s84
      %p86 = scmp.eq.s32.totalorder %s18, 0
      %p87 = por %p85, %p86
      %s88 = ssub.s32 %s12, %s19
      %p89 = scmp.eq.s32.totalorder %s88, 0
      %s91 = sadd.s32 %s90, 1
      %s92 = scalar_select %p89, %s90, %s91
      %p95 = pneg %p89
      %p96 = scmp.eq.s32.totalorder %s12, 1
      %p97 = por %p95, %p96
      %p98 = scmp.ne.s32.totalorder %s90, %s93
      %p99 = scmp.eq.s32.totalorder %s12, 0
      %p100 = por %p98, %p99
      %p101 = scmp.ne.s32.totalorder %s90, %s93
      %p102 = scmp.eq.s32.totalorder %s17, 1
      %p103 = por %p101, %p102
      %p104 = scmp.ne.s32.totalorder %s93, %s94
      %p105 = scmp.eq.s32.totalorder %s17, 0
      %p106 = por %p104, %p105
      %p107 = scmp.ne.s32.totalorder %s93, %s94
      %p108 = scmp.eq.s32.totalorder %s18, 1
      %p109 = por %p107, %p108
      %p111 = scmp.ne.s32.totalorder %s94, %s110
      %p112 = scmp.eq.s32.totalorder %s18, 0
      %p113 = por %p111, %p112
      %p114 = scmp.le.s32.totalorder 1, %s12
      %p115 = scmp.lt.s32.totalorder %s12, 3
      %p116 = pnand %p114, %p115
      %p117 = pneg %p116
      // Predicated region
      $region9: #{diffusion_forward.3} parent=5 // pred_check
        _
      $region10: #{diffusion_forward.3} parent=5 // pred_check_branch
        %119 = sbr.rel (%p116) target = $region12
      $region11: #{diffusion_forward.3} parent=5 // pred_region
        %s120 = ssub.s32 %s12, 1
        // Predicated region
        $region13: #{diffusion_forward.3} parent=11 // pred_check
          %p121 = pneg %p59
        $region14: #{diffusion_forward.3} parent=11 // pred_check_branch
          %123 = sbr.rel (%p121) target = $region16
        $region15: #{diffusion_forward.3} parent=11 // pred_region
          _
        $region16: #{diffusion_forward.3} parent=11 // pred_fallthru
          _
        // Predicated region
        $region17: #{diffusion_forward.3} parent=11 // pred_check
          %p124 = pneg %p80
        $region18: #{diffusion_forward.3} parent=11 // pred_check_branch
          %126 = sbr.rel (%p124) target = $region20
        $region19: #{diffusion_forward.3} parent=11 // pred_region
          _
        $region20: #{diffusion_forward.3} parent=11 // pred_fallthru
          _
      $region12: #{diffusion_forward.3} parent=5 // pred_fallthru
        _
      %p127 = scmp.lt.s32.totalorder %s12, 2
      // Predicated region
      $region21: #{diffusion_forward.3} parent=5 // pred_check
        %p128 = pneg %p127
      $region22: #{diffusion_forward.3} parent=5 // pred_check_branch
        %130 = sbr.rel (%p128) target = $region24
      $region23: #{diffusion_forward.3} parent=5 // pred_region
        // Predicated region
        $region25: #{diffusion_forward.3} parent=23 // pred_check
          %p131 = pneg %p32
        $region26: #{diffusion_forward.3} parent=23 // pred_check_branch
          %133 = sbr.rel (%p131) target = $region28
        $region27: #{diffusion_forward.3} parent=23 // pred_region
          %s134 = smul.u32 32, %s12
          %p135 = scmp.lt.s32.totalorder %s134, 63
          %s136 = scalar_select %p135, %s134, 63
          %s137 = smul.addr %s136, 4
          %s138 = scalar_lea.vmem %s0, %s137
          %s139 = smul.u32 32, %s12
        $region28: #{diffusion_forward.3} parent=23 // pred_fallthru
          _
      $region24: #{diffusion_forward.3} parent=5 // pred_fallthru
        _
      %p140 = scmp.le.s32.totalorder 1, %s12
      %p141 = scmp.lt.s32.totalorder %s12, 3
      %p142 = pnand %p140, %p141
      %p143 = pneg %p142
      // Predicated region
      $region29: #{diffusion_forward.3} parent=5 // pred_check
        _
      $region30: #{diffusion_forward.3} parent=5 // pred_check_branch
        %145 = sbr.rel (%p142) target = $region32
      $region31: #{diffusion_forward.3} parent=5 // pred_region
        %s146 = ssub.s32 %s12, 1
        %s147 = smul.u32 32, %s17
        %p148 = scmp.lt.s32.totalorder %s147, 63
        %s149 = scalar_select %p148, %s147, 63
        %s150 = smul.addr %s149, 4
        %s151 = scalar_lea.vmem %s0, %s150
        %p152 = pneg %p38
        %p153 = pneg %p35
        %p154 = pneg %p59
        %p155 = pneg %p56
        %p156 = pneg %p80
        %p157 = pneg %p77
        %p158 = pneg %p106
        %p159 = pneg %p103
        %s160 = sand.u32 %s93, 1
        %s161 = scalar_lea.sflag [#allocation3], %s160
        %s162 = sand.u32 %s93, 1
        %s163 = smul.addr %s162, 768
        %s164 = scalar_lea.vmem [#allocation2], %s163
        %s165 = smul.u32 32, %s17
        %p166 = scmp.lt.s32.totalorder %s165, 63
        %s167 = scalar_select %p166, %s165, 63
        %s168 = smul.addr %s167, 4
        %s169 = scalar_lea.vmem %s0, %s168
        %s170 = smul.u32 32, %s17
        %s171 = smul.u32 32, %s17
        %v173 = vld [vmem:[%s169] sm:$0xf]
        %v174 = vld [vmem:[%s169 + $0x4] sm:$0xf]
        %v175 = vld [vmem:[%s169 + $0x8] sm:$0xf]
        %v176 = vld [vmem:[%s169 + $0xc] sm:$0xf]
        %v177 = vld [vmem:[%s169 + $0x10] sm:$0xf]
        %v178 = vld [vmem:[%s169 + $0x14] sm:$0xf]
        %v179 = vld [vmem:[%s169 + $0x18] sm:$0xf]
        %v180 = vld [vmem:[%s169 + $0x1c] sm:$0xf]
        %v181 = vld [vmem:[%s169 + $0x20] sm:$0xf]
        %v182 = vld [vmem:[%s169 + $0x24] sm:$0xf]
        %v183 = vld [vmem:[%s169 + $0x28] sm:$0xf]
        %v184 = vld [vmem:[%s169 + $0x2c] sm:$0xf]
        %v185 = vld [vmem:[%s169 + $0x30] sm:$0xf]
        %v186 = vld [vmem:[%s169 + $0x34] sm:$0xf]
        %v187 = vld [vmem:[%s169 + $0x38] sm:$0xf]
        %v188 = vld [vmem:[%s169 + $0x3c] sm:$0xf]
        %v189 = vld [vmem:[%s169 + $0x40] sm:$0xf]
        %v190 = vld [vmem:[%s169 + $0x44] sm:$0xf]
        %v191 = vld [vmem:[%s169 + $0x48] sm:$0xf]
        %v192 = vld [vmem:[%s169 + $0x4c] sm:$0xf]
        %v193 = vld [vmem:[%s169 + $0x50] sm:$0xf]
        %v194 = vld [vmem:[%s169 + $0x54] sm:$0xf]
        %v195 = vld [vmem:[%s169 + $0x58] sm:$0xf]
        %v196 = vld [vmem:[%s169 + $0x5c] sm:$0xf]
        %v197 = vld [vmem:[%s169 + $0x60] sm:$0xf]
        %v198 = vld [vmem:[%s169 + $0x64] sm:$0xf]
        %v199 = vld [vmem:[%s169 + $0x68] sm:$0xf]
        %v200 = vld [vmem:[%s169 + $0x6c] sm:$0xf]
        %v201 = vld [vmem:[%s169 + $0x70] sm:$0xf]
        %v202 = vld [vmem:[%s169 + $0x74] sm:$0xf]
        %v203 = vld [vmem:[%s169 + $0x78] sm:$0xf]
        %v204 = vld [vmem:[%s169 + $0x7c] sm:$0xf]
        %v205 = vld [vmem:[%s1] sm:$0xff]
        %v206 = vld [vmem:[%s1 + $0x8] sm:$0xf]
        %v207 = vld [vmem:[%s1 + $0xc] sm:$0xff]
        %v208 = vld [vmem:[%s1 + $0x14] sm:$0xf]
        %v209 = vld [vmem:[%s1 + $0x18] sm:$0xff]
        %v210 = vld [vmem:[%s1 + $0x20] sm:$0xf]
        %v211 = vld [vmem:[%s1 + $0x24] sm:$0xff]
        %v212 = vld [vmem:[%s1 + $0x2c] sm:$0xf]
        %v213 = vld [vmem:[%s1 + $0x30] sm:$0x33]
        %v214 = vld [vmem:[%s1 + $0x38] sm:$0x3]
        %v215 = vld [vmem:[%s2] sm:$0x7]
        %v217 = vlaneseq
        %v218 = vshrl.u32 %v217, 7
        %v219 = vsub.s32 0, %v218
        %v220 = vrot.slane %v215, %v219
        %v221 = vlaneseq
        %v222 = vshrl.u32 %v221, 7
        %v223 = vsub.s32 1, %v222
        %v224 = vrot.slane %v215, %v223
        %v225 = vlaneseq
        %v226 = vshrl.u32 %v225, 7
        %v227 = vsub.s32 2, %v226
        %v228 = vrot.slane %v215, %v227
        %v264 = vunpack.c.l.b16 %v173
        %v265 = vunpack.c.l.b16 %v174
        %v266 = vunpack.c.l.b16 %v175
        %v267 = vunpack.c.l.b16 %v176
        %v268 = vunpack.c.l.b16 %v177
        %v269 = vunpack.c.l.b16 %v178
        %v270 = vunpack.c.l.b16 %v179
        %v271 = vunpack.c.l.b16 %v180
        %v272 = vunpack.c.l.b16 %v181
        %v273 = vunpack.c.l.b16 %v182
        %v274 = vunpack.c.l.b16 %v183
        %v275 = vunpack.c.l.b16 %v184
        %v276 = vunpack.c.l.b16 %v185
        %v277 = vunpack.c.l.b16 %v186
        %v278 = vunpack.c.l.b16 %v187
        %v279 = vunpack.c.l.b16 %v188
        %v280 = vunpack.c.l.b16 %v189
        %v281 = vunpack.c.l.b16 %v190
        %v282 = vunpack.c.l.b16 %v191
        %v283 = vunpack.c.l.b16 %v192
        %v284 = vunpack.c.l.b16 %v193
        %v285 = vunpack.c.l.b16 %v194
        %v286 = vunpack.c.l.b16 %v195
        %v287 = vunpack.c.l.b16 %v196
        %v288 = vunpack.c.l.b16 %v197
        %v289 = vunpack.c.l.b16 %v198
        %v290 = vunpack.c.l.b16 %v199
        %v291 = vunpack.c.l.b16 %v200
        %v292 = vunpack.c.l.b16 %v201
        %v293 = vunpack.c.l.b16 %v202
        %v294 = vunpack.c.l.b16 %v203
        %v295 = vunpack.c.l.b16 %v204
        %v296 = vpack.c.b16 %v265, %v264
        %v297 = vpack.c.b16 %v267, %v266
        %v298 = vpack.c.b16 %v269, %v268
        %v299 = vpack.c.b16 %v271, %v270
        %v300 = vpack.c.b16 %v273, %v272
        %v301 = vpack.c.b16 %v275, %v274
        %v302 = vpack.c.b16 %v277, %v276
        %v303 = vpack.c.b16 %v279, %v278
        %v304 = vpack.c.b16 %v281, %v280
        %v305 = vpack.c.b16 %v283, %v282
        %v306 = vpack.c.b16 %v285, %v284
        %v307 = vpack.c.b16 %v287, %v286
        %v308 = vpack.c.b16 %v289, %v288
        %v309 = vpack.c.b16 %v291, %v290
        %v310 = vpack.c.b16 %v293, %v292
        %v311 = vpack.c.b16 %v295, %v294
        %v322 = vunpack.c.l.b16 %v205
        %v323 = vunpack.c.h.b16 %v205
        %v324 = vunpack.c.l.b16 %v206
        %v325 = vunpack.c.l.b16 %v207
        %v326 = vunpack.c.h.b16 %v207
        %v327 = vunpack.c.l.b16 %v208
        %v328 = vunpack.c.l.b16 %v209
        %v329 = vunpack.c.h.b16 %v209
        %v330 = vunpack.c.l.b16 %v210
        %v331 = vunpack.c.l.b16 %v211
        %v332 = vunpack.c.h.b16 %v211
        %v333 = vunpack.c.l.b16 %v212
        %v334 = vunpack.c.l.b16 %v213
        %v335 = vunpack.c.h.b16 %v213
        %v336 = vunpack.c.l.b16 %v214
        %v337 = vpack.c.b16 %v325, %v322
        %v338 = vpack.c.b16 %v326, %v323
        %v339 = vpack.c.b16 %v327, %v324
        %v340 = vpack.c.b16 %v331, %v328
        %v341 = vpack.c.b16 %v332, %v329
        %v342 = vpack.c.b16 %v333, %v330
        %v343 = vpack.c.b16 %v334, %v334
        %v344 = vpack.c.b16 %v335, %v335
        %v345 = vpack.c.b16 %v336, %v336
        %vm352 = vcmask 293888
        %v354 = vsel %vm352, %v296, 0
        %v357 = vsel %vm352, %v297, 0
        %v360 = vsel %vm352, %v298, 0
        %v363 = vsel %vm352, %v299, 0
        %v366 = vsel %vm352, %v300, 0
        %v369 = vsel %vm352, %v301, 0
        %v372 = vsel %vm352, %v302, 0
        %v375 = vsel %vm352, %v303, 0
        %v378 = vsel %vm352, %v304, 0
        %v381 = vsel %vm352, %v305, 0
        %v384 = vsel %vm352, %v306, 0
        %v387 = vsel %vm352, %v307, 0
        %v390 = vsel %vm352, %v308, 0
        %v393 = vsel %vm352, %v309, 0
        %v396 = vsel %vm352, %v310, 0
        %v399 = vsel %vm352, %v311, 0
        %vm401 = vcmask 1041408
        %v403 = vsel %vm401, %v343, 0
        %v406 = vsel %vm401, %v344, 0
        %v409 = vsel %vm401, %v345, 0
        %411 = vmatprep.subr.bf16.mxu0 0
        %412 = vmatpush1.bf16.msra.mxu0 0
        %413 = vmatprep.subr.bf16.mxu0 0
        %414 = vmatpush1.bf16.msra.mxu0 0
        %415 = vmatprep.subr.bf16.mxu0 0
        %416 = vmatpush1.bf16.msra.mxu0 0
        %417 = vmatprep.subr.bf16.mxu0 0
        %418 = vmatpush1.bf16.msra.mxu0 0
        %419 = vmatprep.subr.bf16.mxu0 0
        %420 = vmatpush1.bf16.msra.mxu0 0
        %421 = vmatprep.subr.bf16.mxu0 %v406
        %422 = vmatpush1.bf16.msra.mxu0 %v403
        %423 = vmatprep.subr.bf16.mxu0 %v341
        %424 = vmatpush1.bf16.msra.mxu0 %v340
        %425 = vmatprep.subr.bf16.mxu0 %v338
        %426 = vmatpush1.bf16.msra.mxu0 %v337
        %427 = vmatprep.subr.bf16.mxu0 0
        %428 = vmatpush2.bf16.msra.mxu0 0
        %429 = vmatprep.subr.bf16.mxu0 0
        %430 = vmatpush2.bf16.msra.mxu0 0
        %431 = vmatprep.subr.bf16.mxu0 0
        %432 = vmatpush2.bf16.msra.mxu0 0
        %433 = vmatprep.subr.bf16.mxu0 0
        %434 = vmatpush2.bf16.msra.mxu0 0
        %435 = vmatprep.subr.bf16.mxu0 0
        %436 = vmatpush2.bf16.msra.mxu0 0
        %437 = vmatprep.subr.bf16.mxu0 0
        %438 = vmatpush2.bf16.msra.mxu0 0
        %439 = vmatprep.subr.bf16.mxu0 0
        %440 = vmatpush2.bf16.msra.mxu0 0
        %441 = vmatprep.subr.bf16.mxu0 0
        %442 = vmatpush2.bf16.msra.mxu0 0
        %443 = vmatprep.mubr.bf16.mxu0 0
        %444 = vmatmul.mubr.bf16.gmra.mxu0 %v354
        %v445 = vpop.f32.mrf.mxu0
        %v446 = vadd.f32 %v220, %v445
        %v447 = vpop.f32.mrf.mxu0
        %v448 = vadd.f32 %v224, %v447
        %v449 = vpop.f32.mrf.mxu0
        %v450 = vadd.f32 %v220, %v449
        %v451 = vpop.f32.mrf.mxu0
        %v452 = vadd.f32 %v224, %v451
        %453 = vmatprep.mubr.bf16.mxu0 0
        %454 = vmatmul.mubr.bf16.gmra.mxu0 %v357
        %v455 = vpop.f32.mrf.mxu0
        %v456 = vadd.f32 %v220, %v455
        %v457 = vpop.f32.mrf.mxu0
        %v458 = vadd.f32 %v224, %v457
        %v459 = vpop.f32.mrf.mxu0
        %v460 = vadd.f32 %v220, %v459
        %v461 = vpop.f32.mrf.mxu0
        %v462 = vadd.f32 %v224, %v461
        %463 = vmatprep.mubr.bf16.mxu0 0
        %464 = vmatmul.mubr.bf16.gmra.mxu0 %v360
        %v465 = vpop.f32.mrf.mxu0
        %v466 = vadd.f32 %v220, %v465
        %v467 = vpop.f32.mrf.mxu0
        %v468 = vadd.f32 %v224, %v467
        %v469 = vpop.f32.mrf.mxu0
        %v470 = vadd.f32 %v220, %v469
        %v471 = vpop.f32.mrf.mxu0
        %v472 = vadd.f32 %v224, %v471
        %473 = vmatprep.mubr.bf16.mxu0 0
        %474 = vmatmul.mubr.bf16.gmra.mxu0 %v363
        %v475 = vpop.f32.mrf.mxu0
        %v476 = vadd.f32 %v220, %v475
        %v477 = vpop.f32.mrf.mxu0
        %v478 = vadd.f32 %v224, %v477
        %v479 = vpop.f32.mrf.mxu0
        %v480 = vadd.f32 %v220, %v479
        %v481 = vpop.f32.mrf.mxu0
        %v482 = vadd.f32 %v224, %v481
        %483 = vmatprep.mubr.bf16.mxu0 0
        %484 = vmatmul.mubr.bf16.gmra.mxu0 %v366
        %v485 = vpop.f32.mrf.mxu0
        %v486 = vadd.f32 %v220, %v485
        %v487 = vpop.f32.mrf.mxu0
        %v488 = vadd.f32 %v224, %v487
        %v489 = vpop.f32.mrf.mxu0
        %v490 = vadd.f32 %v220, %v489
        %v491 = vpop.f32.mrf.mxu0
        %v492 = vadd.f32 %v224, %v491
        %493 = vmatprep.mubr.bf16.mxu0 0
        %494 = vmatmul.mubr.bf16.gmra.mxu0 %v369
        %v495 = vpop.f32.mrf.mxu0
        %v496 = vadd.f32 %v220, %v495
        %v497 = vpop.f32.mrf.mxu0
        %v498 = vadd.f32 %v224, %v497
        %v499 = vpop.f32.mrf.mxu0
        %v500 = vadd.f32 %v220, %v499
        %v501 = vpop.f32.mrf.mxu0
        %v502 = vadd.f32 %v224, %v501
        %503 = vmatprep.mubr.bf16.mxu0 0
        %504 = vmatmul.mubr.bf16.gmra.mxu0 %v372
        %v505 = vpop.f32.mrf.mxu0
        %v506 = vadd.f32 %v220, %v505
        %v507 = vpop.f32.mrf.mxu0
        %v508 = vadd.f32 %v224, %v507
        %v509 = vpop.f32.mrf.mxu0
        %v510 = vadd.f32 %v220, %v509
        %v511 = vpop.f32.mrf.mxu0
        %v512 = vadd.f32 %v224, %v511
        %513 = vmatprep.mubr.bf16.mxu0 0
        %514 = vmatmul.mubr.bf16.gmra.mxu0 %v375
        %v515 = vpop.f32.mrf.mxu0
        %v516 = vadd.f32 %v220, %v515
        %v517 = vpop.f32.mrf.mxu0
        %v518 = vadd.f32 %v224, %v517
        %v519 = vpop.f32.mrf.mxu0
        %v520 = vadd.f32 %v220, %v519
        %v521 = vpop.f32.mrf.mxu0
        %v522 = vadd.f32 %v224, %v521
        %523 = vmatprep.mubr.bf16.mxu0 0
        %524 = vmatmul.mubr.bf16.gmra.mxu0 %v378
        %v525 = vpop.f32.mrf.mxu0
        %v526 = vadd.f32 %v220, %v525
        %v527 = vpop.f32.mrf.mxu0
        %v528 = vadd.f32 %v224, %v527
        %v529 = vpop.f32.mrf.mxu0
        %v530 = vadd.f32 %v220, %v529
        %v531 = vpop.f32.mrf.mxu0
        %v532 = vadd.f32 %v224, %v531
        %533 = vmatprep.mubr.bf16.mxu0 0
        %534 = vmatmul.mubr.bf16.gmra.mxu0 %v381
        %v535 = vpop.f32.mrf.mxu0
        %v536 = vadd.f32 %v220, %v535
        %v537 = vpop.f32.mrf.mxu0
        %v538 = vadd.f32 %v224, %v537
        %v539 = vpop.f32.mrf.mxu0
        %v540 = vadd.f32 %v220, %v539
        %v541 = vpop.f32.mrf.mxu0
        %v542 = vadd.f32 %v224, %v541
        %543 = vmatprep.mubr.bf16.mxu0 0
        %544 = vmatmul.mubr.bf16.gmra.mxu0 %v384
        %v545 = vpop.f32.mrf.mxu0
        %v546 = vadd.f32 %v220, %v545
        %v547 = vpop.f32.mrf.mxu0
        %v548 = vadd.f32 %v224, %v547
        %v549 = vpop.f32.mrf.mxu0
        %v550 = vadd.f32 %v220, %v549
        %v551 = vpop.f32.mrf.mxu0
        %v552 = vadd.f32 %v224, %v551
        %553 = vmatprep.mubr.bf16.mxu0 0
        %554 = vmatmul.mubr.bf16.gmra.mxu0 %v387
        %v555 = vpop.f32.mrf.mxu0
        %v556 = vadd.f32 %v220, %v555
        %v557 = vpop.f32.mrf.mxu0
        %v558 = vadd.f32 %v224, %v557
        %v559 = vpop.f32.mrf.mxu0
        %v560 = vadd.f32 %v220, %v559
        %v561 = vpop.f32.mrf.mxu0
        %v562 = vadd.f32 %v224, %v561
        %563 = vmatprep.mubr.bf16.mxu0 0
        %564 = vmatmul.mubr.bf16.gmra.mxu0 %v390
        %v565 = vpop.f32.mrf.mxu0
        %v566 = vadd.f32 %v220, %v565
        %v567 = vpop.f32.mrf.mxu0
        %v568 = vadd.f32 %v224, %v567
        %v569 = vpop.f32.mrf.mxu0
        %v570 = vadd.f32 %v220, %v569
        %v571 = vpop.f32.mrf.mxu0
        %v572 = vadd.f32 %v224, %v571
        %573 = vmatprep.mubr.bf16.mxu0 0
        %574 = vmatmul.mubr.bf16.gmra.mxu0 %v393
        %v575 = vpop.f32.mrf.mxu0
        %v576 = vadd.f32 %v220, %v575
        %v577 = vpop.f32.mrf.mxu0
        %v578 = vadd.f32 %v224, %v577
        %v579 = vpop.f32.mrf.mxu0
        %v580 = vadd.f32 %v220, %v579
        %v581 = vpop.f32.mrf.mxu0
        %v582 = vadd.f32 %v224, %v581
        %583 = vmatprep.mubr.bf16.mxu0 0
        %584 = vmatmul.mubr.bf16.gmra.mxu0 %v396
        %v585 = vpop.f32.mrf.mxu0
        %v586 = vadd.f32 %v220, %v585
        %v587 = vpop.f32.mrf.mxu0
        %v588 = vadd.f32 %v224, %v587
        %v589 = vpop.f32.mrf.mxu0
        %v590 = vadd.f32 %v220, %v589
        %v591 = vpop.f32.mrf.mxu0
        %v592 = vadd.f32 %v224, %v591
        %593 = vmatprep.mubr.bf16.mxu0 0
        %594 = vmatmul.mubr.bf16.gmra.mxu0 %v399
        %v595 = vpop.f32.mrf.mxu0
        %v596 = vadd.f32 %v220, %v595
        %v597 = vpop.f32.mrf.mxu0
        %v598 = vadd.f32 %v224, %v597
        %v599 = vpop.f32.mrf.mxu0
        %v600 = vadd.f32 %v220, %v599
        %v601 = vpop.f32.mrf.mxu0
        %v602 = vadd.f32 %v224, %v601
        %603 = vdwg.mxu0
        %604 = vmatprep.subr.bf16.mxu0 0
        %605 = vmatpush1.bf16.msra.mxu0 0
        %606 = vmatprep.subr.bf16.mxu0 0
        %607 = vmatpush1.bf16.msra.mxu0 0
        %608 = vmatprep.subr.bf16.mxu0 0
        %609 = vmatpush1.bf16.msra.mxu0 0
        %610 = vmatprep.subr.bf16.mxu0 0
        %611 = vmatpush1.bf16.msra.mxu0 0
        %612 = vmatprep.subr.bf16.mxu0 0
        %613 = vmatpush1.bf16.msra.mxu0 0
        %614 = vmatprep.subr.bf16.mxu0 0
        %615 = vmatpush1.bf16.msra.mxu0 %v409
        %616 = vmatprep.subr.bf16.mxu0 0
        %617 = vmatpush1.bf16.msra.mxu0 %v342
        %618 = vmatprep.subr.bf16.mxu0 0
        %619 = vmatpush1.bf16.msra.mxu0 %v339
        %620 = vmatprep.subr.bf16.mxu0 0
        %621 = vmatpush2.bf16.msra.mxu0 0
        %622 = vmatprep.subr.bf16.mxu0 0
        %623 = vmatpush2.bf16.msra.mxu0 0
        %624 = vmatprep.subr.bf16.mxu0 0
        %625 = vmatpush2.bf16.msra.mxu0 0
        %626 = vmatprep.subr.bf16.mxu0 0
        %627 = vmatpush2.bf16.msra.mxu0 0
        %628 = vmatprep.subr.bf16.mxu0 0
        %629 = vmatpush2.bf16.msra.mxu0 0
        %630 = vmatprep.subr.bf16.mxu0 0
        %631 = vmatpush2.bf16.msra.mxu0 0
        %632 = vmatprep.subr.bf16.mxu0 0
        %633 = vmatpush2.bf16.msra.mxu0 0
        %634 = vmatprep.subr.bf16.mxu0 0
        %635 = vmatpush2.bf16.msra.mxu0 0
        %636 = vmatprep.mubr.bf16.mxu0 0
        %637 = vmatmul.mubr.bf16.gmra.mxu0 %v354
        %v638 = vpop.f32.mrf.mxu0
        %v639 = vadd.f32 %v228, %v638
        %v640 = vpop.f32.mrf.mxu0
        %v641 = vpop.f32.mrf.mxu0
        %v642 = vadd.f32 %v228, %v641
        %v643 = vpop.f32.mrf.mxu0
        %644 = vmatprep.mubr.bf16.mxu0 0
        %645 = vmatmul.mubr.bf16.gmra.mxu0 %v357
        %v646 = vpop.f32.mrf.mxu0
        %v647 = vadd.f32 %v228, %v646
        %v648 = vpop.f32.mrf.mxu0
        %v649 = vpop.f32.mrf.mxu0
        %v650 = vadd.f32 %v228, %v649
        %v651 = vpop.f32.mrf.mxu0
        %652 = vmatprep.mubr.bf16.mxu0 0
        %653 = vmatmul.mubr.bf16.gmra.mxu0 %v360
        %v654 = vpop.f32.mrf.mxu0
        %v655 = vadd.f32 %v228, %v654
        %v656 = vpop.f32.mrf.mxu0
        %v657 = vpop.f32.mrf.mxu0
        %v658 = vadd.f32 %v228, %v657
        %v659 = vpop.f32.mrf.mxu0
        %660 = vmatprep.mubr.bf16.mxu0 0
        %661 = vmatmul.mubr.bf16.gmra.mxu0 %v363
        %v662 = vpop.f32.mrf.mxu0
        %v663 = vadd.f32 %v228, %v662
        %v664 = vpop.f32.mrf.mxu0
        %v665 = vpop.f32.mrf.mxu0
        %v666 = vadd.f32 %v228, %v665
        %v667 = vpop.f32.mrf.mxu0
        %668 = vmatprep.mubr.bf16.mxu0 0
        %669 = vmatmul.mubr.bf16.gmra.mxu0 %v366
        %v670 = vpop.f32.mrf.mxu0
        %v671 = vadd.f32 %v228, %v670
        %v672 = vpop.f32.mrf.mxu0
        %v673 = vpop.f32.mrf.mxu0
        %v674 = vadd.f32 %v228, %v673
        %v675 = vpop.f32.mrf.mxu0
        %676 = vmatprep.mubr.bf16.mxu0 0
        %677 = vmatmul.mubr.bf16.gmra.mxu0 %v369
        %v678 = vpop.f32.mrf.mxu0
        %v679 = vadd.f32 %v228, %v678
        %v680 = vpop.f32.mrf.mxu0
        %v681 = vpop.f32.mrf.mxu0
        %v682 = vadd.f32 %v228, %v681
        %v683 = vpop.f32.mrf.mxu0
        %684 = vmatprep.mubr.bf16.mxu0 0
        %685 = vmatmul.mubr.bf16.gmra.mxu0 %v372
        %v686 = vpop.f32.mrf.mxu0
        %v687 = vadd.f32 %v228, %v686
        %v688 = vpop.f32.mrf.mxu0
        %v689 = vpop.f32.mrf.mxu0
        %v690 = vadd.f32 %v228, %v689
        %v691 = vpop.f32.mrf.mxu0
        %692 = vmatprep.mubr.bf16.mxu0 0
        %693 = vmatmul.mubr.bf16.gmra.mxu0 %v375
        %v694 = vpop.f32.mrf.mxu0
        %v695 = vadd.f32 %v228, %v694
        %v696 = vpop.f32.mrf.mxu0
        %v697 = vpop.f32.mrf.mxu0
        %v698 = vadd.f32 %v228, %v697
        %v699 = vpop.f32.mrf.mxu0
        %700 = vmatprep.mubr.bf16.mxu0 0
        %701 = vmatmul.mubr.bf16.gmra.mxu0 %v378
        %v702 = vpop.f32.mrf.mxu0
        %v703 = vadd.f32 %v228, %v702
        %v704 = vpop.f32.mrf.mxu0
        %v705 = vpop.f32.mrf.mxu0
        %v706 = vadd.f32 %v228, %v705
        %v707 = vpop.f32.mrf.mxu0
        %708 = vmatprep.mubr.bf16.mxu0 0
        %709 = vmatmul.mubr.bf16.gmra.mxu0 %v381
        %v710 = vpop.f32.mrf.mxu0
        %v711 = vadd.f32 %v228, %v710
        %v712 = vpop.f32.mrf.mxu0
        %v713 = vpop.f32.mrf.mxu0
        %v714 = vadd.f32 %v228, %v713
        %v715 = vpop.f32.mrf.mxu0
        %716 = vmatprep.mubr.bf16.mxu0 0
        %717 = vmatmul.mubr.bf16.gmra.mxu0 %v384
        %v718 = vpop.f32.mrf.mxu0
        %v719 = vadd.f32 %v228, %v718
        %v720 = vpop.f32.mrf.mxu0
        %v721 = vpop.f32.mrf.mxu0
        %v722 = vadd.f32 %v228, %v721
        %v723 = vpop.f32.mrf.mxu0
        %724 = vmatprep.mubr.bf16.mxu0 0
        %725 = vmatmul.mubr.bf16.gmra.mxu0 %v387
        %v726 = vpop.f32.mrf.mxu0
        %v727 = vadd.f32 %v228, %v726
        %v728 = vpop.f32.mrf.mxu0
        %v729 = vpop.f32.mrf.mxu0
        %v730 = vadd.f32 %v228, %v729
        %v731 = vpop.f32.mrf.mxu0
        %732 = vmatprep.mubr.bf16.mxu0 0
        %733 = vmatmul.mubr.bf16.gmra.mxu0 %v390
        %v734 = vpop.f32.mrf.mxu0
        %v735 = vadd.f32 %v228, %v734
        %v736 = vpop.f32.mrf.mxu0
        %v737 = vpop.f32.mrf.mxu0
        %v738 = vadd.f32 %v228, %v737
        %v739 = vpop.f32.mrf.mxu0
        %740 = vmatprep.mubr.bf16.mxu0 0
        %741 = vmatmul.mubr.bf16.gmra.mxu0 %v393
        %v742 = vpop.f32.mrf.mxu0
        %v743 = vadd.f32 %v228, %v742
        %v744 = vpop.f32.mrf.mxu0
        %v745 = vpop.f32.mrf.mxu0
        %v746 = vadd.f32 %v228, %v745
        %v747 = vpop.f32.mrf.mxu0
        %748 = vmatprep.mubr.bf16.mxu0 0
        %749 = vmatmul.mubr.bf16.gmra.mxu0 %v396
        %v750 = vpop.f32.mrf.mxu0
        %v751 = vadd.f32 %v228, %v750
        %v752 = vpop.f32.mrf.mxu0
        %v753 = vpop.f32.mrf.mxu0
        %v754 = vadd.f32 %v228, %v753
        %v755 = vpop.f32.mrf.mxu0
        %756 = vmatprep.mubr.bf16.mxu0 0
        %757 = vmatmul.mubr.bf16.gmra.mxu0 %v399
        %v758 = vpop.f32.mrf.mxu0
        %v759 = vadd.f32 %v228, %v758
        %v760 = vpop.f32.mrf.mxu0
        %v761 = vpop.f32.mrf.mxu0
        %v762 = vadd.f32 %v228, %v761
        %v763 = vpop.f32.mrf.mxu0
        %764 = vdwg.mxu0
        %765 = vst [vmem:[%s164] sm:$0xff] %v446
        %766 = vst [vmem:[%s164 + $0x8] sm:$0xff] %v448
        %767 = vst [vmem:[%s164 + $0x10] sm:$0xff] %v639
        %768 = vst [vmem:[%s164 + $0x18] sm:$0xff] %v450
        %769 = vst [vmem:[%s164 + $0x20] sm:$0xff] %v452
        %770 = vst [vmem:[%s164 + $0x28] sm:$0xff] %v642
        %771 = vst [vmem:[%s164 + $0x30] sm:$0xff] %v456
        %772 = vst [vmem:[%s164 + $0x38] sm:$0xff] %v458
        %773 = vst [vmem:[%s164 + $0x40] sm:$0xff] %v647
        %774 = vst [vmem:[%s164 + $0x48] sm:$0xff] %v460
        %775 = vst [vmem:[%s164 + $0x50] sm:$0xff] %v462
        %776 = vst [vmem:[%s164 + $0x58] sm:$0xff] %v650
        %777 = vst [vmem:[%s164 + $0x60] sm:$0xff] %v466
        %778 = vst [vmem:[%s164 + $0x68] sm:$0xff] %v468
        %779 = vst [vmem:[%s164 + $0x70] sm:$0xff] %v655
        %780 = vst [vmem:[%s164 + $0x78] sm:$0xff] %v470
        %781 = vst [vmem:[%s164 + $0x80] sm:$0xff] %v472
        %782 = vst [vmem:[%s164 + $0x88] sm:$0xff] %v658
        %783 = vst [vmem:[%s164 + $0x90] sm:$0xff] %v476
        %784 = vst [vmem:[%s164 + $0x98] sm:$0xff] %v478
        %785 = vst [vmem:[%s164 + $0xa0] sm:$0xff] %v663
        %786 = vst [vmem:[%s164 + $0xa8] sm:$0xff] %v480
        %787 = vst [vmem:[%s164 + $0xb0] sm:$0xff] %v482
        %788 = vst [vmem:[%s164 + $0xb8] sm:$0xff] %v666
        %789 = vst [vmem:[%s164 + $0xc0] sm:$0xff] %v486
        %790 = vst [vmem:[%s164 + $0xc8] sm:$0xff] %v488
        %791 = vst [vmem:[%s164 + $0xd0] sm:$0xff] %v671
        %792 = vst [vmem:[%s164 + $0xd8] sm:$0xff] %v490
        %793 = vst [vmem:[%s164 + $0xe0] sm:$0xff] %v492
        %794 = vst [vmem:[%s164 + $0xe8] sm:$0xff] %v674
        %795 = vst [vmem:[%s164 + $0xf0] sm:$0xff] %v496
        %796 = vst [vmem:[%s164 + $0xf8] sm:$0xff] %v498
        %797 = vst [vmem:[%s164 + $0x100] sm:$0xff] %v679
        %798 = vst [vmem:[%s164 + $0x108] sm:$0xff] %v500
        %799 = vst [vmem:[%s164 + $0x110] sm:$0xff] %v502
        %800 = vst [vmem:[%s164 + $0x118] sm:$0xff] %v682
        %801 = vst [vmem:[%s164 + $0x120] sm:$0xff] %v506
        %802 = vst [vmem:[%s164 + $0x128] sm:$0xff] %v508
        %803 = vst [vmem:[%s164 + $0x130] sm:$0xff] %v687
        %804 = vst [vmem:[%s164 + $0x138] sm:$0xff] %v510
        %805 = vst [vmem:[%s164 + $0x140] sm:$0xff] %v512
        %806 = vst [vmem:[%s164 + $0x148] sm:$0xff] %v690
        %807 = vst [vmem:[%s164 + $0x150] sm:$0xff] %v516
        %808 = vst [vmem:[%s164 + $0x158] sm:$0xff] %v518
        %809 = vst [vmem:[%s164 + $0x160] sm:$0xff] %v695
        %810 = vst [vmem:[%s164 + $0x168] sm:$0xff] %v520
        %811 = vst [vmem:[%s164 + $0x170] sm:$0xff] %v522
        %812 = vst [vmem:[%s164 + $0x178] sm:$0xff] %v698
        %813 = vst [vmem:[%s164 + $0x180] sm:$0xff] %v526
        %814 = vst [vmem:[%s164 + $0x188] sm:$0xff] %v528
        %815 = vst [vmem:[%s164 + $0x190] sm:$0xff] %v703
        %816 = vst [vmem:[%s164 + $0x198] sm:$0xff] %v530
        %817 = vst [vmem:[%s164 + $0x1a0] sm:$0xff] %v532
        %818 = vst [vmem:[%s164 + $0x1a8] sm:$0xff] %v706
        %819 = vst [vmem:[%s164 + $0x1b0] sm:$0xff] %v536
        %820 = vst [vmem:[%s164 + $0x1b8] sm:$0xff] %v538
        %821 = vst [vmem:[%s164 + $0x1c0] sm:$0xff] %v711
        %822 = vst [vmem:[%s164 + $0x1c8] sm:$0xff] %v540
        %823 = vst [vmem:[%s164 + $0x1d0] sm:$0xff] %v542
        %824 = vst [vmem:[%s164 + $0x1d8] sm:$0xff] %v714
        %825 = vst [vmem:[%s164 + $0x1e0] sm:$0xff] %v546
        %826 = vst [vmem:[%s164 + $0x1e8] sm:$0xff] %v548
        %827 = vst [vmem:[%s164 + $0x1f0] sm:$0xff] %v719
        %828 = vst [vmem:[%s164 + $0x1f8] sm:$0xff] %v550
        %829 = vst [vmem:[%s164 + $0x200] sm:$0xff] %v552
        %830 = vst [vmem:[%s164 + $0x208] sm:$0xff] %v722
        %831 = vst [vmem:[%s164 + $0x210] sm:$0xff] %v556
        %832 = vst [vmem:[%s164 + $0x218] sm:$0xff] %v558
        %833 = vst [vmem:[%s164 + $0x220] sm:$0xff] %v727
        %834 = vst [vmem:[%s164 + $0x228] sm:$0xff] %v560
        %835 = vst [vmem:[%s164 + $0x230] sm:$0xff] %v562
        %836 = vst [vmem:[%s164 + $0x238] sm:$0xff] %v730
        %837 = vst [vmem:[%s164 + $0x240] sm:$0xff] %v566
        %838 = vst [vmem:[%s164 + $0x248] sm:$0xff] %v568
        %839 = vst [vmem:[%s164 + $0x250] sm:$0xff] %v735
        %840 = vst [vmem:[%s164 + $0x258] sm:$0xff] %v570
        %841 = vst [vmem:[%s164 + $0x260] sm:$0xff] %v572
        %842 = vst [vmem:[%s164 + $0x268] sm:$0xff] %v738
        %843 = vst [vmem:[%s164 + $0x270] sm:$0xff] %v576
        %844 = vst [vmem:[%s164 + $0x278] sm:$0xff] %v578
        %845 = vst [vmem:[%s164 + $0x280] sm:$0xff] %v743
        %846 = vst [vmem:[%s164 + $0x288] sm:$0xff] %v580
        %847 = vst [vmem:[%s164 + $0x290] sm:$0xff] %v582
        %848 = vst [vmem:[%s164 + $0x298] sm:$0xff] %v746
        %849 = vst [vmem:[%s164 + $0x2a0] sm:$0xff] %v586
        %850 = vst [vmem:[%s164 + $0x2a8] sm:$0xff] %v588
        %851 = vst [vmem:[%s164 + $0x2b0] sm:$0xff] %v751
        %852 = vst [vmem:[%s164 + $0x2b8] sm:$0xff] %v590
        %853 = vst [vmem:[%s164 + $0x2c0] sm:$0xff] %v592
        %854 = vst [vmem:[%s164 + $0x2c8] sm:$0xff] %v754
        %855 = vst [vmem:[%s164 + $0x2d0] sm:$0xff] %v596
        %856 = vst [vmem:[%s164 + $0x2d8] sm:$0xff] %v598
        %857 = vst [vmem:[%s164 + $0x2e0] sm:$0xff] %v759
        %858 = vst [vmem:[%s164 + $0x2e8] sm:$0xff] %v600
        %859 = vst [vmem:[%s164 + $0x2f0] sm:$0xff] %v602
        %860 = vst [vmem:[%s164 + $0x2f8] sm:$0xff] %v762
        %s861 = sand.u32 %s93, 1
        %s862 = scalar_lea.sflag [#allocation3], %s861
        %s863 = sand.u32 %s93, 1
        %s864 = smul.addr %s863, 768
        %s865 = scalar_lea.vmem [#allocation2], %s864
        // Predicated region
        $region33: #{diffusion_forward.3} parent=31 // pred_check
          %p866 = pneg %p103
        $region34: #{diffusion_forward.3} parent=31 // pred_check_branch
          %868 = sbr.rel (%p866) target = $region36
        $region35: #{diffusion_forward.3} parent=31 // pred_region
          %s869 = smul.u32 32, %s17
          %s871 = ssub.s32 12288, 12288
          %872 = vsyncadd %s862, %s871
          %s873 = smul.addr %s869, 3
          %s874 = smul.addr %s873, 128
          %s875 = scalar_lea.hbm %s3, %s874
          %s876 = sshll.u32 %s865, 4
          %s877 = int_to_ptr.vmem [resolvable:$true] %s876
          %882 = dma.vmem_to_hbm [thread:$0]  %s877, 12288, %s875, %s862, 384, 384, 24
        $region36: #{diffusion_forward.3} parent=31 // pred_fallthru
          _
      $region32: #{diffusion_forward.3} parent=5 // pred_fallthru
        _
      %p883 = scmp.le.s32.totalorder 2, %s12
      // Predicated region
      $region37: #{diffusion_forward.3} parent=5 // pred_check
        %p884 = pneg %p883
      $region38: #{diffusion_forward.3} parent=5 // pred_check_branch
        %886 = sbr.rel (%p884) target = $region40
      $region39: #{diffusion_forward.3} parent=5 // pred_region
        %s887 = ssub.s32 %s12, 2
        // Predicated region
        $region41: #{diffusion_forward.3} parent=39 // pred_check
          %p888 = pneg %p109
        $region42: #{diffusion_forward.3} parent=39 // pred_check_branch
          %890 = sbr.rel (%p888) target = $region44
        $region43: #{diffusion_forward.3} parent=39 // pred_region
          %s891 = sand.u32 %s94, 1
          %s892 = scalar_lea.sflag [#allocation3], %s891
          %s893 = sand.u32 %s94, 1
          %s894 = smul.addr %s893, 768
          %s895 = scalar_lea.vmem [#allocation2], %s894
          %896 = dma.done %s892, 12288
        $region44: #{diffusion_forward.3} parent=39 // pred_fallthru
          _
      $region40: #{diffusion_forward.3} parent=5 // pred_fallthru
        _
    $region6: #{diffusion_forward.3} parent=1 // loop_footer
      %s16 = sadd.s32 1, %s12
    $region7: #{diffusion_forward.3} parent=1 // loop_footer_branch
      %11 = sbr.rel target = $region3
    $region8: #{diffusion_forward.3} parent=1 // loop_exit
      _
    %897 = vsyncpa [#allocation3], 1
    %s898 = scalar_lea.sflag [#allocation3], 1
    %899 = vsyncpa %s898, 1

// kernel: diffusion_forward.2
$region0: #{diffusion_forward.2}
  #allocation0 [shape = 'u32[]', space=smem, size = 0x4, offset = 0x4, fixed_abs, tag = 'smem constant byte address 0x4 - core index']
  #allocation1 [shape = 'u32[144,128]{1,0:T(1,128)}', space=vmem, size = 0x12000, scoped, tag = 'internal scratch']
  %s0 = inlined_call_operand.vmem [shape: bf16[16,320], index: 0, kind: input, shape index: {}]
  %s1 = inlined_call_operand.vmem [shape: bf16[320,1280], index: 1, kind: input, shape index: {}]
  %s2 = inlined_call_operand.vmem [shape: f32[1,1280], index: 2, kind: input, shape index: {}]
  %s3 = inlined_call_operand.vmem [shape: bf16[1280,1280], index: 3, kind: input, shape index: {}]
  %s4 = inlined_call_operand.vmem [shape: f32[1,1280], index: 4, kind: input, shape index: {}]
  %s5 = inlined_call_operand.vmem [shape: f32[16,1280], index: 5, kind: output, shape index: {}]
  %s6 = sld [smem:[#allocation0]]
  $region98: #{diffusion_forward.2} parent=0
    _
  %s8 = ssub.s32 1, %s6
  %s9 = scalar_select 0, %s8, %s6
  $region1: #{diffusion_forward.2} parent=0
    #allocation2 [shape = 'u8[3276800]{0}', space=vmem, size = 0x320000, scoped, tag = 'input window, operand 3']
    #allocation3 [shape = 'u8[81920]{0}', space=vmem, size = 0x14000, scoped, tag = 'output window, operand 0']
    loop: start=0, step=1, limit=4
    $region2: #{diffusion_forward.2} parent=1 // loop_pre_header
      _
    $region3: #{diffusion_forward.2} parent=1 // loop_header
      %s11 = sphi 0, %s15
      %p12 = scmp.ge.s32.totalorder %s11, 4
      %s19 = sphi 0, %s19
      %s21 = sphi 0, %s19
      %s22 = sphi 0, %s21
      %s36 = sphi 0, %s22
      %s40 = sphi 0, %s40
      %s42 = sphi 0, %s40
      %s43 = sphi 0, %s42
      %s57 = sphi 0, %s43
      %s61 = sphi 0, %s61
      %s63 = sphi 0, %s61
      %s64 = sphi 0, %s63
      %s78 = sphi 0, %s64
      %s84 = sphi 0, %s86
      %s87 = sphi 0, %s84
      %s88 = sphi 0, %s87
      %s104 = sphi 0, %s88
      %s110 = sphi 0, %s112
      %s113 = sphi 0, %s110
      %s114 = sphi 0, %s113
      %s130 = sphi 0, %s114
      %s136 = sphi 0, %s138
      %s139 = sphi 0, %s136
      %s140 = sphi 0, %s139
      %s156 = sphi 0, %s140
    $region4: #{diffusion_forward.2} parent=1 // loop_header_branch
      %14 = sbr.rel (%p12) target = $region8
    $region5: #{diffusion_forward.2} parent=1 // loop_body
      %s16 = ssub.s32 %s11, 1
      %s17 = ssub.s32 %s11, 2
      %s18 = sadd.s32 %s11, 1
      %s20 = sadd.s32 %s19, 1
      %p23 = scmp.eq.s32.totalorder %s11, 1
      %p24 = scmp.ne.s32.totalorder %s19, %s21
      %p25 = scmp.eq.s32.totalorder %s11, 0
      %p26 = por %p24, %p25
      %p27 = scmp.ne.s32.totalorder %s19, %s21
      %p28 = scmp.eq.s32.totalorder %s16, 1
      %p29 = por %p27, %p28
      %p30 = scmp.ne.s32.totalorder %s21, %s22
      %p31 = scmp.eq.s32.totalorder %s16, 0
      %p32 = por %p30, %p31
      %p33 = scmp.ne.s32.totalorder %s21, %s22
      %p34 = scmp.eq.s32.totalorder %s17, 1
      %p35 = por %p33, %p34
      %p37 = scmp.ne.s32.totalorder %s22, %s36
      %p38 = scmp.eq.s32.totalorder %s17, 0
      %p39 = por %p37, %p38
      %s41 = sadd.s32 %s40, 1
      %p44 = scmp.eq.s32.totalorder %s11, 1
      %p45 = scmp.ne.s32.totalorder %s40, %s42
      %p46 = scmp.eq.s32.totalorder %s11, 0
      %p47 = por %p45, %p46
      %p48 = scmp.ne.s32.totalorder %s40, %s42
      %p49 = scmp.eq.s32.totalorder %s16, 1
      %p50 = por %p48, %p49
      %p51 = scmp.ne.s32.totalorder %s42, %s43
      %p52 = scmp.eq.s32.totalorder %s16, 0
      %p53 = por %p51, %p52
      %p54 = scmp.ne.s32.totalorder %s42, %s43
      %p55 = scmp.eq.s32.totalorder %s17, 1
      %p56 = por %p54, %p55
      %p58 = scmp.ne.s32.totalorder %s43, %s57
      %p59 = scmp.eq.s32.totalorder %s17, 0
      %p60 = por %p58, %p59
      %s62 = sadd.s32 %s61, 1
      %p65 = scmp.eq.s32.totalorder %s11, 1
      %p66 = scmp.ne.s32.totalorder %s61, %s63
      %p67 = scmp.eq.s32.totalorder %s11, 0
      %p68 = por %p66, %p67
      %p69 = scmp.ne.s32.totalorder %s61, %s63
      %p70 = scmp.eq.s32.totalorder %s16, 1
      %p71 = por %p69, %p70
      %p72 = scmp.ne.s32.totalorder %s63, %s64
      %p73 = scmp.eq.s32.totalorder %s16, 0
      %p74 = por %p72, %p73
      %p75 = scmp.ne.s32.totalorder %s63, %s64
      %p76 = scmp.eq.s32.totalorder %s17, 1
      %p77 = por %p75, %p76
      %p79 = scmp.ne.s32.totalorder %s64, %s78
      %p80 = scmp.eq.s32.totalorder %s17, 0
      %p81 = por %p79, %p80
      %s82 = ssub.s32 %s11, %s18
      %p83 = scmp.eq.s32.totalorder %s82, 0
      %s85 = sadd.s32 %s84, 1
      %s86 = scalar_select %p83, %s84, %s85
      %p89 = pneg %p83
      %p90 = scmp.eq.s32.totalorder %s11, 1
      %p91 = por %p89, %p90
      %p92 = scmp.ne.s32.totalorder %s84, %s87
      %p93 = scmp.eq.s32.totalorder %s11, 0
      %p94 = por %p92, %p93
      %p95 = scmp.ne.s32.totalorder %s84, %s87
      %p96 = scmp.eq.s32.totalorder %s16, 1
      %p97 = por %p95, %p96
      %p98 = scmp.ne.s32.totalorder %s87, %s88
      %p99 = scmp.eq.s32.totalorder %s16, 0
      %p100 = por %p98, %p99
      %p101 = scmp.ne.s32.totalorder %s87, %s88
      %p102 = scmp.eq.s32.totalorder %s17, 1
      %p103 = por %p101, %p102
      %p105 = scmp.ne.s32.totalorder %s88, %s104
      %p106 = scmp.eq.s32.totalorder %s17, 0
      %p107 = por %p105, %p106
      %s108 = ssub.s32 %s11, %s18
      %p109 = scmp.eq.s32.totalorder %s108, 0
      %s111 = sadd.s32 %s110, 1
      %s112 = scalar_select %p109, %s110, %s111
      %p115 = pneg %p109
      %p116 = scmp.eq.s32.totalorder %s11, 1
      %p117 = por %p115, %p116
      %p118 = scmp.ne.s32.totalorder %s110, %s113
      %p119 = scmp.eq.s32.totalorder %s11, 0
      %p120 = por %p118, %p119
      %p121 = scmp.ne.s32.totalorder %s110, %s113
      %p122 = scmp.eq.s32.totalorder %s16, 1
      %p123 = por %p121, %p122
      %p124 = scmp.ne.s32.totalorder %s113, %s114
      %p125 = scmp.eq.s32.totalorder %s16, 0
      %p126 = por %p124, %p125
      %p127 = scmp.ne.s32.totalorder %s113, %s114
      %p128 = scmp.eq.s32.totalorder %s17, 1
      %p129 = por %p127, %p128
      %p131 = scmp.ne.s32.totalorder %s114, %s130
      %p132 = scmp.eq.s32.totalorder %s17, 0
      %p133 = por %p131, %p132
      %s134 = ssub.s32 %s11, %s18
      %p135 = scmp.eq.s32.totalorder %s134, 0
      %s137 = sadd.s32 %s136, 1
      %s138 = scalar_select %p135, %s136, %s137
      %p141 = pneg %p135
      %p142 = scmp.eq.s32.totalorder %s11, 1
      %p143 = por %p141, %p142
      %p144 = scmp.ne.s32.totalorder %s136, %s139
      %p145 = scmp.eq.s32.totalorder %s11, 0
      %p146 = por %p144, %p145
      %p147 = scmp.ne.s32.totalorder %s136, %s139
      %p148 = scmp.eq.s32.totalorder %s16, 1
      %p149 = por %p147, %p148
      %p150 = scmp.ne.s32.totalorder %s139, %s140
      %p151 = scmp.eq.s32.totalorder %s16, 0
      %p152 = por %p150, %p151
      %p153 = scmp.ne.s32.totalorder %s139, %s140
      %p154 = scmp.eq.s32.totalorder %s17, 1
      %p155 = por %p153, %p154
      %p157 = scmp.ne.s32.totalorder %s140, %s156
      %p158 = scmp.eq.s32.totalorder %s17, 0
      %p159 = por %p157, %p158
      %p160 = scmp.le.s32.totalorder 1, %s11
      %p161 = scmp.lt.s32.totalorder %s11, 3
      %p162 = pnand %p160, %p161
      %p163 = pneg %p162
      // Predicated region
      $region9: #{diffusion_forward.2} parent=5 // pred_check
        _
      $region10: #{diffusion_forward.2} parent=5 // pred_check_branch
        %165 = sbr.rel (%p162) target = $region12
      $region11: #{diffusion_forward.2} parent=5 // pred_region
        %s166 = ssub.s32 %s11, 1
        // Predicated region
        $region13: #{diffusion_forward.2} parent=11 // pred_check
          %p167 = pneg %p32
        $region14: #{diffusion_forward.2} parent=11 // pred_check_branch
          %169 = sbr.rel (%p167) target = $region16
        $region15: #{diffusion_forward.2} parent=11 // pred_region
          _
        $region16: #{diffusion_forward.2} parent=11 // pred_fallthru
          _
        // Predicated region
        $region17: #{diffusion_forward.2} parent=11 // pred_check
          %p170 = pneg %p53
        $region18: #{diffusion_forward.2} parent=11 // pred_check_branch
          %172 = sbr.rel (%p170) target = $region20
        $region19: #{diffusion_forward.2} parent=11 // pred_region
          _
        $region20: #{diffusion_forward.2} parent=11 // pred_fallthru
          _
        // Predicated region
        $region21: #{diffusion_forward.2} parent=11 // pred_check
          %p173 = pneg %p74
        $region22: #{diffusion_forward.2} parent=11 // pred_check_branch
          %175 = sbr.rel (%p173) target = $region24
        $region23: #{diffusion_forward.2} parent=11 // pred_region
          _
        $region24: #{diffusion_forward.2} parent=11 // pred_fallthru
          _
      $region12: #{diffusion_forward.2} parent=5 // pred_fallthru
        _
      %p176 = scmp.lt.s32.totalorder %s11, 2
      // Predicated region
      $region25: #{diffusion_forward.2} parent=5 // pred_check
        %p177 = pneg %p176
      $region26: #{diffusion_forward.2} parent=5 // pred_check_branch
        %179 = sbr.rel (%p177) target = $region28
      $region27: #{diffusion_forward.2} parent=5 // pred_region
        // Predicated region
        $region29: #{diffusion_forward.2} parent=27 // pred_check
          %p180 = pneg %p94
        $region30: #{diffusion_forward.2} parent=27 // pred_check_branch
          %182 = sbr.rel (%p180) target = $region32
        $region31: #{diffusion_forward.2} parent=27 // pred_region
          %s183 = sand.u32 %s84, 1
          %s184 = sand.u32 %s84, 1
          %s185 = smul.addr %s184, 3200
          %s186 = scalar_lea.vmem [#allocation2], %s185
          %s187 = smul.u32 5, %s11
          %s188 = smul.addr %s187, 4
          %s189 = scalar_lea.vmem %s3, %s188
          // Predicated region
          $region33: #{diffusion_forward.2} parent=31 // pred_check
            _
          $region34: #{diffusion_forward.2} parent=31 // pred_check_branch
            %191 = sbr.rel (0) target = $region36
          $region35: #{diffusion_forward.2} parent=31 // pred_region
            // Predicated region
            $region37: #{diffusion_forward.2} parent=35 // pred_check
              _
            $region38: #{diffusion_forward.2} parent=35 // pred_check_branch
              %193 = sbr.rel (0) target = $region40
            $region39: #{diffusion_forward.2} parent=35 // pred_region
              %s194 = scalar_lea.vmem %s189, 16
              %s195 = scalar_lea.vmem %s186, 16 [#allocation2]
              loop: start=0, step=1, limit=1
              $region41: #{diffusion_forward.2} parent=39 // loop_pre_header
                _
              $region42: #{diffusion_forward.2} parent=39 // loop_header
                %s197 = sphi 0, %s201
                %p198 = scmp.ge.s32.totalorder %s197, 1
                %s202 = sphi %s189, %s189
                %s203 = sphi %s186, %s186
              $region43: #{diffusion_forward.2} parent=39 // loop_header_branch
                %200 = sbr.rel (%p198) target = $region47
              $region44: #{diffusion_forward.2} parent=39 // loop_body
                %v204 = vld [vmem:[%s202] sm:$0xff]
                %205 = vst [vmem:[%s203] sm:$0xff] %v204
                %v206 = vld [vmem:[%s202 + $0x8] sm:$0xff]
                %207 = vst [vmem:[%s203 + $0x8] sm:$0xff] %v206
                %v208 = vld [vmem:[%s202 + $0x28] sm:$0xff]
                %209 = vst [vmem:[%s203 + $0x14] sm:$0xff] %v208
                %v210 = vld [vmem:[%s202 + $0x30] sm:$0xff]
                %211 = vst [vmem:[%s203 + $0x1c] sm:$0xff] %v210
                %v212 = vld [vmem:[%s202 + $0x50] sm:$0xff]
                %213 = vst [vmem:[%s203 + $0x28] sm:$0xff] %v212
                %v214 = vld [vmem:[%s202 + $0x58] sm:$0xff]
                %215 = vst [vmem:[%s203 + $0x30] sm:$0xff] %v214
                %v216 = vld [vmem:[%s202 + $0x78] sm:$0xff]
                %217 = vst [vmem:[%s203 + $0x3c] sm:$0xff] %v216
                %v218 = vld [vmem:[%s202 + $0x80] sm:$0xff]
                %219 = vst [vmem:[%s203 + $0x44] sm:$0xff] %v218
                %v220 = vld [vmem:[%s202 + $0xa0] sm:$0xff]
                %221 = vst [vmem:[%s203 + $0x50] sm:$0xff] %v220
                %v222 = vld [vmem:[%s202 + $0xa8] sm:$0xff]
                %223 = vst [vmem:[%s203 + $0x58] sm:$0xff] %v222
                %v224 = vld [vmem:[%s202 + $0xc8] sm:$0xff]
                %225 = vst [vmem:[%s203 + $0x64] sm:$0xff] %v224
                %v226 = vld [vmem:[%s202 + $0xd0] sm:$0xff]
                %227 = vst [vmem:[%s203 + $0x6c] sm:$0xff] %v226
                %v228 = vld [vmem:[%s202 + $0xf0] sm:$0xff]
                %229 = vst [vmem:[%s203 + $0x78] sm:$0xff] %v228
                %v230 = vld [vmem:[%s202 + $0xf8] sm:$0xff]
                %231 = vst [vmem:[%s203 + $0x80] sm:$0xff] %v230
                %v232 = vld [vmem:[%s202 + $0x118] sm:$0xff]
                %233 = vst [vmem:[%s203 + $0x8c] sm:$0xff] %v232
                %v234 = vld [vmem:[%s202 + $0x120] sm:$0xff]
                %235 = vst [vmem:[%s203 + $0x94] sm:$0xff] %v234
                %v236 = vld [vmem:[%s202 + $0x140] sm:$0xff]
                %237 = vst [vmem:[%s203 + $0xa0] sm:$0xff] %v236
                %v238 = vld [vmem:[%s202 + $0x148] sm:$0xff]
                %239 = vst [vmem:[%s203 + $0xa8] sm:$0xff] %v238
                %v240 = vld [vmem:[%s202 + $0x168] sm:$0xff]
                %241 = vst [vmem:[%s203 + $0xb4] sm:$0xff] %v240
                %v242 = vld [vmem:[%s202 + $0x170] sm:$0xff]
                %243 = vst [vmem:[%s203 + $0xbc] sm:$0xff] %v242
                %v244 = vld [vmem:[%s202 + $0x190] sm:$0xff]
                %245 = vst [vmem:[%s203 + $0xc8] sm:$0xff] %v244
                %v246 = vld [vmem:[%s202 + $0x198] sm:$0xff]
                %247 = vst [vmem:[%s203 + $0xd0] sm:$0xff] %v246
                %v248 = vld [vmem:[%s202 + $0x1b8] sm:$0xff]
                %249 = vst [vmem:[%s203 + $0xdc] sm:$0xff] %v248
                %v250 = vld [vmem:[%s202 + $0x1c0] sm:$0xff]
                %251 = vst [vmem:[%s203 + $0xe4] sm:$0xff] %v250
                %v252 = vld [vmem:[%s202 + $0x1e0] sm:$0xff]
                %253 = vst [vmem:[%s203 + $0xf0] sm:$0xff] %v252
                %v254 = vld [vmem:[%s202 + $0x1e8] sm:$0xff]
                %255 = vst [vmem:[%s203 + $0xf8] sm:$0xff] %v254
                %v256 = vld [vmem:[%s202 + $0x208] sm:$0xff]
                %257 = vst [vmem:[%s203 + $0x104] sm:$0xff] %v256
                %v258 = vld [vmem:[%s202 + $0x210] sm:$0xff]
                %259 = vst [vmem:[%s203 + $0x10c] sm:$0xff] %v258
                %v260 = vld [vmem:[%s202 + $0x230] sm:$0xff]
                %261 = vst [vmem:[%s203 + $0x118] sm:$0xff] %v260
                %v262 = vld [vmem:[%s202 + $0x238] sm:$0xff]
                %263 = vst [vmem:[%s203 + $0x120] sm:$0xff] %v262
                %v264 = vld [vmem:[%s202 + $0x258] sm:$0xff]
                %265 = vst [vmem:[%s203 + $0x12c] sm:$0xff] %v264
                %v266 = vld [vmem:[%s202 + $0x260] sm:$0xff]
                %267 = vst [vmem:[%s203 + $0x134] sm:$0xff] %v266
                %v268 = vld [vmem:[%s202 + $0x280] sm:$0xff]
                %269 = vst [vmem:[%s203 + $0x140] sm:$0xff] %v268
                %v270 = vld [vmem:[%s202 + $0x288] sm:$0xff]
                %271 = vst [vmem:[%s203 + $0x148] sm:$0xff] %v270
                %v272 = vld [vmem:[%s202 + $0x2a8] sm:$0xff]
                %273 = vst [vmem:[%s203 + $0x154] sm:$0xff] %v272
                %v274 = vld [vmem:[%s202 + $0x2b0] sm:$0xff]
                %275 = vst [vmem:[%s203 + $0x15c] sm:$0xff] %v274
                %v276 = vld [vmem:[%s202 + $0x2d0] sm:$0xff]
                %277 = vst [vmem:[%s203 + $0x168] sm:$0xff] %v276
                %v278 = vld [vmem:[%s202 + $0x2d8] sm:$0xff]
                %279 = vst [vmem:[%s203 + $0x170] sm:$0xff] %v278
                %v280 = vld [vmem:[%s202 + $0x2f8] sm:$0xff]
                %281 = vst [vmem:[%s203 + $0x17c] sm:$0xff] %v280
                %v282 = vld [vmem:[%s202 + $0x300] sm:$0xff]
                %283 = vst [vmem:[%s203 + $0x184] sm:$0xff] %v282
                %v284 = vld [vmem:[%s202 + $0x320] sm:$0xff]
                %285 = vst [vmem:[%s203 + $0x190] sm:$0xff] %v284
                %v286 = vld [vmem:[%s202 + $0x328] sm:$0xff]
                %287 = vst [vmem:[%s203 + $0x198] sm:$0xff] %v286
                %v288 = vld [vmem:[%s202 + $0x348] sm:$0xff]
                %289 = vst [vmem:[%s203 + $0x1a4] sm:$0xff] %v288
                %v290 = vld [vmem:[%s202 + $0x350] sm:$0xff]
                %291 = vst [vmem:[%s203 + $0x1ac] sm:$0xff] %v290
                %v292 = vld [vmem:[%s202 + $0x370] sm:$0xff]
                %293 = vst [vmem:[%s203 + $0x1b8] sm:$0xff] %v292
                %v294 = vld [vmem:[%s202 + $0x378] sm:$0xff]
                %295 = vst [vmem:[%s203 + $0x1c0] sm:$0xff] %v294
                %v296 = vld [vmem:[%s202 + $0x398] sm:$0xff]
                %297 = vst [vmem:[%s203 + $0x1cc] sm:$0xff] %v296
                %v298 = vld [vmem:[%s202 + $0x3a0] sm:$0xff]
                %299 = vst [vmem:[%s203 + $0x1d4] sm:$0xff] %v298
                %v300 = vld [vmem:[%s202 + $0x3c0] sm:$0xff]
                %301 = vst [vmem:[%s203 + $0x1e0] sm:$0xff] %v300
                %v302 = vld [vmem:[%s202 + $0x3c8] sm:$0xff]
                %303 = vst [vmem:[%s203 + $0x1e8] sm:$0xff] %v302
                %v304 = vld [vmem:[%s202 + $0x3e8] sm:$0xff]
                %305 = vst [vmem:[%s203 + $0x1f4] sm:$0xff] %v304
                %v306 = vld [vmem:[%s202 + $0x3f0] sm:$0xff]
                %307 = vst [vmem:[%s203 + $0x1fc] sm:$0xff] %v306
                %v308 = vld [vmem:[%s202 + $0x410] sm:$0xff]
                %309 = vst [vmem:[%s203 + $0x208] sm:$0xff] %v308
                %v310 = vld [vmem:[%s202 + $0x418] sm:$0xff]
                %311 = vst [vmem:[%s203 + $0x210] sm:$0xff] %v310
                %v312 = vld [vmem:[%s202 + $0x438] sm:$0xff]
                %313 = vst [vmem:[%s203 + $0x21c] sm:$0xff] %v312
                %v314 = vld [vmem:[%s202 + $0x440] sm:$0xff]
                %315 = vst [vmem:[%s203 + $0x224] sm:$0xff] %v314
                %v316 = vld [vmem:[%s202 + $0x460] sm:$0xff]
                %317 = vst [vmem:[%s203 + $0x230] sm:$0xff] %v316
                %v318 = vld [vmem:[%s202 + $0x468] sm:$0xff]
                %319 = vst [vmem:[%s203 + $0x238] sm:$0xff] %v318
                %v320 = vld [vmem:[%s202 + $0x488] sm:$0xff]
                %321 = vst [vmem:[%s203 + $0x244] sm:$0xff] %v320
                %v322 = vld [vmem:[%s202 + $0x490] sm:$0xff]
                %323 = vst [vmem:[%s203 + $0x24c] sm:$0xff] %v322
                %v324 = vld [vmem:[%s202 + $0x4b0] sm:$0xff]
                %325 = vst [vmem:[%s203 + $0x258] sm:$0xff] %v324
                %v326 = vld [vmem:[%s202 + $0x4b8] sm:$0xff]
                %327 = vst [vmem:[%s203 + $0x260] sm:$0xff] %v326
                %v328 = vld [vmem:[%s202 + $0x4d8] sm:$0xff]
                %329 = vst [vmem:[%s203 + $0x26c] sm:$0xff] %v328
                %v330 = vld [vmem:[%s202 + $0x4e0] sm:$0xff]
                %331 = vst [vmem:[%s203 + $0x274] sm:$0xff] %v330
                %v332 = vld [vmem:[%s202 + $0x500] sm:$0xff]
                %333 = vst [vmem:[%s203 + $0x280] sm:$0xff] %v332
                %v334 = vld [vmem:[%s202 + $0x508] sm:$0xff]
                %335 = vst [vmem:[%s203 + $0x288] sm:$0xff] %v334
                %v336 = vld [vmem:[%s202 + $0x528] sm:$0xff]
                %337 = vst [vmem:[%s203 + $0x294] sm:$0xff] %v336
                %v338 = vld [vmem:[%s202 + $0x530] sm:$0xff]
                %339 = vst [vmem:[%s203 + $0x29c] sm:$0xff] %v338
                %v340 = vld [vmem:[%s202 + $0x550] sm:$0xff]
                %341 = vst [vmem:[%s203 + $0x2a8] sm:$0xff] %v340
                %v342 = vld [vmem:[%s202 + $0x558] sm:$0xff]
                %343 = vst [vmem:[%s203 + $0x2b0] sm:$0xff] %v342
                %v344 = vld [vmem:[%s202 + $0x578] sm:$0xff]
                %345 = vst [vmem:[%s203 + $0x2bc] sm:$0xff] %v344
                %v346 = vld [vmem:[%s202 + $0x580] sm:$0xff]
                %347 = vst [vmem:[%s203 + $0x2c4] sm:$0xff] %v346
                %v348 = vld [vmem:[%s202 + $0x5a0] sm:$0xff]
                %349 = vst [vmem:[%s203 + $0x2d0] sm:$0xff] %v348
                %v350 = vld [vmem:[%s202 + $0x5a8] sm:$0xff]
                %351 = vst [vmem:[%s203 + $0x2d8] sm:$0xff] %v350
                %v352 = vld [vmem:[%s202 + $0x5c8] sm:$0xff]
                %353 = vst [vmem:[%s203 + $0x2e4] sm:$0xff] %v352
                %v354 = vld [vmem:[%s202 + $0x5d0] sm:$0xff]
                %355 = vst [vmem:[%s203 + $0x2ec] sm:$0xff] %v354
                %v356 = vld [vmem:[%s202 + $0x5f0] sm:$0xff]
                %357 = vst [vmem:[%s203 + $0x2f8] sm:$0xff] %v356
                %v358 = vld [vmem:[%s202 + $0x5f8] sm:$0xff]
                %359 = vst [vmem:[%s203 + $0x300] sm:$0xff] %v358
                %v360 = vld [vmem:[%s202 + $0x618] sm:$0xff]
                %361 = vst [vmem:[%s203 + $0x30c] sm:$0xff] %v360
                %v362 = vld [vmem:[%s202 + $0x620] sm:$0xff]
                %363 = vst [vmem:[%s203 + $0x314] sm:$0xff] %v362
                %v364 = vld [vmem:[%s202 + $0x640] sm:$0xff]
                %365 = vst [vmem:[%s203 + $0x320] sm:$0xff] %v364
                %v366 = vld [vmem:[%s202 + $0x648] sm:$0xff]
                %367 = vst [vmem:[%s203 + $0x328] sm:$0xff] %v366
                %v368 = vld [vmem:[%s202 + $0x668] sm:$0xff]
                %369 = vst [vmem:[%s203 + $0x334] sm:$0xff] %v368
                %v370 = vld [vmem:[%s202 + $0x670] sm:$0xff]
                %371 = vst [vmem:[%s203 + $0x33c] sm:$0xff] %v370
                %v372 = vld [vmem:[%s202 + $0x690] sm:$0xff]
                %373 = vst [vmem:[%s203 + $0x348] sm:$0xff] %v372
                %v374 = vld [vmem:[%s202 + $0x698] sm:$0xff]
                %375 = vst [vmem:[%s203 + $0x350] sm:$0xff] %v374
                %v376 = vld [vmem:[%s202 + $0x6b8] sm:$0xff]
                %377 = vst [vmem:[%s203 + $0x35c] sm:$0xff] %v376
                %v378 = vld [vmem:[%s202 + $0x6c0] sm:$0xff]
                %379 = vst [vmem:[%s203 + $0x364] sm:$0xff] %v378
                %v380 = vld [vmem:[%s202 + $0x6e0] sm:$0xff]
                %381 = vst [vmem:[%s203 + $0x370] sm:$0xff] %v380
                %v382 = vld [vmem:[%s202 + $0x6e8] sm:$0xff]
                %383 = vst [vmem:[%s203 + $0x378] sm:$0xff] %v382
                %v384 = vld [vmem:[%s202 + $0x708] sm:$0xff]
                %385 = vst [vmem:[%s203 + $0x384] sm:$0xff] %v384
                %v386 = vld [vmem:[%s202 + $0x710] sm:$0xff]
                %387 = vst [vmem:[%s203 + $0x38c] sm:$0xff] %v386
                %v388 = vld [vmem:[%s202 + $0x730] sm:$0xff]
                %389 = vst [vmem:[%s203 + $0x398] sm:$0xff] %v388
                %v390 = vld [vmem:[%s202 + $0x738] sm:$0xff]
                %391 = vst [vmem:[%s203 + $0x3a0] sm:$0xff] %v390
                %v392 = vld [vmem:[%s202 + $0x758] sm:$0xff]
                %393 = vst [vmem:[%s203 + $0x3ac] sm:$0xff] %v392
                %v394 = vld [vmem:[%s202 + $0x760] sm:$0xff]
                %395 = vst [vmem:[%s203 + $0x3b4] sm:$0xff] %v394
                %v396 = vld [vmem:[%s202 + $0x780] sm:$0xff]
                %397 = vst [vmem:[%s203 + $0x3c0] sm:$0xff] %v396
                %v398 = vld [vmem:[%s202 + $0x788] sm:$0xff]
                %399 = vst [vmem:[%s203 + $0x3c8] sm:$0xff] %v398
                %v400 = vld [vmem:[%s202 + $0x7a8] sm:$0xff]
                %401 = vst [vmem:[%s203 + $0x3d4] sm:$0xff] %v400
                %v402 = vld [vmem:[%s202 + $0x7b0] sm:$0xff]
                %403 = vst [vmem:[%s203 + $0x3dc] sm:$0xff] %v402
                %v404 = vld [vmem:[%s202 + $0x7d0] sm:$0xff]
                %405 = vst [vmem:[%s203 + $0x3e8] sm:$0xff] %v404
                %v406 = vld [vmem:[%s202 + $0x7d8] sm:$0xff]
                %407 = vst [vmem:[%s203 + $0x3f0] sm:$0xff] %v406
                %v408 = vld [vmem:[%s202 + $0x7f8] sm:$0xff]
                %409 = vst [vmem:[%s203 + $0x3fc] sm:$0xff] %v408
                %v410 = vld [vmem:[%s202 + $0x800] sm:$0xff]
                %411 = vst [vmem:[%s203 + $0x404] sm:$0xff] %v410
                %v412 = vld [vmem:[%s202 + $0x820] sm:$0xff]
                %413 = vst [vmem:[%s203 + $0x410] sm:$0xff] %v412
                %v414 = vld [vmem:[%s202 + $0x828] sm:$0xff]
                %415 = vst [vmem:[%s203 + $0x418] sm:$0xff] %v414
                %v416 = vld [vmem:[%s202 + $0x848] sm:$0xff]
                %417 = vst [vmem:[%s203 + $0x424] sm:$0xff] %v416
                %v418 = vld [vmem:[%s202 + $0x850] sm:$0xff]
                %419 = vst [vmem:[%s203 + $0x42c] sm:$0xff] %v418
                %v420 = vld [vmem:[%s202 + $0x870] sm:$0xff]
                %421 = vst [vmem:[%s203 + $0x438] sm:$0xff] %v420
                %v422 = vld [vmem:[%s202 + $0x878] sm:$0xff]
                %423 = vst [vmem:[%s203 + $0x440] sm:$0xff] %v422
                %v424 = vld [vmem:[%s202 + $0x898] sm:$0xff]
                %425 = vst [vmem:[%s203 + $0x44c] sm:$0xff] %v424
                %v426 = vld [vmem:[%s202 + $0x8a0] sm:$0xff]
                %427 = vst [vmem:[%s203 + $0x454] sm:$0xff] %v426
                %v428 = vld [vmem:[%s202 + $0x8c0] sm:$0xff]
                %429 = vst [vmem:[%s203 + $0x460] sm:$0xff] %v428
                %v430 = vld [vmem:[%s202 + $0x8c8] sm:$0xff]
                %431 = vst [vmem:[%s203 + $0x468] sm:$0xff] %v430
                %v432 = vld [vmem:[%s202 + $0x8e8] sm:$0xff]
                %433 = vst [vmem:[%s203 + $0x474] sm:$0xff] %v432
                %v434 = vld [vmem:[%s202 + $0x8f0] sm:$0xff]
                %435 = vst [vmem:[%s203 + $0x47c] sm:$0xff] %v434
                %v436 = vld [vmem:[%s202 + $0x910] sm:$0xff]
                %437 = vst [vmem:[%s203 + $0x488] sm:$0xff] %v436
                %v438 = vld [vmem:[%s202 + $0x918] sm:$0xff]
                %439 = vst [vmem:[%s203 + $0x490] sm:$0xff] %v438
                %v440 = vld [vmem:[%s202 + $0x938] sm:$0xff]
                %441 = vst [vmem:[%s203 + $0x49c] sm:$0xff] %v440
                %v442 = vld [vmem:[%s202 + $0x940] sm:$0xff]
                %443 = vst [vmem:[%s203 + $0x4a4] sm:$0xff] %v442
                %v444 = vld [vmem:[%s202 + $0x960] sm:$0xff]
                %445 = vst [vmem:[%s203 + $0x4b0] sm:$0xff] %v444
                %v446 = vld [vmem:[%s202 + $0x968] sm:$0xff]
                %447 = vst [vmem:[%s203 + $0x4b8] sm:$0xff] %v446
                %v448 = vld [vmem:[%s202 + $0x988] sm:$0xff]
                %449 = vst [vmem:[%s203 + $0x4c4] sm:$0xff] %v448
                %v450 = vld [vmem:[%s202 + $0x990] sm:$0xff]
                %451 = vst [vmem:[%s203 + $0x4cc] sm:$0xff] %v450
                %v452 = vld [vmem:[%s202 + $0x9b0] sm:$0xff]
                %453 = vst [vmem:[%s203 + $0x4d8] sm:$0xff] %v452
                %v454 = vld [vmem:[%s202 + $0x9b8] sm:$0xff]
                %455 = vst [vmem:[%s203 + $0x4e0] sm:$0xff] %v454
                %v456 = vld [vmem:[%s202 + $0x9d8] sm:$0xff]
                %457 = vst [vmem:[%s203 + $0x4ec] sm:$0xff] %v456
                %v458 = vld [vmem:[%s202 + $0x9e0] sm:$0xff]
                %459 = vst [vmem:[%s203 + $0x4f4] sm:$0xff] %v458
                %v460 = vld [vmem:[%s202 + $0xa00] sm:$0xff]
                %461 = vst [vmem:[%s203 + $0x500] sm:$0xff] %v460
                %v462 = vld [vmem:[%s202 + $0xa08] sm:$0xff]
                %463 = vst [vmem:[%s203 + $0x508] sm:$0xff] %v462
                %v464 = vld [vmem:[%s202 + $0xa28] sm:$0xff]
                %465 = vst [vmem:[%s203 + $0x514] sm:$0xff] %v464
                %v466 = vld [vmem:[%s202 + $0xa30] sm:$0xff]
                %467 = vst [vmem:[%s203 + $0x51c] sm:$0xff] %v466
                %v468 = vld [vmem:[%s202 + $0xa50] sm:$0xff]
                %469 = vst [vmem:[%s203 + $0x528] sm:$0xff] %v468
                %v470 = vld [vmem:[%s202 + $0xa58] sm:$0xff]
                %471 = vst [vmem:[%s203 + $0x530] sm:$0xff] %v470
                %v472 = vld [vmem:[%s202 + $0xa78] sm:$0xff]
                %473 = vst [vmem:[%s203 + $0x53c] sm:$0xff] %v472
                %v474 = vld [vmem:[%s202 + $0xa80] sm:$0xff]
                %475 = vst [vmem:[%s203 + $0x544] sm:$0xff] %v474
                %v476 = vld [vmem:[%s202 + $0xaa0] sm:$0xff]
                %477 = vst [vmem:[%s203 + $0x550] sm:$0xff] %v476
                %v478 = vld [vmem:[%s202 + $0xaa8] sm:$0xff]
                %479 = vst [vmem:[%s203 + $0x558] sm:$0xff] %v478
                %v480 = vld [vmem:[%s202 + $0xac8] sm:$0xff]
                %481 = vst [vmem:[%s203 + $0x564] sm:$0xff] %v480
                %v482 = vld [vmem:[%s202 + $0xad0] sm:$0xff]
                %483 = vst [vmem:[%s203 + $0x56c] sm:$0xff] %v482
                %v484 = vld [vmem:[%s202 + $0xaf0] sm:$0xff]
                %485 = vst [vmem:[%s203 + $0x578] sm:$0xff] %v484
                %v486 = vld [vmem:[%s202 + $0xaf8] sm:$0xff]
                %487 = vst [vmem:[%s203 + $0x580] sm:$0xff] %v486
                %v488 = vld [vmem:[%s202 + $0xb18] sm:$0xff]
                %489 = vst [vmem:[%s203 + $0x58c] sm:$0xff] %v488
                %v490 = vld [vmem:[%s202 + $0xb20] sm:$0xff]
                %491 = vst [vmem:[%s203 + $0x594] sm:$0xff] %v490
                %v492 = vld [vmem:[%s202 + $0xb40] sm:$0xff]
                %493 = vst [vmem:[%s203 + $0x5a0] sm:$0xff] %v492
                %v494 = vld [vmem:[%s202 + $0xb48] sm:$0xff]
                %495 = vst [vmem:[%s203 + $0x5a8] sm:$0xff] %v494
                %v496 = vld [vmem:[%s202 + $0xb68] sm:$0xff]
                %497 = vst [vmem:[%s203 + $0x5b4] sm:$0xff] %v496
                %v498 = vld [vmem:[%s202 + $0xb70] sm:$0xff]
                %499 = vst [vmem:[%s203 + $0x5bc] sm:$0xff] %v498
                %v500 = vld [vmem:[%s202 + $0xb90] sm:$0xff]
                %501 = vst [vmem:[%s203 + $0x5c8] sm:$0xff] %v500
                %v502 = vld [vmem:[%s202 + $0xb98] sm:$0xff]
                %503 = vst [vmem:[%s203 + $0x5d0] sm:$0xff] %v502
                %v504 = vld [vmem:[%s202 + $0xbb8] sm:$0xff]
                %505 = vst [vmem:[%s203 + $0x5dc] sm:$0xff] %v504
                %v506 = vld [vmem:[%s202 + $0xbc0] sm:$0xff]
                %507 = vst [vmem:[%s203 + $0x5e4] sm:$0xff] %v506
                %v508 = vld [vmem:[%s202 + $0xbe0] sm:$0xff]
                %509 = vst [vmem:[%s203 + $0x5f0] sm:$0xff] %v508
                %v510 = vld [vmem:[%s202 + $0xbe8] sm:$0xff]
                %511 = vst [vmem:[%s203 + $0x5f8] sm:$0xff] %v510
                %v512 = vld [vmem:[%s202 + $0xc08] sm:$0xff]
                %513 = vst [vmem:[%s203 + $0x604] sm:$0xff] %v512
                %v514 = vld [vmem:[%s202 + $0xc10] sm:$0xff]
                %515 = vst [vmem:[%s203 + $0x60c] sm:$0xff] %v514
                %v516 = vld [vmem:[%s202 + $0xc30] sm:$0xff]
                %517 = vst [vmem:[%s203 + $0x618] sm:$0xff] %v516
                %v518 = vld [vmem:[%s202 + $0xc38] sm:$0xff]
                %519 = vst [vmem:[%s203 + $0x620] sm:$0xff] %v518
                %v520 = vld [vmem:[%s202 + $0xc58] sm:$0xff]
                %521 = vst [vmem:[%s203 + $0x62c] sm:$0xff] %v520
                %v522 = vld [vmem:[%s202 + $0xc60] sm:$0xff]
                %523 = vst [vmem:[%s203 + $0x634] sm:$0xff] %v522
                %v524 = vld [vmem:[%s202 + $0xc80] sm:$0xff]
                %525 = vst [vmem:[%s203 + $0x640] sm:$0xff] %v524
                %v526 = vld [vmem:[%s202 + $0xc88] sm:$0xff]
                %527 = vst [vmem:[%s203 + $0x648] sm:$0xff] %v526
                %v528 = vld [vmem:[%s202 + $0xca8] sm:$0xff]
                %529 = vst [vmem:[%s203 + $0x654] sm:$0xff] %v528
                %v530 = vld [vmem:[%s202 + $0xcb0] sm:$0xff]
                %531 = vst [vmem:[%s203 + $0x65c] sm:$0xff] %v530
                %v532 = vld [vmem:[%s202 + $0xcd0] sm:$0xff]
                %533 = vst [vmem:[%s203 + $0x668] sm:$0xff] %v532
                %v534 = vld [vmem:[%s202 + $0xcd8] sm:$0xff]
                %535 = vst [vmem:[%s203 + $0x670] sm:$0xff] %v534
                %v536 = vld [vmem:[%s202 + $0xcf8] sm:$0xff]
                %537 = vst [vmem:[%s203 + $0x67c] sm:$0xff] %v536
                %v538 = vld [vmem:[%s202 + $0xd00] sm:$0xff]
                %539 = vst [vmem:[%s203 + $0x684] sm:$0xff] %v538
                %v540 = vld [vmem:[%s202 + $0xd20] sm:$0xff]
                %541 = vst [vmem:[%s203 + $0x690] sm:$0xff] %v540
                %v542 = vld [vmem:[%s202 + $0xd28] sm:$0xff]
                %543 = vst [vmem:[%s203 + $0x698] sm:$0xff] %v542
                %v544 = vld [vmem:[%s202 + $0xd48] sm:$0xff]
                %545 = vst [vmem:[%s203 + $0x6a4] sm:$0xff] %v544
                %v546 = vld [vmem:[%s202 + $0xd50] sm:$0xff]
                %547 = vst [vmem:[%s203 + $0x6ac] sm:$0xff] %v546
                %v548 = vld [vmem:[%s202 + $0xd70] sm:$0xff]
                %549 = vst [vmem:[%s203 + $0x6b8] sm:$0xff] %v548
                %v550 = vld [vmem:[%s202 + $0xd78] sm:$0xff]
                %551 = vst [vmem:[%s203 + $0x6c0] sm:$0xff] %v550
                %v552 = vld [vmem:[%s202 + $0xd98] sm:$0xff]
                %553 = vst [vmem:[%s203 + $0x6cc] sm:$0xff] %v552
                %v554 = vld [vmem:[%s202 + $0xda0] sm:$0xff]
                %555 = vst [vmem:[%s203 + $0x6d4] sm:$0xff] %v554
                %v556 = vld [vmem:[%s202 + $0xdc0] sm:$0xff]
                %557 = vst [vmem:[%s203 + $0x6e0] sm:$0xff] %v556
                %v558 = vld [vmem:[%s202 + $0xdc8] sm:$0xff]
                %559 = vst [vmem:[%s203 + $0x6e8] sm:$0xff] %v558
                %v560 = vld [vmem:[%s202 + $0xde8] sm:$0xff]
                %561 = vst [vmem:[%s203 + $0x6f4] sm:$0xff] %v560
                %v562 = vld [vmem:[%s202 + $0xdf0] sm:$0xff]
                %563 = vst [vmem:[%s203 + $0x6fc] sm:$0xff] %v562
                %v564 = vld [vmem:[%s202 + $0xe10] sm:$0xff]
                %565 = vst [vmem:[%s203 + $0x708] sm:$0xff] %v564
                %v566 = vld [vmem:[%s202 + $0xe18] sm:$0xff]
                %567 = vst [vmem:[%s203 + $0x710] sm:$0xff] %v566
                %v568 = vld [vmem:[%s202 + $0xe38] sm:$0xff]
                %569 = vst [vmem:[%s203 + $0x71c] sm:$0xff] %v568
                %v570 = vld [vmem:[%s202 + $0xe40] sm:$0xff]
                %571 = vst [vmem:[%s203 + $0x724] sm:$0xff] %v570
                %v572 = vld [vmem:[%s202 + $0xe60] sm:$0xff]
                %573 = vst [vmem:[%s203 + $0x730] sm:$0xff] %v572
                %v574 = vld [vmem:[%s202 + $0xe68] sm:$0xff]
                %575 = vst [vmem:[%s203 + $0x738] sm:$0xff] %v574
                %v576 = vld [vmem:[%s202 + $0xe88] sm:$0xff]
                %577 = vst [vmem:[%s203 + $0x744] sm:$0xff] %v576
                %v578 = vld [vmem:[%s202 + $0xe90] sm:$0xff]
                %579 = vst [vmem:[%s203 + $0x74c] sm:$0xff] %v578
                %v580 = vld [vmem:[%s202 + $0xeb0] sm:$0xff]
                %581 = vst [vmem:[%s203 + $0x758] sm:$0xff] %v580
                %v582 = vld [vmem:[%s202 + $0xeb8] sm:$0xff]
                %583 = vst [vmem:[%s203 + $0x760] sm:$0xff] %v582
                %v584 = vld [vmem:[%s202 + $0xed8] sm:$0xff]
                %585 = vst [vmem:[%s203 + $0x76c] sm:$0xff] %v584
                %v586 = vld [vmem:[%s202 + $0xee0] sm:$0xff]
                %587 = vst [vmem:[%s203 + $0x774] sm:$0xff] %v586
                %v588 = vld [vmem:[%s202 + $0xf00] sm:$0xff]
                %589 = vst [vmem:[%s203 + $0x780] sm:$0xff] %v588
                %v590 = vld [vmem:[%s202 + $0xf08] sm:$0xff]
                %591 = vst [vmem:[%s203 + $0x788] sm:$0xff] %v590
                %v592 = vld [vmem:[%s202 + $0xf28] sm:$0xff]
                %593 = vst [vmem:[%s203 + $0x794] sm:$0xff] %v592
                %v594 = vld [vmem:[%s202 + $0xf30] sm:$0xff]
                %595 = vst [vmem:[%s203 + $0x79c] sm:$0xff] %v594
                %v596 = vld [vmem:[%s202 + $0xf50] sm:$0xff]
                %597 = vst [vmem:[%s203 + $0x7a8] sm:$0xff] %v596
                %v598 = vld [vmem:[%s202 + $0xf58] sm:$0xff]
                %599 = vst [vmem:[%s203 + $0x7b0] sm:$0xff] %v598
                %v600 = vld [vmem:[%s202 + $0xf78] sm:$0xff]
                %601 = vst [vmem:[%s203 + $0x7bc] sm:$0xff] %v600
                %v602 = vld [vmem:[%s202 + $0xf80] sm:$0xff]
                %603 = vst [vmem:[%s203 + $0x7c4] sm:$0xff] %v602
                %v604 = vld [vmem:[%s202 + $0xfa0] sm:$0xff]
                %605 = vst [vmem:[%s203 + $0x7d0] sm:$0xff] %v604
                %v606 = vld [vmem:[%s202 + $0xfa8] sm:$0xff]
                %607 = vst [vmem:[%s203 + $0x7d8] sm:$0xff] %v606
                %v608 = vld [vmem:[%s202 + $0xfc8] sm:$0xff]
                %609 = vst [vmem:[%s203 + $0x7e4] sm:$0xff] %v608
                %v610 = vld [vmem:[%s202 + $0xfd0] sm:$0xff]
                %611 = vst [vmem:[%s203 + $0x7ec] sm:$0xff] %v610
                %v612 = vld [vmem:[%s202 + $0xff0] sm:$0xff]
                %613 = vst [vmem:[%s203 + $0x7f8] sm:$0xff] %v612
                %v614 = vld [vmem:[%s202 + $0xff8] sm:$0xff]
                %615 = vst [vmem:[%s203 + $0x800] sm:$0xff] %v614
                %v616 = vld [vmem:[%s202 + $0x1018] sm:$0xff]
                %617 = vst [vmem:[%s203 + $0x80c] sm:$0xff] %v616
                %v618 = vld [vmem:[%s202 + $0x1020] sm:$0xff]
                %619 = vst [vmem:[%s203 + $0x814] sm:$0xff] %v618
                %v620 = vld [vmem:[%s202 + $0x1040] sm:$0xff]
                %621 = vst [vmem:[%s203 + $0x820] sm:$0xff] %v620
                %v622 = vld [vmem:[%s202 + $0x1048] sm:$0xff]
                %623 = vst [vmem:[%s203 + $0x828] sm:$0xff] %v622
                %v624 = vld [vmem:[%s202 + $0x1068] sm:$0xff]
                %625 = vst [vmem:[%s203 + $0x834] sm:$0xff] %v624
                %v626 = vld [vmem:[%s202 + $0x1070] sm:$0xff]
                %627 = vst [vmem:[%s203 + $0x83c] sm:$0xff] %v626
                %v628 = vld [vmem:[%s202 + $0x1090] sm:$0xff]
                %629 = vst [vmem:[%s203 + $0x848] sm:$0xff] %v628
                %v630 = vld [vmem:[%s202 + $0x1098] sm:$0xff]
                %631 = vst [vmem:[%s203 + $0x850] sm:$0xff] %v630
                %v632 = vld [vmem:[%s202 + $0x10b8] sm:$0xff]
                %633 = vst [vmem:[%s203 + $0x85c] sm:$0xff] %v632
                %v634 = vld [vmem:[%s202 + $0x10c0] sm:$0xff]
                %635 = vst [vmem:[%s203 + $0x864] sm:$0xff] %v634
                %v636 = vld [vmem:[%s202 + $0x10e0] sm:$0xff]
                %637 = vst [vmem:[%s203 + $0x870] sm:$0xff] %v636
                %v638 = vld [vmem:[%s202 + $0x10e8] sm:$0xff]
                %639 = vst [vmem:[%s203 + $0x878] sm:$0xff] %v638
                %v640 = vld [vmem:[%s202 + $0x1108] sm:$0xff]
                %641 = vst [vmem:[%s203 + $0x884] sm:$0xff] %v640
                %v642 = vld [vmem:[%s202 + $0x1110] sm:$0xff]
                %643 = vst [vmem:[%s203 + $0x88c] sm:$0xff] %v642
                %v644 = vld [vmem:[%s202 + $0x1130] sm:$0xff]
                %645 = vst [vmem:[%s203 + $0x898] sm:$0xff] %v644
                %v646 = vld [vmem:[%s202 + $0x1138] sm:$0xff]
                %647 = vst [vmem:[%s203 + $0x8a0] sm:$0xff] %v646
                %v648 = vld [vmem:[%s202 + $0x1158] sm:$0xff]
                %649 = vst [vmem:[%s203 + $0x8ac] sm:$0xff] %v648
                %v650 = vld [vmem:[%s202 + $0x1160] sm:$0xff]
                %651 = vst [vmem:[%s203 + $0x8b4] sm:$0xff] %v650
                %v652 = vld [vmem:[%s202 + $0x1180] sm:$0xff]
                %653 = vst [vmem:[%s203 + $0x8c0] sm:$0xff] %v652
                %v654 = vld [vmem:[%s202 + $0x1188] sm:$0xff]
                %655 = vst [vmem:[%s203 + $0x8c8] sm:$0xff] %v654
                %v656 = vld [vmem:[%s202 + $0x11a8] sm:$0xff]
                %657 = vst [vmem:[%s203 + $0x8d4] sm:$0xff] %v656
                %v658 = vld [vmem:[%s202 + $0x11b0] sm:$0xff]
                %659 = vst [vmem:[%s203 + $0x8dc] sm:$0xff] %v658
                %v660 = vld [vmem:[%s202 + $0x11d0] sm:$0xff]
                %661 = vst [vmem:[%s203 + $0x8e8] sm:$0xff] %v660
                %v662 = vld [vmem:[%s202 + $0x11d8] sm:$0xff]
                %663 = vst [vmem:[%s203 + $0x8f0] sm:$0xff] %v662
                %v664 = vld [vmem:[%s202 + $0x11f8] sm:$0xff]
                %665 = vst [vmem:[%s203 + $0x8fc] sm:$0xff] %v664
                %v666 = vld [vmem:[%s202 + $0x1200] sm:$0xff]
                %667 = vst [vmem:[%s203 + $0x904] sm:$0xff] %v666
                %v668 = vld [vmem:[%s202 + $0x1220] sm:$0xff]
                %669 = vst [vmem:[%s203 + $0x910] sm:$0xff] %v668
                %v670 = vld [vmem:[%s202 + $0x1228] sm:$0xff]
                %671 = vst [vmem:[%s203 + $0x918] sm:$0xff] %v670
                %v672 = vld [vmem:[%s202 + $0x1248] sm:$0xff]
                %673 = vst [vmem:[%s203 + $0x924] sm:$0xff] %v672
                %v674 = vld [vmem:[%s202 + $0x1250] sm:$0xff]
                %675 = vst [vmem:[%s203 + $0x92c] sm:$0xff] %v674
                %v676 = vld [vmem:[%s202 + $0x1270] sm:$0xff]
                %677 = vst [vmem:[%s203 + $0x938] sm:$0xff] %v676
                %v678 = vld [vmem:[%s202 + $0x1278] sm:$0xff]
                %679 = vst [vmem:[%s203 + $0x940] sm:$0xff] %v678
                %v680 = vld [vmem:[%s202 + $0x1298] sm:$0xff]
                %681 = vst [vmem:[%s203 + $0x94c] sm:$0xff] %v680
                %v682 = vld [vmem:[%s202 + $0x12a0] sm:$0xff]
                %683 = vst [vmem:[%s203 + $0x954] sm:$0xff] %v682
                %v684 = vld [vmem:[%s202 + $0x12c0] sm:$0xff]
                %685 = vst [vmem:[%s203 + $0x960] sm:$0xff] %v684
                %v686 = vld [vmem:[%s202 + $0x12c8] sm:$0xff]
                %687 = vst [vmem:[%s203 + $0x968] sm:$0xff] %v686
                %v688 = vld [vmem:[%s202 + $0x12e8] sm:$0xff]
                %689 = vst [vmem:[%s203 + $0x974] sm:$0xff] %v688
                %v690 = vld [vmem:[%s202 + $0x12f0] sm:$0xff]
                %691 = vst [vmem:[%s203 + $0x97c] sm:$0xff] %v690
                %v692 = vld [vmem:[%s202 + $0x1310] sm:$0xff]
                %693 = vst [vmem:[%s203 + $0x988] sm:$0xff] %v692
                %v694 = vld [vmem:[%s202 + $0x1318] sm:$0xff]
                %695 = vst [vmem:[%s203 + $0x990] sm:$0xff] %v694
                %v696 = vld [vmem:[%s202 + $0x1338] sm:$0xff]
                %697 = vst [vmem:[%s203 + $0x99c] sm:$0xff] %v696
                %v698 = vld [vmem:[%s202 + $0x1340] sm:$0xff]
                %699 = vst [vmem:[%s203 + $0x9a4] sm:$0xff] %v698
                %v700 = vld [vmem:[%s202 + $0x1360] sm:$0xff]
                %701 = vst [vmem:[%s203 + $0x9b0] sm:$0xff] %v700
                %v702 = vld [vmem:[%s202 + $0x1368] sm:$0xff]
                %703 = vst [vmem:[%s203 + $0x9b8] sm:$0xff] %v702
                %v704 = vld [vmem:[%s202 + $0x1388] sm:$0xff]
                %705 = vst [vmem:[%s203 + $0x9c4] sm:$0xff] %v704
                %v706 = vld [vmem:[%s202 + $0x1390] sm:$0xff]
                %707 = vst [vmem:[%s203 + $0x9cc] sm:$0xff] %v706
                %v708 = vld [vmem:[%s202 + $0x13b0] sm:$0xff]
                %709 = vst [vmem:[%s203 + $0x9d8] sm:$0xff] %v708
                %v710 = vld [vmem:[%s202 + $0x13b8] sm:$0xff]
                %711 = vst [vmem:[%s203 + $0x9e0] sm:$0xff] %v710
                %v712 = vld [vmem:[%s202 + $0x13d8] sm:$0xff]
                %713 = vst [vmem:[%s203 + $0x9ec] sm:$0xff] %v712
                %v714 = vld [vmem:[%s202 + $0x13e0] sm:$0xff]
                %715 = vst [vmem:[%s203 + $0x9f4] sm:$0xff] %v714
                %v716 = vld [vmem:[%s202 + $0x1400] sm:$0xff]
                %717 = vst [vmem:[%s203 + $0xa00] sm:$0xff] %v716
                %v718 = vld [vmem:[%s202 + $0x1408] sm:$0xff]
                %719 = vst [vmem:[%s203 + $0xa08] sm:$0xff] %v718
                %v720 = vld [vmem:[%s202 + $0x1428] sm:$0xff]
                %721 = vst [vmem:[%s203 + $0xa14] sm:$0xff] %v720
                %v722 = vld [vmem:[%s202 + $0x1430] sm:$0xff]
                %723 = vst [vmem:[%s203 + $0xa1c] sm:$0xff] %v722
                %v724 = vld [vmem:[%s202 + $0x1450] sm:$0xff]
                %725 = vst [vmem:[%s203 + $0xa28] sm:$0xff] %v724
                %v726 = vld [vmem:[%s202 + $0x1458] sm:$0xff]
                %727 = vst [vmem:[%s203 + $0xa30] sm:$0xff] %v726
                %v728 = vld [vmem:[%s202 + $0x1478] sm:$0xff]
                %729 = vst [vmem:[%s203 + $0xa3c] sm:$0xff] %v728
                %v730 = vld [vmem:[%s202 + $0x1480] sm:$0xff]
                %731 = vst [vmem:[%s203 + $0xa44] sm:$0xff] %v730
                %v732 = vld [vmem:[%s202 + $0x14a0] sm:$0xff]
                %733 = vst [vmem:[%s203 + $0xa50] sm:$0xff] %v732
                %v734 = vld [vmem:[%s202 + $0x14a8] sm:$0xff]
                %735 = vst [vmem:[%s203 + $0xa58] sm:$0xff] %v734
                %v736 = vld [vmem:[%s202 + $0x14c8] sm:$0xff]
                %737 = vst [vmem:[%s203 + $0xa64] sm:$0xff] %v736
                %v738 = vld [vmem:[%s202 + $0x14d0] sm:$0xff]
                %739 = vst [vmem:[%s203 + $0xa6c] sm:$0xff] %v738
                %v740 = vld [vmem:[%s202 + $0x14f0] sm:$0xff]
                %741 = vst [vmem:[%s203 + $0xa78] sm:$0xff] %v740
                %v742 = vld [vmem:[%s202 + $0x14f8] sm:$0xff]
                %743 = vst [vmem:[%s203 + $0xa80] sm:$0xff] %v742
                %v744 = vld [vmem:[%s202 + $0x1518] sm:$0xff]
                %745 = vst [vmem:[%s203 + $0xa8c] sm:$0xff] %v744
                %v746 = vld [vmem:[%s202 + $0x1520] sm:$0xff]
                %747 = vst [vmem:[%s203 + $0xa94] sm:$0xff] %v746
                %v748 = vld [vmem:[%s202 + $0x1540] sm:$0xff]
                %749 = vst [vmem:[%s203 + $0xaa0] sm:$0xff] %v748
                %v750 = vld [vmem:[%s202 + $0x1548] sm:$0xff]
                %751 = vst [vmem:[%s203 + $0xaa8] sm:$0xff] %v750
                %v752 = vld [vmem:[%s202 + $0x1568] sm:$0xff]
                %753 = vst [vmem:[%s203 + $0xab4] sm:$0xff] %v752
                %v754 = vld [vmem:[%s202 + $0x1570] sm:$0xff]
                %755 = vst [vmem:[%s203 + $0xabc] sm:$0xff] %v754
                %v756 = vld [vmem:[%s202 + $0x1590] sm:$0xff]
                %757 = vst [vmem:[%s203 + $0xac8] sm:$0xff] %v756
                %v758 = vld [vmem:[%s202 + $0x1598] sm:$0xff]
                %759 = vst [vmem:[%s203 + $0xad0] sm:$0xff] %v758
                %v760 = vld [vmem:[%s202 + $0x15b8] sm:$0xff]
                %761 = vst [vmem:[%s203 + $0xadc] sm:$0xff] %v760
                %v762 = vld [vmem:[%s202 + $0x15c0] sm:$0xff]
                %763 = vst [vmem:[%s203 + $0xae4] sm:$0xff] %v762
                %v764 = vld [vmem:[%s202 + $0x15e0] sm:$0xff]
                %765 = vst [vmem:[%s203 + $0xaf0] sm:$0xff] %v764
                %v766 = vld [vmem:[%s202 + $0x15e8] sm:$0xff]
                %767 = vst [vmem:[%s203 + $0xaf8] sm:$0xff] %v766
                %v768 = vld [vmem:[%s202 + $0x1608] sm:$0xff]
                %769 = vst [vmem:[%s203 + $0xb04] sm:$0xff] %v768
                %v770 = vld [vmem:[%s202 + $0x1610] sm:$0xff]
                %771 = vst [vmem:[%s203 + $0xb0c] sm:$0xff] %v770
                %v772 = vld [vmem:[%s202 + $0x1630] sm:$0xff]
                %773 = vst [vmem:[%s203 + $0xb18] sm:$0xff] %v772
                %v774 = vld [vmem:[%s202 + $0x1638] sm:$0xff]
                %775 = vst [vmem:[%s203 + $0xb20] sm:$0xff] %v774
                %v776 = vld [vmem:[%s202 + $0x1658] sm:$0xff]
                %777 = vst [vmem:[%s203 + $0xb2c] sm:$0xff] %v776
                %v778 = vld [vmem:[%s202 + $0x1660] sm:$0xff]
                %779 = vst [vmem:[%s203 + $0xb34] sm:$0xff] %v778
                %v780 = vld [vmem:[%s202 + $0x1680] sm:$0xff]
                %781 = vst [vmem:[%s203 + $0xb40] sm:$0xff] %v780
                %v782 = vld [vmem:[%s202 + $0x1688] sm:$0xff]
                %783 = vst [vmem:[%s203 + $0xb48] sm:$0xff] %v782
                %v784 = vld [vmem:[%s202 + $0x16a8] sm:$0xff]
                %785 = vst [vmem:[%s203 + $0xb54] sm:$0xff] %v784
                %v786 = vld [vmem:[%s202 + $0x16b0] sm:$0xff]
                %787 = vst [vmem:[%s203 + $0xb5c] sm:$0xff] %v786
                %v788 = vld [vmem:[%s202 + $0x16d0] sm:$0xff]
                %789 = vst [vmem:[%s203 + $0xb68] sm:$0xff] %v788
                %v790 = vld [vmem:[%s202 + $0x16d8] sm:$0xff]
                %791 = vst [vmem:[%s203 + $0xb70] sm:$0xff] %v790
                %v792 = vld [vmem:[%s202 + $0x16f8] sm:$0xff]
                %793 = vst [vmem:[%s203 + $0xb7c] sm:$0xff] %v792
                %v794 = vld [vmem:[%s202 + $0x1700] sm:$0xff]
                %795 = vst [vmem:[%s203 + $0xb84] sm:$0xff] %v794
                %v796 = vld [vmem:[%s202 + $0x1720] sm:$0xff]
                %797 = vst [vmem:[%s203 + $0xb90] sm:$0xff] %v796
                %v798 = vld [vmem:[%s202 + $0x1728] sm:$0xff]
                %799 = vst [vmem:[%s203 + $0xb98] sm:$0xff] %v798
                %v800 = vld [vmem:[%s202 + $0x1748] sm:$0xff]
                %801 = vst [vmem:[%s203 + $0xba4] sm:$0xff] %v800
                %v802 = vld [vmem:[%s202 + $0x1750] sm:$0xff]
                %803 = vst [vmem:[%s203 + $0xbac] sm:$0xff] %v802
                %v804 = vld [vmem:[%s202 + $0x1770] sm:$0xff]
                %805 = vst [vmem:[%s203 + $0xbb8] sm:$0xff] %v804
                %v806 = vld [vmem:[%s202 + $0x1778] sm:$0xff]
                %807 = vst [vmem:[%s203 + $0xbc0] sm:$0xff] %v806
                %v808 = vld [vmem:[%s202 + $0x1798] sm:$0xff]
                %809 = vst [vmem:[%s203 + $0xbcc] sm:$0xff] %v808
                %v810 = vld [vmem:[%s202 + $0x17a0] sm:$0xff]
                %811 = vst [vmem:[%s203 + $0xbd4] sm:$0xff] %v810
                %v812 = vld [vmem:[%s202 + $0x17c0] sm:$0xff]
                %813 = vst [vmem:[%s203 + $0xbe0] sm:$0xff] %v812
                %v814 = vld [vmem:[%s202 + $0x17c8] sm:$0xff]
                %815 = vst [vmem:[%s203 + $0xbe8] sm:$0xff] %v814
                %v816 = vld [vmem:[%s202 + $0x17e8] sm:$0xff]
                %817 = vst [vmem:[%s203 + $0xbf4] sm:$0xff] %v816
                %v818 = vld [vmem:[%s202 + $0x17f0] sm:$0xff]
                %819 = vst [vmem:[%s203 + $0xbfc] sm:$0xff] %v818
                %v820 = vld [vmem:[%s202 + $0x1810] sm:$0xff]
                %821 = vst [vmem:[%s203 + $0xc08] sm:$0xff] %v820
                %v822 = vld [vmem:[%s202 + $0x1818] sm:$0xff]
                %823 = vst [vmem:[%s203 + $0xc10] sm:$0xff] %v822
                %v824 = vld [vmem:[%s202 + $0x1838] sm:$0xff]
                %825 = vst [vmem:[%s203 + $0xc1c] sm:$0xff] %v824
                %v826 = vld [vmem:[%s202 + $0x1840] sm:$0xff]
                %827 = vst [vmem:[%s203 + $0xc24] sm:$0xff] %v826
                %v828 = vld [vmem:[%s202 + $0x1860] sm:$0xff]
                %829 = vst [vmem:[%s203 + $0xc30] sm:$0xff] %v828
                %v830 = vld [vmem:[%s202 + $0x1868] sm:$0xff]
                %831 = vst [vmem:[%s203 + $0xc38] sm:$0xff] %v830
                %v832 = vld [vmem:[%s202 + $0x1888] sm:$0xff]
                %833 = vst [vmem:[%s203 + $0xc44] sm:$0xff] %v832
                %v834 = vld [vmem:[%s202 + $0x1890] sm:$0xff]
                %835 = vst [vmem:[%s203 + $0xc4c] sm:$0xff] %v834
                %v836 = vld [vmem:[%s202 + $0x18b0] sm:$0xff]
                %837 = vst [vmem:[%s203 + $0xc58] sm:$0xff] %v836
                %v838 = vld [vmem:[%s202 + $0x18b8] sm:$0xff]
                %839 = vst [vmem:[%s203 + $0xc60] sm:$0xff] %v838
                %v840 = vld [vmem:[%s202 + $0x18d8] sm:$0xff]
                %841 = vst [vmem:[%s203 + $0xc6c] sm:$0xff] %v840
                %v842 = vld [vmem:[%s202 + $0x18e0] sm:$0xff]
                %843 = vst [vmem:[%s203 + $0xc74] sm:$0xff] %v842
              $region45: #{diffusion_forward.2} parent=39 // loop_footer
                %s201 = sadd.s32 1, %s197
              $region46: #{diffusion_forward.2} parent=39 // loop_footer_branch
                %196 = sbr.rel target = $region42
              $region47: #{diffusion_forward.2} parent=39 // loop_exit
                _
              %s845 = ssub.s32 16, 1
              loop: start=0, step=1, limit=1
              $region48: #{diffusion_forward.2} parent=39 // loop_pre_header
                _
              $region49: #{diffusion_forward.2} parent=39 // loop_header
                %s847 = sphi 0, %s851
                %p848 = scmp.ge.s32.totalorder %s847, 1
                %s852 = sphi %s194, %s194
                %s853 = sphi %s195, %s195
              $region50: #{diffusion_forward.2} parent=39 // loop_header_branch
                %850 = sbr.rel (%p848) target = $region54
              $region51: #{diffusion_forward.2} parent=39 // loop_body
                %v854 = vld [vmem:[%s852] sm:%s845]
                %855 = vst [vmem:[%s853] sm:%s845] %v854
                %v856 = vld [vmem:[%s852 + $0x28] sm:%s845]
                %857 = vst [vmem:[%s853 + $0x14] sm:%s845] %v856
                %v858 = vld [vmem:[%s852 + $0x50] sm:%s845]
                %859 = vst [vmem:[%s853 + $0x28] sm:%s845] %v858
                %v860 = vld [vmem:[%s852 + $0x78] sm:%s845]
                %861 = vst [vmem:[%s853 + $0x3c] sm:%s845] %v860
                %v862 = vld [vmem:[%s852 + $0xa0] sm:%s845]
                %863 = vst [vmem:[%s853 + $0x50] sm:%s845] %v862
                %v864 = vld [vmem:[%s852 + $0xc8] sm:%s845]
                %865 = vst [vmem:[%s853 + $0x64] sm:%s845] %v864
                %v866 = vld [vmem:[%s852 + $0xf0] sm:%s845]
                %867 = vst [vmem:[%s853 + $0x78] sm:%s845] %v866
                %v868 = vld [vmem:[%s852 + $0x118] sm:%s845]
                %869 = vst [vmem:[%s853 + $0x8c] sm:%s845] %v868
                %v870 = vld [vmem:[%s852 + $0x140] sm:%s845]
                %871 = vst [vmem:[%s853 + $0xa0] sm:%s845] %v870
                %v872 = vld [vmem:[%s852 + $0x168] sm:%s845]
                %873 = vst [vmem:[%s853 + $0xb4] sm:%s845] %v872
                %v874 = vld [vmem:[%s852 + $0x190] sm:%s845]
                %875 = vst [vmem:[%s853 + $0xc8] sm:%s845] %v874
                %v876 = vld [vmem:[%s852 + $0x1b8] sm:%s845]
                %877 = vst [vmem:[%s853 + $0xdc] sm:%s845] %v876
                %v878 = vld [vmem:[%s852 + $0x1e0] sm:%s845]
                %879 = vst [vmem:[%s853 + $0xf0] sm:%s845] %v878
                %v880 = vld [vmem:[%s852 + $0x208] sm:%s845]
                %881 = vst [vmem:[%s853 + $0x104] sm:%s845] %v880
                %v882 = vld [vmem:[%s852 + $0x230] sm:%s845]
                %883 = vst [vmem:[%s853 + $0x118] sm:%s845] %v882
                %v884 = vld [vmem:[%s852 + $0x258] sm:%s845]
                %885 = vst [vmem:[%s853 + $0x12c] sm:%s845] %v884
                %v886 = vld [vmem:[%s852 + $0x280] sm:%s845]
                %887 = vst [vmem:[%s853 + $0x140] sm:%s845] %v886
                %v888 = vld [vmem:[%s852 + $0x2a8] sm:%s845]
                %889 = vst [vmem:[%s853 + $0x154] sm:%s845] %v888
                %v890 = vld [vmem:[%s852 + $0x2d0] sm:%s845]
                %891 = vst [vmem:[%s853 + $0x168] sm:%s845] %v890
                %v892 = vld [vmem:[%s852 + $0x2f8] sm:%s845]
                %893 = vst [vmem:[%s853 + $0x17c] sm:%s845] %v892
                %v894 = vld [vmem:[%s852 + $0x320] sm:%s845]
                %895 = vst [vmem:[%s853 + $0x190] sm:%s845] %v894
                %v896 = vld [vmem:[%s852 + $0x348] sm:%s845]
                %897 = vst [vmem:[%s853 + $0x1a4] sm:%s845] %v896
                %v898 = vld [vmem:[%s852 + $0x370] sm:%s845]
                %899 = vst [vmem:[%s853 + $0x1b8] sm:%s845] %v898
                %v900 = vld [vmem:[%s852 + $0x398] sm:%s845]
                %901 = vst [vmem:[%s853 + $0x1cc] sm:%s845] %v900
                %v902 = vld [vmem:[%s852 + $0x3c0] sm:%s845]
                %903 = vst [vmem:[%s853 + $0x1e0] sm:%s845] %v902
                %v904 = vld [vmem:[%s852 + $0x3e8] sm:%s845]
                %905 = vst [vmem:[%s853 + $0x1f4] sm:%s845] %v904
                %v906 = vld [vmem:[%s852 + $0x410] sm:%s845]
                %907 = vst [vmem:[%s853 + $0x208] sm:%s845] %v906
                %v908 = vld [vmem:[%s852 + $0x438] sm:%s845]
                %909 = vst [vmem:[%s853 + $0x21c] sm:%s845] %v908
                %v910 = vld [vmem:[%s852 + $0x460] sm:%s845]
                %911 = vst [vmem:[%s853 + $0x230] sm:%s845] %v910
                %v912 = vld [vmem:[%s852 + $0x488] sm:%s845]
                %913 = vst [vmem:[%s853 + $0x244] sm:%s845] %v912
                %v914 = vld [vmem:[%s852 + $0x4b0] sm:%s845]
                %915 = vst [vmem:[%s853 + $0x258] sm:%s845] %v914
                %v916 = vld [vmem:[%s852 + $0x4d8] sm:%s845]
                %917 = vst [vmem:[%s853 + $0x26c] sm:%s845] %v916
                %v918 = vld [vmem:[%s852 + $0x500] sm:%s845]
                %919 = vst [vmem:[%s853 + $0x280] sm:%s845] %v918
                %v920 = vld [vmem:[%s852 + $0x528] sm:%s845]
                %921 = vst [vmem:[%s853 + $0x294] sm:%s845] %v920
                %v922 = vld [vmem:[%s852 + $0x550] sm:%s845]
                %923 = vst [vmem:[%s853 + $0x2a8] sm:%s845] %v922
                %v924 = vld [vmem:[%s852 + $0x578] sm:%s845]
                %925 = vst [vmem:[%s853 + $0x2bc] sm:%s845] %v924
                %v926 = vld [vmem:[%s852 + $0x5a0] sm:%s845]
                %927 = vst [vmem:[%s853 + $0x2d0] sm:%s845] %v926
                %v928 = vld [vmem:[%s852 + $0x5c8] sm:%s845]
                %929 = vst [vmem:[%s853 + $0x2e4] sm:%s845] %v928
                %v930 = vld [vmem:[%s852 + $0x5f0] sm:%s845]
                %931 = vst [vmem:[%s853 + $0x2f8] sm:%s845] %v930
                %v932 = vld [vmem:[%s852 + $0x618] sm:%s845]
                %933 = vst [vmem:[%s853 + $0x30c] sm:%s845] %v932
                %v934 = vld [vmem:[%s852 + $0x640] sm:%s845]
                %935 = vst [vmem:[%s853 + $0x320] sm:%s845] %v934
                %v936 = vld [vmem:[%s852 + $0x668] sm:%s845]
                %937 = vst [vmem:[%s853 + $0x334] sm:%s845] %v936
                %v938 = vld [vmem:[%s852 + $0x690] sm:%s845]
                %939 = vst [vmem:[%s853 + $0x348] sm:%s845] %v938
                %v940 = vld [vmem:[%s852 + $0x6b8] sm:%s845]
                %941 = vst [vmem:[%s853 + $0x35c] sm:%s845] %v940
                %v942 = vld [vmem:[%s852 + $0x6e0] sm:%s845]
                %943 = vst [vmem:[%s853 + $0x370] sm:%s845] %v942
                %v944 = vld [vmem:[%s852 + $0x708] sm:%s845]
                %945 = vst [vmem:[%s853 + $0x384] sm:%s845] %v944
                %v946 = vld [vmem:[%s852 + $0x730] sm:%s845]
                %947 = vst [vmem:[%s853 + $0x398] sm:%s845] %v946
                %v948 = vld [vmem:[%s852 + $0x758] sm:%s845]
                %949 = vst [vmem:[%s853 + $0x3ac] sm:%s845] %v948
                %v950 = vld [vmem:[%s852 + $0x780] sm:%s845]
                %951 = vst [vmem:[%s853 + $0x3c0] sm:%s845] %v950
                %v952 = vld [vmem:[%s852 + $0x7a8] sm:%s845]
                %953 = vst [vmem:[%s853 + $0x3d4] sm:%s845] %v952
                %v954 = vld [vmem:[%s852 + $0x7d0] sm:%s845]
                %955 = vst [vmem:[%s853 + $0x3e8] sm:%s845] %v954
                %v956 = vld [vmem:[%s852 + $0x7f8] sm:%s845]
                %957 = vst [vmem:[%s853 + $0x3fc] sm:%s845] %v956
                %v958 = vld [vmem:[%s852 + $0x820] sm:%s845]
                %959 = vst [vmem:[%s853 + $0x410] sm:%s845] %v958
                %v960 = vld [vmem:[%s852 + $0x848] sm:%s845]
                %961 = vst [vmem:[%s853 + $0x424] sm:%s845] %v960
                %v962 = vld [vmem:[%s852 + $0x870] sm:%s845]
                %963 = vst [vmem:[%s853 + $0x438] sm:%s845] %v962
                %v964 = vld [vmem:[%s852 + $0x898] sm:%s845]
                %965 = vst [vmem:[%s853 + $0x44c] sm:%s845] %v964
                %v966 = vld [vmem:[%s852 + $0x8c0] sm:%s845]
                %967 = vst [vmem:[%s853 + $0x460] sm:%s845] %v966
                %v968 = vld [vmem:[%s852 + $0x8e8] sm:%s845]
                %969 = vst [vmem:[%s853 + $0x474] sm:%s845] %v968
                %v970 = vld [vmem:[%s852 + $0x910] sm:%s845]
                %971 = vst [vmem:[%s853 + $0x488] sm:%s845] %v970
                %v972 = vld [vmem:[%s852 + $0x938] sm:%s845]
                %973 = vst [vmem:[%s853 + $0x49c] sm:%s845] %v972
                %v974 = vld [vmem:[%s852 + $0x960] sm:%s845]
                %975 = vst [vmem:[%s853 + $0x4b0] sm:%s845] %v974
                %v976 = vld [vmem:[%s852 + $0x988] sm:%s845]
                %977 = vst [vmem:[%s853 + $0x4c4] sm:%s845] %v976
                %v978 = vld [vmem:[%s852 + $0x9b0] sm:%s845]
                %979 = vst [vmem:[%s853 + $0x4d8] sm:%s845] %v978
                %v980 = vld [vmem:[%s852 + $0x9d8] sm:%s845]
                %981 = vst [vmem:[%s853 + $0x4ec] sm:%s845] %v980
                %v982 = vld [vmem:[%s852 + $0xa00] sm:%s845]
                %983 = vst [vmem:[%s853 + $0x500] sm:%s845] %v982
                %v984 = vld [vmem:[%s852 + $0xa28] sm:%s845]
                %985 = vst [vmem:[%s853 + $0x514] sm:%s845] %v984
                %v986 = vld [vmem:[%s852 + $0xa50] sm:%s845]
                %987 = vst [vmem:[%s853 + $0x528] sm:%s845] %v986
                %v988 = vld [vmem:[%s852 + $0xa78] sm:%s845]
                %989 = vst [vmem:[%s853 + $0x53c] sm:%s845] %v988
                %v990 = vld [vmem:[%s852 + $0xaa0] sm:%s845]
                %991 = vst [vmem:[%s853 + $0x550] sm:%s845] %v990
                %v992 = vld [vmem:[%s852 + $0xac8] sm:%s845]
                %993 = vst [vmem:[%s853 + $0x564] sm:%s845] %v992
                %v994 = vld [vmem:[%s852 + $0xaf0] sm:%s845]
                %995 = vst [vmem:[%s853 + $0x578] sm:%s845] %v994
                %v996 = vld [vmem:[%s852 + $0xb18] sm:%s845]
                %997 = vst [vmem:[%s853 + $0x58c] sm:%s845] %v996
                %v998 = vld [vmem:[%s852 + $0xb40] sm:%s845]
                %999 = vst [vmem:[%s853 + $0x5a0] sm:%s845] %v998
                %v1000 = vld [vmem:[%s852 + $0xb68] sm:%s845]
                %1001 = vst [vmem:[%s853 + $0x5b4] sm:%s845] %v1000
                %v1002 = vld [vmem:[%s852 + $0xb90] sm:%s845]
                %1003 = vst [vmem:[%s853 + $0x5c8] sm:%s845] %v1002
                %v1004 = vld [vmem:[%s852 + $0xbb8] sm:%s845]
                %1005 = vst [vmem:[%s853 + $0x5dc] sm:%s845] %v1004
                %v1006 = vld [vmem:[%s852 + $0xbe0] sm:%s845]
                %1007 = vst [vmem:[%s853 + $0x5f0] sm:%s845] %v1006
                %v1008 = vld [vmem:[%s852 + $0xc08] sm:%s845]
                %1009 = vst [vmem:[%s853 + $0x604] sm:%s845] %v1008
                %v1010 = vld [vmem:[%s852 + $0xc30] sm:%s845]
                %1011 = vst [vmem:[%s853 + $0x618] sm:%s845] %v1010
                %v1012 = vld [vmem:[%s852 + $0xc58] sm:%s845]
                %1013 = vst [vmem:[%s853 + $0x62c] sm:%s845] %v1012
                %v1014 = vld [vmem:[%s852 + $0xc80] sm:%s845]
                %1015 = vst [vmem:[%s853 + $0x640] sm:%s845] %v1014
                %v1016 = vld [vmem:[%s852 + $0xca8] sm:%s845]
                %1017 = vst [vmem:[%s853 + $0x654] sm:%s845] %v1016
                %v1018 = vld [vmem:[%s852 + $0xcd0] sm:%s845]
                %1019 = vst [vmem:[%s853 + $0x668] sm:%s845] %v1018
                %v1020 = vld [vmem:[%s852 + $0xcf8] sm:%s845]
                %1021 = vst [vmem:[%s853 + $0x67c] sm:%s845] %v1020
                %v1022 = vld [vmem:[%s852 + $0xd20] sm:%s845]
                %1023 = vst [vmem:[%s853 + $0x690] sm:%s845] %v1022
                %v1024 = vld [vmem:[%s852 + $0xd48] sm:%s845]
                %1025 = vst [vmem:[%s853 + $0x6a4] sm:%s845] %v1024
                %v1026 = vld [vmem:[%s852 + $0xd70] sm:%s845]
                %1027 = vst [vmem:[%s853 + $0x6b8] sm:%s845] %v1026
                %v1028 = vld [vmem:[%s852 + $0xd98] sm:%s845]
                %1029 = vst [vmem:[%s853 + $0x6cc] sm:%s845] %v1028
                %v1030 = vld [vmem:[%s852 + $0xdc0] sm:%s845]
                %1031 = vst [vmem:[%s853 + $0x6e0] sm:%s845] %v1030
                %v1032 = vld [vmem:[%s852 + $0xde8] sm:%s845]
                %1033 = vst [vmem:[%s853 + $0x6f4] sm:%s845] %v1032
                %v1034 = vld [vmem:[%s852 + $0xe10] sm:%s845]
                %1035 = vst [vmem:[%s853 + $0x708] sm:%s845] %v1034
                %v1036 = vld [vmem:[%s852 + $0xe38] sm:%s845]
                %1037 = vst [vmem:[%s853 + $0x71c] sm:%s845] %v1036
                %v1038 = vld [vmem:[%s852 + $0xe60] sm:%s845]
                %1039 = vst [vmem:[%s853 + $0x730] sm:%s845] %v1038
                %v1040 = vld [vmem:[%s852 + $0xe88] sm:%s845]
                %1041 = vst [vmem:[%s853 + $0x744] sm:%s845] %v1040
                %v1042 = vld [vmem:[%s852 + $0xeb0] sm:%s845]
                %1043 = vst [vmem:[%s853 + $0x758] sm:%s845] %v1042
                %v1044 = vld [vmem:[%s852 + $0xed8] sm:%s845]
                %1045 = vst [vmem:[%s853 + $0x76c] sm:%s845] %v1044
                %v1046 = vld [vmem:[%s852 + $0xf00] sm:%s845]
                %1047 = vst [vmem:[%s853 + $0x780] sm:%s845] %v1046
                %v1048 = vld [vmem:[%s852 + $0xf28] sm:%s845]
                %1049 = vst [vmem:[%s853 + $0x794] sm:%s845] %v1048
                %v1050 = vld [vmem:[%s852 + $0xf50] sm:%s845]
                %1051 = vst [vmem:[%s853 + $0x7a8] sm:%s845] %v1050
                %v1052 = vld [vmem:[%s852 + $0xf78] sm:%s845]
                %1053 = vst [vmem:[%s853 + $0x7bc] sm:%s845] %v1052
                %v1054 = vld [vmem:[%s852 + $0xfa0] sm:%s845]
                %1055 = vst [vmem:[%s853 + $0x7d0] sm:%s845] %v1054
                %v1056 = vld [vmem:[%s852 + $0xfc8] sm:%s845]
                %1057 = vst [vmem:[%s853 + $0x7e4] sm:%s845] %v1056
                %v1058 = vld [vmem:[%s852 + $0xff0] sm:%s845]
                %1059 = vst [vmem:[%s853 + $0x7f8] sm:%s845] %v1058
                %v1060 = vld [vmem:[%s852 + $0x1018] sm:%s845]
                %1061 = vst [vmem:[%s853 + $0x80c] sm:%s845] %v1060
                %v1062 = vld [vmem:[%s852 + $0x1040] sm:%s845]
                %1063 = vst [vmem:[%s853 + $0x820] sm:%s845] %v1062
                %v1064 = vld [vmem:[%s852 + $0x1068] sm:%s845]
                %1065 = vst [vmem:[%s853 + $0x834] sm:%s845] %v1064
                %v1066 = vld [vmem:[%s852 + $0x1090] sm:%s845]
                %1067 = vst [vmem:[%s853 + $0x848] sm:%s845] %v1066
                %v1068 = vld [vmem:[%s852 + $0x10b8] sm:%s845]
                %1069 = vst [vmem:[%s853 + $0x85c] sm:%s845] %v1068
                %v1070 = vld [vmem:[%s852 + $0x10e0] sm:%s845]
                %1071 = vst [vmem:[%s853 + $0x870] sm:%s845] %v1070
                %v1072 = vld [vmem:[%s852 + $0x1108] sm:%s845]
                %1073 = vst [vmem:[%s853 + $0x884] sm:%s845] %v1072
                %v1074 = vld [vmem:[%s852 + $0x1130] sm:%s845]
                %1075 = vst [vmem:[%s853 + $0x898] sm:%s845] %v1074
                %v1076 = vld [vmem:[%s852 + $0x1158] sm:%s845]
                %1077 = vst [vmem:[%s853 + $0x8ac] sm:%s845] %v1076
                %v1078 = vld [vmem:[%s852 + $0x1180] sm:%s845]
                %1079 = vst [vmem:[%s853 + $0x8c0] sm:%s845] %v1078
                %v1080 = vld [vmem:[%s852 + $0x11a8] sm:%s845]
                %1081 = vst [vmem:[%s853 + $0x8d4] sm:%s845] %v1080
                %v1082 = vld [vmem:[%s852 + $0x11d0] sm:%s845]
                %1083 = vst [vmem:[%s853 + $0x8e8] sm:%s845] %v1082
                %v1084 = vld [vmem:[%s852 + $0x11f8] sm:%s845]
                %1085 = vst [vmem:[%s853 + $0x8fc] sm:%s845] %v1084
                %v1086 = vld [vmem:[%s852 + $0x1220] sm:%s845]
                %1087 = vst [vmem:[%s853 + $0x910] sm:%s845] %v1086
                %v1088 = vld [vmem:[%s852 + $0x1248] sm:%s845]
                %1089 = vst [vmem:[%s853 + $0x924] sm:%s845] %v1088
                %v1090 = vld [vmem:[%s852 + $0x1270] sm:%s845]
                %1091 = vst [vmem:[%s853 + $0x938] sm:%s845] %v1090
                %v1092 = vld [vmem:[%s852 + $0x1298] sm:%s845]
                %1093 = vst [vmem:[%s853 + $0x94c] sm:%s845] %v1092
                %v1094 = vld [vmem:[%s852 + $0x12c0] sm:%s845]
                %1095 = vst [vmem:[%s853 + $0x960] sm:%s845] %v1094
                %v1096 = vld [vmem:[%s852 + $0x12e8] sm:%s845]
                %1097 = vst [vmem:[%s853 + $0x974] sm:%s845] %v1096
                %v1098 = vld [vmem:[%s852 + $0x1310] sm:%s845]
                %1099 = vst [vmem:[%s853 + $0x988] sm:%s845] %v1098
                %v1100 = vld [vmem:[%s852 + $0x1338] sm:%s845]
                %1101 = vst [vmem:[%s853 + $0x99c] sm:%s845] %v1100
                %v1102 = vld [vmem:[%s852 + $0x1360] sm:%s845]
                %1103 = vst [vmem:[%s853 + $0x9b0] sm:%s845] %v1102
                %v1104 = vld [vmem:[%s852 + $0x1388] sm:%s845]
                %1105 = vst [vmem:[%s853 + $0x9c4] sm:%s845] %v1104
                %v1106 = vld [vmem:[%s852 + $0x13b0] sm:%s845]
                %1107 = vst [vmem:[%s853 + $0x9d8] sm:%s845] %v1106
                %v1108 = vld [vmem:[%s852 + $0x13d8] sm:%s845]
                %1109 = vst [vmem:[%s853 + $0x9ec] sm:%s845] %v1108
                %v1110 = vld [vmem:[%s852 + $0x1400] sm:%s845]
                %1111 = vst [vmem:[%s853 + $0xa00] sm:%s845] %v1110
                %v1112 = vld [vmem:[%s852 + $0x1428] sm:%s845]
                %1113 = vst [vmem:[%s853 + $0xa14] sm:%s845] %v1112
                %v1114 = vld [vmem:[%s852 + $0x1450] sm:%s845]
                %1115 = vst [vmem:[%s853 + $0xa28] sm:%s845] %v1114
                %v1116 = vld [vmem:[%s852 + $0x1478] sm:%s845]
                %1117 = vst [vmem:[%s853 + $0xa3c] sm:%s845] %v1116
                %v1118 = vld [vmem:[%s852 + $0x14a0] sm:%s845]
                %1119 = vst [vmem:[%s853 + $0xa50] sm:%s845] %v1118
                %v1120 = vld [vmem:[%s852 + $0x14c8] sm:%s845]
                %1121 = vst [vmem:[%s853 + $0xa64] sm:%s845] %v1120
                %v1122 = vld [vmem:[%s852 + $0x14f0] sm:%s845]
                %1123 = vst [vmem:[%s853 + $0xa78] sm:%s845] %v1122
                %v1124 = vld [vmem:[%s852 + $0x1518] sm:%s845]
                %1125 = vst [vmem:[%s853 + $0xa8c] sm:%s845] %v1124
                %v1126 = vld [vmem:[%s852 + $0x1540] sm:%s845]
                %1127 = vst [vmem:[%s853 + $0xaa0] sm:%s845] %v1126
                %v1128 = vld [vmem:[%s852 + $0x1568] sm:%s845]
                %1129 = vst [vmem:[%s853 + $0xab4] sm:%s845] %v1128
                %v1130 = vld [vmem:[%s852 + $0x1590] sm:%s845]
                %1131 = vst [vmem:[%s853 + $0xac8] sm:%s845] %v1130
                %v1132 = vld [vmem:[%s852 + $0x15b8] sm:%s845]
                %1133 = vst [vmem:[%s853 + $0xadc] sm:%s845] %v1132
                %v1134 = vld [vmem:[%s852 + $0x15e0] sm:%s845]
                %1135 = vst [vmem:[%s853 + $0xaf0] sm:%s845] %v1134
                %v1136 = vld [vmem:[%s852 + $0x1608] sm:%s845]
                %1137 = vst [vmem:[%s853 + $0xb04] sm:%s845] %v1136
                %v1138 = vld [vmem:[%s852 + $0x1630] sm:%s845]
                %1139 = vst [vmem:[%s853 + $0xb18] sm:%s845] %v1138
                %v1140 = vld [vmem:[%s852 + $0x1658] sm:%s845]
                %1141 = vst [vmem:[%s853 + $0xb2c] sm:%s845] %v1140
                %v1142 = vld [vmem:[%s852 + $0x1680] sm:%s845]
                %1143 = vst [vmem:[%s853 + $0xb40] sm:%s845] %v1142
                %v1144 = vld [vmem:[%s852 + $0x16a8] sm:%s845]
                %1145 = vst [vmem:[%s853 + $0xb54] sm:%s845] %v1144
                %v1146 = vld [vmem:[%s852 + $0x16d0] sm:%s845]
                %1147 = vst [vmem:[%s853 + $0xb68] sm:%s845] %v1146
                %v1148 = vld [vmem:[%s852 + $0x16f8] sm:%s845]
                %1149 = vst [vmem:[%s853 + $0xb7c] sm:%s845] %v1148
                %v1150 = vld [vmem:[%s852 + $0x1720] sm:%s845]
                %1151 = vst [vmem:[%s853 + $0xb90] sm:%s845] %v1150
                %v1152 = vld [vmem:[%s852 + $0x1748] sm:%s845]
                %1153 = vst [vmem:[%s853 + $0xba4] sm:%s845] %v1152
                %v1154 = vld [vmem:[%s852 + $0x1770] sm:%s845]
                %1155 = vst [vmem:[%s853 + $0xbb8] sm:%s845] %v1154
                %v1156 = vld [vmem:[%s852 + $0x1798] sm:%s845]
                %1157 = vst [vmem:[%s853 + $0xbcc] sm:%s845] %v1156
                %v1158 = vld [vmem:[%s852 + $0x17c0] sm:%s845]
                %1159 = vst [vmem:[%s853 + $0xbe0] sm:%s845] %v1158
                %v1160 = vld [vmem:[%s852 + $0x17e8] sm:%s845]
                %1161 = vst [vmem:[%s853 + $0xbf4] sm:%s845] %v1160
                %v1162 = vld [vmem:[%s852 + $0x1810] sm:%s845]
                %1163 = vst [vmem:[%s853 + $0xc08] sm:%s845] %v1162
                %v1164 = vld [vmem:[%s852 + $0x1838] sm:%s845]
                %1165 = vst [vmem:[%s853 + $0xc1c] sm:%s845] %v1164
                %v1166 = vld [vmem:[%s852 + $0x1860] sm:%s845]
                %1167 = vst [vmem:[%s853 + $0xc30] sm:%s845] %v1166
                %v1168 = vld [vmem:[%s852 + $0x1888] sm:%s845]
                %1169 = vst [vmem:[%s853 + $0xc44] sm:%s845] %v1168
                %v1170 = vld [vmem:[%s852 + $0x18b0] sm:%s845]
                %1171 = vst [vmem:[%s853 + $0xc58] sm:%s845] %v1170
                %v1172 = vld [vmem:[%s852 + $0x18d8] sm:%s845]
                %1173 = vst [vmem:[%s853 + $0xc6c] sm:%s845] %v1172
              $region52: #{diffusion_forward.2} parent=39 // loop_footer
                %s851 = sadd.s32 1, %s847
              $region53: #{diffusion_forward.2} parent=39 // loop_footer_branch
                %846 = sbr.rel target = $region49
              $region54: #{diffusion_forward.2} parent=39 // loop_exit
                _
            $region40: #{diffusion_forward.2} parent=35 // pred_fallthru
              _
          $region36: #{diffusion_forward.2} parent=31 // pred_fallthru
            _
          %1174 = vnop
        $region32: #{diffusion_forward.2} parent=27 // pred_fallthru
          _
        // Predicated region
        $region55: #{diffusion_forward.2} parent=27 // pred_check
          %p1175 = pneg %p120
        $region56: #{diffusion_forward.2} parent=27 // pred_check_branch
          %1177 = sbr.rel (%p1175) target = $region58
        $region57: #{diffusion_forward.2} parent=27 // pred_region
          %s1178 = smul.u32 5, %s11
          %p1179 = scmp.lt.s32.totalorder %s1178, 9
          %s1180 = scalar_select %p1179, %s1178, 9
          %s1181 = scalar_lea.vmem %s4, %s1180
          %s1182 = smul.u32 5, %s11
        $region58: #{diffusion_forward.2} parent=27 // pred_fallthru
          _
      $region28: #{diffusion_forward.2} parent=5 // pred_fallthru
        _
      %p1183 = scmp.le.s32.totalorder 1, %s11
      %p1184 = scmp.lt.s32.totalorder %s11, 3
      %p1185 = pnand %p1183, %p1184
      %p1186 = pneg %p1185
      // Predicated region
      $region59: #{diffusion_forward.2} parent=5 // pred_check
        _
      $region60: #{diffusion_forward.2} parent=5 // pred_check_branch
        %1188 = sbr.rel (%p1185) target = $region62
      $region61: #{diffusion_forward.2} parent=5 // pred_region
        %s1189 = ssub.s32 %s11, 1
        %s1190 = sand.u32 %s87, 1
        %s1191 = sand.u32 %s87, 1
        %s1192 = smul.addr %s1191, 3200
        %s1193 = scalar_lea.vmem [#allocation2], %s1192
        // Predicated region
        $region63: #{diffusion_forward.2} parent=61 // pred_check
          %p1194 = pneg %p100
        $region64: #{diffusion_forward.2} parent=61 // pred_check_branch
          %1196 = sbr.rel (%p1194) target = $region66
        $region65: #{diffusion_forward.2} parent=61 // pred_region
          _
        $region66: #{diffusion_forward.2} parent=61 // pred_fallthru
          _
        %p1197 = pneg %p32
        %p1198 = pneg %p29
        %p1199 = pneg %p53
        %p1200 = pneg %p50
        %p1201 = pneg %p74
        %p1202 = pneg %p71
        %s1203 = sand.u32 %s87, 1
        %s1204 = sand.u32 %s87, 1
        %s1205 = smul.addr %s1204, 3200
        %s1206 = scalar_lea.vmem [#allocation2], %s1205
        %p1207 = pneg %p100
        %p1208 = pneg %p97
        %s1209 = smul.u32 5, %s16
        %p1210 = scmp.lt.s32.totalorder %s1209, 9
        %s1211 = scalar_select %p1210, %s1209, 9
        %s1212 = scalar_lea.vmem %s4, %s1211
        %p1213 = pneg %p126
        %p1214 = pneg %p123
        %p1215 = pneg %p152
        %p1216 = pneg %p149
        %s1217 = sand.u32 %s139, 1
        %s1218 = sand.u32 %s139, 1
        %s1219 = smul.addr %s1218, 80
        %s1220 = scalar_lea.vmem [#allocation3], %s1219
        %s1221 = smul.u32 5, %s16
        %s1222 = smul.u32 5, %s16
        %p1223 = scmp.lt.s32.totalorder %s1222, 9
        %s1224 = scalar_select %p1223, %s1222, 9
        %s1225 = scalar_lea.vmem %s4, %s1224
        %s1226 = smul.u32 5, %s16
        %s1227 = smul.u32 5, %s16
        %v1229 = vld [vmem:[%s0] sm:$0xff]
        %v1230 = vld [vmem:[%s0 + $0x8] sm:$0xf]
        %v1231 = vld [vmem:[%s0 + $0xc] sm:$0xff]
        %v1232 = vld [vmem:[%s0 + $0x14] sm:$0xf]
        %v1233 = vld [vmem:[%s1] sm:$0xff]
        %v1234 = vld [vmem:[%s1 + $0x8] sm:$0xff]
        %v1235 = vld [vmem:[%s1 + $0x10] sm:$0xff]
        %v1236 = vld [vmem:[%s1 + $0x18] sm:$0xff]
        %v1237 = vld [vmem:[%s1 + $0x20] sm:$0xff]
        %v1238 = vld [vmem:[%s1 + $0x28] sm:$0xff]
        %v1239 = vld [vmem:[%s1 + $0x30] sm:$0xff]
        %v1240 = vld [vmem:[%s1 + $0x38] sm:$0xff]
        %v1241 = vld [vmem:[%s1 + $0x40] sm:$0xff]
        %v1242 = vld [vmem:[%s1 + $0x48] sm:$0xff]
        %v1243 = vld [vmem:[%s1 + $0x50] sm:$0xff]
        %v1244 = vld [vmem:[%s1 + $0x58] sm:$0xff]
        %v1245 = vld [vmem:[%s1 + $0x60] sm:$0xff]
        %v1246 = vld [vmem:[%s1 + $0x68] sm:$0xff]
        %v1247 = vld [vmem:[%s1 + $0x70] sm:$0xff]
        %v1248 = vld [vmem:[%s1 + $0x78] sm:$0xff]
        %v1249 = vld [vmem:[%s1 + $0x80] sm:$0xff]
        %v1250 = vld [vmem:[%s1 + $0x88] sm:$0xff]
        %v1251 = vld [vmem:[%s1 + $0x90] sm:$0xff]
        %v1252 = vld [vmem:[%s1 + $0x98] sm:$0xff]
        %v1253 = vld [vmem:[%s1 + $0xa0] sm:$0xff]
        %v1254 = vld [vmem:[%s1 + $0xa8] sm:$0xff]
        %v1255 = vld [vmem:[%s1 + $0xb0] sm:$0xff]
        %v1256 = vld [vmem:[%s1 + $0xb8] sm:$0xff]
        %v1257 = vld [vmem:[%s1 + $0xc0] sm:$0xff]
        %v1258 = vld [vmem:[%s1 + $0xc8] sm:$0xff]
        %v1259 = vld [vmem:[%s1 + $0xd0] sm:$0xff]
        %v1260 = vld [vmem:[%s1 + $0xd8] sm:$0xff]
        %v1261 = vld [vmem:[%s1 + $0xe0] sm:$0xff]
        %v1262 = vld [vmem:[%s1 + $0xe8] sm:$0xff]
        %v1263 = vld [vmem:[%s1 + $0xf0] sm:$0xff]
        %v1264 = vld [vmem:[%s1 + $0xf8] sm:$0xff]
        %v1265 = vld [vmem:[%s1 + $0x100] sm:$0xff]
        %v1266 = vld [vmem:[%s1 + $0x108] sm:$0xff]
        %v1267 = vld [vmem:[%s1 + $0x110] sm:$0xff]
        %v1268 = vld [vmem:[%s1 + $0x118] sm:$0xff]
        %v1269 = vld [vmem:[%s1 + $0x120] sm:$0xff]
        %v1270 = vld [vmem:[%s1 + $0x128] sm:$0xff]
        %v1271 = vld [vmem:[%s1 + $0x130] sm:$0xff]
        %v1272 = vld [vmem:[%s1 + $0x138] sm:$0xff]
        %v1273 = vld [vmem:[%s1 + $0x140] sm:$0xff]
        %v1274 = vld [vmem:[%s1 + $0x148] sm:$0xff]
        %v1275 = vld [vmem:[%s1 + $0x150] sm:$0xff]
        %v1276 = vld [vmem:[%s1 + $0x158] sm:$0xff]
        %v1277 = vld [vmem:[%s1 + $0x160] sm:$0xff]
        %v1278 = vld [vmem:[%s1 + $0x168] sm:$0xff]
        %v1279 = vld [vmem:[%s1 + $0x170] sm:$0xff]
        %v1280 = vld [vmem:[%s1 + $0x178] sm:$0xff]
        %v1281 = vld [vmem:[%s1 + $0x180] sm:$0xff]
        %v1282 = vld [vmem:[%s1 + $0x188] sm:$0xff]
        %v1283 = vld [vmem:[%s1 + $0x190] sm:$0xff]
        %v1284 = vld [vmem:[%s1 + $0x198] sm:$0xff]
        %v1285 = vld [vmem:[%s1 + $0x1a0] sm:$0xff]
        %v1286 = vld [vmem:[%s1 + $0x1a8] sm:$0xff]
        %v1287 = vld [vmem:[%s1 + $0x1b0] sm:$0xff]
        %v1288 = vld [vmem:[%s1 + $0x1b8] sm:$0xff]
        %v1289 = vld [vmem:[%s1 + $0x1c0] sm:$0xff]
        %v1290 = vld [vmem:[%s1 + $0x1c8] sm:$0xff]
        %v1291 = vld [vmem:[%s1 + $0x1d0] sm:$0xff]
        %v1292 = vld [vmem:[%s1 + $0x1d8] sm:$0xff]
        %v1293 = vld [vmem:[%s1 + $0x1e0] sm:$0xff]
        %v1294 = vld [vmem:[%s1 + $0x1e8] sm:$0xff]
        %v1295 = vld [vmem:[%s1 + $0x1f0] sm:$0xff]
        %v1296 = vld [vmem:[%s1 + $0x1f8] sm:$0xff]
        %v1297 = vld [vmem:[%s1 + $0x200] sm:$0xff]
        %v1298 = vld [vmem:[%s1 + $0x208] sm:$0xff]
        %v1299 = vld [vmem:[%s1 + $0x210] sm:$0xff]
        %v1300 = vld [vmem:[%s1 + $0x218] sm:$0xff]
        %v1301 = vld [vmem:[%s1 + $0x220] sm:$0xff]
        %v1302 = vld [vmem:[%s1 + $0x228] sm:$0xff]
        %v1303 = vld [vmem:[%s1 + $0x230] sm:$0xff]
        %v1304 = vld [vmem:[%s1 + $0x238] sm:$0xff]
        %v1305 = vld [vmem:[%s1 + $0x240] sm:$0xff]
        %v1306 = vld [vmem:[%s1 + $0x248] sm:$0xff]
        %v1307 = vld [vmem:[%s1 + $0x250] sm:$0xff]
        %v1308 = vld [vmem:[%s1 + $0x258] sm:$0xff]
        %v1309 = vld [vmem:[%s1 + $0x260] sm:$0xff]
        %v1310 = vld [vmem:[%s1 + $0x268] sm:$0xff]
        %v1311 = vld [vmem:[%s1 + $0x270] sm:$0xff]
        %v1312 = vld [vmem:[%s1 + $0x278] sm:$0xff]
        %v1313 = vld [vmem:[%s1 + $0x280] sm:$0xff]
        %v1314 = vld [vmem:[%s1 + $0x288] sm:$0xff]
        %v1315 = vld [vmem:[%s1 + $0x290] sm:$0xff]
        %v1316 = vld [vmem:[%s1 + $0x298] sm:$0xff]
        %v1317 = vld [vmem:[%s1 + $0x2a0] sm:$0xff]
        %v1318 = vld [vmem:[%s1 + $0x2a8] sm:$0xff]
        %v1319 = vld [vmem:[%s1 + $0x2b0] sm:$0xff]
        %v1320 = vld [vmem:[%s1 + $0x2b8] sm:$0xff]
        %v1321 = vld [vmem:[%s1 + $0x2c0] sm:$0xff]
        %v1322 = vld [vmem:[%s1 + $0x2c8] sm:$0xff]
        %v1323 = vld [vmem:[%s1 + $0x2d0] sm:$0xff]
        %v1324 = vld [vmem:[%s1 + $0x2d8] sm:$0xff]
        %v1325 = vld [vmem:[%s1 + $0x2e0] sm:$0xff]
        %v1326 = vld [vmem:[%s1 + $0x2e8] sm:$0xff]
        %v1327 = vld [vmem:[%s1 + $0x2f0] sm:$0xff]
        %v1328 = vld [vmem:[%s1 + $0x2f8] sm:$0xff]
        %v1329 = vld [vmem:[%s1 + $0x300] sm:$0xff]
        %v1330 = vld [vmem:[%s1 + $0x308] sm:$0xff]
        %v1331 = vld [vmem:[%s1 + $0x310] sm:$0xff]
        %v1332 = vld [vmem:[%s1 + $0x318] sm:$0xff]
        %v1333 = vld [vmem:[%s1 + $0x320] sm:$0xff]
        %v1334 = vld [vmem:[%s1 + $0x328] sm:$0xff]
        %v1335 = vld [vmem:[%s1 + $0x330] sm:$0xff]
        %v1336 = vld [vmem:[%s1 + $0x338] sm:$0xff]
        %v1337 = vld [vmem:[%s1 + $0x340] sm:$0xff]
        %v1338 = vld [vmem:[%s1 + $0x348] sm:$0xff]
        %v1339 = vld [vmem:[%s1 + $0x350] sm:$0xff]
        %v1340 = vld [vmem:[%s1 + $0x358] sm:$0xff]
        %v1341 = vld [vmem:[%s1 + $0x360] sm:$0xff]
        %v1342 = vld [vmem:[%s1 + $0x368] sm:$0xff]
        %v1343 = vld [vmem:[%s1 + $0x370] sm:$0xff]
        %v1344 = vld [vmem:[%s1 + $0x378] sm:$0xff]
        %v1345 = vld [vmem:[%s1 + $0x380] sm:$0xff]
        %v1346 = vld [vmem:[%s1 + $0x388] sm:$0xff]
        %v1347 = vld [vmem:[%s1 + $0x390] sm:$0xff]
        %v1348 = vld [vmem:[%s1 + $0x398] sm:$0xff]
        %v1349 = vld [vmem:[%s1 + $0x3a0] sm:$0xff]
        %v1350 = vld [vmem:[%s1 + $0x3a8] sm:$0xff]
        %v1351 = vld [vmem:[%s1 + $0x3b0] sm:$0xff]
        %v1352 = vld [vmem:[%s1 + $0x3b8] sm:$0xff]
        %v1353 = vld [vmem:[%s1 + $0x3c0] sm:$0xff]
        %v1354 = vld [vmem:[%s1 + $0x3c8] sm:$0xff]
        %v1355 = vld [vmem:[%s1 + $0x3d0] sm:$0xff]
        %v1356 = vld [vmem:[%s1 + $0x3d8] sm:$0xff]
        %v1357 = vld [vmem:[%s1 + $0x3e0] sm:$0xff]
        %v1358 = vld [vmem:[%s1 + $0x3e8] sm:$0xff]
        %v1359 = vld [vmem:[%s1 + $0x3f0] sm:$0xff]
        %v1360 = vld [vmem:[%s1 + $0x3f8] sm:$0xff]
        %v1361 = vld [vmem:[%s1 + $0x400] sm:$0xff]
        %v1362 = vld [vmem:[%s1 + $0x408] sm:$0xff]
        %v1363 = vld [vmem:[%s1 + $0x410] sm:$0xff]
        %v1364 = vld [vmem:[%s1 + $0x418] sm:$0xff]
        %v1365 = vld [vmem:[%s1 + $0x420] sm:$0xff]
        %v1366 = vld [vmem:[%s1 + $0x428] sm:$0xff]
        %v1367 = vld [vmem:[%s1 + $0x430] sm:$0xff]
        %v1368 = vld [vmem:[%s1 + $0x438] sm:$0xff]
        %v1369 = vld [vmem:[%s1 + $0x440] sm:$0xff]
        %v1370 = vld [vmem:[%s1 + $0x448] sm:$0xff]
        %v1371 = vld [vmem:[%s1 + $0x450] sm:$0xff]
        %v1372 = vld [vmem:[%s1 + $0x458] sm:$0xff]
        %v1373 = vld [vmem:[%s1 + $0x460] sm:$0xff]
        %v1374 = vld [vmem:[%s1 + $0x468] sm:$0xff]
        %v1375 = vld [vmem:[%s1 + $0x470] sm:$0xff]
        %v1376 = vld [vmem:[%s1 + $0x478] sm:$0xff]
        %v1377 = vld [vmem:[%s1 + $0x480] sm:$0xff]
        %v1378 = vld [vmem:[%s1 + $0x488] sm:$0xff]
        %v1379 = vld [vmem:[%s1 + $0x490] sm:$0xff]
        %v1380 = vld [vmem:[%s1 + $0x498] sm:$0xff]
        %v1381 = vld [vmem:[%s1 + $0x4a0] sm:$0xff]
        %v1382 = vld [vmem:[%s1 + $0x4a8] sm:$0xff]
        %v1383 = vld [vmem:[%s1 + $0x4b0] sm:$0xff]
        %v1384 = vld [vmem:[%s1 + $0x4b8] sm:$0xff]
        %v1385 = vld [vmem:[%s1 + $0x4c0] sm:$0xff]
        %v1386 = vld [vmem:[%s1 + $0x4c8] sm:$0xff]
        %v1387 = vld [vmem:[%s1 + $0x4d0] sm:$0xff]
        %v1388 = vld [vmem:[%s1 + $0x4d8] sm:$0xff]
        %v1389 = vld [vmem:[%s1 + $0x4e0] sm:$0xff]
        %v1390 = vld [vmem:[%s1 + $0x4e8] sm:$0xff]
        %v1391 = vld [vmem:[%s1 + $0x4f0] sm:$0xff]
        %v1392 = vld [vmem:[%s1 + $0x4f8] sm:$0xff]
        %v1393 = vld [vmem:[%s1 + $0x500] sm:$0xff]
        %v1394 = vld [vmem:[%s1 + $0x508] sm:$0xff]
        %v1395 = vld [vmem:[%s1 + $0x510] sm:$0xff]
        %v1396 = vld [vmem:[%s1 + $0x518] sm:$0xff]
        %v1397 = vld [vmem:[%s1 + $0x520] sm:$0xff]
        %v1398 = vld [vmem:[%s1 + $0x528] sm:$0xff]
        %v1399 = vld [vmem:[%s1 + $0x530] sm:$0xff]
        %v1400 = vld [vmem:[%s1 + $0x538] sm:$0xff]
        %v1401 = vld [vmem:[%s1 + $0x540] sm:$0xff]
        %v1402 = vld [vmem:[%s1 + $0x548] sm:$0xff]
        %v1403 = vld [vmem:[%s1 + $0x550] sm:$0xff]
        %v1404 = vld [vmem:[%s1 + $0x558] sm:$0xff]
        %v1405 = vld [vmem:[%s1 + $0x560] sm:$0xff]
        %v1406 = vld [vmem:[%s1 + $0x568] sm:$0xff]
        %v1407 = vld [vmem:[%s1 + $0x570] sm:$0xff]
        %v1408 = vld [vmem:[%s1 + $0x578] sm:$0xff]
        %v1409 = vld [vmem:[%s1 + $0x580] sm:$0xff]
        %v1410 = vld [vmem:[%s1 + $0x588] sm:$0xff]
        %v1411 = vld [vmem:[%s1 + $0x590] sm:$0xff]
        %v1412 = vld [vmem:[%s1 + $0x598] sm:$0xff]
        %v1413 = vld [vmem:[%s1 + $0x5a0] sm:$0xff]
        %v1414 = vld [vmem:[%s1 + $0x5a8] sm:$0xff]
        %v1415 = vld [vmem:[%s1 + $0x5b0] sm:$0xff]
        %v1416 = vld [vmem:[%s1 + $0x5b8] sm:$0xff]
        %v1417 = vld [vmem:[%s1 + $0x5c0] sm:$0xff]
        %v1418 = vld [vmem:[%s1 + $0x5c8] sm:$0xff]
        %v1419 = vld [vmem:[%s1 + $0x5d0] sm:$0xff]
        %v1420 = vld [vmem:[%s1 + $0x5d8] sm:$0xff]
        %v1421 = vld [vmem:[%s1 + $0x5e0] sm:$0xff]
        %v1422 = vld [vmem:[%s1 + $0x5e8] sm:$0xff]
        %v1423 = vld [vmem:[%s1 + $0x5f0] sm:$0xff]
        %v1424 = vld [vmem:[%s1 + $0x5f8] sm:$0xff]
        %v1425 = vld [vmem:[%s1 + $0x600] sm:$0xff]
        %v1426 = vld [vmem:[%s1 + $0x608] sm:$0xff]
        %v1427 = vld [vmem:[%s1 + $0x610] sm:$0xff]
        %v1428 = vld [vmem:[%s1 + $0x618] sm:$0xff]
        %v1429 = vld [vmem:[%s1 + $0x620] sm:$0xff]
        %v1430 = vld [vmem:[%s1 + $0x628] sm:$0xff]
        %v1431 = vld [vmem:[%s1 + $0x630] sm:$0xff]
        %v1432 = vld [vmem:[%s1 + $0x638] sm:$0xff]
        %v1433 = vld [vmem:[%s2] sm:$0xff]
        %v1434 = vld [vmem:[%s2 + $0x8] sm:$0x3]
        %v1437 = vlaneseq
        %v1438 = vshrl.u32 %v1437, 7
        %v1439 = vsub.s32 0, %v1438
        %v1440 = vrot.slane %v1433, %v1439
        %v1441 = vlaneseq
        %v1442 = vshrl.u32 %v1441, 7
        %v1443 = vsub.s32 1, %v1442
        %v1444 = vrot.slane %v1433, %v1443
        %v1445 = vlaneseq
        %v1446 = vshrl.u32 %v1445, 7
        %v1447 = vsub.s32 2, %v1446
        %v1448 = vrot.slane %v1433, %v1447
        %v1449 = vlaneseq
        %v1450 = vshrl.u32 %v1449, 7
        %v1451 = vsub.s32 3, %v1450
        %v1452 = vrot.slane %v1433, %v1451
        %v1453 = vlaneseq
        %v1454 = vshrl.u32 %v1453, 7
        %v1455 = vsub.s32 4, %v1454
        %v1456 = vrot.slane %v1433, %v1455
        %v1457 = vlaneseq
        %v1458 = vshrl.u32 %v1457, 7
        %v1459 = vsub.s32 5, %v1458
        %v1460 = vrot.slane %v1433, %v1459
        %v1461 = vlaneseq
        %v1462 = vshrl.u32 %v1461, 7
        %v1463 = vsub.s32 6, %v1462
        %v1464 = vrot.slane %v1433, %v1463
        %v1465 = vlaneseq
        %v1466 = vshrl.u32 %v1465, 7
        %v1467 = vsub.s32 7, %v1466
        %v1468 = vrot.slane %v1433, %v1467
        %v1469 = vlaneseq
        %v1470 = vshrl.u32 %v1469, 7
        %v1471 = vsub.s32 0, %v1470
        %v1472 = vrot.slane %v1434, %v1471
        %v1473 = vlaneseq
        %v1474 = vshrl.u32 %v1473, 7
        %v1475 = vsub.s32 1, %v1474
        %v1476 = vrot.slane %v1434, %v1475
        %v1491 = vunpack.c.l.b16 %v1229
        %v1492 = vunpack.c.h.b16 %v1229
        %v1493 = vunpack.c.l.b16 %v1230
        %v1494 = vunpack.c.l.b16 %v1231
        %v1495 = vunpack.c.h.b16 %v1231
        %v1496 = vunpack.c.l.b16 %v1232
        %v1497 = vpack.c.b16 %v1494, %v1491
        %v1498 = vpack.c.b16 %v1495, %v1492
        %v1499 = vpack.c.b16 %v1496, %v1493
        %v1702 = vunpack.c.l.b16 %v1233
        %v1703 = vunpack.c.h.b16 %v1233
        %v1704 = vunpack.c.l.b16 %v1234
        %v1705 = vunpack.c.h.b16 %v1234
        %v1706 = vunpack.c.l.b16 %v1235
        %v1707 = vunpack.c.h.b16 %v1235
        %v1708 = vunpack.c.l.b16 %v1236
        %v1709 = vunpack.c.h.b16 %v1236
        %v1710 = vunpack.c.l.b16 %v1237
        %v1711 = vunpack.c.h.b16 %v1237
        %v1712 = vunpack.c.l.b16 %v1238
        %v1713 = vunpack.c.h.b16 %v1238
        %v1714 = vunpack.c.l.b16 %v1239
        %v1715 = vunpack.c.h.b16 %v1239
        %v1716 = vunpack.c.l.b16 %v1240
        %v1717 = vunpack.c.h.b16 %v1240
        %v1718 = vunpack.c.l.b16 %v1241
        %v1719 = vunpack.c.h.b16 %v1241
        %v1720 = vunpack.c.l.b16 %v1242
        %v1721 = vunpack.c.h.b16 %v1242
        %v1722 = vunpack.c.l.b16 %v1243
        %v1723 = vunpack.c.h.b16 %v1243
        %v1724 = vunpack.c.l.b16 %v1244
        %v1725 = vunpack.c.h.b16 %v1244
        %v1726 = vunpack.c.l.b16 %v1245
        %v1727 = vunpack.c.h.b16 %v1245
        %v1728 = vunpack.c.l.b16 %v1246
        %v1729 = vunpack.c.h.b16 %v1246
        %v1730 = vunpack.c.l.b16 %v1247
        %v1731 = vunpack.c.h.b16 %v1247
        %v1732 = vunpack.c.l.b16 %v1248
        %v1733 = vunpack.c.h.b16 %v1248
        %v1734 = vunpack.c.l.b16 %v1249
        %v1735 = vunpack.c.h.b16 %v1249
        %v1736 = vunpack.c.l.b16 %v1250
        %v1737 = vunpack.c.h.b16 %v1250
        %v1738 = vunpack.c.l.b16 %v1251
        %v1739 = vunpack.c.h.b16 %v1251
        %v1740 = vunpack.c.l.b16 %v1252
        %v1741 = vunpack.c.h.b16 %v1252
        %v1742 = vunpack.c.l.b16 %v1253
        %v1743 = vunpack.c.h.b16 %v1253
        %v1744 = vunpack.c.l.b16 %v1254
        %v1745 = vunpack.c.h.b16 %v1254
        %v1746 = vunpack.c.l.b16 %v1255
        %v1747 = vunpack.c.h.b16 %v1255
        %v1748 = vunpack.c.l.b16 %v1256
        %v1749 = vunpack.c.h.b16 %v1256
        %v1750 = vunpack.c.l.b16 %v1257
        %v1751 = vunpack.c.h.b16 %v1257
        %v1752 = vunpack.c.l.b16 %v1258
        %v1753 = vunpack.c.h.b16 %v1258
        %v1754 = vunpack.c.l.b16 %v1259
        %v1755 = vunpack.c.h.b16 %v1259
        %v1756 = vunpack.c.l.b16 %v1260
        %v1757 = vunpack.c.h.b16 %v1260
        %v1758 = vunpack.c.l.b16 %v1261
        %v1759 = vunpack.c.h.b16 %v1261
        %v1760 = vunpack.c.l.b16 %v1262
        %v1761 = vunpack.c.h.b16 %v1262
        %v1762 = vunpack.c.l.b16 %v1263
        %v1763 = vunpack.c.h.b16 %v1263
        %v1764 = vunpack.c.l.b16 %v1264
        %v1765 = vunpack.c.h.b16 %v1264
        %v1766 = vunpack.c.l.b16 %v1265
        %v1767 = vunpack.c.h.b16 %v1265
        %v1768 = vunpack.c.l.b16 %v1266
        %v1769 = vunpack.c.h.b16 %v1266
        %v1770 = vunpack.c.l.b16 %v1267
        %v1771 = vunpack.c.h.b16 %v1267
        %v1772 = vunpack.c.l.b16 %v1268
        %v1773 = vunpack.c.h.b16 %v1268
        %v1774 = vunpack.c.l.b16 %v1269
        %v1775 = vunpack.c.h.b16 %v1269
        %v1776 = vunpack.c.l.b16 %v1270
        %v1777 = vunpack.c.h.b16 %v1270
        %v1778 = vunpack.c.l.b16 %v1271
        %v1779 = vunpack.c.h.b16 %v1271
        %v1780 = vunpack.c.l.b16 %v1272
        %v1781 = vunpack.c.h.b16 %v1272
        %v1782 = vunpack.c.l.b16 %v1273
        %v1783 = vunpack.c.h.b16 %v1273
        %v1784 = vunpack.c.l.b16 %v1274
        %v1785 = vunpack.c.h.b16 %v1274
        %v1786 = vunpack.c.l.b16 %v1275
        %v1787 = vunpack.c.h.b16 %v1275
        %v1788 = vunpack.c.l.b16 %v1276
        %v1789 = vunpack.c.h.b16 %v1276
        %v1790 = vunpack.c.l.b16 %v1277
        %v1791 = vunpack.c.h.b16 %v1277
        %v1792 = vunpack.c.l.b16 %v1278
        %v1793 = vunpack.c.h.b16 %v1278
        %v1794 = vunpack.c.l.b16 %v1279
        %v1795 = vunpack.c.h.b16 %v1279
        %v1796 = vunpack.c.l.b16 %v1280
        %v1797 = vunpack.c.h.b16 %v1280
        %v1798 = vunpack.c.l.b16 %v1281
        %v1799 = vunpack.c.h.b16 %v1281
        %v1800 = vunpack.c.l.b16 %v1282
        %v1801 = vunpack.c.h.b16 %v1282
        %v1802 = vunpack.c.l.b16 %v1283
        %v1803 = vunpack.c.h.b16 %v1283
        %v1804 = vunpack.c.l.b16 %v1284
        %v1805 = vunpack.c.h.b16 %v1284
        %v1806 = vunpack.c.l.b16 %v1285
        %v1807 = vunpack.c.h.b16 %v1285
        %v1808 = vunpack.c.l.b16 %v1286
        %v1809 = vunpack.c.h.b16 %v1286
        %v1810 = vunpack.c.l.b16 %v1287
        %v1811 = vunpack.c.h.b16 %v1287
        %v1812 = vunpack.c.l.b16 %v1288
        %v1813 = vunpack.c.h.b16 %v1288
        %v1814 = vunpack.c.l.b16 %v1289
        %v1815 = vunpack.c.h.b16 %v1289
        %v1816 = vunpack.c.l.b16 %v1290
        %v1817 = vunpack.c.h.b16 %v1290
        %v1818 = vunpack.c.l.b16 %v1291
        %v1819 = vunpack.c.h.b16 %v1291
        %v1820 = vunpack.c.l.b16 %v1292
        %v1821 = vunpack.c.h.b16 %v1292
        %v1822 = vunpack.c.l.b16 %v1293
        %v1823 = vunpack.c.h.b16 %v1293
        %v1824 = vunpack.c.l.b16 %v1294
        %v1825 = vunpack.c.h.b16 %v1294
        %v1826 = vunpack.c.l.b16 %v1295
        %v1827 = vunpack.c.h.b16 %v1295
        %v1828 = vunpack.c.l.b16 %v1296
        %v1829 = vunpack.c.h.b16 %v1296
        %v1830 = vunpack.c.l.b16 %v1297
        %v1831 = vunpack.c.h.b16 %v1297
        %v1832 = vunpack.c.l.b16 %v1298
        %v1833 = vunpack.c.h.b16 %v1298
        %v1834 = vunpack.c.l.b16 %v1299
        %v1835 = vunpack.c.h.b16 %v1299
        %v1836 = vunpack.c.l.b16 %v1300
        %v1837 = vunpack.c.h.b16 %v1300
        %v1838 = vunpack.c.l.b16 %v1301
        %v1839 = vunpack.c.h.b16 %v1301
        %v1840 = vunpack.c.l.b16 %v1302
        %v1841 = vunpack.c.h.b16 %v1302
        %v1842 = vunpack.c.l.b16 %v1303
        %v1843 = vunpack.c.h.b16 %v1303
        %v1844 = vunpack.c.l.b16 %v1304
        %v1845 = vunpack.c.h.b16 %v1304
        %v1846 = vunpack.c.l.b16 %v1305
        %v1847 = vunpack.c.h.b16 %v1305
        %v1848 = vunpack.c.l.b16 %v1306
        %v1849 = vunpack.c.h.b16 %v1306
        %v1850 = vunpack.c.l.b16 %v1307
        %v1851 = vunpack.c.h.b16 %v1307
        %v1852 = vunpack.c.l.b16 %v1308
        %v1853 = vunpack.c.h.b16 %v1308
        %v1854 = vunpack.c.l.b16 %v1309
        %v1855 = vunpack.c.h.b16 %v1309
        %v1856 = vunpack.c.l.b16 %v1310
        %v1857 = vunpack.c.h.b16 %v1310
        %v1858 = vunpack.c.l.b16 %v1311
        %v1859 = vunpack.c.h.b16 %v1311
        %v1860 = vunpack.c.l.b16 %v1312
        %v1861 = vunpack.c.h.b16 %v1312
        %v1862 = vunpack.c.l.b16 %v1313
        %v1863 = vunpack.c.h.b16 %v1313
        %v1864 = vunpack.c.l.b16 %v1314
        %v1865 = vunpack.c.h.b16 %v1314
        %v1866 = vunpack.c.l.b16 %v1315
        %v1867 = vunpack.c.h.b16 %v1315
        %v1868 = vunpack.c.l.b16 %v1316
        %v1869 = vunpack.c.h.b16 %v1316
        %v1870 = vunpack.c.l.b16 %v1317
        %v1871 = vunpack.c.h.b16 %v1317
        %v1872 = vunpack.c.l.b16 %v1318
        %v1873 = vunpack.c.h.b16 %v1318
        %v1874 = vunpack.c.l.b16 %v1319
        %v1875 = vunpack.c.h.b16 %v1319
        %v1876 = vunpack.c.l.b16 %v1320
        %v1877 = vunpack.c.h.b16 %v1320
        %v1878 = vunpack.c.l.b16 %v1321
        %v1879 = vunpack.c.h.b16 %v1321
        %v1880 = vunpack.c.l.b16 %v1322
        %v1881 = vunpack.c.h.b16 %v1322
        %v1882 = vunpack.c.l.b16 %v1323
        %v1883 = vunpack.c.h.b16 %v1323
        %v1884 = vunpack.c.l.b16 %v1324
        %v1885 = vunpack.c.h.b16 %v1324
        %v1886 = vunpack.c.l.b16 %v1325
        %v1887 = vunpack.c.h.b16 %v1325
        %v1888 = vunpack.c.l.b16 %v1326
        %v1889 = vunpack.c.h.b16 %v1326
        %v1890 = vunpack.c.l.b16 %v1327
        %v1891 = vunpack.c.h.b16 %v1327
        %v1892 = vunpack.c.l.b16 %v1328
        %v1893 = vunpack.c.h.b16 %v1328
        %v1894 = vunpack.c.l.b16 %v1329
        %v1895 = vunpack.c.h.b16 %v1329
        %v1896 = vunpack.c.l.b16 %v1330
        %v1897 = vunpack.c.h.b16 %v1330
        %v1898 = vunpack.c.l.b16 %v1331
        %v1899 = vunpack.c.h.b16 %v1331
        %v1900 = vunpack.c.l.b16 %v1332
        %v1901 = vunpack.c.h.b16 %v1332
        %v1902 = vunpack.c.l.b16 %v1333
        %v1903 = vunpack.c.h.b16 %v1333
        %v1904 = vunpack.c.l.b16 %v1334
        %v1905 = vunpack.c.h.b16 %v1334
        %v1906 = vunpack.c.l.b16 %v1335
        %v1907 = vunpack.c.h.b16 %v1335
        %v1908 = vunpack.c.l.b16 %v1336
        %v1909 = vunpack.c.h.b16 %v1336
        %v1910 = vunpack.c.l.b16 %v1337
        %v1911 = vunpack.c.h.b16 %v1337
        %v1912 = vunpack.c.l.b16 %v1338
        %v1913 = vunpack.c.h.b16 %v1338
        %v1914 = vunpack.c.l.b16 %v1339
        %v1915 = vunpack.c.h.b16 %v1339
        %v1916 = vunpack.c.l.b16 %v1340
        %v1917 = vunpack.c.h.b16 %v1340
        %v1918 = vunpack.c.l.b16 %v1341
        %v1919 = vunpack.c.h.b16 %v1341
        %v1920 = vunpack.c.l.b16 %v1342
        %v1921 = vunpack.c.h.b16 %v1342
        %v1922 = vunpack.c.l.b16 %v1343
        %v1923 = vunpack.c.h.b16 %v1343
        %v1924 = vunpack.c.l.b16 %v1344
        %v1925 = vunpack.c.h.b16 %v1344
        %v1926 = vunpack.c.l.b16 %v1345
        %v1927 = vunpack.c.h.b16 %v1345
        %v1928 = vunpack.c.l.b16 %v1346
        %v1929 = vunpack.c.h.b16 %v1346
        %v1930 = vunpack.c.l.b16 %v1347
        %v1931 = vunpack.c.h.b16 %v1347
        %v1932 = vunpack.c.l.b16 %v1348
        %v1933 = vunpack.c.h.b16 %v1348
        %v1934 = vunpack.c.l.b16 %v1349
        %v1935 = vunpack.c.h.b16 %v1349
        %v1936 = vunpack.c.l.b16 %v1350
        %v1937 = vunpack.c.h.b16 %v1350
        %v1938 = vunpack.c.l.b16 %v1351
        %v1939 = vunpack.c.h.b16 %v1351
        %v1940 = vunpack.c.l.b16 %v1352
        %v1941 = vunpack.c.h.b16 %v1352
        %v1942 = vunpack.c.l.b16 %v1353
        %v1943 = vunpack.c.h.b16 %v1353
        %v1944 = vunpack.c.l.b16 %v1354
        %v1945 = vunpack.c.h.b16 %v1354
        %v1946 = vunpack.c.l.b16 %v1355
        %v1947 = vunpack.c.h.b16 %v1355
        %v1948 = vunpack.c.l.b16 %v1356
        %v1949 = vunpack.c.h.b16 %v1356
        %v1950 = vunpack.c.l.b16 %v1357
        %v1951 = vunpack.c.h.b16 %v1357
        %v1952 = vunpack.c.l.b16 %v1358
        %v1953 = vunpack.c.h.b16 %v1358
        %v1954 = vunpack.c.l.b16 %v1359
        %v1955 = vunpack.c.h.b16 %v1359
        %v1956 = vunpack.c.l.b16 %v1360
        %v1957 = vunpack.c.h.b16 %v1360
        %v1958 = vunpack.c.l.b16 %v1361
        %v1959 = vunpack.c.h.b16 %v1361
        %v1960 = vunpack.c.l.b16 %v1362
        %v1961 = vunpack.c.h.b16 %v1362
        %v1962 = vunpack.c.l.b16 %v1363
        %v1963 = vunpack.c.h.b16 %v1363
        %v1964 = vunpack.c.l.b16 %v1364
        %v1965 = vunpack.c.h.b16 %v1364
        %v1966 = vunpack.c.l.b16 %v1365
        %v1967 = vunpack.c.h.b16 %v1365
        %v1968 = vunpack.c.l.b16 %v1366
        %v1969 = vunpack.c.h.b16 %v1366
        %v1970 = vunpack.c.l.b16 %v1367
        %v1971 = vunpack.c.h.b16 %v1367
        %v1972 = vunpack.c.l.b16 %v1368
        %v1973 = vunpack.c.h.b16 %v1368
        %v1974 = vunpack.c.l.b16 %v1369
        %v1975 = vunpack.c.h.b16 %v1369
        %v1976 = vunpack.c.l.b16 %v1370
        %v1977 = vunpack.c.h.b16 %v1370
        %v1978 = vunpack.c.l.b16 %v1371
        %v1979 = vunpack.c.h.b16 %v1371
        %v1980 = vunpack.c.l.b16 %v1372
        %v1981 = vunpack.c.h.b16 %v1372
        %v1982 = vunpack.c.l.b16 %v1373
        %v1983 = vunpack.c.h.b16 %v1373
        %v1984 = vunpack.c.l.b16 %v1374
        %v1985 = vunpack.c.h.b16 %v1374
        %v1986 = vunpack.c.l.b16 %v1375
        %v1987 = vunpack.c.h.b16 %v1375
        %v1988 = vunpack.c.l.b16 %v1376
        %v1989 = vunpack.c.h.b16 %v1376
        %v1990 = vunpack.c.l.b16 %v1377
        %v1991 = vunpack.c.h.b16 %v1377
        %v1992 = vunpack.c.l.b16 %v1378
        %v1993 = vunpack.c.h.b16 %v1378
        %v1994 = vunpack.c.l.b16 %v1379
        %v1995 = vunpack.c.h.b16 %v1379
        %v1996 = vunpack.c.l.b16 %v1380
        %v1997 = vunpack.c.h.b16 %v1380
        %v1998 = vunpack.c.l.b16 %v1381
        %v1999 = vunpack.c.h.b16 %v1381
        %v2000 = vunpack.c.l.b16 %v1382
        %v2001 = vunpack.c.h.b16 %v1382
        %v2002 = vunpack.c.l.b16 %v1383
        %v2003 = vunpack.c.h.b16 %v1383
        %v2004 = vunpack.c.l.b16 %v1384
        %v2005 = vunpack.c.h.b16 %v1384
        %v2006 = vunpack.c.l.b16 %v1385
        %v2007 = vunpack.c.h.b16 %v1385
        %v2008 = vunpack.c.l.b16 %v1386
        %v2009 = vunpack.c.h.b16 %v1386
        %v2010 = vunpack.c.l.b16 %v1387
        %v2011 = vunpack.c.h.b16 %v1387
        %v2012 = vunpack.c.l.b16 %v1388
        %v2013 = vunpack.c.h.b16 %v1388
        %v2014 = vunpack.c.l.b16 %v1389
        %v2015 = vunpack.c.h.b16 %v1389
        %v2016 = vunpack.c.l.b16 %v1390
        %v2017 = vunpack.c.h.b16 %v1390
        %v2018 = vunpack.c.l.b16 %v1391
        %v2019 = vunpack.c.h.b16 %v1391
        %v2020 = vunpack.c.l.b16 %v1392
        %v2021 = vunpack.c.h.b16 %v1392
        %v2022 = vunpack.c.l.b16 %v1393
        %v2023 = vunpack.c.h.b16 %v1393
        %v2024 = vunpack.c.l.b16 %v1394
        %v2025 = vunpack.c.h.b16 %v1394
        %v2026 = vunpack.c.l.b16 %v1395
        %v2027 = vunpack.c.h.b16 %v1395
        %v2028 = vunpack.c.l.b16 %v1396
        %v2029 = vunpack.c.h.b16 %v1396
        %v2030 = vunpack.c.l.b16 %v1397
        %v2031 = vunpack.c.h.b16 %v1397
        %v2032 = vunpack.c.l.b16 %v1398
        %v2033 = vunpack.c.h.b16 %v1398
        %v2034 = vunpack.c.l.b16 %v1399
        %v2035 = vunpack.c.h.b16 %v1399
        %v2036 = vunpack.c.l.b16 %v1400
        %v2037 = vunpack.c.h.b16 %v1400
        %v2038 = vunpack.c.l.b16 %v1401
        %v2039 = vunpack.c.h.b16 %v1401
        %v2040 = vunpack.c.l.b16 %v1402
        %v2041 = vunpack.c.h.b16 %v1402
        %v2042 = vunpack.c.l.b16 %v1403
        %v2043 = vunpack.c.h.b16 %v1403
        %v2044 = vunpack.c.l.b16 %v1404
        %v2045 = vunpack.c.h.b16 %v1404
        %v2046 = vunpack.c.l.b16 %v1405
        %v2047 = vunpack.c.h.b16 %v1405
        %v2048 = vunpack.c.l.b16 %v1406
        %v2049 = vunpack.c.h.b16 %v1406
        %v2050 = vunpack.c.l.b16 %v1407
        %v2051 = vunpack.c.h.b16 %v1407
        %v2052 = vunpack.c.l.b16 %v1408
        %v2053 = vunpack.c.h.b16 %v1408
        %v2054 = vunpack.c.l.b16 %v1409
        %v2055 = vunpack.c.h.b16 %v1409
        %v2056 = vunpack.c.l.b16 %v1410
        %v2057 = vunpack.c.h.b16 %v1410
        %v2058 = vunpack.c.l.b16 %v1411
        %v2059 = vunpack.c.h.b16 %v1411
        %v2060 = vunpack.c.l.b16 %v1412
        %v2061 = vunpack.c.h.b16 %v1412
        %v2062 = vunpack.c.l.b16 %v1413
        %v2063 = vunpack.c.h.b16 %v1413
        %v2064 = vunpack.c.l.b16 %v1414
        %v2065 = vunpack.c.h.b16 %v1414
        %v2066 = vunpack.c.l.b16 %v1415
        %v2067 = vunpack.c.h.b16 %v1415
        %v2068 = vunpack.c.l.b16 %v1416
        %v2069 = vunpack.c.h.b16 %v1416
        %v2070 = vunpack.c.l.b16 %v1417
        %v2071 = vunpack.c.h.b16 %v1417
        %v2072 = vunpack.c.l.b16 %v1418
        %v2073 = vunpack.c.h.b16 %v1418
        %v2074 = vunpack.c.l.b16 %v1419
        %v2075 = vunpack.c.h.b16 %v1419
        %v2076 = vunpack.c.l.b16 %v1420
        %v2077 = vunpack.c.h.b16 %v1420
        %v2078 = vunpack.c.l.b16 %v1421
        %v2079 = vunpack.c.h.b16 %v1421
        %v2080 = vunpack.c.l.b16 %v1422
        %v2081 = vunpack.c.h.b16 %v1422
        %v2082 = vunpack.c.l.b16 %v1423
        %v2083 = vunpack.c.h.b16 %v1423
        %v2084 = vunpack.c.l.b16 %v1424
        %v2085 = vunpack.c.h.b16 %v1424
        %v2086 = vunpack.c.l.b16 %v1425
        %v2087 = vunpack.c.h.b16 %v1425
        %v2088 = vunpack.c.l.b16 %v1426
        %v2089 = vunpack.c.h.b16 %v1426
        %v2090 = vunpack.c.l.b16 %v1427
        %v2091 = vunpack.c.h.b16 %v1427
        %v2092 = vunpack.c.l.b16 %v1428
        %v2093 = vunpack.c.h.b16 %v1428
        %v2094 = vunpack.c.l.b16 %v1429
        %v2095 = vunpack.c.h.b16 %v1429
        %v2096 = vunpack.c.l.b16 %v1430
        %v2097 = vunpack.c.h.b16 %v1430
        %v2098 = vunpack.c.l.b16 %v1431
        %v2099 = vunpack.c.h.b16 %v1431
        %v2100 = vunpack.c.l.b16 %v1432
        %v2101 = vunpack.c.h.b16 %v1432
        %v2102 = vpack.c.b16 %v1712, %v1702
        %v2103 = vpack.c.b16 %v1713, %v1703
        %v2104 = vpack.c.b16 %v1714, %v1704
        %v2105 = vpack.c.b16 %v1715, %v1705
        %v2106 = vpack.c.b16 %v1716, %v1706
        %v2107 = vpack.c.b16 %v1717, %v1707
        %v2108 = vpack.c.b16 %v1718, %v1708
        %v2109 = vpack.c.b16 %v1719, %v1709
        %v2110 = vpack.c.b16 %v1720, %v1710
        %v2111 = vpack.c.b16 %v1721, %v1711
        %v2112 = vpack.c.b16 %v1732, %v1722
        %v2113 = vpack.c.b16 %v1733, %v1723
        %v2114 = vpack.c.b16 %v1734, %v1724
        %v2115 = vpack.c.b16 %v1735, %v1725
        %v2116 = vpack.c.b16 %v1736, %v1726
        %v2117 = vpack.c.b16 %v1737, %v1727
        %v2118 = vpack.c.b16 %v1738, %v1728
        %v2119 = vpack.c.b16 %v1739, %v1729
        %v2120 = vpack.c.b16 %v1740, %v1730
        %v2121 = vpack.c.b16 %v1741, %v1731
        %v2122 = vpack.c.b16 %v1752, %v1742
        %v2123 = vpack.c.b16 %v1753, %v1743
        %v2124 = vpack.c.b16 %v1754, %v1744
        %v2125 = vpack.c.b16 %v1755, %v1745
        %v2126 = vpack.c.b16 %v1756, %v1746
        %v2127 = vpack.c.b16 %v1757, %v1747
        %v2128 = vpack.c.b16 %v1758, %v1748
        %v2129 = vpack.c.b16 %v1759, %v1749
        %v2130 = vpack.c.b16 %v1760, %v1750
        %v2131 = vpack.c.b16 %v1761, %v1751
        %v2132 = vpack.c.b16 %v1772, %v1762
        %v2133 = vpack.c.b16 %v1773, %v1763
        %v2134 = vpack.c.b16 %v1774, %v1764
        %v2135 = vpack.c.b16 %v1775, %v1765
        %v2136 = vpack.c.b16 %v1776, %v1766
        %v2137 = vpack.c.b16 %v1777, %v1767
        %v2138 = vpack.c.b16 %v1778, %v1768
        %v2139 = vpack.c.b16 %v1779, %v1769
        %v2140 = vpack.c.b16 %v1780, %v1770
        %v2141 = vpack.c.b16 %v1781, %v1771
        %v2142 = vpack.c.b16 %v1792, %v1782
        %v2143 = vpack.c.b16 %v1793, %v1783
        %v2144 = vpack.c.b16 %v1794, %v1784
        %v2145 = vpack.c.b16 %v1795, %v1785
        %v2146 = vpack.c.b16 %v1796, %v1786
        %v2147 = vpack.c.b16 %v1797, %v1787
        %v2148 = vpack.c.b16 %v1798, %v1788
        %v2149 = vpack.c.b16 %v1799, %v1789
        %v2150 = vpack.c.b16 %v1800, %v1790
        %v2151 = vpack.c.b16 %v1801, %v1791
        %v2152 = vpack.c.b16 %v1812, %v1802
        %v2153 = vpack.c.b16 %v1813, %v1803
        %v2154 = vpack.c.b16 %v1814, %v1804
        %v2155 = vpack.c.b16 %v1815, %v1805
        %v2156 = vpack.c.b16 %v1816, %v1806
        %v2157 = vpack.c.b16 %v1817, %v1807
        %v2158 = vpack.c.b16 %v1818, %v1808
        %v2159 = vpack.c.b16 %v1819, %v1809
        %v2160 = vpack.c.b16 %v1820, %v1810
        %v2161 = vpack.c.b16 %v1821, %v1811
        %v2162 = vpack.c.b16 %v1832, %v1822
        %v2163 = vpack.c.b16 %v1833, %v1823
        %v2164 = vpack.c.b16 %v1834, %v1824
        %v2165 = vpack.c.b16 %v1835, %v1825
        %v2166 = vpack.c.b16 %v1836, %v1826
        %v2167 = vpack.c.b16 %v1837, %v1827
        %v2168 = vpack.c.b16 %v1838, %v1828
        %v2169 = vpack.c.b16 %v1839, %v1829
        %v2170 = vpack.c.b16 %v1840, %v1830
        %v2171 = vpack.c.b16 %v1841, %v1831
        %v2172 = vpack.c.b16 %v1852, %v1842
        %v2173 = vpack.c.b16 %v1853, %v1843
        %v2174 = vpack.c.b16 %v1854, %v1844
        %v2175 = vpack.c.b16 %v1855, %v1845
        %v2176 = vpack.c.b16 %v1856, %v1846
        %v2177 = vpack.c.b16 %v1857, %v1847
        %v2178 = vpack.c.b16 %v1858, %v1848
        %v2179 = vpack.c.b16 %v1859, %v1849
        %v2180 = vpack.c.b16 %v1860, %v1850
        %v2181 = vpack.c.b16 %v1861, %v1851
        %v2182 = vpack.c.b16 %v1872, %v1862
        %v2183 = vpack.c.b16 %v1873, %v1863
        %v2184 = vpack.c.b16 %v1874, %v1864
        %v2185 = vpack.c.b16 %v1875, %v1865
        %v2186 = vpack.c.b16 %v1876, %v1866
        %v2187 = vpack.c.b16 %v1877, %v1867
        %v2188 = vpack.c.b16 %v1878, %v1868
        %v2189 = vpack.c.b16 %v1879, %v1869
        %v2190 = vpack.c.b16 %v1880, %v1870
        %v2191 = vpack.c.b16 %v1881, %v1871
        %v2192 = vpack.c.b16 %v1892, %v1882
        %v2193 = vpack.c.b16 %v1893, %v1883
        %v2194 = vpack.c.b16 %v1894, %v1884
        %v2195 = vpack.c.b16 %v1895, %v1885
        %v2196 = vpack.c.b16 %v1896, %v1886
        %v2197 = vpack.c.b16 %v1897, %v1887
        %v2198 = vpack.c.b16 %v1898, %v1888
        %v2199 = vpack.c.b16 %v1899, %v1889
        %v2200 = vpack.c.b16 %v1900, %v1890
        %v2201 = vpack.c.b16 %v1901, %v1891
        %v2202 = vpack.c.b16 %v1912, %v1902
        %v2203 = vpack.c.b16 %v1913, %v1903
        %v2204 = vpack.c.b16 %v1914, %v1904
        %v2205 = vpack.c.b16 %v1915, %v1905
        %v2206 = vpack.c.b16 %v1916, %v1906
        %v2207 = vpack.c.b16 %v1917, %v1907
        %v2208 = vpack.c.b16 %v1918, %v1908
        %v2209 = vpack.c.b16 %v1919, %v1909
        %v2210 = vpack.c.b16 %v1920, %v1910
        %v2211 = vpack.c.b16 %v1921, %v1911
        %v2212 = vpack.c.b16 %v1932, %v1922
        %v2213 = vpack.c.b16 %v1933, %v1923
        %v2214 = vpack.c.b16 %v1934, %v1924
        %v2215 = vpack.c.b16 %v1935, %v1925
        %v2216 = vpack.c.b16 %v1936, %v1926
        %v2217 = vpack.c.b16 %v1937, %v1927
        %v2218 = vpack.c.b16 %v1938, %v1928
        %v2219 = vpack.c.b16 %v1939, %v1929
        %v2220 = vpack.c.b16 %v1940, %v1930
        %v2221 = vpack.c.b16 %v1941, %v1931
        %v2222 = vpack.c.b16 %v1952, %v1942
        %v2223 = vpack.c.b16 %v1953, %v1943
        %v2224 = vpack.c.b16 %v1954, %v1944
        %v2225 = vpack.c.b16 %v1955, %v1945
        %v2226 = vpack.c.b16 %v1956, %v1946
        %v2227 = vpack.c.b16 %v1957, %v1947
        %v2228 = vpack.c.b16 %v1958, %v1948
        %v2229 = vpack.c.b16 %v1959, %v1949
        %v2230 = vpack.c.b16 %v1960, %v1950
        %v2231 = vpack.c.b16 %v1961, %v1951
        %v2232 = vpack.c.b16 %v1972, %v1962
        %v2233 = vpack.c.b16 %v1973, %v1963
        %v2234 = vpack.c.b16 %v1974, %v1964
        %v2235 = vpack.c.b16 %v1975, %v1965
        %v2236 = vpack.c.b16 %v1976, %v1966
        %v2237 = vpack.c.b16 %v1977, %v1967
        %v2238 = vpack.c.b16 %v1978, %v1968
        %v2239 = vpack.c.b16 %v1979, %v1969
        %v2240 = vpack.c.b16 %v1980, %v1970
        %v2241 = vpack.c.b16 %v1981, %v1971
        %v2242 = vpack.c.b16 %v1992, %v1982
        %v2243 = vpack.c.b16 %v1993, %v1983
        %v2244 = vpack.c.b16 %v1994, %v1984
        %v2245 = vpack.c.b16 %v1995, %v1985
        %v2246 = vpack.c.b16 %v1996, %v1986
        %v2247 = vpack.c.b16 %v1997, %v1987
        %v2248 = vpack.c.b16 %v1998, %v1988
        %v2249 = vpack.c.b16 %v1999, %v1989
        %v2250 = vpack.c.b16 %v2000, %v1990
        %v2251 = vpack.c.b16 %v2001, %v1991
        %v2252 = vpack.c.b16 %v2012, %v2002
        %v2253 = vpack.c.b16 %v2013, %v2003
        %v2254 = vpack.c.b16 %v2014, %v2004
        %v2255 = vpack.c.b16 %v2015, %v2005
        %v2256 = vpack.c.b16 %v2016, %v2006
        %v2257 = vpack.c.b16 %v2017, %v2007
        %v2258 = vpack.c.b16 %v2018, %v2008
        %v2259 = vpack.c.b16 %v2019, %v2009
        %v2260 = vpack.c.b16 %v2020, %v2010
        %v2261 = vpack.c.b16 %v2021, %v2011
        %v2262 = vpack.c.b16 %v2032, %v2022
        %v2263 = vpack.c.b16 %v2033, %v2023
        %v2264 = vpack.c.b16 %v2034, %v2024
        %v2265 = vpack.c.b16 %v2035, %v2025
        %v2266 = vpack.c.b16 %v2036, %v2026
        %v2267 = vpack.c.b16 %v2037, %v2027
        %v2268 = vpack.c.b16 %v2038, %v2028
        %v2269 = vpack.c.b16 %v2039, %v2029
        %v2270 = vpack.c.b16 %v2040, %v2030
        %v2271 = vpack.c.b16 %v2041, %v2031
        %v2272 = vpack.c.b16 %v2052, %v2042
        %v2273 = vpack.c.b16 %v2053, %v2043
        %v2274 = vpack.c.b16 %v2054, %v2044
        %v2275 = vpack.c.b16 %v2055, %v2045
        %v2276 = vpack.c.b16 %v2056, %v2046
        %v2277 = vpack.c.b16 %v2057, %v2047
        %v2278 = vpack.c.b16 %v2058, %v2048
        %v2279 = vpack.c.b16 %v2059, %v2049
        %v2280 = vpack.c.b16 %v2060, %v2050
        %v2281 = vpack.c.b16 %v2061, %v2051
        %v2282 = vpack.c.b16 %v2072, %v2062
        %v2283 = vpack.c.b16 %v2073, %v2063
        %v2284 = vpack.c.b16 %v2074, %v2064
        %v2285 = vpack.c.b16 %v2075, %v2065
        %v2286 = vpack.c.b16 %v2076, %v2066
        %v2287 = vpack.c.b16 %v2077, %v2067
        %v2288 = vpack.c.b16 %v2078, %v2068
        %v2289 = vpack.c.b16 %v2079, %v2069
        %v2290 = vpack.c.b16 %v2080, %v2070
        %v2291 = vpack.c.b16 %v2081, %v2071
        %v2292 = vpack.c.b16 %v2092, %v2082
        %v2293 = vpack.c.b16 %v2093, %v2083
        %v2294 = vpack.c.b16 %v2094, %v2084
        %v2295 = vpack.c.b16 %v2095, %v2085
        %v2296 = vpack.c.b16 %v2096, %v2086
        %v2297 = vpack.c.b16 %v2097, %v2087
        %v2298 = vpack.c.b16 %v2098, %v2088
        %v2299 = vpack.c.b16 %v2099, %v2089
        %v2300 = vpack.c.b16 %v2100, %v2090
        %v2301 = vpack.c.b16 %v2101, %v2091
        %vm2502 = vcmask 523264
        %v2504 = vsel %vm2502, %v1499, 0
        %2506 = vmatprep.subr.bf16.mxu0 %v2173
        %2507 = vmatpush1.bf16.msra.mxu0 %v2172
        %2508 = vmatprep.subr.bf16.mxu0 %v2163
        %2509 = vmatpush1.bf16.msra.mxu0 %v2162
        %2510 = vmatprep.subr.bf16.mxu0 %v2153
        %2511 = vmatpush1.bf16.msra.mxu0 %v2152
        %2512 = vmatprep.subr.bf16.mxu0 %v2143
        %2513 = vmatpush1.bf16.msra.mxu0 %v2142
        %2514 = vmatprep.subr.bf16.mxu0 %v2133
        %2515 = vmatpush1.bf16.msra.mxu0 %v2132
        %2516 = vmatprep.subr.bf16.mxu0 %v2123
        %2517 = vmatpush1.bf16.msra.mxu0 %v2122
        %2518 = vmatprep.subr.bf16.mxu0 %v2113
        %2519 = vmatpush1.bf16.msra.mxu0 %v2112
        %2520 = vmatprep.subr.bf16.mxu0 %v2103
        %2521 = vmatpush1.bf16.msra.mxu0 %v2102
        %2522 = vmatprep.subr.bf16.mxu0 %v2253
        %2523 = vmatpush2.bf16.msra.mxu0 %v2252
        %2524 = vmatprep.subr.bf16.mxu0 %v2243
        %2525 = vmatpush2.bf16.msra.mxu0 %v2242
        %2526 = vmatprep.subr.bf16.mxu0 %v2233
        %2527 = vmatpush2.bf16.msra.mxu0 %v2232
        %2528 = vmatprep.subr.bf16.mxu0 %v2223
        %2529 = vmatpush2.bf16.msra.mxu0 %v2222
        %2530 = vmatprep.subr.bf16.mxu0 %v2213
        %2531 = vmatpush2.bf16.msra.mxu0 %v2212
        %2532 = vmatprep.subr.bf16.mxu0 %v2203
        %2533 = vmatpush2.bf16.msra.mxu0 %v2202
        %2534 = vmatprep.subr.bf16.mxu0 %v2193
        %2535 = vmatpush2.bf16.msra.mxu0 %v2192
        %2536 = vmatprep.subr.bf16.mxu0 %v2183
        %2537 = vmatpush2.bf16.msra.mxu0 %v2182
        %2538 = vmatprep.mubr.bf16.mxu0 %v1498
        %2539 = vmatmul.mubr.bf16.gmra.mxu0 %v1497
        %v2540 = vpop.f32.mrf.mxu0
        %v2541 = vadd.f32 %v1440, %v2540
        %v2542 = vpop.f32.mrf.mxu0
        %v2543 = vadd.f32 %v1444, %v2542
        %v2544 = vpop.f32.mrf.mxu0
        %v2545 = vadd.f32 %v1440, %v2544
        %v2546 = vpop.f32.mrf.mxu0
        %v2547 = vadd.f32 %v1444, %v2546
        %2548 = vdwg.mxu0
        %2549 = vmatprep.subr.bf16.mxu0 0
        %2550 = vmatpush1.bf16.msra.mxu0 0
        %2551 = vmatprep.subr.bf16.mxu0 0
        %2552 = vmatpush1.bf16.msra.mxu0 0
        %2553 = vmatprep.subr.bf16.mxu0 0
        %2554 = vmatpush1.bf16.msra.mxu0 0
        %2555 = vmatprep.subr.bf16.mxu0 0
        %2556 = vmatpush1.bf16.msra.mxu0 0
        %2557 = vmatprep.subr.bf16.mxu0 %v2293
        %2558 = vmatpush1.bf16.msra.mxu0 %v2292
        %2559 = vmatprep.subr.bf16.mxu0 %v2283
        %2560 = vmatpush1.bf16.msra.mxu0 %v2282
        %2561 = vmatprep.subr.bf16.mxu0 %v2273
        %2562 = vmatpush1.bf16.msra.mxu0 %v2272
        %2563 = vmatprep.subr.bf16.mxu0 %v2263
        %2564 = vmatpush1.bf16.msra.mxu0 %v2262
        %2565 = vmatprep.subr.bf16.mxu0 0
        %2566 = vmatpush2.bf16.msra.mxu0 0
        %2567 = vmatprep.subr.bf16.mxu0 0
        %2568 = vmatpush2.bf16.msra.mxu0 0
        %2569 = vmatprep.subr.bf16.mxu0 0
        %2570 = vmatpush2.bf16.msra.mxu0 0
        %2571 = vmatprep.subr.bf16.mxu0 0
        %2572 = vmatpush2.bf16.msra.mxu0 0
        %2573 = vmatprep.subr.bf16.mxu0 0
        %2574 = vmatpush2.bf16.msra.mxu0 0
        %2575 = vmatprep.subr.bf16.mxu0 0
        %2576 = vmatpush2.bf16.msra.mxu0 0
        %2577 = vmatprep.subr.bf16.mxu0 0
        %2578 = vmatpush2.bf16.msra.mxu0 0
        %2579 = vmatprep.subr.bf16.mxu0 0
        %2580 = vmatpush2.bf16.msra.mxu0 0
        %2581 = vmatprep.mubr.bf16.mxu0 0
        %2582 = vmatmul.mubr.bf16.gmra.mxu0 %v2504
        %v2583 = vpop.f32.mrf.mxu0
        %v2584 = vadd.f32 %v2541, %v2583
        %v2585 = vpop.f32.mrf.mxu0
        %v2586 = vadd.f32 %v2543, %v2585
        %v2587 = vpop.f32.mrf.mxu0
        %v2588 = vadd.f32 %v2545, %v2587
        %v2589 = vpop.f32.mrf.mxu0
        %v2590 = vadd.f32 %v2547, %v2589
        %2591 = vdwg.mxu0
        %2592 = vmatprep.subr.bf16.mxu0 %v2175
        %2593 = vmatpush1.bf16.msra.mxu0 %v2174
        %2594 = vmatprep.subr.bf16.mxu0 %v2165
        %2595 = vmatpush1.bf16.msra.mxu0 %v2164
        %2596 = vmatprep.subr.bf16.mxu0 %v2155
        %2597 = vmatpush1.bf16.msra.mxu0 %v2154
        %2598 = vmatprep.subr.bf16.mxu0 %v2145
        %2599 = vmatpush1.bf16.msra.mxu0 %v2144
        %2600 = vmatprep.subr.bf16.mxu0 %v2135
        %2601 = vmatpush1.bf16.msra.mxu0 %v2134
        %2602 = vmatprep.subr.bf16.mxu0 %v2125
        %2603 = vmatpush1.bf16.msra.mxu0 %v2124
        %2604 = vmatprep.subr.bf16.mxu0 %v2115
        %2605 = vmatpush1.bf16.msra.mxu0 %v2114
        %2606 = vmatprep.subr.bf16.mxu0 %v2105
        %2607 = vmatpush1.bf16.msra.mxu0 %v2104
        %2608 = vmatprep.subr.bf16.mxu0 %v2255
        %2609 = vmatpush2.bf16.msra.mxu0 %v2254
        %2610 = vmatprep.subr.bf16.mxu0 %v2245
        %2611 = vmatpush2.bf16.msra.mxu0 %v2244
        %2612 = vmatprep.subr.bf16.mxu0 %v2235
        %2613 = vmatpush2.bf16.msra.mxu0 %v2234
        %2614 = vmatprep.subr.bf16.mxu0 %v2225
        %2615 = vmatpush2.bf16.msra.mxu0 %v2224
        %2616 = vmatprep.subr.bf16.mxu0 %v2215
        %2617 = vmatpush2.bf16.msra.mxu0 %v2214
        %2618 = vmatprep.subr.bf16.mxu0 %v2205
        %2619 = vmatpush2.bf16.msra.mxu0 %v2204
        %2620 = vmatprep.subr.bf16.mxu0 %v2195
        %2621 = vmatpush2.bf16.msra.mxu0 %v2194
        %2622 = vmatprep.subr.bf16.mxu0 %v2185
        %2623 = vmatpush2.bf16.msra.mxu0 %v2184
        %2624 = vmatprep.mubr.bf16.mxu0 %v1498
        %2625 = vmatmul.mubr.bf16.gmra.mxu0 %v1497
        %v2626 = vpop.f32.mrf.mxu0
        %v2627 = vadd.f32 %v1448, %v2626
        %v2628 = vpop.f32.mrf.mxu0
        %v2629 = vadd.f32 %v1452, %v2628
        %v2630 = vpop.f32.mrf.mxu0
        %v2631 = vadd.f32 %v1448, %v2630
        %v2632 = vpop.f32.mrf.mxu0
        %v2633 = vadd.f32 %v1452, %v2632
        %2634 = vdwg.mxu0
        %2635 = vmatprep.subr.bf16.mxu0 0
        %2636 = vmatpush1.bf16.msra.mxu0 0
        %2637 = vmatprep.subr.bf16.mxu0 0
        %2638 = vmatpush1.bf16.msra.mxu0 0
        %2639 = vmatprep.subr.bf16.mxu0 0
        %2640 = vmatpush1.bf16.msra.mxu0 0
        %2641 = vmatprep.subr.bf16.mxu0 0
        %2642 = vmatpush1.bf16.msra.mxu0 0
        %2643 = vmatprep.subr.bf16.mxu0 %v2295
        %2644 = vmatpush1.bf16.msra.mxu0 %v2294
        %2645 = vmatprep.subr.bf16.mxu0 %v2285
        %2646 = vmatpush1.bf16.msra.mxu0 %v2284
        %2647 = vmatprep.subr.bf16.mxu0 %v2275
        %2648 = vmatpush1.bf16.msra.mxu0 %v2274
        %2649 = vmatprep.subr.bf16.mxu0 %v2265
        %2650 = vmatpush1.bf16.msra.mxu0 %v2264
        %2651 = vmatprep.subr.bf16.mxu0 0
        %2652 = vmatpush2.bf16.msra.mxu0 0
        %2653 = vmatprep.subr.bf16.mxu0 0
        %2654 = vmatpush2.bf16.msra.mxu0 0
        %2655 = vmatprep.subr.bf16.mxu0 0
        %2656 = vmatpush2.bf16.msra.mxu0 0
        %2657 = vmatprep.subr.bf16.mxu0 0
        %2658 = vmatpush2.bf16.msra.mxu0 0
        %2659 = vmatprep.subr.bf16.mxu0 0
        %2660 = vmatpush2.bf16.msra.mxu0 0
        %2661 = vmatprep.subr.bf16.mxu0 0
        %2662 = vmatpush2.bf16.msra.mxu0 0
        %2663 = vmatprep.subr.bf16.mxu0 0
        %2664 = vmatpush2.bf16.msra.mxu0 0
        %2665 = vmatprep.subr.bf16.mxu0 0
        %2666 = vmatpush2.bf16.msra.mxu0 0
        %2667 = vmatprep.mubr.bf16.mxu0 0
        %2668 = vmatmul.mubr.bf16.gmra.mxu0 %v2504
        %v2669 = vpop.f32.mrf.mxu0
        %v2670 = vadd.f32 %v2627, %v2669
        %v2671 = vpop.f32.mrf.mxu0
        %v2672 = vadd.f32 %v2629, %v2671
        %v2673 = vpop.f32.mrf.mxu0
        %v2674 = vadd.f32 %v2631, %v2673
        %v2675 = vpop.f32.mrf.mxu0
        %v2676 = vadd.f32 %v2633, %v2675
        %2677 = vdwg.mxu0
        %2678 = vmatprep.subr.bf16.mxu0 %v2177
        %2679 = vmatpush1.bf16.msra.mxu0 %v2176
        %2680 = vmatprep.subr.bf16.mxu0 %v2167
        %2681 = vmatpush1.bf16.msra.mxu0 %v2166
        %2682 = vmatprep.subr.bf16.mxu0 %v2157
        %2683 = vmatpush1.bf16.msra.mxu0 %v2156
        %2684 = vmatprep.subr.bf16.mxu0 %v2147
        %2685 = vmatpush1.bf16.msra.mxu0 %v2146
        %2686 = vmatprep.subr.bf16.mxu0 %v2137
        %2687 = vmatpush1.bf16.msra.mxu0 %v2136
        %2688 = vmatprep.subr.bf16.mxu0 %v2127
        %2689 = vmatpush1.bf16.msra.mxu0 %v2126
        %2690 = vmatprep.subr.bf16.mxu0 %v2117
        %2691 = vmatpush1.bf16.msra.mxu0 %v2116
        %2692 = vmatprep.subr.bf16.mxu0 %v2107
        %2693 = vmatpush1.bf16.msra.mxu0 %v2106
        %2694 = vmatprep.subr.bf16.mxu0 %v2257
        %2695 = vmatpush2.bf16.msra.mxu0 %v2256
        %2696 = vmatprep.subr.bf16.mxu0 %v2247
        %2697 = vmatpush2.bf16.msra.mxu0 %v2246
        %2698 = vmatprep.subr.bf16.mxu0 %v2237
        %2699 = vmatpush2.bf16.msra.mxu0 %v2236
        %2700 = vmatprep.subr.bf16.mxu0 %v2227
        %2701 = vmatpush2.bf16.msra.mxu0 %v2226
        %2702 = vmatprep.subr.bf16.mxu0 %v2217
        %2703 = vmatpush2.bf16.msra.mxu0 %v2216
        %2704 = vmatprep.subr.bf16.mxu0 %v2207
        %2705 = vmatpush2.bf16.msra.mxu0 %v2206
        %2706 = vmatprep.subr.bf16.mxu0 %v2197
        %2707 = vmatpush2.bf16.msra.mxu0 %v2196
        %2708 = vmatprep.subr.bf16.mxu0 %v2187
        %2709 = vmatpush2.bf16.msra.mxu0 %v2186
        %2710 = vmatprep.mubr.bf16.mxu0 %v1498
        %2711 = vmatmul.mubr.bf16.gmra.mxu0 %v1497
        %v2712 = vpop.f32.mrf.mxu0
        %v2713 = vadd.f32 %v1456, %v2712
        %v2714 = vpop.f32.mrf.mxu0
        %v2715 = vadd.f32 %v1460, %v2714
        %v2716 = vpop.f32.mrf.mxu0
        %v2717 = vadd.f32 %v1456, %v2716
        %v2718 = vpop.f32.mrf.mxu0
        %v2719 = vadd.f32 %v1460, %v2718
        %2720 = vdwg.mxu0
        %2721 = vmatprep.subr.bf16.mxu0 0
        %2722 = vmatpush1.bf16.msra.mxu0 0
        %2723 = vmatprep.subr.bf16.mxu0 0
        %2724 = vmatpush1.bf16.msra.mxu0 0
        %2725 = vmatprep.subr.bf16.mxu0 0
        %2726 = vmatpush1.bf16.msra.mxu0 0
        %2727 = vmatprep.subr.bf16.mxu0 0
        %2728 = vmatpush1.bf16.msra.mxu0 0
        %2729 = vmatprep.subr.bf16.mxu0 %v2297
        %2730 = vmatpush1.bf16.msra.mxu0 %v2296
        %2731 = vmatprep.subr.bf16.mxu0 %v2287
        %2732 = vmatpush1.bf16.msra.mxu0 %v2286
        %2733 = vmatprep.subr.bf16.mxu0 %v2277
        %2734 = vmatpush1.bf16.msra.mxu0 %v2276
        %2735 = vmatprep.subr.bf16.mxu0 %v2267
        %2736 = vmatpush1.bf16.msra.mxu0 %v2266
        %2737 = vmatprep.subr.bf16.mxu0 0
        %2738 = vmatpush2.bf16.msra.mxu0 0
        %2739 = vmatprep.subr.bf16.mxu0 0
        %2740 = vmatpush2.bf16.msra.mxu0 0
        %2741 = vmatprep.subr.bf16.mxu0 0
        %2742 = vmatpush2.bf16.msra.mxu0 0
        %2743 = vmatprep.subr.bf16.mxu0 0
        %2744 = vmatpush2.bf16.msra.mxu0 0
        %2745 = vmatprep.subr.bf16.mxu0 0
        %2746 = vmatpush2.bf16.msra.mxu0 0
        %2747 = vmatprep.subr.bf16.mxu0 0
        %2748 = vmatpush2.bf16.msra.mxu0 0
        %2749 = vmatprep.subr.bf16.mxu0 0
        %2750 = vmatpush2.bf16.msra.mxu0 0
        %2751 = vmatprep.subr.bf16.mxu0 0
        %2752 = vmatpush2.bf16.msra.mxu0 0
        %2753 = vmatprep.mubr.bf16.mxu0 0
        %2754 = vmatmul.mubr.bf16.gmra.mxu0 %v2504
        %v2755 = vpop.f32.mrf.mxu0
        %v2756 = vadd.f32 %v2713, %v2755
        %v2757 = vpop.f32.mrf.mxu0
        %v2758 = vadd.f32 %v2715, %v2757
        %v2759 = vpop.f32.mrf.mxu0
        %v2760 = vadd.f32 %v2717, %v2759
        %v2761 = vpop.f32.mrf.mxu0
        %v2762 = vadd.f32 %v2719, %v2761
        %2763 = vdwg.mxu0
        %2764 = vmatprep.subr.bf16.mxu0 %v2179
        %2765 = vmatpush1.bf16.msra.mxu0 %v2178
        %2766 = vmatprep.subr.bf16.mxu0 %v2169
        %2767 = vmatpush1.bf16.msra.mxu0 %v2168
        %2768 = vmatprep.subr.bf16.mxu0 %v2159
        %2769 = vmatpush1.bf16.msra.mxu0 %v2158
        %2770 = vmatprep.subr.bf16.mxu0 %v2149
        %2771 = vmatpush1.bf16.msra.mxu0 %v2148
        %2772 = vmatprep.subr.bf16.mxu0 %v2139
        %2773 = vmatpush1.bf16.msra.mxu0 %v2138
        %2774 = vmatprep.subr.bf16.mxu0 %v2129
        %2775 = vmatpush1.bf16.msra.mxu0 %v2128
        %2776 = vmatprep.subr.bf16.mxu0 %v2119
        %2777 = vmatpush1.bf16.msra.mxu0 %v2118
        %2778 = vmatprep.subr.bf16.mxu0 %v2109
        %2779 = vmatpush1.bf16.msra.mxu0 %v2108
        %2780 = vmatprep.subr.bf16.mxu0 %v2259
        %2781 = vmatpush2.bf16.msra.mxu0 %v2258
        %2782 = vmatprep.subr.bf16.mxu0 %v2249
        %2783 = vmatpush2.bf16.msra.mxu0 %v2248
        %2784 = vmatprep.subr.bf16.mxu0 %v2239
        %2785 = vmatpush2.bf16.msra.mxu0 %v2238
        %2786 = vmatprep.subr.bf16.mxu0 %v2229
        %2787 = vmatpush2.bf16.msra.mxu0 %v2228
        %2788 = vmatprep.subr.bf16.mxu0 %v2219
        %2789 = vmatpush2.bf16.msra.mxu0 %v2218
        %2790 = vmatprep.subr.bf16.mxu0 %v2209
        %2791 = vmatpush2.bf16.msra.mxu0 %v2208
        %2792 = vmatprep.subr.bf16.mxu0 %v2199
        %2793 = vmatpush2.bf16.msra.mxu0 %v2198
        %2794 = vmatprep.subr.bf16.mxu0 %v2189
        %2795 = vmatpush2.bf16.msra.mxu0 %v2188
        %2796 = vmatprep.mubr.bf16.mxu0 %v1498
        %2797 = vmatmul.mubr.bf16.gmra.mxu0 %v1497
        %v2798 = vpop.f32.mrf.mxu0
        %v2799 = vadd.f32 %v1464, %v2798
        %v2800 = vpop.f32.mrf.mxu0
        %v2801 = vadd.f32 %v1468, %v2800
        %v2802 = vpop.f32.mrf.mxu0
        %v2803 = vadd.f32 %v1464, %v2802
        %v2804 = vpop.f32.mrf.mxu0
        %v2805 = vadd.f32 %v1468, %v2804
        %2806 = vdwg.mxu0
        %2807 = vmatprep.subr.bf16.mxu0 0
        %2808 = vmatpush1.bf16.msra.mxu0 0
        %2809 = vmatprep.subr.bf16.mxu0 0
        %2810 = vmatpush1.bf16.msra.mxu0 0
        %2811 = vmatprep.subr.bf16.mxu0 0
        %2812 = vmatpush1.bf16.msra.mxu0 0
        %2813 = vmatprep.subr.bf16.mxu0 0
        %2814 = vmatpush1.bf16.msra.mxu0 0
        %2815 = vmatprep.subr.bf16.mxu0 %v2299
        %2816 = vmatpush1.bf16.msra.mxu0 %v2298
        %2817 = vmatprep.subr.bf16.mxu0 %v2289
        %2818 = vmatpush1.bf16.msra.mxu0 %v2288
        %2819 = vmatprep.subr.bf16.mxu0 %v2279
        %2820 = vmatpush1.bf16.msra.mxu0 %v2278
        %2821 = vmatprep.subr.bf16.mxu0 %v2269
        %2822 = vmatpush1.bf16.msra.mxu0 %v2268
        %2823 = vmatprep.subr.bf16.mxu0 0
        %2824 = vmatpush2.bf16.msra.mxu0 0
        %2825 = vmatprep.subr.bf16.mxu0 0
        %2826 = vmatpush2.bf16.msra.mxu0 0
        %2827 = vmatprep.subr.bf16.mxu0 0
        %2828 = vmatpush2.bf16.msra.mxu0 0
        %2829 = vmatprep.subr.bf16.mxu0 0
        %2830 = vmatpush2.bf16.msra.mxu0 0
        %2831 = vmatprep.subr.bf16.mxu0 0
        %2832 = vmatpush2.bf16.msra.mxu0 0
        %2833 = vmatprep.subr.bf16.mxu0 0
        %2834 = vmatpush2.bf16.msra.mxu0 0
        %2835 = vmatprep.subr.bf16.mxu0 0
        %2836 = vmatpush2.bf16.msra.mxu0 0
        %2837 = vmatprep.subr.bf16.mxu0 0
        %2838 = vmatpush2.bf16.msra.mxu0 0
        %2839 = vmatprep.mubr.bf16.mxu0 0
        %2840 = vmatmul.mubr.bf16.gmra.mxu0 %v2504
        %v2841 = vpop.f32.mrf.mxu0
        %v2842 = vadd.f32 %v2799, %v2841
        %v2843 = vpop.f32.mrf.mxu0
        %v2844 = vadd.f32 %v2801, %v2843
        %v2845 = vpop.f32.mrf.mxu0
        %v2846 = vadd.f32 %v2803, %v2845
        %v2847 = vpop.f32.mrf.mxu0
        %v2848 = vadd.f32 %v2805, %v2847
        %2849 = vdwg.mxu0
        %2850 = vmatprep.subr.bf16.mxu0 %v2181
        %2851 = vmatpush1.bf16.msra.mxu0 %v2180
        %2852 = vmatprep.subr.bf16.mxu0 %v2171
        %2853 = vmatpush1.bf16.msra.mxu0 %v2170
        %2854 = vmatprep.subr.bf16.mxu0 %v2161
        %2855 = vmatpush1.bf16.msra.mxu0 %v2160
        %2856 = vmatprep.subr.bf16.mxu0 %v2151
        %2857 = vmatpush1.bf16.msra.mxu0 %v2150
        %2858 = vmatprep.subr.bf16.mxu0 %v2141
        %2859 = vmatpush1.bf16.msra.mxu0 %v2140
        %2860 = vmatprep.subr.bf16.mxu0 %v2131
        %2861 = vmatpush1.bf16.msra.mxu0 %v2130
        %2862 = vmatprep.subr.bf16.mxu0 %v2121
        %2863 = vmatpush1.bf16.msra.mxu0 %v2120
        %2864 = vmatprep.subr.bf16.mxu0 %v2111
        %2865 = vmatpush1.bf16.msra.mxu0 %v2110
        %2866 = vmatprep.subr.bf16.mxu0 %v2261
        %2867 = vmatpush2.bf16.msra.mxu0 %v2260
        %2868 = vmatprep.subr.bf16.mxu0 %v2251
        %2869 = vmatpush2.bf16.msra.mxu0 %v2250
        %2870 = vmatprep.subr.bf16.mxu0 %v2241
        %2871 = vmatpush2.bf16.msra.mxu0 %v2240
        %2872 = vmatprep.subr.bf16.mxu0 %v2231
        %2873 = vmatpush2.bf16.msra.mxu0 %v2230
        %2874 = vmatprep.subr.bf16.mxu0 %v2221
        %2875 = vmatpush2.bf16.msra.mxu0 %v2220
        %2876 = vmatprep.subr.bf16.mxu0 %v2211
        %2877 = vmatpush2.bf16.msra.mxu0 %v2210
        %2878 = vmatprep.subr.bf16.mxu0 %v2201
        %2879 = vmatpush2.bf16.msra.mxu0 %v2200
        %2880 = vmatprep.subr.bf16.mxu0 %v2191
        %2881 = vmatpush2.bf16.msra.mxu0 %v2190
        %2882 = vmatprep.mubr.bf16.mxu0 %v1498
        %2883 = vmatmul.mubr.bf16.gmra.mxu0 %v1497
        %v2884 = vpop.f32.mrf.mxu0
        %v2885 = vadd.f32 %v1472, %v2884
        %v2886 = vpop.f32.mrf.mxu0
        %v2887 = vadd.f32 %v1476, %v2886
        %v2888 = vpop.f32.mrf.mxu0
        %v2889 = vadd.f32 %v1472, %v2888
        %v2890 = vpop.f32.mrf.mxu0
        %v2891 = vadd.f32 %v1476, %v2890
        %2892 = vdwg.mxu0
        %2893 = vmatprep.subr.bf16.mxu0 0
        %2894 = vmatpush1.bf16.msra.mxu0 0
        %2895 = vmatprep.subr.bf16.mxu0 0
        %2896 = vmatpush1.bf16.msra.mxu0 0
        %2897 = vmatprep.subr.bf16.mxu0 0
        %2898 = vmatpush1.bf16.msra.mxu0 0
        %2899 = vmatprep.subr.bf16.mxu0 0
        %2900 = vmatpush1.bf16.msra.mxu0 0
        %2901 = vmatprep.subr.bf16.mxu0 %v2301
        %2902 = vmatpush1.bf16.msra.mxu0 %v2300
        %2903 = vmatprep.subr.bf16.mxu0 %v2291
        %2904 = vmatpush1.bf16.msra.mxu0 %v2290
        %2905 = vmatprep.subr.bf16.mxu0 %v2281
        %2906 = vmatpush1.bf16.msra.mxu0 %v2280
        %2907 = vmatprep.subr.bf16.mxu0 %v2271
        %2908 = vmatpush1.bf16.msra.mxu0 %v2270
        %2909 = vmatprep.subr.bf16.mxu0 0
        %2910 = vmatpush2.bf16.msra.mxu0 0
        %2911 = vmatprep.subr.bf16.mxu0 0
        %2912 = vmatpush2.bf16.msra.mxu0 0
        %2913 = vmatprep.subr.bf16.mxu0 0
        %2914 = vmatpush2.bf16.msra.mxu0 0
        %2915 = vmatprep.subr.bf16.mxu0 0
        %2916 = vmatpush2.bf16.msra.mxu0 0
        %2917 = vmatprep.subr.bf16.mxu0 0
        %2918 = vmatpush2.bf16.msra.mxu0 0
        %2919 = vmatprep.subr.bf16.mxu0 0
        %2920 = vmatpush2.bf16.msra.mxu0 0
        %2921 = vmatprep.subr.bf16.mxu0 0
        %2922 = vmatpush2.bf16.msra.mxu0 0
        %2923 = vmatprep.subr.bf16.mxu0 0
        %2924 = vmatpush2.bf16.msra.mxu0 0
        %2925 = vmatprep.mubr.bf16.mxu0 0
        %2926 = vmatmul.mubr.bf16.gmra.mxu0 %v2504
        %v2927 = vpop.f32.mrf.mxu0
        %v2928 = vadd.f32 %v2885, %v2927
        %v2929 = vpop.f32.mrf.mxu0
        %v2930 = vadd.f32 %v2887, %v2929
        %v2931 = vpop.f32.mrf.mxu0
        %v2932 = vadd.f32 %v2889, %v2931
        %v2933 = vpop.f32.mrf.mxu0
        %v2934 = vadd.f32 %v2891, %v2933
        %2935 = vdwg.mxu0
        %v2936 = vxor.u32 %v2584, 2147483648
        %v2937 = vxor.u32 %v2586, 2147483648
        %v2938 = vxor.u32 %v2670, 2147483648
        %v2939 = vxor.u32 %v2672, 2147483648
        %v2940 = vxor.u32 %v2756, 2147483648
        %v2941 = vxor.u32 %v2758, 2147483648
        %v2942 = vxor.u32 %v2842, 2147483648
        %v2943 = vxor.u32 %v2844, 2147483648
        %v2944 = vxor.u32 %v2928, 2147483648
        %v2945 = vxor.u32 %v2930, 2147483648
        %v2946 = vxor.u32 %v2588, 2147483648
        %v2947 = vxor.u32 %v2590, 2147483648
        %v2948 = vxor.u32 %v2674, 2147483648
        %v2949 = vxor.u32 %v2676, 2147483648
        %v2950 = vxor.u32 %v2760, 2147483648
        %v2951 = vxor.u32 %v2762, 2147483648
        %v2952 = vxor.u32 %v2846, 2147483648
        %v2953 = vxor.u32 %v2848, 2147483648
        %v2954 = vxor.u32 %v2932, 2147483648
        %v2955 = vxor.u32 %v2934, 2147483648
        %v2956 = vmul.f32 %v2936, 1.442695
        %v2957 = vpow.pop %v2956
        %v2958 = vmul.f32 %v2937, 1.442695
        %v2959 = vpow.pop %v2958
        %v2960 = vmul.f32 %v2938, 1.442695
        %v2961 = vpow.pop %v2960
        %v2962 = vmul.f32 %v2939, 1.442695
        %v2963 = vpow.pop %v2962
        %v2964 = vmul.f32 %v2940, 1.442695
        %v2965 = vpow.pop %v2964
        %v2966 = vmul.f32 %v2941, 1.442695
        %v2967 = vpow.pop %v2966
        %v2968 = vmul.f32 %v2942, 1.442695
        %v2969 = vpow.pop %v2968
        %v2970 = vmul.f32 %v2943, 1.442695
        %v2971 = vpow.pop %v2970
        %v2972 = vmul.f32 %v2944, 1.442695
        %v2973 = vpow.pop %v2972
        %v2974 = vmul.f32 %v2945, 1.442695
        %v2975 = vpow.pop %v2974
        %v2976 = vmul.f32 %v2946, 1.442695
        %v2977 = vpow.pop %v2976
        %v2978 = vmul.f32 %v2947, 1.442695
        %v2979 = vpow.pop %v2978
        %v2980 = vmul.f32 %v2948, 1.442695
        %v2981 = vpow.pop %v2980
        %v2982 = vmul.f32 %v2949, 1.442695
        %v2983 = vpow.pop %v2982
        %v2984 = vmul.f32 %v2950, 1.442695
        %v2985 = vpow.pop %v2984
        %v2986 = vmul.f32 %v2951, 1.442695
        %v2987 = vpow.pop %v2986
        %v2988 = vmul.f32 %v2952, 1.442695
        %v2989 = vpow.pop %v2988
        %v2990 = vmul.f32 %v2953, 1.442695
        %v2991 = vpow.pop %v2990
        %v2992 = vmul.f32 %v2954, 1.442695
        %v2993 = vpow.pop %v2992
        %v2994 = vmul.f32 %v2955, 1.442695
        %v2995 = vpow.pop %v2994
        %v2996 = vadd.f32 %v2957, 1.0
        %v2997 = vadd.f32 %v2959, 1.0
        %v2998 = vadd.f32 %v2961, 1.0
        %v2999 = vadd.f32 %v2963, 1.0
        %v3000 = vadd.f32 %v2965, 1.0
        %v3001 = vadd.f32 %v2967, 1.0
        %v3002 = vadd.f32 %v2969, 1.0
        %v3003 = vadd.f32 %v2971, 1.0
        %v3004 = vadd.f32 %v2973, 1.0
        %v3005 = vadd.f32 %v2975, 1.0
        %v3006 = vadd.f32 %v2977, 1.0
        %v3007 = vadd.f32 %v2979, 1.0
        %v3008 = vadd.f32 %v2981, 1.0
        %v3009 = vadd.f32 %v2983, 1.0
        %v3010 = vadd.f32 %v2985, 1.0
        %v3011 = vadd.f32 %v2987, 1.0
        %v3012 = vadd.f32 %v2989, 1.0
        %v3013 = vadd.f32 %v2991, 1.0
        %v3014 = vadd.f32 %v2993, 1.0
        %v3015 = vadd.f32 %v2995, 1.0
        %v3016 = vrcp.pop %v2996
        %v3017 = vmul.f32 1.0, %v3016
        %v3018 = vrcp.pop %v2997
        %v3019 = vmul.f32 1.0, %v3018
        %v3020 = vrcp.pop %v2998
        %v3021 = vmul.f32 1.0, %v3020
        %v3022 = vrcp.pop %v2999
        %v3023 = vmul.f32 1.0, %v3022
        %v3024 = vrcp.pop %v3000
        %v3025 = vmul.f32 1.0, %v3024
        %v3026 = vrcp.pop %v3001
        %v3027 = vmul.f32 1.0, %v3026
        %v3028 = vrcp.pop %v3002
        %v3029 = vmul.f32 1.0, %v3028
        %v3030 = vrcp.pop %v3003
        %v3031 = vmul.f32 1.0, %v3030
        %v3032 = vrcp.pop %v3004
        %v3033 = vmul.f32 1.0, %v3032
        %v3034 = vrcp.pop %v3005
        %v3035 = vmul.f32 1.0, %v3034
        %v3036 = vrcp.pop %v3006
        %v3037 = vmul.f32 1.0, %v3036
        %v3038 = vrcp.pop %v3007
        %v3039 = vmul.f32 1.0, %v3038
        %v3040 = vrcp.pop %v3008
        %v3041 = vmul.f32 1.0, %v3040
        %v3042 = vrcp.pop %v3009
        %v3043 = vmul.f32 1.0, %v3042
        %v3044 = vrcp.pop %v3010
        %v3045 = vmul.f32 1.0, %v3044
        %v3046 = vrcp.pop %v3011
        %v3047 = vmul.f32 1.0, %v3046
        %v3048 = vrcp.pop %v3012
        %v3049 = vmul.f32 1.0, %v3048
        %v3050 = vrcp.pop %v3013
        %v3051 = vmul.f32 1.0, %v3050
        %v3052 = vrcp.pop %v3014
        %v3053 = vmul.f32 1.0, %v3052
        %v3054 = vrcp.pop %v3015
        %v3055 = vmul.f32 1.0, %v3054
        %v3056 = vmul.f32 %v2584, %v3017
        %v3057 = vmul.f32 %v2586, %v3019
        %v3058 = vmul.f32 %v2670, %v3021
        %v3059 = vmul.f32 %v2672, %v3023
        %v3060 = vmul.f32 %v2756, %v3025
        %v3061 = vmul.f32 %v2758, %v3027
        %v3062 = vmul.f32 %v2842, %v3029
        %v3063 = vmul.f32 %v2844, %v3031
        %v3064 = vmul.f32 %v2928, %v3033
        %v3065 = vmul.f32 %v2930, %v3035
        %v3066 = vmul.f32 %v2588, %v3037
        %v3067 = vmul.f32 %v2590, %v3039
        %v3068 = vmul.f32 %v2674, %v3041
        %v3069 = vmul.f32 %v2676, %v3043
        %v3070 = vmul.f32 %v2760, %v3045
        %v3071 = vmul.f32 %v2762, %v3047
        %v3072 = vmul.f32 %v2846, %v3049
        %v3073 = vmul.f32 %v2848, %v3051
        %v3074 = vmul.f32 %v2932, %v3053
        %v3075 = vmul.f32 %v2934, %v3055
        %v3076 = vpack.c.bf16 %v3066, %v3056
        %v3077 = vpack.c.bf16 %v3067, %v3057
        %v3078 = vpack.c.bf16 %v3068, %v3058
        %v3079 = vpack.c.bf16 %v3069, %v3059
        %v3080 = vpack.c.bf16 %v3070, %v3060
        %v3081 = vpack.c.bf16 %v3071, %v3061
        %v3082 = vpack.c.bf16 %v3072, %v3062
        %v3083 = vpack.c.bf16 %v3073, %v3063
        %v3084 = vpack.c.bf16 %v3074, %v3064
        %v3085 = vpack.c.bf16 %v3075, %v3065
        %v3086 = vld [vmem:[%s1193] sm:$0xff]
        %v3087 = vld [vmem:[%s1193 + $0x8] sm:$0xff]
        %v3088 = vld [vmem:[%s1193 + $0x10] sm:$0xf]
        %v3089 = vld [vmem:[%s1193 + $0x14] sm:$0xff]
        %v3090 = vld [vmem:[%s1193 + $0x1c] sm:$0xff]
        %v3091 = vld [vmem:[%s1193 + $0x24] sm:$0xf]
        %v3092 = vld [vmem:[%s1193 + $0x28] sm:$0xff]
        %v3093 = vld [vmem:[%s1193 + $0x30] sm:$0xff]
        %v3094 = vld [vmem:[%s1193 + $0x38] sm:$0xf]
        %v3095 = vld [vmem:[%s1193 + $0x3c] sm:$0xff]
        %v3096 = vld [vmem:[%s1193 + $0x44] sm:$0xff]
        %v3097 = vld [vmem:[%s1193 + $0x4c] sm:$0xf]
        %v3098 = vld [vmem:[%s1193 + $0x50] sm:$0xff]
        %v3099 = vld [vmem:[%s1193 + $0x58] sm:$0xff]
        %v3100 = vld [vmem:[%s1193 + $0x60] sm:$0xf]
        %v3101 = vld [vmem:[%s1193 + $0x64] sm:$0xff]
        %v3102 = vld [vmem:[%s1193 + $0x6c] sm:$0xff]
        %v3103 = vld [vmem:[%s1193 + $0x74] sm:$0xf]
        %v3104 = vld [vmem:[%s1193 + $0x78] sm:$0xff]
        %v3105 = vld [vmem:[%s1193 + $0x80] sm:$0xff]
        %v3106 = vld [vmem:[%s1193 + $0x88] sm:$0xf]
        %v3107 = vld [vmem:[%s1193 + $0x8c] sm:$0xff]
        %v3108 = vld [vmem:[%s1193 + $0x94] sm:$0xff]
        %v3109 = vld [vmem:[%s1193 + $0x9c] sm:$0xf]
        %v3110 = vld [vmem:[%s1193 + $0xa0] sm:$0xff]
        %v3111 = vld [vmem:[%s1193 + $0xa8] sm:$0xff]
        %v3112 = vld [vmem:[%s1193 + $0xb0] sm:$0xf]
        %v3113 = vld [vmem:[%s1193 + $0xb4] sm:$0xff]
        %v3114 = vld [vmem:[%s1193 + $0xbc] sm:$0xff]
        %v3115 = vld [vmem:[%s1193 + $0xc4] sm:$0xf]
        %v3116 = vld [vmem:[%s1193 + $0xc8] sm:$0xff]
        %v3117 = vld [vmem:[%s1193 + $0xd0] sm:$0xff]
        %v3118 = vld [vmem:[%s1193 + $0xd8] sm:$0xf]
        %v3119 = vld [vmem:[%s1193 + $0xdc] sm:$0xff]
        %v3120 = vld [vmem:[%s1193 + $0xe4] sm:$0xff]
        %v3121 = vld [vmem:[%s1193 + $0xec] sm:$0xf]
        %v3122 = vld [vmem:[%s1193 + $0xf0] sm:$0xff]
        %v3123 = vld [vmem:[%s1193 + $0xf8] sm:$0xff]
        %v3124 = vld [vmem:[%s1193 + $0x100] sm:$0xf]
        %v3125 = vld [vmem:[%s1193 + $0x104] sm:$0xff]
        %v3126 = vld [vmem:[%s1193 + $0x10c] sm:$0xff]
        %v3127 = vld [vmem:[%s1193 + $0x114] sm:$0xf]
        %v3128 = vld [vmem:[%s1193 + $0x118] sm:$0xff]
        %v3129 = vld [vmem:[%s1193 + $0x120] sm:$0xff]
        %v3130 = vld [vmem:[%s1193 + $0x128] sm:$0xf]
        %v3131 = vld [vmem:[%s1193 + $0x12c] sm:$0xff]
        %v3132 = vld [vmem:[%s1193 + $0x134] sm:$0xff]
        %v3133 = vld [vmem:[%s1193 + $0x13c] sm:$0xf]
        %v3134 = vld [vmem:[%s1193 + $0x140] sm:$0xff]
        %v3135 = vld [vmem:[%s1193 + $0x148] sm:$0xff]
        %v3136 = vld [vmem:[%s1193 + $0x150] sm:$0xf]
        %v3137 = vld [vmem:[%s1193 + $0x154] sm:$0xff]
        %v3138 = vld [vmem:[%s1193 + $0x15c] sm:$0xff]
        %v3139 = vld [vmem:[%s1193 + $0x164] sm:$0xf]
        %v3140 = vld [vmem:[%s1193 + $0x168] sm:$0xff]
        %v3141 = vld [vmem:[%s1193 + $0x170] sm:$0xff]
        %v3142 = vld [vmem:[%s1193 + $0x178] sm:$0xf]
        %v3143 = vld [vmem:[%s1193 + $0x17c] sm:$0xff]
        %v3144 = vld [vmem:[%s1193 + $0x184] sm:$0xff]
        %v3145 = vld [vmem:[%s1193 + $0x18c] sm:$0xf]
        %v3146 = vld [vmem:[%s1193 + $0x190] sm:$0xff]
        %v3147 = vld [vmem:[%s1193 + $0x198] sm:$0xff]
        %v3148 = vld [vmem:[%s1193 + $0x1a0] sm:$0xf]
        %v3149 = vld [vmem:[%s1193 + $0x1a4] sm:$0xff]
        %v3150 = vld [vmem:[%s1193 + $0x1ac] sm:$0xff]
        %v3151 = vld [vmem:[%s1193 + $0x1b4] sm:$0xf]
        %v3152 = vld [vmem:[%s1193 + $0x1b8] sm:$0xff]
        %v3153 = vld [vmem:[%s1193 + $0x1c0] sm:$0xff]
        %v3154 = vld [vmem:[%s1193 + $0x1c8] sm:$0xf]
        %v3155 = vld [vmem:[%s1193 + $0x1cc] sm:$0xff]
        %v3156 = vld [vmem:[%s1193 + $0x1d4] sm:$0xff]
        %v3157 = vld [vmem:[%s1193 + $0x1dc] sm:$0xf]
        %v3158 = vld [vmem:[%s1193 + $0x1e0] sm:$0xff]
        %v3159 = vld [vmem:[%s1193 + $0x1e8] sm:$0xff]
        %v3160 = vld [vmem:[%s1193 + $0x1f0] sm:$0xf]
        %v3161 = vld [vmem:[%s1193 + $0x1f4] sm:$0xff]
        %v3162 = vld [vmem:[%s1193 + $0x1fc] sm:$0xff]
        %v3163 = vld [vmem:[%s1193 + $0x204] sm:$0xf]
        %v3164 = vld [vmem:[%s1193 + $0x208] sm:$0xff]
        %v3165 = vld [vmem:[%s1193 + $0x210] sm:$0xff]
        %v3166 = vld [vmem:[%s1193 + $0x218] sm:$0xf]
        %v3167 = vld [vmem:[%s1193 + $0x21c] sm:$0xff]
        %v3168 = vld [vmem:[%s1193 + $0x224] sm:$0xff]
        %v3169 = vld [vmem:[%s1193 + $0x22c] sm:$0xf]
        %v3170 = vld [vmem:[%s1193 + $0x230] sm:$0xff]
        %v3171 = vld [vmem:[%s1193 + $0x238] sm:$0xff]
        %v3172 = vld [vmem:[%s1193 + $0x240] sm:$0xf]
        %v3173 = vld [vmem:[%s1193 + $0x244] sm:$0xff]
        %v3174 = vld [vmem:[%s1193 + $0x24c] sm:$0xff]
        %v3175 = vld [vmem:[%s1193 + $0x254] sm:$0xf]
        %v3176 = vld [vmem:[%s1193 + $0x258] sm:$0xff]
        %v3177 = vld [vmem:[%s1193 + $0x260] sm:$0xff]
        %v3178 = vld [vmem:[%s1193 + $0x268] sm:$0xf]
        %v3179 = vld [vmem:[%s1193 + $0x26c] sm:$0xff]
        %v3180 = vld [vmem:[%s1193 + $0x274] sm:$0xff]
        %v3181 = vld [vmem:[%s1193 + $0x27c] sm:$0xf]
        %v3182 = vld [vmem:[%s1193 + $0x280] sm:$0xff]
        %v3183 = vld [vmem:[%s1193 + $0x288] sm:$0xff]
        %v3184 = vld [vmem:[%s1193 + $0x290] sm:$0xf]
        %v3185 = vld [vmem:[%s1193 + $0x294] sm:$0xff]
        %v3186 = vld [vmem:[%s1193 + $0x29c] sm:$0xff]
        %v3187 = vld [vmem:[%s1193 + $0x2a4] sm:$0xf]
        %v3188 = vld [vmem:[%s1193 + $0x2a8] sm:$0xff]
        %v3189 = vld [vmem:[%s1193 + $0x2b0] sm:$0xff]
        %v3190 = vld [vmem:[%s1193 + $0x2b8] sm:$0xf]
        %v3191 = vld [vmem:[%s1193 + $0x2bc] sm:$0xff]
        %v3192 = vld [vmem:[%s1193 + $0x2c4] sm:$0xff]
        %v3193 = vld [vmem:[%s1193 + $0x2cc] sm:$0xf]
        %v3194 = vld [vmem:[%s1193 + $0x2d0] sm:$0xff]
        %v3195 = vld [vmem:[%s1193 + $0x2d8] sm:$0xff]
        %v3196 = vld [vmem:[%s1193 + $0x2e0] sm:$0xf]
        %v3197 = vld [vmem:[%s1193 + $0x2e4] sm:$0xff]
        %v3198 = vld [vmem:[%s1193 + $0x2ec] sm:$0xff]
        %v3199 = vld [vmem:[%s1193 + $0x2f4] sm:$0xf]
        %v3200 = vld [vmem:[%s1193 + $0x2f8] sm:$0xff]
        %v3201 = vld [vmem:[%s1193 + $0x300] sm:$0xff]
        %v3202 = vld [vmem:[%s1193 + $0x308] sm:$0xf]
        %v3203 = vld [vmem:[%s1193 + $0x30c] sm:$0xff]
        %v3204 = vld [vmem:[%s1193 + $0x314] sm:$0xff]
        %v3205 = vld [vmem:[%s1193 + $0x31c] sm:$0xf]
        %v3206 = vld [vmem:[%s1193 + $0x320] sm:$0xff]
        %v3207 = vld [vmem:[%s1193 + $0x328] sm:$0xff]
        %v3208 = vld [vmem:[%s1193 + $0x330] sm:$0xf]
        %v3209 = vld [vmem:[%s1193 + $0x334] sm:$0xff]
        %v3210 = vld [vmem:[%s1193 + $0x33c] sm:$0xff]
        %v3211 = vld [vmem:[%s1193 + $0x344] sm:$0xf]
        %v3212 = vld [vmem:[%s1193 + $0x348] sm:$0xff]
        %v3213 = vld [vmem:[%s1193 + $0x350] sm:$0xff]
        %v3214 = vld [vmem:[%s1193 + $0x358] sm:$0xf]
        %v3215 = vld [vmem:[%s1193 + $0x35c] sm:$0xff]
        %v3216 = vld [vmem:[%s1193 + $0x364] sm:$0xff]
        %v3217 = vld [vmem:[%s1193 + $0x36c] sm:$0xf]
        %v3218 = vld [vmem:[%s1193 + $0x370] sm:$0xff]
        %v3219 = vld [vmem:[%s1193 + $0x378] sm:$0xff]
        %v3220 = vld [vmem:[%s1193 + $0x380] sm:$0xf]
        %v3221 = vld [vmem:[%s1193 + $0x384] sm:$0xff]
        %v3222 = vld [vmem:[%s1193 + $0x38c] sm:$0xff]
        %v3223 = vld [vmem:[%s1193 + $0x394] sm:$0xf]
        %v3224 = vld [vmem:[%s1193 + $0x398] sm:$0xff]
        %v3225 = vld [vmem:[%s1193 + $0x3a0] sm:$0xff]
        %v3226 = vld [vmem:[%s1193 + $0x3a8] sm:$0xf]
        %v3227 = vld [vmem:[%s1193 + $0x3ac] sm:$0xff]
        %v3228 = vld [vmem:[%s1193 + $0x3b4] sm:$0xff]
        %v3229 = vld [vmem:[%s1193 + $0x3bc] sm:$0xf]
        %v3230 = vld [vmem:[%s1193 + $0x3c0] sm:$0xff]
        %v3231 = vld [vmem:[%s1193 + $0x3c8] sm:$0xff]
        %v3232 = vld [vmem:[%s1193 + $0x3d0] sm:$0xf]
        %v3233 = vld [vmem:[%s1193 + $0x3d4] sm:$0xff]
        %v3234 = vld [vmem:[%s1193 + $0x3dc] sm:$0xff]
        %v3235 = vld [vmem:[%s1193 + $0x3e4] sm:$0xf]
        %v3236 = vld [vmem:[%s1193 + $0x3e8] sm:$0xff]
        %v3237 = vld [vmem:[%s1193 + $0x3f0] sm:$0xff]
        %v3238 = vld [vmem:[%s1193 + $0x3f8] sm:$0xf]
        %v3239 = vld [vmem:[%s1193 + $0x3fc] sm:$0xff]
        %v3240 = vld [vmem:[%s1193 + $0x404] sm:$0xff]
        %v3241 = vld [vmem:[%s1193 + $0x40c] sm:$0xf]
        %v3242 = vld [vmem:[%s1193 + $0x410] sm:$0xff]
        %v3243 = vld [vmem:[%s1193 + $0x418] sm:$0xff]
        %v3244 = vld [vmem:[%s1193 + $0x420] sm:$0xf]
        %v3245 = vld [vmem:[%s1193 + $0x424] sm:$0xff]
        %v3246 = vld [vmem:[%s1193 + $0x42c] sm:$0xff]
        %v3247 = vld [vmem:[%s1193 + $0x434] sm:$0xf]
        %v3248 = vld [vmem:[%s1193 + $0x438] sm:$0xff]
        %v3249 = vld [vmem:[%s1193 + $0x440] sm:$0xff]
        %v3250 = vld [vmem:[%s1193 + $0x448] sm:$0xf]
        %v3251 = vld [vmem:[%s1193 + $0x44c] sm:$0xff]
        %v3252 = vld [vmem:[%s1193 + $0x454] sm:$0xff]
        %v3253 = vld [vmem:[%s1193 + $0x45c] sm:$0xf]
        %v3254 = vld [vmem:[%s1193 + $0x460] sm:$0xff]
        %v3255 = vld [vmem:[%s1193 + $0x468] sm:$0xff]
        %v3256 = vld [vmem:[%s1193 + $0x470] sm:$0xf]
        %v3257 = vld [vmem:[%s1193 + $0x474] sm:$0xff]
        %v3258 = vld [vmem:[%s1193 + $0x47c] sm:$0xff]
        %v3259 = vld [vmem:[%s1193 + $0x484] sm:$0xf]
        %v3260 = vld [vmem:[%s1193 + $0x488] sm:$0xff]
        %v3261 = vld [vmem:[%s1193 + $0x490] sm:$0xff]
        %v3262 = vld [vmem:[%s1193 + $0x498] sm:$0xf]
        %v3263 = vld [vmem:[%s1193 + $0x49c] sm:$0xff]
        %v3264 = vld [vmem:[%s1193 + $0x4a4] sm:$0xff]
        %v3265 = vld [vmem:[%s1193 + $0x4ac] sm:$0xf]
        %v3266 = vld [vmem:[%s1193 + $0x4b0] sm:$0xff]
        %v3267 = vld [vmem:[%s1193 + $0x4b8] sm:$0xff]
        %v3268 = vld [vmem:[%s1193 + $0x4c0] sm:$0xf]
        %v3269 = vld [vmem:[%s1193 + $0x4c4] sm:$0xff]
        %v3270 = vld [vmem:[%s1193 + $0x4cc] sm:$0xff]
        %v3271 = vld [vmem:[%s1193 + $0x4d4] sm:$0xf]
        %v3272 = vld [vmem:[%s1193 + $0x4d8] sm:$0xff]
        %v3273 = vld [vmem:[%s1193 + $0x4e0] sm:$0xff]
        %v3274 = vld [vmem:[%s1193 + $0x4e8] sm:$0xf]
        %v3275 = vld [vmem:[%s1193 + $0x4ec] sm:$0xff]
        %v3276 = vld [vmem:[%s1193 + $0x4f4] sm:$0xff]
        %v3277 = vld [vmem:[%s1193 + $0x4fc] sm:$0xf]
        %v3278 = vld [vmem:[%s1193 + $0x500] sm:$0xff]
        %v3279 = vld [vmem:[%s1193 + $0x508] sm:$0xff]
        %v3280 = vld [vmem:[%s1193 + $0x510] sm:$0xf]
        %v3281 = vld [vmem:[%s1193 + $0x514] sm:$0xff]
        %v3282 = vld [vmem:[%s1193 + $0x51c] sm:$0xff]
        %v3283 = vld [vmem:[%s1193 + $0x524] sm:$0xf]
        %v3284 = vld [vmem:[%s1193 + $0x528] sm:$0xff]
        %v3285 = vld [vmem:[%s1193 + $0x530] sm:$0xff]
        %v3286 = vld [vmem:[%s1193 + $0x538] sm:$0xf]
        %v3287 = vld [vmem:[%s1193 + $0x53c] sm:$0xff]
        %v3288 = vld [vmem:[%s1193 + $0x544] sm:$0xff]
        %v3289 = vld [vmem:[%s1193 + $0x54c] sm:$0xf]
        %v3290 = vld [vmem:[%s1193 + $0x550] sm:$0xff]
        %v3291 = vld [vmem:[%s1193 + $0x558] sm:$0xff]
        %v3292 = vld [vmem:[%s1193 + $0x560] sm:$0xf]
        %v3293 = vld [vmem:[%s1193 + $0x564] sm:$0xff]
        %v3294 = vld [vmem:[%s1193 + $0x56c] sm:$0xff]
        %v3295 = vld [vmem:[%s1193 + $0x574] sm:$0xf]
        %v3296 = vld [vmem:[%s1193 + $0x578] sm:$0xff]
        %v3297 = vld [vmem:[%s1193 + $0x580] sm:$0xff]
        %v3298 = vld [vmem:[%s1193 + $0x588] sm:$0xf]
        %v3299 = vld [vmem:[%s1193 + $0x58c] sm:$0xff]
        %v3300 = vld [vmem:[%s1193 + $0x594] sm:$0xff]
        %v3301 = vld [vmem:[%s1193 + $0x59c] sm:$0xf]
        %v3302 = vld [vmem:[%s1193 + $0x5a0] sm:$0xff]
        %v3303 = vld [vmem:[%s1193 + $0x5a8] sm:$0xff]
        %v3304 = vld [vmem:[%s1193 + $0x5b0] sm:$0xf]
        %v3305 = vld [vmem:[%s1193 + $0x5b4] sm:$0xff]
        %v3306 = vld [vmem:[%s1193 + $0x5bc] sm:$0xff]
        %v3307 = vld [vmem:[%s1193 + $0x5c4] sm:$0xf]
        %v3308 = vld [vmem:[%s1193 + $0x5c8] sm:$0xff]
        %v3309 = vld [vmem:[%s1193 + $0x5d0] sm:$0xff]
        %v3310 = vld [vmem:[%s1193 + $0x5d8] sm:$0xf]
        %v3311 = vld [vmem:[%s1193 + $0x5dc] sm:$0xff]
        %v3312 = vld [vmem:[%s1193 + $0x5e4] sm:$0xff]
        %v3313 = vld [vmem:[%s1193 + $0x5ec] sm:$0xf]
        %v3314 = vld [vmem:[%s1193 + $0x5f0] sm:$0xff]
        %v3315 = vld [vmem:[%s1193 + $0x5f8] sm:$0xff]
        %v3316 = vld [vmem:[%s1193 + $0x600] sm:$0xf]
        %v3317 = vld [vmem:[%s1193 + $0x604] sm:$0xff]
        %v3318 = vld [vmem:[%s1193 + $0x60c] sm:$0xff]
        %v3319 = vld [vmem:[%s1193 + $0x614] sm:$0xf]
        %v3320 = vld [vmem:[%s1193 + $0x618] sm:$0xff]
        %v3321 = vld [vmem:[%s1193 + $0x620] sm:$0xff]
        %v3322 = vld [vmem:[%s1193 + $0x628] sm:$0xf]
        %v3323 = vld [vmem:[%s1193 + $0x62c] sm:$0xff]
        %v3324 = vld [vmem:[%s1193 + $0x634] sm:$0xff]
        %v3325 = vld [vmem:[%s1193 + $0x63c] sm:$0xf]
        %v3326 = vld [vmem:[%s1193 + $0x640] sm:$0xff]
        %v3327 = vld [vmem:[%s1193 + $0x648] sm:$0xff]
        %v3328 = vld [vmem:[%s1193 + $0x650] sm:$0xf]
        %v3329 = vld [vmem:[%s1193 + $0x654] sm:$0xff]
        %v3330 = vld [vmem:[%s1193 + $0x65c] sm:$0xff]
        %v3331 = vld [vmem:[%s1193 + $0x664] sm:$0xf]
        %v3332 = vld [vmem:[%s1193 + $0x668] sm:$0xff]
        %v3333 = vld [vmem:[%s1193 + $0x670] sm:$0xff]
        %v3334 = vld [vmem:[%s1193 + $0x678] sm:$0xf]
        %v3335 = vld [vmem:[%s1193 + $0x67c] sm:$0xff]
        %v3336 = vld [vmem:[%s1193 + $0x684] sm:$0xff]
        %v3337 = vld [vmem:[%s1193 + $0x68c] sm:$0xf]
        %v3338 = vld [vmem:[%s1193 + $0x690] sm:$0xff]
        %v3339 = vld [vmem:[%s1193 + $0x698] sm:$0xff]
        %v3340 = vld [vmem:[%s1193 + $0x6a0] sm:$0xf]
        %v3341 = vld [vmem:[%s1193 + $0x6a4] sm:$0xff]
        %v3342 = vld [vmem:[%s1193 + $0x6ac] sm:$0xff]
        %v3343 = vld [vmem:[%s1193 + $0x6b4] sm:$0xf]
        %v3344 = vld [vmem:[%s1193 + $0x6b8] sm:$0xff]
        %v3345 = vld [vmem:[%s1193 + $0x6c0] sm:$0xff]
        %v3346 = vld [vmem:[%s1193 + $0x6c8] sm:$0xf]
        %v3347 = vld [vmem:[%s1193 + $0x6cc] sm:$0xff]
        %v3348 = vld [vmem:[%s1193 + $0x6d4] sm:$0xff]
        %v3349 = vld [vmem:[%s1193 + $0x6dc] sm:$0xf]
        %v3350 = vld [vmem:[%s1193 + $0x6e0] sm:$0xff]
        %v3351 = vld [vmem:[%s1193 + $0x6e8] sm:$0xff]
        %v3352 = vld [vmem:[%s1193 + $0x6f0] sm:$0xf]
        %v3353 = vld [vmem:[%s1193 + $0x6f4] sm:$0xff]
        %v3354 = vld [vmem:[%s1193 + $0x6fc] sm:$0xff]
        %v3355 = vld [vmem:[%s1193 + $0x704] sm:$0xf]
        %v3356 = vld [vmem:[%s1193 + $0x708] sm:$0xff]
        %v3357 = vld [vmem:[%s1193 + $0x710] sm:$0xff]
        %v3358 = vld [vmem:[%s1193 + $0x718] sm:$0xf]
        %v3359 = vld [vmem:[%s1193 + $0x71c] sm:$0xff]
        %v3360 = vld [vmem:[%s1193 + $0x724] sm:$0xff]
        %v3361 = vld [vmem:[%s1193 + $0x72c] sm:$0xf]
        %v3362 = vld [vmem:[%s1193 + $0x730] sm:$0xff]
        %v3363 = vld [vmem:[%s1193 + $0x738] sm:$0xff]
        %v3364 = vld [vmem:[%s1193 + $0x740] sm:$0xf]
        %v3365 = vld [vmem:[%s1193 + $0x744] sm:$0xff]
        %v3366 = vld [vmem:[%s1193 + $0x74c] sm:$0xff]
        %v3367 = vld [vmem:[%s1193 + $0x754] sm:$0xf]
        %v3368 = vld [vmem:[%s1193 + $0x758] sm:$0xff]
        %v3369 = vld [vmem:[%s1193 + $0x760] sm:$0xff]
        %v3370 = vld [vmem:[%s1193 + $0x768] sm:$0xf]
        %v3371 = vld [vmem:[%s1193 + $0x76c] sm:$0xff]
        %v3372 = vld [vmem:[%s1193 + $0x774] sm:$0xff]
        %v3373 = vld [vmem:[%s1193 + $0x77c] sm:$0xf]
        %v3374 = vld [vmem:[%s1193 + $0x780] sm:$0xff]
        %v3375 = vld [vmem:[%s1193 + $0x788] sm:$0xff]
        %v3376 = vld [vmem:[%s1193 + $0x790] sm:$0xf]
        %v3377 = vld [vmem:[%s1193 + $0x794] sm:$0xff]
        %v3378 = vld [vmem:[%s1193 + $0x79c] sm:$0xff]
        %v3379 = vld [vmem:[%s1193 + $0x7a4] sm:$0xf]
        %v3380 = vld [vmem:[%s1193 + $0x7a8] sm:$0xff]
        %v3381 = vld [vmem:[%s1193 + $0x7b0] sm:$0xff]
        %v3382 = vld [vmem:[%s1193 + $0x7b8] sm:$0xf]
        %v3383 = vld [vmem:[%s1193 + $0x7bc] sm:$0xff]
        %v3384 = vld [vmem:[%s1193 + $0x7c4] sm:$0xff]
        %v3385 = vld [vmem:[%s1193 + $0x7cc] sm:$0xf]
        %v3386 = vld [vmem:[%s1193 + $0x7d0] sm:$0xff]
        %v3387 = vld [vmem:[%s1193 + $0x7d8] sm:$0xff]
        %v3388 = vld [vmem:[%s1193 + $0x7e0] sm:$0xf]
        %v3389 = vld [vmem:[%s1193 + $0x7e4] sm:$0xff]
        %v3390 = vld [vmem:[%s1193 + $0x7ec] sm:$0xff]
        %v3391 = vld [vmem:[%s1193 + $0x7f4] sm:$0xf]
        %v3392 = vld [vmem:[%s1193 + $0x7f8] sm:$0xff]
        %v3393 = vld [vmem:[%s1193 + $0x800] sm:$0xff]
        %v3394 = vld [vmem:[%s1193 + $0x808] sm:$0xf]
        %v3395 = vld [vmem:[%s1193 + $0x80c] sm:$0xff]
        %v3396 = vld [vmem:[%s1193 + $0x814] sm:$0xff]
        %v3397 = vld [vmem:[%s1193 + $0x81c] sm:$0xf]
        %v3398 = vld [vmem:[%s1193 + $0x820] sm:$0xff]
        %v3399 = vld [vmem:[%s1193 + $0x828] sm:$0xff]
        %v3400 = vld [vmem:[%s1193 + $0x830] sm:$0xf]
        %v3401 = vld [vmem:[%s1193 + $0x834] sm:$0xff]
        %v3402 = vld [vmem:[%s1193 + $0x83c] sm:$0xff]
        %v3403 = vld [vmem:[%s1193 + $0x844] sm:$0xf]
        %v3404 = vld [vmem:[%s1193 + $0x848] sm:$0xff]
        %v3405 = vld [vmem:[%s1193 + $0x850] sm:$0xff]
        %v3406 = vld [vmem:[%s1193 + $0x858] sm:$0xf]
        %v3407 = vld [vmem:[%s1193 + $0x85c] sm:$0xff]
        %v3408 = vld [vmem:[%s1193 + $0x864] sm:$0xff]
        %v3409 = vld [vmem:[%s1193 + $0x86c] sm:$0xf]
        %v3410 = vld [vmem:[%s1193 + $0x870] sm:$0xff]
        %v3411 = vld [vmem:[%s1193 + $0x878] sm:$0xff]
        %v3412 = vld [vmem:[%s1193 + $0x880] sm:$0xf]
        %v3413 = vld [vmem:[%s1193 + $0x884] sm:$0xff]
        %v3414 = vld [vmem:[%s1193 + $0x88c] sm:$0xff]
        %v3415 = vld [vmem:[%s1193 + $0x894] sm:$0xf]
        %v3416 = vld [vmem:[%s1193 + $0x898] sm:$0xff]
        %v3417 = vld [vmem:[%s1193 + $0x8a0] sm:$0xff]
        %v3418 = vld [vmem:[%s1193 + $0x8a8] sm:$0xf]
        %v3419 = vld [vmem:[%s1193 + $0x8ac] sm:$0xff]
        %v3420 = vld [vmem:[%s1193 + $0x8b4] sm:$0xff]
        %v3421 = vld [vmem:[%s1193 + $0x8bc] sm:$0xf]
        %v3422 = vld [vmem:[%s1193 + $0x8c0] sm:$0xff]
        %v3423 = vld [vmem:[%s1193 + $0x8c8] sm:$0xff]
        %v3424 = vld [vmem:[%s1193 + $0x8d0] sm:$0xf]
        %v3425 = vld [vmem:[%s1193 + $0x8d4] sm:$0xff]
        %v3426 = vld [vmem:[%s1193 + $0x8dc] sm:$0xff]
        %v3427 = vld [vmem:[%s1193 + $0x8e4] sm:$0xf]
        %v3428 = vld [vmem:[%s1193 + $0x8e8] sm:$0xff]
        %v3429 = vld [vmem:[%s1193 + $0x8f0] sm:$0xff]
        %v3430 = vld [vmem:[%s1193 + $0x8f8] sm:$0xf]
        %v3431 = vld [vmem:[%s1193 + $0x8fc] sm:$0xff]
        %v3432 = vld [vmem:[%s1193 + $0x904] sm:$0xff]
        %v3433 = vld [vmem:[%s1193 + $0x90c] sm:$0xf]
        %v3434 = vld [vmem:[%s1193 + $0x910] sm:$0xff]
        %v3435 = vld [vmem:[%s1193 + $0x918] sm:$0xff]
        %v3436 = vld [vmem:[%s1193 + $0x920] sm:$0xf]
        %v3437 = vld [vmem:[%s1193 + $0x924] sm:$0xff]
        %v3438 = vld [vmem:[%s1193 + $0x92c] sm:$0xff]
        %v3439 = vld [vmem:[%s1193 + $0x934] sm:$0xf]
        %v3440 = vld [vmem:[%s1193 + $0x938] sm:$0xff]
        %v3441 = vld [vmem:[%s1193 + $0x940] sm:$0xff]
        %v3442 = vld [vmem:[%s1193 + $0x948] sm:$0xf]
        %v3443 = vld [vmem:[%s1193 + $0x94c] sm:$0xff]
        %v3444 = vld [vmem:[%s1193 + $0x954] sm:$0xff]
        %v3445 = vld [vmem:[%s1193 + $0x95c] sm:$0xf]
        %v3446 = vld [vmem:[%s1193 + $0x960] sm:$0xff]
        %v3447 = vld [vmem:[%s1193 + $0x968] sm:$0xff]
        %v3448 = vld [vmem:[%s1193 + $0x970] sm:$0xf]
        %v3449 = vld [vmem:[%s1193 + $0x974] sm:$0xff]
        %v3450 = vld [vmem:[%s1193 + $0x97c] sm:$0xff]
        %v3451 = vld [vmem:[%s1193 + $0x984] sm:$0xf]
        %v3452 = vld [vmem:[%s1193 + $0x988] sm:$0xff]
        %v3453 = vld [vmem:[%s1193 + $0x990] sm:$0xff]
        %v3454 = vld [vmem:[%s1193 + $0x998] sm:$0xf]
        %v3455 = vld [vmem:[%s1193 + $0x99c] sm:$0xff]
        %v3456 = vld [vmem:[%s1193 + $0x9a4] sm:$0xff]
        %v3457 = vld [vmem:[%s1193 + $0x9ac] sm:$0xf]
        %v3458 = vld [vmem:[%s1193 + $0x9b0] sm:$0xff]
        %v3459 = vld [vmem:[%s1193 + $0x9b8] sm:$0xff]
        %v3460 = vld [vmem:[%s1193 + $0x9c0] sm:$0xf]
        %v3461 = vld [vmem:[%s1193 + $0x9c4] sm:$0xff]
        %v3462 = vld [vmem:[%s1193 + $0x9cc] sm:$0xff]
        %v3463 = vld [vmem:[%s1193 + $0x9d4] sm:$0xf]
        %v3464 = vld [vmem:[%s1193 + $0x9d8] sm:$0xff]
        %v3465 = vld [vmem:[%s1193 + $0x9e0] sm:$0xff]
        %v3466 = vld [vmem:[%s1193 + $0x9e8] sm:$0xf]
        %v3467 = vld [vmem:[%s1193 + $0x9ec] sm:$0xff]
        %v3468 = vld [vmem:[%s1193 + $0x9f4] sm:$0xff]
        %v3469 = vld [vmem:[%s1193 + $0x9fc] sm:$0xf]
        %v3470 = vld [vmem:[%s1193 + $0xa00] sm:$0xff]
        %v3471 = vld [vmem:[%s1193 + $0xa08] sm:$0xff]
        %v3472 = vld [vmem:[%s1193 + $0xa10] sm:$0xf]
        %v3473 = vld [vmem:[%s1193 + $0xa14] sm:$0xff]
        %v3474 = vld [vmem:[%s1193 + $0xa1c] sm:$0xff]
        %v3475 = vld [vmem:[%s1193 + $0xa24] sm:$0xf]
        %v3476 = vld [vmem:[%s1193 + $0xa28] sm:$0xff]
        %v3477 = vld [vmem:[%s1193 + $0xa30] sm:$0xff]
        %v3478 = vld [vmem:[%s1193 + $0xa38] sm:$0xf]
        %v3479 = vld [vmem:[%s1193 + $0xa3c] sm:$0xff]
        %v3480 = vld [vmem:[%s1193 + $0xa44] sm:$0xff]
        %v3481 = vld [vmem:[%s1193 + $0xa4c] sm:$0xf]
        %v3482 = vld [vmem:[%s1193 + $0xa50] sm:$0xff]
        %v3483 = vld [vmem:[%s1193 + $0xa58] sm:$0xff]
        %v3484 = vld [vmem:[%s1193 + $0xa60] sm:$0xf]
        %v3485 = vld [vmem:[%s1193 + $0xa64] sm:$0xff]
        %v3486 = vld [vmem:[%s1193 + $0xa6c] sm:$0xff]
        %v3487 = vld [vmem:[%s1193 + $0xa74] sm:$0xf]
        %v3488 = vld [vmem:[%s1193 + $0xa78] sm:$0xff]
        %v3489 = vld [vmem:[%s1193 + $0xa80] sm:$0xff]
        %v3490 = vld [vmem:[%s1193 + $0xa88] sm:$0xf]
        %v3491 = vld [vmem:[%s1193 + $0xa8c] sm:$0xff]
        %v3492 = vld [vmem:[%s1193 + $0xa94] sm:$0xff]
        %v3493 = vld [vmem:[%s1193 + $0xa9c] sm:$0xf]
        %v3494 = vld [vmem:[%s1193 + $0xaa0] sm:$0xff]
        %v3495 = vld [vmem:[%s1193 + $0xaa8] sm:$0xff]
        %v3496 = vld [vmem:[%s1193 + $0xab0] sm:$0xf]
        %v3497 = vld [vmem:[%s1193 + $0xab4] sm:$0xff]
        %v3498 = vld [vmem:[%s1193 + $0xabc] sm:$0xff]
        %v3499 = vld [vmem:[%s1193 + $0xac4] sm:$0xf]
        %v3500 = vld [vmem:[%s1193 + $0xac8] sm:$0xff]
        %v3501 = vld [vmem:[%s1193 + $0xad0] sm:$0xff]
        %v3502 = vld [vmem:[%s1193 + $0xad8] sm:$0xf]
        %v3503 = vld [vmem:[%s1193 + $0xadc] sm:$0xff]
        %v3504 = vld [vmem:[%s1193 + $0xae4] sm:$0xff]
        %v3505 = vld [vmem:[%s1193 + $0xaec] sm:$0xf]
        %v3506 = vld [vmem:[%s1193 + $0xaf0] sm:$0xff]
        %v3507 = vld [vmem:[%s1193 + $0xaf8] sm:$0xff]
        %v3508 = vld [vmem:[%s1193 + $0xb00] sm:$0xf]
        %v3509 = vld [vmem:[%s1193 + $0xb04] sm:$0xff]
        %v3510 = vld [vmem:[%s1193 + $0xb0c] sm:$0xff]
        %v3511 = vld [vmem:[%s1193 + $0xb14] sm:$0xf]
        %v3512 = vld [vmem:[%s1193 + $0xb18] sm:$0xff]
        %v3513 = vld [vmem:[%s1193 + $0xb20] sm:$0xff]
        %v3514 = vld [vmem:[%s1193 + $0xb28] sm:$0xf]
        %v3515 = vld [vmem:[%s1193 + $0xb2c] sm:$0xff]
        %v3516 = vld [vmem:[%s1193 + $0xb34] sm:$0xff]
        %v3517 = vld [vmem:[%s1193 + $0xb3c] sm:$0xf]
        %v3518 = vld [vmem:[%s1193 + $0xb40] sm:$0xff]
        %v3519 = vld [vmem:[%s1193 + $0xb48] sm:$0xff]
        %v3520 = vld [vmem:[%s1193 + $0xb50] sm:$0xf]
        %v3521 = vld [vmem:[%s1193 + $0xb54] sm:$0xff]
        %v3522 = vld [vmem:[%s1193 + $0xb5c] sm:$0xff]
        %v3523 = vld [vmem:[%s1193 + $0xb64] sm:$0xf]
        %v3524 = vld [vmem:[%s1193 + $0xb68] sm:$0xff]
        %v3525 = vld [vmem:[%s1193 + $0xb70] sm:$0xff]
        %v3526 = vld [vmem:[%s1193 + $0xb78] sm:$0xf]
        %v3527 = vld [vmem:[%s1193 + $0xb7c] sm:$0xff]
        %v3528 = vld [vmem:[%s1193 + $0xb84] sm:$0xff]
        %v3529 = vld [vmem:[%s1193 + $0xb8c] sm:$0xf]
        %v3530 = vld [vmem:[%s1193 + $0xb90] sm:$0xff]
        %v3531 = vld [vmem:[%s1193 + $0xb98] sm:$0xff]
        %v3532 = vld [vmem:[%s1193 + $0xba0] sm:$0xf]
        %v3533 = vld [vmem:[%s1193 + $0xba4] sm:$0xff]
        %v3534 = vld [vmem:[%s1193 + $0xbac] sm:$0xff]
        %v3535 = vld [vmem:[%s1193 + $0xbb4] sm:$0xf]
        %v3536 = vld [vmem:[%s1193 + $0xbb8] sm:$0xff]
        %v3537 = vld [vmem:[%s1193 + $0xbc0] sm:$0xff]
        %v3538 = vld [vmem:[%s1193 + $0xbc8] sm:$0xf]
        %v3539 = vld [vmem:[%s1193 + $0xbcc] sm:$0xff]
        %v3540 = vld [vmem:[%s1193 + $0xbd4] sm:$0xff]
        %v3541 = vld [vmem:[%s1193 + $0xbdc] sm:$0xf]
        %v3542 = vld [vmem:[%s1193 + $0xbe0] sm:$0xff]
        %v3543 = vld [vmem:[%s1193 + $0xbe8] sm:$0xff]
        %v3544 = vld [vmem:[%s1193 + $0xbf0] sm:$0xf]
        %v3545 = vld [vmem:[%s1193 + $0xbf4] sm:$0xff]
        %v3546 = vld [vmem:[%s1193 + $0xbfc] sm:$0xff]
        %v3547 = vld [vmem:[%s1193 + $0xc04] sm:$0xf]
        %v3548 = vld [vmem:[%s1193 + $0xc08] sm:$0xff]
        %v3549 = vld [vmem:[%s1193 + $0xc10] sm:$0xff]
        %v3550 = vld [vmem:[%s1193 + $0xc18] sm:$0xf]
        %v3551 = vld [vmem:[%s1193 + $0xc1c] sm:$0xff]
        %v3552 = vld [vmem:[%s1193 + $0xc24] sm:$0xff]
        %v3553 = vld [vmem:[%s1193 + $0xc2c] sm:$0xf]
        %v3554 = vld [vmem:[%s1193 + $0xc30] sm:$0xff]
        %v3555 = vld [vmem:[%s1193 + $0xc38] sm:$0xff]
        %v3556 = vld [vmem:[%s1193 + $0xc40] sm:$0xf]
        %v3557 = vld [vmem:[%s1193 + $0xc44] sm:$0xff]
        %v3558 = vld [vmem:[%s1193 + $0xc4c] sm:$0xff]
        %v3559 = vld [vmem:[%s1193 + $0xc54] sm:$0xf]
        %v3560 = vld [vmem:[%s1193 + $0xc58] sm:$0xff]
        %v3561 = vld [vmem:[%s1193 + $0xc60] sm:$0xff]
        %v3562 = vld [vmem:[%s1193 + $0xc68] sm:$0xf]
        %v3563 = vld [vmem:[%s1193 + $0xc6c] sm:$0xff]
        %v3564 = vld [vmem:[%s1193 + $0xc74] sm:$0xff]
        %v3565 = vld [vmem:[%s1193 + $0xc7c] sm:$0xf]
        %v3566 = vld [vmem:[%s1225] sm:$0x1f]
        %v3568 = vlaneseq
        %v3569 = vshrl.u32 %v3568, 7
        %v3570 = vsub.s32 0, %v3569
        %v3571 = vrot.slane %v3566, %v3570
        %v3572 = vlaneseq
        %v3573 = vshrl.u32 %v3572, 7
        %v3574 = vsub.s32 1, %v3573
        %v3575 = vrot.slane %v3566, %v3574
        %v3576 = vlaneseq
        %v3577 = vshrl.u32 %v3576, 7
        %v3578 = vsub.s32 2, %v3577
        %v3579 = vrot.slane %v3566, %v3578
        %v3580 = vlaneseq
        %v3581 = vshrl.u32 %v3580, 7
        %v3582 = vsub.s32 3, %v3581
        %v3583 = vrot.slane %v3566, %v3582
        %v3584 = vlaneseq
        %v3585 = vshrl.u32 %v3584, 7
        %v3586 = vsub.s32 4, %v3585
        %v3587 = vrot.slane %v3566, %v3586
        %v4073 = vunpack.c.l.b16 %v3086
        %v4074 = vunpack.c.h.b16 %v3086
        %v4075 = vunpack.c.l.b16 %v3087
        %v4076 = vunpack.c.h.b16 %v3087
        %v4077 = vunpack.c.l.b16 %v3088
        %v4078 = vunpack.c.l.b16 %v3089
        %v4079 = vunpack.c.h.b16 %v3089
        %v4080 = vunpack.c.l.b16 %v3090
        %v4081 = vunpack.c.h.b16 %v3090
        %v4082 = vunpack.c.l.b16 %v3091
        %v4083 = vunpack.c.l.b16 %v3092
        %v4084 = vunpack.c.h.b16 %v3092
        %v4085 = vunpack.c.l.b16 %v3093
        %v4086 = vunpack.c.h.b16 %v3093
        %v4087 = vunpack.c.l.b16 %v3094
        %v4088 = vunpack.c.l.b16 %v3095
        %v4089 = vunpack.c.h.b16 %v3095
        %v4090 = vunpack.c.l.b16 %v3096
        %v4091 = vunpack.c.h.b16 %v3096
        %v4092 = vunpack.c.l.b16 %v3097
        %v4093 = vunpack.c.l.b16 %v3098
        %v4094 = vunpack.c.h.b16 %v3098
        %v4095 = vunpack.c.l.b16 %v3099
        %v4096 = vunpack.c.h.b16 %v3099
        %v4097 = vunpack.c.l.b16 %v3100
        %v4098 = vunpack.c.l.b16 %v3101
        %v4099 = vunpack.c.h.b16 %v3101
        %v4100 = vunpack.c.l.b16 %v3102
        %v4101 = vunpack.c.h.b16 %v3102
        %v4102 = vunpack.c.l.b16 %v3103
        %v4103 = vunpack.c.l.b16 %v3104
        %v4104 = vunpack.c.h.b16 %v3104
        %v4105 = vunpack.c.l.b16 %v3105
        %v4106 = vunpack.c.h.b16 %v3105
        %v4107 = vunpack.c.l.b16 %v3106
        %v4108 = vunpack.c.l.b16 %v3107
        %v4109 = vunpack.c.h.b16 %v3107
        %v4110 = vunpack.c.l.b16 %v3108
        %v4111 = vunpack.c.h.b16 %v3108
        %v4112 = vunpack.c.l.b16 %v3109
        %v4113 = vunpack.c.l.b16 %v3110
        %v4114 = vunpack.c.h.b16 %v3110
        %v4115 = vunpack.c.l.b16 %v3111
        %v4116 = vunpack.c.h.b16 %v3111
        %v4117 = vunpack.c.l.b16 %v3112
        %v4118 = vunpack.c.l.b16 %v3113
        %v4119 = vunpack.c.h.b16 %v3113
        %v4120 = vunpack.c.l.b16 %v3114
        %v4121 = vunpack.c.h.b16 %v3114
        %v4122 = vunpack.c.l.b16 %v3115
        %v4123 = vunpack.c.l.b16 %v3116
        %v4124 = vunpack.c.h.b16 %v3116
        %v4125 = vunpack.c.l.b16 %v3117
        %v4126 = vunpack.c.h.b16 %v3117
        %v4127 = vunpack.c.l.b16 %v3118
        %v4128 = vunpack.c.l.b16 %v3119
        %v4129 = vunpack.c.h.b16 %v3119
        %v4130 = vunpack.c.l.b16 %v3120
        %v4131 = vunpack.c.h.b16 %v3120
        %v4132 = vunpack.c.l.b16 %v3121
        %v4133 = vunpack.c.l.b16 %v3122
        %v4134 = vunpack.c.h.b16 %v3122
        %v4135 = vunpack.c.l.b16 %v3123
        %v4136 = vunpack.c.h.b16 %v3123
        %v4137 = vunpack.c.l.b16 %v3124
        %v4138 = vunpack.c.l.b16 %v3125
        %v4139 = vunpack.c.h.b16 %v3125
        %v4140 = vunpack.c.l.b16 %v3126
        %v4141 = vunpack.c.h.b16 %v3126
        %v4142 = vunpack.c.l.b16 %v3127
        %v4143 = vunpack.c.l.b16 %v3128
        %v4144 = vunpack.c.h.b16 %v3128
        %v4145 = vunpack.c.l.b16 %v3129
        %v4146 = vunpack.c.h.b16 %v3129
        %v4147 = vunpack.c.l.b16 %v3130
        %v4148 = vunpack.c.l.b16 %v3131
        %v4149 = vunpack.c.h.b16 %v3131
        %v4150 = vunpack.c.l.b16 %v3132
        %v4151 = vunpack.c.h.b16 %v3132
        %v4152 = vunpack.c.l.b16 %v3133
        %v4153 = vunpack.c.l.b16 %v3134
        %v4154 = vunpack.c.h.b16 %v3134
        %v4155 = vunpack.c.l.b16 %v3135
        %v4156 = vunpack.c.h.b16 %v3135
        %v4157 = vunpack.c.l.b16 %v3136
        %v4158 = vunpack.c.l.b16 %v3137
        %v4159 = vunpack.c.h.b16 %v3137
        %v4160 = vunpack.c.l.b16 %v3138
        %v4161 = vunpack.c.h.b16 %v3138
        %v4162 = vunpack.c.l.b16 %v3139
        %v4163 = vunpack.c.l.b16 %v3140
        %v4164 = vunpack.c.h.b16 %v3140
        %v4165 = vunpack.c.l.b16 %v3141
        %v4166 = vunpack.c.h.b16 %v3141
        %v4167 = vunpack.c.l.b16 %v3142
        %v4168 = vunpack.c.l.b16 %v3143
        %v4169 = vunpack.c.h.b16 %v3143
        %v4170 = vunpack.c.l.b16 %v3144
        %v4171 = vunpack.c.h.b16 %v3144
        %v4172 = vunpack.c.l.b16 %v3145
        %v4173 = vunpack.c.l.b16 %v3146
        %v4174 = vunpack.c.h.b16 %v3146
        %v4175 = vunpack.c.l.b16 %v3147
        %v4176 = vunpack.c.h.b16 %v3147
        %v4177 = vunpack.c.l.b16 %v3148
        %v4178 = vunpack.c.l.b16 %v3149
        %v4179 = vunpack.c.h.b16 %v3149
        %v4180 = vunpack.c.l.b16 %v3150
        %v4181 = vunpack.c.h.b16 %v3150
        %v4182 = vunpack.c.l.b16 %v3151
        %v4183 = vunpack.c.l.b16 %v3152
        %v4184 = vunpack.c.h.b16 %v3152
        %v4185 = vunpack.c.l.b16 %v3153
        %v4186 = vunpack.c.h.b16 %v3153
        %v4187 = vunpack.c.l.b16 %v3154
        %v4188 = vunpack.c.l.b16 %v3155
        %v4189 = vunpack.c.h.b16 %v3155
        %v4190 = vunpack.c.l.b16 %v3156
        %v4191 = vunpack.c.h.b16 %v3156
        %v4192 = vunpack.c.l.b16 %v3157
        %v4193 = vunpack.c.l.b16 %v3158
        %v4194 = vunpack.c.h.b16 %v3158
        %v4195 = vunpack.c.l.b16 %v3159
        %v4196 = vunpack.c.h.b16 %v3159
        %v4197 = vunpack.c.l.b16 %v3160
        %v4198 = vunpack.c.l.b16 %v3161
        %v4199 = vunpack.c.h.b16 %v3161
        %v4200 = vunpack.c.l.b16 %v3162
        %v4201 = vunpack.c.h.b16 %v3162
        %v4202 = vunpack.c.l.b16 %v3163
        %v4203 = vunpack.c.l.b16 %v3164
        %v4204 = vunpack.c.h.b16 %v3164
        %v4205 = vunpack.c.l.b16 %v3165
        %v4206 = vunpack.c.h.b16 %v3165
        %v4207 = vunpack.c.l.b16 %v3166
        %v4208 = vunpack.c.l.b16 %v3167
        %v4209 = vunpack.c.h.b16 %v3167
        %v4210 = vunpack.c.l.b16 %v3168
        %v4211 = vunpack.c.h.b16 %v3168
        %v4212 = vunpack.c.l.b16 %v3169
        %v4213 = vunpack.c.l.b16 %v3170
        %v4214 = vunpack.c.h.b16 %v3170
        %v4215 = vunpack.c.l.b16 %v3171
        %v4216 = vunpack.c.h.b16 %v3171
        %v4217 = vunpack.c.l.b16 %v3172
        %v4218 = vunpack.c.l.b16 %v3173
        %v4219 = vunpack.c.h.b16 %v3173
        %v4220 = vunpack.c.l.b16 %v3174
        %v4221 = vunpack.c.h.b16 %v3174
        %v4222 = vunpack.c.l.b16 %v3175
        %v4223 = vunpack.c.l.b16 %v3176
        %v4224 = vunpack.c.h.b16 %v3176
        %v4225 = vunpack.c.l.b16 %v3177
        %v4226 = vunpack.c.h.b16 %v3177
        %v4227 = vunpack.c.l.b16 %v3178
        %v4228 = vunpack.c.l.b16 %v3179
        %v4229 = vunpack.c.h.b16 %v3179
        %v4230 = vunpack.c.l.b16 %v3180
        %v4231 = vunpack.c.h.b16 %v3180
        %v4232 = vunpack.c.l.b16 %v3181
        %v4233 = vunpack.c.l.b16 %v3182
        %v4234 = vunpack.c.h.b16 %v3182
        %v4235 = vunpack.c.l.b16 %v3183
        %v4236 = vunpack.c.h.b16 %v3183
        %v4237 = vunpack.c.l.b16 %v3184
        %v4238 = vunpack.c.l.b16 %v3185
        %v4239 = vunpack.c.h.b16 %v3185
        %v4240 = vunpack.c.l.b16 %v3186
        %v4241 = vunpack.c.h.b16 %v3186
        %v4242 = vunpack.c.l.b16 %v3187
        %v4243 = vunpack.c.l.b16 %v3188
        %v4244 = vunpack.c.h.b16 %v3188
        %v4245 = vunpack.c.l.b16 %v3189
        %v4246 = vunpack.c.h.b16 %v3189
        %v4247 = vunpack.c.l.b16 %v3190
        %v4248 = vunpack.c.l.b16 %v3191
        %v4249 = vunpack.c.h.b16 %v3191
        %v4250 = vunpack.c.l.b16 %v3192
        %v4251 = vunpack.c.h.b16 %v3192
        %v4252 = vunpack.c.l.b16 %v3193
        %v4253 = vunpack.c.l.b16 %v3194
        %v4254 = vunpack.c.h.b16 %v3194
        %v4255 = vunpack.c.l.b16 %v3195
        %v4256 = vunpack.c.h.b16 %v3195
        %v4257 = vunpack.c.l.b16 %v3196
        %v4258 = vunpack.c.l.b16 %v3197
        %v4259 = vunpack.c.h.b16 %v3197
        %v4260 = vunpack.c.l.b16 %v3198
        %v4261 = vunpack.c.h.b16 %v3198
        %v4262 = vunpack.c.l.b16 %v3199
        %v4263 = vunpack.c.l.b16 %v3200
        %v4264 = vunpack.c.h.b16 %v3200
        %v4265 = vunpack.c.l.b16 %v3201
        %v4266 = vunpack.c.h.b16 %v3201
        %v4267 = vunpack.c.l.b16 %v3202
        %v4268 = vunpack.c.l.b16 %v3203
        %v4269 = vunpack.c.h.b16 %v3203
        %v4270 = vunpack.c.l.b16 %v3204
        %v4271 = vunpack.c.h.b16 %v3204
        %v4272 = vunpack.c.l.b16 %v3205
        %v4273 = vunpack.c.l.b16 %v3206
        %v4274 = vunpack.c.h.b16 %v3206
        %v4275 = vunpack.c.l.b16 %v3207
        %v4276 = vunpack.c.h.b16 %v3207
        %v4277 = vunpack.c.l.b16 %v3208
        %v4278 = vunpack.c.l.b16 %v3209
        %v4279 = vunpack.c.h.b16 %v3209
        %v4280 = vunpack.c.l.b16 %v3210
        %v4281 = vunpack.c.h.b16 %v3210
        %v4282 = vunpack.c.l.b16 %v3211
        %v4283 = vunpack.c.l.b16 %v3212
        %v4284 = vunpack.c.h.b16 %v3212
        %v4285 = vunpack.c.l.b16 %v3213
        %v4286 = vunpack.c.h.b16 %v3213
        %v4287 = vunpack.c.l.b16 %v3214
        %v4288 = vunpack.c.l.b16 %v3215
        %v4289 = vunpack.c.h.b16 %v3215
        %v4290 = vunpack.c.l.b16 %v3216
        %v4291 = vunpack.c.h.b16 %v3216
        %v4292 = vunpack.c.l.b16 %v3217
        %v4293 = vunpack.c.l.b16 %v3218
        %v4294 = vunpack.c.h.b16 %v3218
        %v4295 = vunpack.c.l.b16 %v3219
        %v4296 = vunpack.c.h.b16 %v3219
        %v4297 = vunpack.c.l.b16 %v3220
        %v4298 = vunpack.c.l.b16 %v3221
        %v4299 = vunpack.c.h.b16 %v3221
        %v4300 = vunpack.c.l.b16 %v3222
        %v4301 = vunpack.c.h.b16 %v3222
        %v4302 = vunpack.c.l.b16 %v3223
        %v4303 = vunpack.c.l.b16 %v3224
        %v4304 = vunpack.c.h.b16 %v3224
        %v4305 = vunpack.c.l.b16 %v3225
        %v4306 = vunpack.c.h.b16 %v3225
        %v4307 = vunpack.c.l.b16 %v3226
        %v4308 = vunpack.c.l.b16 %v3227
        %v4309 = vunpack.c.h.b16 %v3227
        %v4310 = vunpack.c.l.b16 %v3228
        %v4311 = vunpack.c.h.b16 %v3228
        %v4312 = vunpack.c.l.b16 %v3229
        %v4313 = vunpack.c.l.b16 %v3230
        %v4314 = vunpack.c.h.b16 %v3230
        %v4315 = vunpack.c.l.b16 %v3231
        %v4316 = vunpack.c.h.b16 %v3231
        %v4317 = vunpack.c.l.b16 %v3232
        %v4318 = vunpack.c.l.b16 %v3233
        %v4319 = vunpack.c.h.b16 %v3233
        %v4320 = vunpack.c.l.b16 %v3234
        %v4321 = vunpack.c.h.b16 %v3234
        %v4322 = vunpack.c.l.b16 %v3235
        %v4323 = vunpack.c.l.b16 %v3236
        %v4324 = vunpack.c.h.b16 %v3236
        %v4325 = vunpack.c.l.b16 %v3237
        %v4326 = vunpack.c.h.b16 %v3237
        %v4327 = vunpack.c.l.b16 %v3238
        %v4328 = vunpack.c.l.b16 %v3239
        %v4329 = vunpack.c.h.b16 %v3239
        %v4330 = vunpack.c.l.b16 %v3240
        %v4331 = vunpack.c.h.b16 %v3240
        %v4332 = vunpack.c.l.b16 %v3241
        %v4333 = vunpack.c.l.b16 %v3242
        %v4334 = vunpack.c.h.b16 %v3242
        %v4335 = vunpack.c.l.b16 %v3243
        %v4336 = vunpack.c.h.b16 %v3243
        %v4337 = vunpack.c.l.b16 %v3244
        %v4338 = vunpack.c.l.b16 %v3245
        %v4339 = vunpack.c.h.b16 %v3245
        %v4340 = vunpack.c.l.b16 %v3246
        %v4341 = vunpack.c.h.b16 %v3246
        %v4342 = vunpack.c.l.b16 %v3247
        %v4343 = vunpack.c.l.b16 %v3248
        %v4344 = vunpack.c.h.b16 %v3248
        %v4345 = vunpack.c.l.b16 %v3249
        %v4346 = vunpack.c.h.b16 %v3249
        %v4347 = vunpack.c.l.b16 %v3250
        %v4348 = vunpack.c.l.b16 %v3251
        %v4349 = vunpack.c.h.b16 %v3251
        %v4350 = vunpack.c.l.b16 %v3252
        %v4351 = vunpack.c.h.b16 %v3252
        %v4352 = vunpack.c.l.b16 %v3253
        %v4353 = vunpack.c.l.b16 %v3254
        %v4354 = vunpack.c.h.b16 %v3254
        %v4355 = vunpack.c.l.b16 %v3255
        %v4356 = vunpack.c.h.b16 %v3255
        %v4357 = vunpack.c.l.b16 %v3256
        %v4358 = vunpack.c.l.b16 %v3257
        %v4359 = vunpack.c.h.b16 %v3257
        %v4360 = vunpack.c.l.b16 %v3258
        %v4361 = vunpack.c.h.b16 %v3258
        %v4362 = vunpack.c.l.b16 %v3259
        %v4363 = vunpack.c.l.b16 %v3260
        %v4364 = vunpack.c.h.b16 %v3260
        %v4365 = vunpack.c.l.b16 %v3261
        %v4366 = vunpack.c.h.b16 %v3261
        %v4367 = vunpack.c.l.b16 %v3262
        %v4368 = vunpack.c.l.b16 %v3263
        %v4369 = vunpack.c.h.b16 %v3263
        %v4370 = vunpack.c.l.b16 %v3264
        %v4371 = vunpack.c.h.b16 %v3264
        %v4372 = vunpack.c.l.b16 %v3265
        %v4373 = vunpack.c.l.b16 %v3266
        %v4374 = vunpack.c.h.b16 %v3266
        %v4375 = vunpack.c.l.b16 %v3267
        %v4376 = vunpack.c.h.b16 %v3267
        %v4377 = vunpack.c.l.b16 %v3268
        %v4378 = vunpack.c.l.b16 %v3269
        %v4379 = vunpack.c.h.b16 %v3269
        %v4380 = vunpack.c.l.b16 %v3270
        %v4381 = vunpack.c.h.b16 %v3270
        %v4382 = vunpack.c.l.b16 %v3271
        %v4383 = vunpack.c.l.b16 %v3272
        %v4384 = vunpack.c.h.b16 %v3272
        %v4385 = vunpack.c.l.b16 %v3273
        %v4386 = vunpack.c.h.b16 %v3273
        %v4387 = vunpack.c.l.b16 %v3274
        %v4388 = vunpack.c.l.b16 %v3275
        %v4389 = vunpack.c.h.b16 %v3275
        %v4390 = vunpack.c.l.b16 %v3276
        %v4391 = vunpack.c.h.b16 %v3276
        %v4392 = vunpack.c.l.b16 %v3277
        %v4393 = vunpack.c.l.b16 %v3278
        %v4394 = vunpack.c.h.b16 %v3278
        %v4395 = vunpack.c.l.b16 %v3279
        %v4396 = vunpack.c.h.b16 %v3279
        %v4397 = vunpack.c.l.b16 %v3280
        %v4398 = vunpack.c.l.b16 %v3281
        %v4399 = vunpack.c.h.b16 %v3281
        %v4400 = vunpack.c.l.b16 %v3282
        %v4401 = vunpack.c.h.b16 %v3282
        %v4402 = vunpack.c.l.b16 %v3283
        %v4403 = vunpack.c.l.b16 %v3284
        %v4404 = vunpack.c.h.b16 %v3284
        %v4405 = vunpack.c.l.b16 %v3285
        %v4406 = vunpack.c.h.b16 %v3285
        %v4407 = vunpack.c.l.b16 %v3286
        %v4408 = vunpack.c.l.b16 %v3287
        %v4409 = vunpack.c.h.b16 %v3287
        %v4410 = vunpack.c.l.b16 %v3288
        %v4411 = vunpack.c.h.b16 %v3288
        %v4412 = vunpack.c.l.b16 %v3289
        %v4413 = vunpack.c.l.b16 %v3290
        %v4414 = vunpack.c.h.b16 %v3290
        %v4415 = vunpack.c.l.b16 %v3291
        %v4416 = vunpack.c.h.b16 %v3291
        %v4417 = vunpack.c.l.b16 %v3292
        %v4418 = vunpack.c.l.b16 %v3293
        %v4419 = vunpack.c.h.b16 %v3293
        %v4420 = vunpack.c.l.b16 %v3294
        %v4421 = vunpack.c.h.b16 %v3294
        %v4422 = vunpack.c.l.b16 %v3295
        %v4423 = vunpack.c.l.b16 %v3296
        %v4424 = vunpack.c.h.b16 %v3296
        %v4425 = vunpack.c.l.b16 %v3297
        %v4426 = vunpack.c.h.b16 %v3297
        %v4427 = vunpack.c.l.b16 %v3298
        %v4428 = vunpack.c.l.b16 %v3299
        %v4429 = vunpack.c.h.b16 %v3299
        %v4430 = vunpack.c.l.b16 %v3300
        %v4431 = vunpack.c.h.b16 %v3300
        %v4432 = vunpack.c.l.b16 %v3301
        %v4433 = vunpack.c.l.b16 %v3302
        %v4434 = vunpack.c.h.b16 %v3302
        %v4435 = vunpack.c.l.b16 %v3303
        %v4436 = vunpack.c.h.b16 %v3303
        %v4437 = vunpack.c.l.b16 %v3304
        %v4438 = vunpack.c.l.b16 %v3305
        %v4439 = vunpack.c.h.b16 %v3305
        %v4440 = vunpack.c.l.b16 %v3306
        %v4441 = vunpack.c.h.b16 %v3306
        %v4442 = vunpack.c.l.b16 %v3307
        %v4443 = vunpack.c.l.b16 %v3308
        %v4444 = vunpack.c.h.b16 %v3308
        %v4445 = vunpack.c.l.b16 %v3309
        %v4446 = vunpack.c.h.b16 %v3309
        %v4447 = vunpack.c.l.b16 %v3310
        %v4448 = vunpack.c.l.b16 %v3311
        %v4449 = vunpack.c.h.b16 %v3311
        %v4450 = vunpack.c.l.b16 %v3312
        %v4451 = vunpack.c.h.b16 %v3312
        %v4452 = vunpack.c.l.b16 %v3313
        %v4453 = vunpack.c.l.b16 %v3314
        %v4454 = vunpack.c.h.b16 %v3314
        %v4455 = vunpack.c.l.b16 %v3315
        %v4456 = vunpack.c.h.b16 %v3315
        %v4457 = vunpack.c.l.b16 %v3316
        %v4458 = vunpack.c.l.b16 %v3317
        %v4459 = vunpack.c.h.b16 %v3317
        %v4460 = vunpack.c.l.b16 %v3318
        %v4461 = vunpack.c.h.b16 %v3318
        %v4462 = vunpack.c.l.b16 %v3319
        %v4463 = vunpack.c.l.b16 %v3320
        %v4464 = vunpack.c.h.b16 %v3320
        %v4465 = vunpack.c.l.b16 %v3321
        %v4466 = vunpack.c.h.b16 %v3321
        %v4467 = vunpack.c.l.b16 %v3322
        %v4468 = vunpack.c.l.b16 %v3323
        %v4469 = vunpack.c.h.b16 %v3323
        %v4470 = vunpack.c.l.b16 %v3324
        %v4471 = vunpack.c.h.b16 %v3324
        %v4472 = vunpack.c.l.b16 %v3325
        %v4473 = vunpack.c.l.b16 %v3326
        %v4474 = vunpack.c.h.b16 %v3326
        %v4475 = vunpack.c.l.b16 %v3327
        %v4476 = vunpack.c.h.b16 %v3327
        %v4477 = vunpack.c.l.b16 %v3328
        %v4478 = vunpack.c.l.b16 %v3329
        %v4479 = vunpack.c.h.b16 %v3329
        %v4480 = vunpack.c.l.b16 %v3330
        %v4481 = vunpack.c.h.b16 %v3330
        %v4482 = vunpack.c.l.b16 %v3331
        %v4483 = vunpack.c.l.b16 %v3332
        %v4484 = vunpack.c.h.b16 %v3332
        %v4485 = vunpack.c.l.b16 %v3333
        %v4486 = vunpack.c.h.b16 %v3333
        %v4487 = vunpack.c.l.b16 %v3334
        %v4488 = vunpack.c.l.b16 %v3335
        %v4489 = vunpack.c.h.b16 %v3335
        %v4490 = vunpack.c.l.b16 %v3336
        %v4491 = vunpack.c.h.b16 %v3336
        %v4492 = vunpack.c.l.b16 %v3337
        %v4493 = vunpack.c.l.b16 %v3338
        %v4494 = vunpack.c.h.b16 %v3338
        %v4495 = vunpack.c.l.b16 %v3339
        %v4496 = vunpack.c.h.b16 %v3339
        %v4497 = vunpack.c.l.b16 %v3340
        %v4498 = vunpack.c.l.b16 %v3341
        %v4499 = vunpack.c.h.b16 %v3341
        %v4500 = vunpack.c.l.b16 %v3342
        %v4501 = vunpack.c.h.b16 %v3342
        %v4502 = vunpack.c.l.b16 %v3343
        %v4503 = vunpack.c.l.b16 %v3344
        %v4504 = vunpack.c.h.b16 %v3344
        %v4505 = vunpack.c.l.b16 %v3345
        %v4506 = vunpack.c.h.b16 %v3345
        %v4507 = vunpack.c.l.b16 %v3346
        %v4508 = vunpack.c.l.b16 %v3347
        %v4509 = vunpack.c.h.b16 %v3347
        %v4510 = vunpack.c.l.b16 %v3348
        %v4511 = vunpack.c.h.b16 %v3348
        %v4512 = vunpack.c.l.b16 %v3349
        %v4513 = vunpack.c.l.b16 %v3350
        %v4514 = vunpack.c.h.b16 %v3350
        %v4515 = vunpack.c.l.b16 %v3351
        %v4516 = vunpack.c.h.b16 %v3351
        %v4517 = vunpack.c.l.b16 %v3352
        %v4518 = vunpack.c.l.b16 %v3353
        %v4519 = vunpack.c.h.b16 %v3353
        %v4520 = vunpack.c.l.b16 %v3354
        %v4521 = vunpack.c.h.b16 %v3354
        %v4522 = vunpack.c.l.b16 %v3355
        %v4523 = vunpack.c.l.b16 %v3356
        %v4524 = vunpack.c.h.b16 %v3356
        %v4525 = vunpack.c.l.b16 %v3357
        %v4526 = vunpack.c.h.b16 %v3357
        %v4527 = vunpack.c.l.b16 %v3358
        %v4528 = vunpack.c.l.b16 %v3359
        %v4529 = vunpack.c.h.b16 %v3359
        %v4530 = vunpack.c.l.b16 %v3360
        %v4531 = vunpack.c.h.b16 %v3360
        %v4532 = vunpack.c.l.b16 %v3361
        %v4533 = vunpack.c.l.b16 %v3362
        %v4534 = vunpack.c.h.b16 %v3362
        %v4535 = vunpack.c.l.b16 %v3363
        %v4536 = vunpack.c.h.b16 %v3363
        %v4537 = vunpack.c.l.b16 %v3364
        %v4538 = vunpack.c.l.b16 %v3365
        %v4539 = vunpack.c.h.b16 %v3365
        %v4540 = vunpack.c.l.b16 %v3366
        %v4541 = vunpack.c.h.b16 %v3366
        %v4542 = vunpack.c.l.b16 %v3367
        %v4543 = vunpack.c.l.b16 %v3368
        %v4544 = vunpack.c.h.b16 %v3368
        %v4545 = vunpack.c.l.b16 %v3369
        %v4546 = vunpack.c.h.b16 %v3369
        %v4547 = vunpack.c.l.b16 %v3370
        %v4548 = vunpack.c.l.b16 %v3371
        %v4549 = vunpack.c.h.b16 %v3371
        %v4550 = vunpack.c.l.b16 %v3372
        %v4551 = vunpack.c.h.b16 %v3372
        %v4552 = vunpack.c.l.b16 %v3373
        %v4553 = vunpack.c.l.b16 %v3374
        %v4554 = vunpack.c.h.b16 %v3374
        %v4555 = vunpack.c.l.b16 %v3375
        %v4556 = vunpack.c.h.b16 %v3375
        %v4557 = vunpack.c.l.b16 %v3376
        %v4558 = vunpack.c.l.b16 %v3377
        %v4559 = vunpack.c.h.b16 %v3377
        %v4560 = vunpack.c.l.b16 %v3378
        %v4561 = vunpack.c.h.b16 %v3378
        %v4562 = vunpack.c.l.b16 %v3379
        %v4563 = vunpack.c.l.b16 %v3380
        %v4564 = vunpack.c.h.b16 %v3380
        %v4565 = vunpack.c.l.b16 %v3381
        %v4566 = vunpack.c.h.b16 %v3381
        %v4567 = vunpack.c.l.b16 %v3382
        %v4568 = vunpack.c.l.b16 %v3383
        %v4569 = vunpack.c.h.b16 %v3383
        %v4570 = vunpack.c.l.b16 %v3384
        %v4571 = vunpack.c.h.b16 %v3384
        %v4572 = vunpack.c.l.b16 %v3385
        %v4573 = vunpack.c.l.b16 %v3386
        %v4574 = vunpack.c.h.b16 %v3386
        %v4575 = vunpack.c.l.b16 %v3387
        %v4576 = vunpack.c.h.b16 %v3387
        %v4577 = vunpack.c.l.b16 %v3388
        %v4578 = vunpack.c.l.b16 %v3389
        %v4579 = vunpack.c.h.b16 %v3389
        %v4580 = vunpack.c.l.b16 %v3390
        %v4581 = vunpack.c.h.b16 %v3390
        %v4582 = vunpack.c.l.b16 %v3391
        %v4583 = vunpack.c.l.b16 %v3392
        %v4584 = vunpack.c.h.b16 %v3392
        %v4585 = vunpack.c.l.b16 %v3393
        %v4586 = vunpack.c.h.b16 %v3393
        %v4587 = vunpack.c.l.b16 %v3394
        %v4588 = vunpack.c.l.b16 %v3395
        %v4589 = vunpack.c.h.b16 %v3395
        %v4590 = vunpack.c.l.b16 %v3396
        %v4591 = vunpack.c.h.b16 %v3396
        %v4592 = vunpack.c.l.b16 %v3397
        %v4593 = vunpack.c.l.b16 %v3398
        %v4594 = vunpack.c.h.b16 %v3398
        %v4595 = vunpack.c.l.b16 %v3399
        %v4596 = vunpack.c.h.b16 %v3399
        %v4597 = vunpack.c.l.b16 %v3400
        %v4598 = vunpack.c.l.b16 %v3401
        %v4599 = vunpack.c.h.b16 %v3401
        %v4600 = vunpack.c.l.b16 %v3402
        %v4601 = vunpack.c.h.b16 %v3402
        %v4602 = vunpack.c.l.b16 %v3403
        %v4603 = vunpack.c.l.b16 %v3404
        %v4604 = vunpack.c.h.b16 %v3404
        %v4605 = vunpack.c.l.b16 %v3405
        %v4606 = vunpack.c.h.b16 %v3405
        %v4607 = vunpack.c.l.b16 %v3406
        %v4608 = vunpack.c.l.b16 %v3407
        %v4609 = vunpack.c.h.b16 %v3407
        %v4610 = vunpack.c.l.b16 %v3408
        %v4611 = vunpack.c.h.b16 %v3408
        %v4612 = vunpack.c.l.b16 %v3409
        %v4613 = vunpack.c.l.b16 %v3410
        %v4614 = vunpack.c.h.b16 %v3410
        %v4615 = vunpack.c.l.b16 %v3411
        %v4616 = vunpack.c.h.b16 %v3411
        %v4617 = vunpack.c.l.b16 %v3412
        %v4618 = vunpack.c.l.b16 %v3413
        %v4619 = vunpack.c.h.b16 %v3413
        %v4620 = vunpack.c.l.b16 %v3414
        %v4621 = vunpack.c.h.b16 %v3414
        %v4622 = vunpack.c.l.b16 %v3415
        %v4623 = vunpack.c.l.b16 %v3416
        %v4624 = vunpack.c.h.b16 %v3416
        %v4625 = vunpack.c.l.b16 %v3417
        %v4626 = vunpack.c.h.b16 %v3417
        %v4627 = vunpack.c.l.b16 %v3418
        %v4628 = vunpack.c.l.b16 %v3419
        %v4629 = vunpack.c.h.b16 %v3419
        %v4630 = vunpack.c.l.b16 %v3420
        %v4631 = vunpack.c.h.b16 %v3420
        %v4632 = vunpack.c.l.b16 %v3421
        %v4633 = vunpack.c.l.b16 %v3422
        %v4634 = vunpack.c.h.b16 %v3422
        %v4635 = vunpack.c.l.b16 %v3423
        %v4636 = vunpack.c.h.b16 %v3423
        %v4637 = vunpack.c.l.b16 %v3424
        %v4638 = vunpack.c.l.b16 %v3425
        %v4639 = vunpack.c.h.b16 %v3425
        %v4640 = vunpack.c.l.b16 %v3426
        %v4641 = vunpack.c.h.b16 %v3426
        %v4642 = vunpack.c.l.b16 %v3427
        %v4643 = vunpack.c.l.b16 %v3428
        %v4644 = vunpack.c.h.b16 %v3428
        %v4645 = vunpack.c.l.b16 %v3429
        %v4646 = vunpack.c.h.b16 %v3429
        %v4647 = vunpack.c.l.b16 %v3430
        %v4648 = vunpack.c.l.b16 %v3431
        %v4649 = vunpack.c.h.b16 %v3431
        %v4650 = vunpack.c.l.b16 %v3432
        %v4651 = vunpack.c.h.b16 %v3432
        %v4652 = vunpack.c.l.b16 %v3433
        %v4653 = vunpack.c.l.b16 %v3434
        %v4654 = vunpack.c.h.b16 %v3434
        %v4655 = vunpack.c.l.b16 %v3435
        %v4656 = vunpack.c.h.b16 %v3435
        %v4657 = vunpack.c.l.b16 %v3436
        %v4658 = vunpack.c.l.b16 %v3437
        %v4659 = vunpack.c.h.b16 %v3437
        %v4660 = vunpack.c.l.b16 %v3438
        %v4661 = vunpack.c.h.b16 %v3438
        %v4662 = vunpack.c.l.b16 %v3439
        %v4663 = vunpack.c.l.b16 %v3440
        %v4664 = vunpack.c.h.b16 %v3440
        %v4665 = vunpack.c.l.b16 %v3441
        %v4666 = vunpack.c.h.b16 %v3441
        %v4667 = vunpack.c.l.b16 %v3442
        %v4668 = vunpack.c.l.b16 %v3443
        %v4669 = vunpack.c.h.b16 %v3443
        %v4670 = vunpack.c.l.b16 %v3444
        %v4671 = vunpack.c.h.b16 %v3444
        %v4672 = vunpack.c.l.b16 %v3445
        %v4673 = vunpack.c.l.b16 %v3446
        %v4674 = vunpack.c.h.b16 %v3446
        %v4675 = vunpack.c.l.b16 %v3447
        %v4676 = vunpack.c.h.b16 %v3447
        %v4677 = vunpack.c.l.b16 %v3448
        %v4678 = vunpack.c.l.b16 %v3449
        %v4679 = vunpack.c.h.b16 %v3449
        %v4680 = vunpack.c.l.b16 %v3450
        %v4681 = vunpack.c.h.b16 %v3450
        %v4682 = vunpack.c.l.b16 %v3451
        %v4683 = vunpack.c.l.b16 %v3452
        %v4684 = vunpack.c.h.b16 %v3452
        %v4685 = vunpack.c.l.b16 %v3453
        %v4686 = vunpack.c.h.b16 %v3453
        %v4687 = vunpack.c.l.b16 %v3454
        %v4688 = vunpack.c.l.b16 %v3455
        %v4689 = vunpack.c.h.b16 %v3455
        %v4690 = vunpack.c.l.b16 %v3456
        %v4691 = vunpack.c.h.b16 %v3456
        %v4692 = vunpack.c.l.b16 %v3457
        %v4693 = vunpack.c.l.b16 %v3458
        %v4694 = vunpack.c.h.b16 %v3458
        %v4695 = vunpack.c.l.b16 %v3459
        %v4696 = vunpack.c.h.b16 %v3459
        %v4697 = vunpack.c.l.b16 %v3460
        %v4698 = vunpack.c.l.b16 %v3461
        %v4699 = vunpack.c.h.b16 %v3461
        %v4700 = vunpack.c.l.b16 %v3462
        %v4701 = vunpack.c.h.b16 %v3462
        %v4702 = vunpack.c.l.b16 %v3463
        %v4703 = vunpack.c.l.b16 %v3464
        %v4704 = vunpack.c.h.b16 %v3464
        %v4705 = vunpack.c.l.b16 %v3465
        %v4706 = vunpack.c.h.b16 %v3465
        %v4707 = vunpack.c.l.b16 %v3466
        %v4708 = vunpack.c.l.b16 %v3467
        %v4709 = vunpack.c.h.b16 %v3467
        %v4710 = vunpack.c.l.b16 %v3468
        %v4711 = vunpack.c.h.b16 %v3468
        %v4712 = vunpack.c.l.b16 %v3469
        %v4713 = vunpack.c.l.b16 %v3470
        %v4714 = vunpack.c.h.b16 %v3470
        %v4715 = vunpack.c.l.b16 %v3471
        %v4716 = vunpack.c.h.b16 %v3471
        %v4717 = vunpack.c.l.b16 %v3472
        %v4718 = vunpack.c.l.b16 %v3473
        %v4719 = vunpack.c.h.b16 %v3473
        %v4720 = vunpack.c.l.b16 %v3474
        %v4721 = vunpack.c.h.b16 %v3474
        %v4722 = vunpack.c.l.b16 %v3475
        %v4723 = vunpack.c.l.b16 %v3476
        %v4724 = vunpack.c.h.b16 %v3476
        %v4725 = vunpack.c.l.b16 %v3477
        %v4726 = vunpack.c.h.b16 %v3477
        %v4727 = vunpack.c.l.b16 %v3478
        %v4728 = vunpack.c.l.b16 %v3479
        %v4729 = vunpack.c.h.b16 %v3479
        %v4730 = vunpack.c.l.b16 %v3480
        %v4731 = vunpack.c.h.b16 %v3480
        %v4732 = vunpack.c.l.b16 %v3481
        %v4733 = vunpack.c.l.b16 %v3482
        %v4734 = vunpack.c.h.b16 %v3482
        %v4735 = vunpack.c.l.b16 %v3483
        %v4736 = vunpack.c.h.b16 %v3483
        %v4737 = vunpack.c.l.b16 %v3484
        %v4738 = vunpack.c.l.b16 %v3485
        %v4739 = vunpack.c.h.b16 %v3485
        %v4740 = vunpack.c.l.b16 %v3486
        %v4741 = vunpack.c.h.b16 %v3486
        %v4742 = vunpack.c.l.b16 %v3487
        %v4743 = vunpack.c.l.b16 %v3488
        %v4744 = vunpack.c.h.b16 %v3488
        %v4745 = vunpack.c.l.b16 %v3489
        %v4746 = vunpack.c.h.b16 %v3489
        %v4747 = vunpack.c.l.b16 %v3490
        %v4748 = vunpack.c.l.b16 %v3491
        %v4749 = vunpack.c.h.b16 %v3491
        %v4750 = vunpack.c.l.b16 %v3492
        %v4751 = vunpack.c.h.b16 %v3492
        %v4752 = vunpack.c.l.b16 %v3493
        %v4753 = vunpack.c.l.b16 %v3494
        %v4754 = vunpack.c.h.b16 %v3494
        %v4755 = vunpack.c.l.b16 %v3495
        %v4756 = vunpack.c.h.b16 %v3495
        %v4757 = vunpack.c.l.b16 %v3496
        %v4758 = vunpack.c.l.b16 %v3497
        %v4759 = vunpack.c.h.b16 %v3497
        %v4760 = vunpack.c.l.b16 %v3498
        %v4761 = vunpack.c.h.b16 %v3498
        %v4762 = vunpack.c.l.b16 %v3499
        %v4763 = vunpack.c.l.b16 %v3500
        %v4764 = vunpack.c.h.b16 %v3500
        %v4765 = vunpack.c.l.b16 %v3501
        %v4766 = vunpack.c.h.b16 %v3501
        %v4767 = vunpack.c.l.b16 %v3502
        %v4768 = vunpack.c.l.b16 %v3503
        %v4769 = vunpack.c.h.b16 %v3503
        %v4770 = vunpack.c.l.b16 %v3504
        %v4771 = vunpack.c.h.b16 %v3504
        %v4772 = vunpack.c.l.b16 %v3505
        %v4773 = vunpack.c.l.b16 %v3506
        %v4774 = vunpack.c.h.b16 %v3506
        %v4775 = vunpack.c.l.b16 %v3507
        %v4776 = vunpack.c.h.b16 %v3507
        %v4777 = vunpack.c.l.b16 %v3508
        %v4778 = vunpack.c.l.b16 %v3509
        %v4779 = vunpack.c.h.b16 %v3509
        %v4780 = vunpack.c.l.b16 %v3510
        %v4781 = vunpack.c.h.b16 %v3510
        %v4782 = vunpack.c.l.b16 %v3511
        %v4783 = vunpack.c.l.b16 %v3512
        %v4784 = vunpack.c.h.b16 %v3512
        %v4785 = vunpack.c.l.b16 %v3513
        %v4786 = vunpack.c.h.b16 %v3513
        %v4787 = vunpack.c.l.b16 %v3514
        %v4788 = vunpack.c.l.b16 %v3515
        %v4789 = vunpack.c.h.b16 %v3515
        %v4790 = vunpack.c.l.b16 %v3516
        %v4791 = vunpack.c.h.b16 %v3516
        %v4792 = vunpack.c.l.b16 %v3517
        %v4793 = vunpack.c.l.b16 %v3518
        %v4794 = vunpack.c.h.b16 %v3518
        %v4795 = vunpack.c.l.b16 %v3519
        %v4796 = vunpack.c.h.b16 %v3519
        %v4797 = vunpack.c.l.b16 %v3520
        %v4798 = vunpack.c.l.b16 %v3521
        %v4799 = vunpack.c.h.b16 %v3521
        %v4800 = vunpack.c.l.b16 %v3522
        %v4801 = vunpack.c.h.b16 %v3522
        %v4802 = vunpack.c.l.b16 %v3523
        %v4803 = vunpack.c.l.b16 %v3524
        %v4804 = vunpack.c.h.b16 %v3524
        %v4805 = vunpack.c.l.b16 %v3525
        %v4806 = vunpack.c.h.b16 %v3525
        %v4807 = vunpack.c.l.b16 %v3526
        %v4808 = vunpack.c.l.b16 %v3527
        %v4809 = vunpack.c.h.b16 %v3527
        %v4810 = vunpack.c.l.b16 %v3528
        %v4811 = vunpack.c.h.b16 %v3528
        %v4812 = vunpack.c.l.b16 %v3529
        %v4813 = vunpack.c.l.b16 %v3530
        %v4814 = vunpack.c.h.b16 %v3530
        %v4815 = vunpack.c.l.b16 %v3531
        %v4816 = vunpack.c.h.b16 %v3531
        %v4817 = vunpack.c.l.b16 %v3532
        %v4818 = vunpack.c.l.b16 %v3533
        %v4819 = vunpack.c.h.b16 %v3533
        %v4820 = vunpack.c.l.b16 %v3534
        %v4821 = vunpack.c.h.b16 %v3534
        %v4822 = vunpack.c.l.b16 %v3535
        %v4823 = vunpack.c.l.b16 %v3536
        %v4824 = vunpack.c.h.b16 %v3536
        %v4825 = vunpack.c.l.b16 %v3537
        %v4826 = vunpack.c.h.b16 %v3537
        %v4827 = vunpack.c.l.b16 %v3538
        %v4828 = vunpack.c.l.b16 %v3539
        %v4829 = vunpack.c.h.b16 %v3539
        %v4830 = vunpack.c.l.b16 %v3540
        %v4831 = vunpack.c.h.b16 %v3540
        %v4832 = vunpack.c.l.b16 %v3541
        %v4833 = vunpack.c.l.b16 %v3542
        %v4834 = vunpack.c.h.b16 %v3542
        %v4835 = vunpack.c.l.b16 %v3543
        %v4836 = vunpack.c.h.b16 %v3543
        %v4837 = vunpack.c.l.b16 %v3544
        %v4838 = vunpack.c.l.b16 %v3545
        %v4839 = vunpack.c.h.b16 %v3545
        %v4840 = vunpack.c.l.b16 %v3546
        %v4841 = vunpack.c.h.b16 %v3546
        %v4842 = vunpack.c.l.b16 %v3547
        %v4843 = vunpack.c.l.b16 %v3548
        %v4844 = vunpack.c.h.b16 %v3548
        %v4845 = vunpack.c.l.b16 %v3549
        %v4846 = vunpack.c.h.b16 %v3549
        %v4847 = vunpack.c.l.b16 %v3550
        %v4848 = vunpack.c.l.b16 %v3551
        %v4849 = vunpack.c.h.b16 %v3551
        %v4850 = vunpack.c.l.b16 %v3552
        %v4851 = vunpack.c.h.b16 %v3552
        %v4852 = vunpack.c.l.b16 %v3553
        %v4853 = vunpack.c.l.b16 %v3554
        %v4854 = vunpack.c.h.b16 %v3554
        %v4855 = vunpack.c.l.b16 %v3555
        %v4856 = vunpack.c.h.b16 %v3555
        %v4857 = vunpack.c.l.b16 %v3556
        %v4858 = vunpack.c.l.b16 %v3557
        %v4859 = vunpack.c.h.b16 %v3557
        %v4860 = vunpack.c.l.b16 %v3558
        %v4861 = vunpack.c.h.b16 %v3558
        %v4862 = vunpack.c.l.b16 %v3559
        %v4863 = vunpack.c.l.b16 %v3560
        %v4864 = vunpack.c.h.b16 %v3560
        %v4865 = vunpack.c.l.b16 %v3561
        %v4866 = vunpack.c.h.b16 %v3561
        %v4867 = vunpack.c.l.b16 %v3562
        %v4868 = vunpack.c.l.b16 %v3563
        %v4869 = vunpack.c.h.b16 %v3563
        %v4870 = vunpack.c.l.b16 %v3564
        %v4871 = vunpack.c.h.b16 %v3564
        %v4872 = vunpack.c.l.b16 %v3565
        %v4873 = vpack.c.b16 %v4078, %v4073
        %v4874 = vpack.c.b16 %v4079, %v4074
        %v4875 = vpack.c.b16 %v4080, %v4075
        %v4876 = vpack.c.b16 %v4081, %v4076
        %v4877 = vpack.c.b16 %v4082, %v4077
        %v4878 = vpack.c.b16 %v4088, %v4083
        %v4879 = vpack.c.b16 %v4089, %v4084
        %v4880 = vpack.c.b16 %v4090, %v4085
        %v4881 = vpack.c.b16 %v4091, %v4086
        %v4882 = vpack.c.b16 %v4092, %v4087
        %v4883 = vpack.c.b16 %v4098, %v4093
        %v4884 = vpack.c.b16 %v4099, %v4094
        %v4885 = vpack.c.b16 %v4100, %v4095
        %v4886 = vpack.c.b16 %v4101, %v4096
        %v4887 = vpack.c.b16 %v4102, %v4097
        %v4888 = vpack.c.b16 %v4108, %v4103
        %v4889 = vpack.c.b16 %v4109, %v4104
        %v4890 = vpack.c.b16 %v4110, %v4105
        %v4891 = vpack.c.b16 %v4111, %v4106
        %v4892 = vpack.c.b16 %v4112, %v4107
        %v4893 = vpack.c.b16 %v4118, %v4113
        %v4894 = vpack.c.b16 %v4119, %v4114
        %v4895 = vpack.c.b16 %v4120, %v4115
        %v4896 = vpack.c.b16 %v4121, %v4116
        %v4897 = vpack.c.b16 %v4122, %v4117
        %v4898 = vpack.c.b16 %v4128, %v4123
        %v4899 = vpack.c.b16 %v4129, %v4124
        %v4900 = vpack.c.b16 %v4130, %v4125
        %v4901 = vpack.c.b16 %v4131, %v4126
        %v4902 = vpack.c.b16 %v4132, %v4127
        %v4903 = vpack.c.b16 %v4138, %v4133
        %v4904 = vpack.c.b16 %v4139, %v4134
        %v4905 = vpack.c.b16 %v4140, %v4135
        %v4906 = vpack.c.b16 %v4141, %v4136
        %v4907 = vpack.c.b16 %v4142, %v4137
        %v4908 = vpack.c.b16 %v4148, %v4143
        %v4909 = vpack.c.b16 %v4149, %v4144
        %v4910 = vpack.c.b16 %v4150, %v4145
        %v4911 = vpack.c.b16 %v4151, %v4146
        %v4912 = vpack.c.b16 %v4152, %v4147
        %v4913 = vpack.c.b16 %v4158, %v4153
        %v4914 = vpack.c.b16 %v4159, %v4154
        %v4915 = vpack.c.b16 %v4160, %v4155
        %v4916 = vpack.c.b16 %v4161, %v4156
        %v4917 = vpack.c.b16 %v4162, %v4157
        %v4918 = vpack.c.b16 %v4168, %v4163
        %v4919 = vpack.c.b16 %v4169, %v4164
        %v4920 = vpack.c.b16 %v4170, %v4165
        %v4921 = vpack.c.b16 %v4171, %v4166
        %v4922 = vpack.c.b16 %v4172, %v4167
        %v4923 = vpack.c.b16 %v4178, %v4173
        %v4924 = vpack.c.b16 %v4179, %v4174
        %v4925 = vpack.c.b16 %v4180, %v4175
        %v4926 = vpack.c.b16 %v4181, %v4176
        %v4927 = vpack.c.b16 %v4182, %v4177
        %v4928 = vpack.c.b16 %v4188, %v4183
        %v4929 = vpack.c.b16 %v4189, %v4184
        %v4930 = vpack.c.b16 %v4190, %v4185
        %v4931 = vpack.c.b16 %v4191, %v4186
        %v4932 = vpack.c.b16 %v4192, %v4187
        %v4933 = vpack.c.b16 %v4198, %v4193
        %v4934 = vpack.c.b16 %v4199, %v4194
        %v4935 = vpack.c.b16 %v4200, %v4195
        %v4936 = vpack.c.b16 %v4201, %v4196
        %v4937 = vpack.c.b16 %v4202, %v4197
        %v4938 = vpack.c.b16 %v4208, %v4203
        %v4939 = vpack.c.b16 %v4209, %v4204
        %v4940 = vpack.c.b16 %v4210, %v4205
        %v4941 = vpack.c.b16 %v4211, %v4206
        %v4942 = vpack.c.b16 %v4212, %v4207
        %v4943 = vpack.c.b16 %v4218, %v4213
        %v4944 = vpack.c.b16 %v4219, %v4214
        %v4945 = vpack.c.b16 %v4220, %v4215
        %v4946 = vpack.c.b16 %v4221, %v4216
        %v4947 = vpack.c.b16 %v4222, %v4217
        %v4948 = vpack.c.b16 %v4228, %v4223
        %v4949 = vpack.c.b16 %v4229, %v4224
        %v4950 = vpack.c.b16 %v4230, %v4225
        %v4951 = vpack.c.b16 %v4231, %v4226
        %v4952 = vpack.c.b16 %v4232, %v4227
        %v4953 = vpack.c.b16 %v4238, %v4233
        %v4954 = vpack.c.b16 %v4239, %v4234
        %v4955 = vpack.c.b16 %v4240, %v4235
        %v4956 = vpack.c.b16 %v4241, %v4236
        %v4957 = vpack.c.b16 %v4242, %v4237
        %v4958 = vpack.c.b16 %v4248, %v4243
        %v4959 = vpack.c.b16 %v4249, %v4244
        %v4960 = vpack.c.b16 %v4250, %v4245
        %v4961 = vpack.c.b16 %v4251, %v4246
        %v4962 = vpack.c.b16 %v4252, %v4247
        %v4963 = vpack.c.b16 %v4258, %v4253
        %v4964 = vpack.c.b16 %v4259, %v4254
        %v4965 = vpack.c.b16 %v4260, %v4255
        %v4966 = vpack.c.b16 %v4261, %v4256
        %v4967 = vpack.c.b16 %v4262, %v4257
        %v4968 = vpack.c.b16 %v4268, %v4263
        %v4969 = vpack.c.b16 %v4269, %v4264
        %v4970 = vpack.c.b16 %v4270, %v4265
        %v4971 = vpack.c.b16 %v4271, %v4266
        %v4972 = vpack.c.b16 %v4272, %v4267
        %v4973 = vpack.c.b16 %v4278, %v4273
        %v4974 = vpack.c.b16 %v4279, %v4274
        %v4975 = vpack.c.b16 %v4280, %v4275
        %v4976 = vpack.c.b16 %v4281, %v4276
        %v4977 = vpack.c.b16 %v4282, %v4277
        %v4978 = vpack.c.b16 %v4288, %v4283
        %v4979 = vpack.c.b16 %v4289, %v4284
        %v4980 = vpack.c.b16 %v4290, %v4285
        %v4981 = vpack.c.b16 %v4291, %v4286
        %v4982 = vpack.c.b16 %v4292, %v4287
        %v4983 = vpack.c.b16 %v4298, %v4293
        %v4984 = vpack.c.b16 %v4299, %v4294
        %v4985 = vpack.c.b16 %v4300, %v4295
        %v4986 = vpack.c.b16 %v4301, %v4296
        %v4987 = vpack.c.b16 %v4302, %v4297
        %v4988 = vpack.c.b16 %v4308, %v4303
        %v4989 = vpack.c.b16 %v4309, %v4304
        %v4990 = vpack.c.b16 %v4310, %v4305
        %v4991 = vpack.c.b16 %v4311, %v4306
        %v4992 = vpack.c.b16 %v4312, %v4307
        %v4993 = vpack.c.b16 %v4318, %v4313
        %v4994 = vpack.c.b16 %v4319, %v4314
        %v4995 = vpack.c.b16 %v4320, %v4315
        %v4996 = vpack.c.b16 %v4321, %v4316
        %v4997 = vpack.c.b16 %v4322, %v4317
        %v4998 = vpack.c.b16 %v4328, %v4323
        %v4999 = vpack.c.b16 %v4329, %v4324
        %v5000 = vpack.c.b16 %v4330, %v4325
        %v5001 = vpack.c.b16 %v4331, %v4326
        %v5002 = vpack.c.b16 %v4332, %v4327
        %v5003 = vpack.c.b16 %v4338, %v4333
        %v5004 = vpack.c.b16 %v4339, %v4334
        %v5005 = vpack.c.b16 %v4340, %v4335
        %v5006 = vpack.c.b16 %v4341, %v4336
        %v5007 = vpack.c.b16 %v4342, %v4337
        %v5008 = vpack.c.b16 %v4348, %v4343
        %v5009 = vpack.c.b16 %v4349, %v4344
        %v5010 = vpack.c.b16 %v4350, %v4345
        %v5011 = vpack.c.b16 %v4351, %v4346
        %v5012 = vpack.c.b16 %v4352, %v4347
        %v5013 = vpack.c.b16 %v4358, %v4353
        %v5014 = vpack.c.b16 %v4359, %v4354
        %v5015 = vpack.c.b16 %v4360, %v4355
        %v5016 = vpack.c.b16 %v4361, %v4356
        %v5017 = vpack.c.b16 %v4362, %v4357
        %v5018 = vpack.c.b16 %v4368, %v4363
        %v5019 = vpack.c.b16 %v4369, %v4364
        %v5020 = vpack.c.b16 %v4370, %v4365
        %v5021 = vpack.c.b16 %v4371, %v4366
        %v5022 = vpack.c.b16 %v4372, %v4367
        %v5023 = vpack.c.b16 %v4378, %v4373
        %v5024 = vpack.c.b16 %v4379, %v4374
        %v5025 = vpack.c.b16 %v4380, %v4375
        %v5026 = vpack.c.b16 %v4381, %v4376
        %v5027 = vpack.c.b16 %v4382, %v4377
        %v5028 = vpack.c.b16 %v4388, %v4383
        %v5029 = vpack.c.b16 %v4389, %v4384
        %v5030 = vpack.c.b16 %v4390, %v4385
        %v5031 = vpack.c.b16 %v4391, %v4386
        %v5032 = vpack.c.b16 %v4392, %v4387
        %v5033 = vpack.c.b16 %v4398, %v4393
        %v5034 = vpack.c.b16 %v4399, %v4394
        %v5035 = vpack.c.b16 %v4400, %v4395
        %v5036 = vpack.c.b16 %v4401, %v4396
        %v5037 = vpack.c.b16 %v4402, %v4397
        %v5038 = vpack.c.b16 %v4408, %v4403
        %v5039 = vpack.c.b16 %v4409, %v4404
        %v5040 = vpack.c.b16 %v4410, %v4405
        %v5041 = vpack.c.b16 %v4411, %v4406
        %v5042 = vpack.c.b16 %v4412, %v4407
        %v5043 = vpack.c.b16 %v4418, %v4413
        %v5044 = vpack.c.b16 %v4419, %v4414
        %v5045 = vpack.c.b16 %v4420, %v4415
        %v5046 = vpack.c.b16 %v4421, %v4416
        %v5047 = vpack.c.b16 %v4422, %v4417
        %v5048 = vpack.c.b16 %v4428, %v4423
        %v5049 = vpack.c.b16 %v4429, %v4424
        %v5050 = vpack.c.b16 %v4430, %v4425
        %v5051 = vpack.c.b16 %v4431, %v4426
        %v5052 = vpack.c.b16 %v4432, %v4427
        %v5053 = vpack.c.b16 %v4438, %v4433
        %v5054 = vpack.c.b16 %v4439, %v4434
        %v5055 = vpack.c.b16 %v4440, %v4435
        %v5056 = vpack.c.b16 %v4441, %v4436
        %v5057 = vpack.c.b16 %v4442, %v4437
        %v5058 = vpack.c.b16 %v4448, %v4443
        %v5059 = vpack.c.b16 %v4449, %v4444
        %v5060 = vpack.c.b16 %v4450, %v4445
        %v5061 = vpack.c.b16 %v4451, %v4446
        %v5062 = vpack.c.b16 %v4452, %v4447
        %v5063 = vpack.c.b16 %v4458, %v4453
        %v5064 = vpack.c.b16 %v4459, %v4454
        %v5065 = vpack.c.b16 %v4460, %v4455
        %v5066 = vpack.c.b16 %v4461, %v4456
        %v5067 = vpack.c.b16 %v4462, %v4457
        %v5068 = vpack.c.b16 %v4468, %v4463
        %v5069 = vpack.c.b16 %v4469, %v4464
        %v5070 = vpack.c.b16 %v4470, %v4465
        %v5071 = vpack.c.b16 %v4471, %v4466
        %v5072 = vpack.c.b16 %v4472, %v4467
        %v5073 = vpack.c.b16 %v4478, %v4473
        %v5074 = vpack.c.b16 %v4479, %v4474
        %v5075 = vpack.c.b16 %v4480, %v4475
        %v5076 = vpack.c.b16 %v4481, %v4476
        %v5077 = vpack.c.b16 %v4482, %v4477
        %v5078 = vpack.c.b16 %v4488, %v4483
        %v5079 = vpack.c.b16 %v4489, %v4484
        %v5080 = vpack.c.b16 %v4490, %v4485
        %v5081 = vpack.c.b16 %v4491, %v4486
        %v5082 = vpack.c.b16 %v4492, %v4487
        %v5083 = vpack.c.b16 %v4498, %v4493
        %v5084 = vpack.c.b16 %v4499, %v4494
        %v5085 = vpack.c.b16 %v4500, %v4495
        %v5086 = vpack.c.b16 %v4501, %v4496
        %v5087 = vpack.c.b16 %v4502, %v4497
        %v5088 = vpack.c.b16 %v4508, %v4503
        %v5089 = vpack.c.b16 %v4509, %v4504
        %v5090 = vpack.c.b16 %v4510, %v4505
        %v5091 = vpack.c.b16 %v4511, %v4506
        %v5092 = vpack.c.b16 %v4512, %v4507
        %v5093 = vpack.c.b16 %v4518, %v4513
        %v5094 = vpack.c.b16 %v4519, %v4514
        %v5095 = vpack.c.b16 %v4520, %v4515
        %v5096 = vpack.c.b16 %v4521, %v4516
        %v5097 = vpack.c.b16 %v4522, %v4517
        %v5098 = vpack.c.b16 %v4528, %v4523
        %v5099 = vpack.c.b16 %v4529, %v4524
        %v5100 = vpack.c.b16 %v4530, %v4525
        %v5101 = vpack.c.b16 %v4531, %v4526
        %v5102 = vpack.c.b16 %v4532, %v4527
        %v5103 = vpack.c.b16 %v4538, %v4533
        %v5104 = vpack.c.b16 %v4539, %v4534
        %v5105 = vpack.c.b16 %v4540, %v4535
        %v5106 = vpack.c.b16 %v4541, %v4536
        %v5107 = vpack.c.b16 %v4542, %v4537
        %v5108 = vpack.c.b16 %v4548, %v4543
        %v5109 = vpack.c.b16 %v4549, %v4544
        %v5110 = vpack.c.b16 %v4550, %v4545
        %v5111 = vpack.c.b16 %v4551, %v4546
        %v5112 = vpack.c.b16 %v4552, %v4547
        %v5113 = vpack.c.b16 %v4558, %v4553
        %v5114 = vpack.c.b16 %v4559, %v4554
        %v5115 = vpack.c.b16 %v4560, %v4555
        %v5116 = vpack.c.b16 %v4561, %v4556
        %v5117 = vpack.c.b16 %v4562, %v4557
        %v5118 = vpack.c.b16 %v4568, %v4563
        %v5119 = vpack.c.b16 %v4569, %v4564
        %v5120 = vpack.c.b16 %v4570, %v4565
        %v5121 = vpack.c.b16 %v4571, %v4566
        %v5122 = vpack.c.b16 %v4572, %v4567
        %v5123 = vpack.c.b16 %v4578, %v4573
        %v5124 = vpack.c.b16 %v4579, %v4574
        %v5125 = vpack.c.b16 %v4580, %v4575
        %v5126 = vpack.c.b16 %v4581, %v4576
        %v5127 = vpack.c.b16 %v4582, %v4577
        %v5128 = vpack.c.b16 %v4588, %v4583
        %v5129 = vpack.c.b16 %v4589, %v4584
        %v5130 = vpack.c.b16 %v4590, %v4585
        %v5131 = vpack.c.b16 %v4591, %v4586
        %v5132 = vpack.c.b16 %v4592, %v4587
        %v5133 = vpack.c.b16 %v4598, %v4593
        %v5134 = vpack.c.b16 %v4599, %v4594
        %v5135 = vpack.c.b16 %v4600, %v4595
        %v5136 = vpack.c.b16 %v4601, %v4596
        %v5137 = vpack.c.b16 %v4602, %v4597
        %v5138 = vpack.c.b16 %v4608, %v4603
        %v5139 = vpack.c.b16 %v4609, %v4604
        %v5140 = vpack.c.b16 %v4610, %v4605
        %v5141 = vpack.c.b16 %v4611, %v4606
        %v5142 = vpack.c.b16 %v4612, %v4607
        %v5143 = vpack.c.b16 %v4618, %v4613
        %v5144 = vpack.c.b16 %v4619, %v4614
        %v5145 = vpack.c.b16 %v4620, %v4615
        %v5146 = vpack.c.b16 %v4621, %v4616
        %v5147 = vpack.c.b16 %v4622, %v4617
        %v5148 = vpack.c.b16 %v4628, %v4623
        %v5149 = vpack.c.b16 %v4629, %v4624
        %v5150 = vpack.c.b16 %v4630, %v4625
        %v5151 = vpack.c.b16 %v4631, %v4626
        %v5152 = vpack.c.b16 %v4632, %v4627
        %v5153 = vpack.c.b16 %v4638, %v4633
        %v5154 = vpack.c.b16 %v4639, %v4634
        %v5155 = vpack.c.b16 %v4640, %v4635
        %v5156 = vpack.c.b16 %v4641, %v4636
        %v5157 = vpack.c.b16 %v4642, %v4637
        %v5158 = vpack.c.b16 %v4648, %v4643
        %v5159 = vpack.c.b16 %v4649, %v4644
        %v5160 = vpack.c.b16 %v4650, %v4645
        %v5161 = vpack.c.b16 %v4651, %v4646
        %v5162 = vpack.c.b16 %v4652, %v4647
        %v5163 = vpack.c.b16 %v4658, %v4653
        %v5164 = vpack.c.b16 %v4659, %v4654
        %v5165 = vpack.c.b16 %v4660, %v4655
        %v5166 = vpack.c.b16 %v4661, %v4656
        %v5167 = vpack.c.b16 %v4662, %v4657
        %v5168 = vpack.c.b16 %v4668, %v4663
        %v5169 = vpack.c.b16 %v4669, %v4664
        %v5170 = vpack.c.b16 %v4670, %v4665
        %v5171 = vpack.c.b16 %v4671, %v4666
        %v5172 = vpack.c.b16 %v4672, %v4667
        %v5173 = vpack.c.b16 %v4678, %v4673
        %v5174 = vpack.c.b16 %v4679, %v4674
        %v5175 = vpack.c.b16 %v4680, %v4675
        %v5176 = vpack.c.b16 %v4681, %v4676
        %v5177 = vpack.c.b16 %v4682, %v4677
        %v5178 = vpack.c.b16 %v4688, %v4683
        %v5179 = vpack.c.b16 %v4689, %v4684
        %v5180 = vpack.c.b16 %v4690, %v4685
        %v5181 = vpack.c.b16 %v4691, %v4686
        %v5182 = vpack.c.b16 %v4692, %v4687
        %v5183 = vpack.c.b16 %v4698, %v4693
        %v5184 = vpack.c.b16 %v4699, %v4694
        %v5185 = vpack.c.b16 %v4700, %v4695
        %v5186 = vpack.c.b16 %v4701, %v4696
        %v5187 = vpack.c.b16 %v4702, %v4697
        %v5188 = vpack.c.b16 %v4708, %v4703
        %v5189 = vpack.c.b16 %v4709, %v4704
        %v5190 = vpack.c.b16 %v4710, %v4705
        %v5191 = vpack.c.b16 %v4711, %v4706
        %v5192 = vpack.c.b16 %v4712, %v4707
        %v5193 = vpack.c.b16 %v4718, %v4713
        %v5194 = vpack.c.b16 %v4719, %v4714
        %v5195 = vpack.c.b16 %v4720, %v4715
        %v5196 = vpack.c.b16 %v4721, %v4716
        %v5197 = vpack.c.b16 %v4722, %v4717
        %v5198 = vpack.c.b16 %v4728, %v4723
        %v5199 = vpack.c.b16 %v4729, %v4724
        %v5200 = vpack.c.b16 %v4730, %v4725
        %v5201 = vpack.c.b16 %v4731, %v4726
        %v5202 = vpack.c.b16 %v4732, %v4727
        %v5203 = vpack.c.b16 %v4738, %v4733
        %v5204 = vpack.c.b16 %v4739, %v4734
        %v5205 = vpack.c.b16 %v4740, %v4735
        %v5206 = vpack.c.b16 %v4741, %v4736
        %v5207 = vpack.c.b16 %v4742, %v4737
        %v5208 = vpack.c.b16 %v4748, %v4743
        %v5209 = vpack.c.b16 %v4749, %v4744
        %v5210 = vpack.c.b16 %v4750, %v4745
        %v5211 = vpack.c.b16 %v4751, %v4746
        %v5212 = vpack.c.b16 %v4752, %v4747
        %v5213 = vpack.c.b16 %v4758, %v4753
        %v5214 = vpack.c.b16 %v4759, %v4754
        %v5215 = vpack.c.b16 %v4760, %v4755
        %v5216 = vpack.c.b16 %v4761, %v4756
        %v5217 = vpack.c.b16 %v4762, %v4757
        %v5218 = vpack.c.b16 %v4768, %v4763
        %v5219 = vpack.c.b16 %v4769, %v4764
        %v5220 = vpack.c.b16 %v4770, %v4765
        %v5221 = vpack.c.b16 %v4771, %v4766
        %v5222 = vpack.c.b16 %v4772, %v4767
        %v5223 = vpack.c.b16 %v4778, %v4773
        %v5224 = vpack.c.b16 %v4779, %v4774
        %v5225 = vpack.c.b16 %v4780, %v4775
        %v5226 = vpack.c.b16 %v4781, %v4776
        %v5227 = vpack.c.b16 %v4782, %v4777
        %v5228 = vpack.c.b16 %v4788, %v4783
        %v5229 = vpack.c.b16 %v4789, %v4784
        %v5230 = vpack.c.b16 %v4790, %v4785
        %v5231 = vpack.c.b16 %v4791, %v4786
        %v5232 = vpack.c.b16 %v4792, %v4787
        %v5233 = vpack.c.b16 %v4798, %v4793
        %v5234 = vpack.c.b16 %v4799, %v4794
        %v5235 = vpack.c.b16 %v4800, %v4795
        %v5236 = vpack.c.b16 %v4801, %v4796
        %v5237 = vpack.c.b16 %v4802, %v4797
        %v5238 = vpack.c.b16 %v4808, %v4803
        %v5239 = vpack.c.b16 %v4809, %v4804
        %v5240 = vpack.c.b16 %v4810, %v4805
        %v5241 = vpack.c.b16 %v4811, %v4806
        %v5242 = vpack.c.b16 %v4812, %v4807
        %v5243 = vpack.c.b16 %v4818, %v4813
        %v5244 = vpack.c.b16 %v4819, %v4814
        %v5245 = vpack.c.b16 %v4820, %v4815
        %v5246 = vpack.c.b16 %v4821, %v4816
        %v5247 = vpack.c.b16 %v4822, %v4817
        %v5248 = vpack.c.b16 %v4828, %v4823
        %v5249 = vpack.c.b16 %v4829, %v4824
        %v5250 = vpack.c.b16 %v4830, %v4825
        %v5251 = vpack.c.b16 %v4831, %v4826
        %v5252 = vpack.c.b16 %v4832, %v4827
        %v5253 = vpack.c.b16 %v4838, %v4833
        %v5254 = vpack.c.b16 %v4839, %v4834
        %v5255 = vpack.c.b16 %v4840, %v4835
        %v5256 = vpack.c.b16 %v4841, %v4836
        %v5257 = vpack.c.b16 %v4842, %v4837
        %v5258 = vpack.c.b16 %v4848, %v4843
        %v5259 = vpack.c.b16 %v4849, %v4844
        %v5260 = vpack.c.b16 %v4850, %v4845
        %v5261 = vpack.c.b16 %v4851, %v4846
        %v5262 = vpack.c.b16 %v4852, %v4847
        %v5263 = vpack.c.b16 %v4858, %v4853
        %v5264 = vpack.c.b16 %v4859, %v4854
        %v5265 = vpack.c.b16 %v4860, %v4855
        %v5266 = vpack.c.b16 %v4861, %v4856
        %v5267 = vpack.c.b16 %v4862, %v4857
        %v5268 = vpack.c.b16 %v4868, %v4863
        %v5269 = vpack.c.b16 %v4869, %v4864
        %v5270 = vpack.c.b16 %v4870, %v4865
        %v5271 = vpack.c.b16 %v4871, %v4866
        %v5272 = vpack.c.b16 %v4872, %v4867
        %5673 = vmatprep.subr.bf16.mxu0 %v4909
        %5674 = vmatpush1.bf16.msra.mxu0 %v4908
        %5675 = vmatprep.subr.bf16.mxu0 %v4904
        %5676 = vmatpush1.bf16.msra.mxu0 %v4903
        %5677 = vmatprep.subr.bf16.mxu0 %v4899
        %5678 = vmatpush1.bf16.msra.mxu0 %v4898
        %5679 = vmatprep.subr.bf16.mxu0 %v4894
        %5680 = vmatpush1.bf16.msra.mxu0 %v4893
        %5681 = vmatprep.subr.bf16.mxu0 %v4889
        %5682 = vmatpush1.bf16.msra.mxu0 %v4888
        %5683 = vmatprep.subr.bf16.mxu0 %v4884
        %5684 = vmatpush1.bf16.msra.mxu0 %v4883
        %5685 = vmatprep.subr.bf16.mxu0 %v4879
        %5686 = vmatpush1.bf16.msra.mxu0 %v4878
        %5687 = vmatprep.subr.bf16.mxu0 %v4874
        %5688 = vmatpush1.bf16.msra.mxu0 %v4873
        %5689 = vmatprep.subr.bf16.mxu0 %v4949
        %5690 = vmatpush2.bf16.msra.mxu0 %v4948
        %5691 = vmatprep.subr.bf16.mxu0 %v4944
        %5692 = vmatpush2.bf16.msra.mxu0 %v4943
        %5693 = vmatprep.subr.bf16.mxu0 %v4939
        %5694 = vmatpush2.bf16.msra.mxu0 %v4938
        %5695 = vmatprep.subr.bf16.mxu0 %v4934
        %5696 = vmatpush2.bf16.msra.mxu0 %v4933
        %5697 = vmatprep.subr.bf16.mxu0 %v4929
        %5698 = vmatpush2.bf16.msra.mxu0 %v4928
        %5699 = vmatprep.subr.bf16.mxu0 %v4924
        %5700 = vmatpush2.bf16.msra.mxu0 %v4923
        %5701 = vmatprep.subr.bf16.mxu0 %v4919
        %5702 = vmatpush2.bf16.msra.mxu0 %v4918
        %5703 = vmatprep.subr.bf16.mxu0 %v4914
        %5704 = vmatpush2.bf16.msra.mxu0 %v4913
        %5705 = vmatprep.mubr.bf16.mxu0 %v3077
        %5706 = vmatmul.mubr.bf16.gmra.mxu0 %v3076
        %v5707 = vpop.f32.mrf.mxu0
        %v5708 = vadd.f32 %v3571, %v5707
        %v5709 = vpop.f32.mrf.mxu0
        %v5710 = vadd.f32 %v3575, %v5709
        %v5711 = vpop.f32.mrf.mxu0
        %v5712 = vadd.f32 %v3571, %v5711
        %v5713 = vpop.f32.mrf.mxu0
        %v5714 = vadd.f32 %v3575, %v5713
        %5715 = vdwg.mxu0
        %5716 = vmatprep.subr.bf16.mxu0 %v4989
        %5717 = vmatpush1.bf16.msra.mxu0 %v4988
        %5718 = vmatprep.subr.bf16.mxu0 %v4984
        %5719 = vmatpush1.bf16.msra.mxu0 %v4983
        %5720 = vmatprep.subr.bf16.mxu0 %v4979
        %5721 = vmatpush1.bf16.msra.mxu0 %v4978
        %5722 = vmatprep.subr.bf16.mxu0 %v4974
        %5723 = vmatpush1.bf16.msra.mxu0 %v4973
        %5724 = vmatprep.subr.bf16.mxu0 %v4969
        %5725 = vmatpush1.bf16.msra.mxu0 %v4968
        %5726 = vmatprep.subr.bf16.mxu0 %v4964
        %5727 = vmatpush1.bf16.msra.mxu0 %v4963
        %5728 = vmatprep.subr.bf16.mxu0 %v4959
        %5729 = vmatpush1.bf16.msra.mxu0 %v4958
        %5730 = vmatprep.subr.bf16.mxu0 %v4954
        %5731 = vmatpush1.bf16.msra.mxu0 %v4953
        %5732 = vmatprep.subr.bf16.mxu0 %v5029
        %5733 = vmatpush2.bf16.msra.mxu0 %v5028
        %5734 = vmatprep.subr.bf16.mxu0 %v5024
        %5735 = vmatpush2.bf16.msra.mxu0 %v5023
        %5736 = vmatprep.subr.bf16.mxu0 %v5019
        %5737 = vmatpush2.bf16.msra.mxu0 %v5018
        %5738 = vmatprep.subr.bf16.mxu0 %v5014
        %5739 = vmatpush2.bf16.msra.mxu0 %v5013
        %5740 = vmatprep.subr.bf16.mxu0 %v5009
        %5741 = vmatpush2.bf16.msra.mxu0 %v5008
        %5742 = vmatprep.subr.bf16.mxu0 %v5004
        %5743 = vmatpush2.bf16.msra.mxu0 %v5003
        %5744 = vmatprep.subr.bf16.mxu0 %v4999
        %5745 = vmatpush2.bf16.msra.mxu0 %v4998
        %5746 = vmatprep.subr.bf16.mxu0 %v4994
        %5747 = vmatpush2.bf16.msra.mxu0 %v4993
        %5748 = vmatprep.mubr.bf16.mxu0 %v3079
        %5749 = vmatmul.mubr.bf16.gmra.mxu0 %v3078
        %v5750 = vpop.f32.mrf.mxu0
        %v5751 = vadd.f32 %v5708, %v5750
        %v5752 = vpop.f32.mrf.mxu0
        %v5753 = vadd.f32 %v5710, %v5752
        %v5754 = vpop.f32.mrf.mxu0
        %v5755 = vadd.f32 %v5712, %v5754
        %v5756 = vpop.f32.mrf.mxu0
        %v5757 = vadd.f32 %v5714, %v5756
        %5758 = vdwg.mxu0
        %5759 = vmatprep.subr.bf16.mxu0 %v5069
        %5760 = vmatpush1.bf16.msra.mxu0 %v5068
        %5761 = vmatprep.subr.bf16.mxu0 %v5064
        %5762 = vmatpush1.bf16.msra.mxu0 %v5063
        %5763 = vmatprep.subr.bf16.mxu0 %v5059
        %5764 = vmatpush1.bf16.msra.mxu0 %v5058
        %5765 = vmatprep.subr.bf16.mxu0 %v5054
        %5766 = vmatpush1.bf16.msra.mxu0 %v5053
        %5767 = vmatprep.subr.bf16.mxu0 %v5049
        %5768 = vmatpush1.bf16.msra.mxu0 %v5048
        %5769 = vmatprep.subr.bf16.mxu0 %v5044
        %5770 = vmatpush1.bf16.msra.mxu0 %v5043
        %5771 = vmatprep.subr.bf16.mxu0 %v5039
        %5772 = vmatpush1.bf16.msra.mxu0 %v5038
        %5773 = vmatprep.subr.bf16.mxu0 %v5034
        %5774 = vmatpush1.bf16.msra.mxu0 %v5033
        %5775 = vmatprep.subr.bf16.mxu0 %v5109
        %5776 = vmatpush2.bf16.msra.mxu0 %v5108
        %5777 = vmatprep.subr.bf16.mxu0 %v5104
        %5778 = vmatpush2.bf16.msra.mxu0 %v5103
        %5779 = vmatprep.subr.bf16.mxu0 %v5099
        %5780 = vmatpush2.bf16.msra.mxu0 %v5098
        %5781 = vmatprep.subr.bf16.mxu0 %v5094
        %5782 = vmatpush2.bf16.msra.mxu0 %v5093
        %5783 = vmatprep.subr.bf16.mxu0 %v5089
        %5784 = vmatpush2.bf16.msra.mxu0 %v5088
        %5785 = vmatprep.subr.bf16.mxu0 %v5084
        %5786 = vmatpush2.bf16.msra.mxu0 %v5083
        %5787 = vmatprep.subr.bf16.mxu0 %v5079
        %5788 = vmatpush2.bf16.msra.mxu0 %v5078
        %5789 = vmatprep.subr.bf16.mxu0 %v5074
        %5790 = vmatpush2.bf16.msra.mxu0 %v5073
        %5791 = vmatprep.mubr.bf16.mxu0 %v3081
        %5792 = vmatmul.mubr.bf16.gmra.mxu0 %v3080
        %v5793 = vpop.f32.mrf.mxu0
        %v5794 = vadd.f32 %v5751, %v5793
        %v5795 = vpop.f32.mrf.mxu0
        %v5796 = vadd.f32 %v5753, %v5795
        %v5797 = vpop.f32.mrf.mxu0
        %v5798 = vadd.f32 %v5755, %v5797
        %v5799 = vpop.f32.mrf.mxu0
        %v5800 = vadd.f32 %v5757, %v5799
        %5801 = vdwg.mxu0
        %5802 = vmatprep.subr.bf16.mxu0 %v5149
        %5803 = vmatpush1.bf16.msra.mxu0 %v5148
        %5804 = vmatprep.subr.bf16.mxu0 %v5144
        %5805 = vmatpush1.bf16.msra.mxu0 %v5143
        %5806 = vmatprep.subr.bf16.mxu0 %v5139
        %5807 = vmatpush1.bf16.msra.mxu0 %v5138
        %5808 = vmatprep.subr.bf16.mxu0 %v5134
        %5809 = vmatpush1.bf16.msra.mxu0 %v5133
        %5810 = vmatprep.subr.bf16.mxu0 %v5129
        %5811 = vmatpush1.bf16.msra.mxu0 %v5128
        %5812 = vmatprep.subr.bf16.mxu0 %v5124
        %5813 = vmatpush1.bf16.msra.mxu0 %v5123
        %5814 = vmatprep.subr.bf16.mxu0 %v5119
        %5815 = vmatpush1.bf16.msra.mxu0 %v5118
        %5816 = vmatprep.subr.bf16.mxu0 %v5114
        %5817 = vmatpush1.bf16.msra.mxu0 %v5113
        %5818 = vmatprep.subr.bf16.mxu0 %v5189
        %5819 = vmatpush2.bf16.msra.mxu0 %v5188
        %5820 = vmatprep.subr.bf16.mxu0 %v5184
        %5821 = vmatpush2.bf16.msra.mxu0 %v5183
        %5822 = vmatprep.subr.bf16.mxu0 %v5179
        %5823 = vmatpush2.bf16.msra.mxu0 %v5178
        %5824 = vmatprep.subr.bf16.mxu0 %v5174
        %5825 = vmatpush2.bf16.msra.mxu0 %v5173
        %5826 = vmatprep.subr.bf16.mxu0 %v5169
        %5827 = vmatpush2.bf16.msra.mxu0 %v5168
        %5828 = vmatprep.subr.bf16.mxu0 %v5164
        %5829 = vmatpush2.bf16.msra.mxu0 %v5163
        %5830 = vmatprep.subr.bf16.mxu0 %v5159
        %5831 = vmatpush2.bf16.msra.mxu0 %v5158
        %5832 = vmatprep.subr.bf16.mxu0 %v5154
        %5833 = vmatpush2.bf16.msra.mxu0 %v5153
        %5834 = vmatprep.mubr.bf16.mxu0 %v3083
        %5835 = vmatmul.mubr.bf16.gmra.mxu0 %v3082
        %v5836 = vpop.f32.mrf.mxu0
        %v5837 = vadd.f32 %v5794, %v5836
        %v5838 = vpop.f32.mrf.mxu0
        %v5839 = vadd.f32 %v5796, %v5838
        %v5840 = vpop.f32.mrf.mxu0
        %v5841 = vadd.f32 %v5798, %v5840
        %v5842 = vpop.f32.mrf.mxu0
        %v5843 = vadd.f32 %v5800, %v5842
        %5844 = vdwg.mxu0
        %5845 = vmatprep.subr.bf16.mxu0 %v5229
        %5846 = vmatpush1.bf16.msra.mxu0 %v5228
        %5847 = vmatprep.subr.bf16.mxu0 %v5224
        %5848 = vmatpush1.bf16.msra.mxu0 %v5223
        %5849 = vmatprep.subr.bf16.mxu0 %v5219
        %5850 = vmatpush1.bf16.msra.mxu0 %v5218
        %5851 = vmatprep.subr.bf16.mxu0 %v5214
        %5852 = vmatpush1.bf16.msra.mxu0 %v5213
        %5853 = vmatprep.subr.bf16.mxu0 %v5209
        %5854 = vmatpush1.bf16.msra.mxu0 %v5208
        %5855 = vmatprep.subr.bf16.mxu0 %v5204
        %5856 = vmatpush1.bf16.msra.mxu0 %v5203
        %5857 = vmatprep.subr.bf16.mxu0 %v5199
        %5858 = vmatpush1.bf16.msra.mxu0 %v5198
        %5859 = vmatprep.subr.bf16.mxu0 %v5194
        %5860 = vmatpush1.bf16.msra.mxu0 %v5193
        %5861 = vmatprep.subr.bf16.mxu0 %v5269
        %5862 = vmatpush2.bf16.msra.mxu0 %v5268
        %5863 = vmatprep.subr.bf16.mxu0 %v5264
        %5864 = vmatpush2.bf16.msra.mxu0 %v5263
        %5865 = vmatprep.subr.bf16.mxu0 %v5259
        %5866 = vmatpush2.bf16.msra.mxu0 %v5258
        %5867 = vmatprep.subr.bf16.mxu0 %v5254
        %5868 = vmatpush2.bf16.msra.mxu0 %v5253
        %5869 = vmatprep.subr.bf16.mxu0 %v5249
        %5870 = vmatpush2.bf16.msra.mxu0 %v5248
        %5871 = vmatprep.subr.bf16.mxu0 %v5244
        %5872 = vmatpush2.bf16.msra.mxu0 %v5243
        %5873 = vmatprep.subr.bf16.mxu0 %v5239
        %5874 = vmatpush2.bf16.msra.mxu0 %v5238
        %5875 = vmatprep.subr.bf16.mxu0 %v5234
        %5876 = vmatpush2.bf16.msra.mxu0 %v5233
        %5877 = vmatprep.mubr.bf16.mxu0 %v3085
        %5878 = vmatmul.mubr.bf16.gmra.mxu0 %v3084
        %v5879 = vpop.f32.mrf.mxu0
        %v5880 = vadd.f32 %v5837, %v5879
        %v5881 = vpop.f32.mrf.mxu0
        %v5882 = vadd.f32 %v5839, %v5881
        %v5883 = vpop.f32.mrf.mxu0
        %v5884 = vadd.f32 %v5841, %v5883
        %v5885 = vpop.f32.mrf.mxu0
        %v5886 = vadd.f32 %v5843, %v5885
        %5887 = vdwg.mxu0
        %5888 = vmatprep.subr.bf16.mxu0 %v4911
        %5889 = vmatpush1.bf16.msra.mxu0 %v4910
        %5890 = vmatprep.subr.bf16.mxu0 %v4906
        %5891 = vmatpush1.bf16.msra.mxu0 %v4905
        %5892 = vmatprep.subr.bf16.mxu0 %v4901
        %5893 = vmatpush1.bf16.msra.mxu0 %v4900
        %5894 = vmatprep.subr.bf16.mxu0 %v4896
        %5895 = vmatpush1.bf16.msra.mxu0 %v4895
        %5896 = vmatprep.subr.bf16.mxu0 %v4891
        %5897 = vmatpush1.bf16.msra.mxu0 %v4890
        %5898 = vmatprep.subr.bf16.mxu0 %v4886
        %5899 = vmatpush1.bf16.msra.mxu0 %v4885
        %5900 = vmatprep.subr.bf16.mxu0 %v4881
        %5901 = vmatpush1.bf16.msra.mxu0 %v4880
        %5902 = vmatprep.subr.bf16.mxu0 %v4876
        %5903 = vmatpush1.bf16.msra.mxu0 %v4875
        %5904 = vmatprep.subr.bf16.mxu0 %v4951
        %5905 = vmatpush2.bf16.msra.mxu0 %v4950
        %5906 = vmatprep.subr.bf16.mxu0 %v4946
        %5907 = vmatpush2.bf16.msra.mxu0 %v4945
        %5908 = vmatprep.subr.bf16.mxu0 %v4941
        %5909 = vmatpush2.bf16.msra.mxu0 %v4940
        %5910 = vmatprep.subr.bf16.mxu0 %v4936
        %5911 = vmatpush2.bf16.msra.mxu0 %v4935
        %5912 = vmatprep.subr.bf16.mxu0 %v4931
        %5913 = vmatpush2.bf16.msra.mxu0 %v4930
        %5914 = vmatprep.subr.bf16.mxu0 %v4926
        %5915 = vmatpush2.bf16.msra.mxu0 %v4925
        %5916 = vmatprep.subr.bf16.mxu0 %v4921
        %5917 = vmatpush2.bf16.msra.mxu0 %v4920
        %5918 = vmatprep.subr.bf16.mxu0 %v4916
        %5919 = vmatpush2.bf16.msra.mxu0 %v4915
        %5920 = vmatprep.mubr.bf16.mxu0 %v3077
        %5921 = vmatmul.mubr.bf16.gmra.mxu0 %v3076
        %v5922 = vpop.f32.mrf.mxu0
        %v5923 = vadd.f32 %v3579, %v5922
        %v5924 = vpop.f32.mrf.mxu0
        %v5925 = vadd.f32 %v3583, %v5924
        %v5926 = vpop.f32.mrf.mxu0
        %v5927 = vadd.f32 %v3579, %v5926
        %v5928 = vpop.f32.mrf.mxu0
        %v5929 = vadd.f32 %v3583, %v5928
        %5930 = vdwg.mxu0
        %5931 = vmatprep.subr.bf16.mxu0 %v4991
        %5932 = vmatpush1.bf16.msra.mxu0 %v4990
        %5933 = vmatprep.subr.bf16.mxu0 %v4986
        %5934 = vmatpush1.bf16.msra.mxu0 %v4985
        %5935 = vmatprep.subr.bf16.mxu0 %v4981
        %5936 = vmatpush1.bf16.msra.mxu0 %v4980
        %5937 = vmatprep.subr.bf16.mxu0 %v4976
        %5938 = vmatpush1.bf16.msra.mxu0 %v4975
        %5939 = vmatprep.subr.bf16.mxu0 %v4971
        %5940 = vmatpush1.bf16.msra.mxu0 %v4970
        %5941 = vmatprep.subr.bf16.mxu0 %v4966
        %5942 = vmatpush1.bf16.msra.mxu0 %v4965
        %5943 = vmatprep.subr.bf16.mxu0 %v4961
        %5944 = vmatpush1.bf16.msra.mxu0 %v4960
        %5945 = vmatprep.subr.bf16.mxu0 %v4956
        %5946 = vmatpush1.bf16.msra.mxu0 %v4955
        %5947 = vmatprep.subr.bf16.mxu0 %v5031
        %5948 = vmatpush2.bf16.msra.mxu0 %v5030
        %5949 = vmatprep.subr.bf16.mxu0 %v5026
        %5950 = vmatpush2.bf16.msra.mxu0 %v5025
        %5951 = vmatprep.subr.bf16.mxu0 %v5021
        %5952 = vmatpush2.bf16.msra.mxu0 %v5020
        %5953 = vmatprep.subr.bf16.mxu0 %v5016
        %5954 = vmatpush2.bf16.msra.mxu0 %v5015
        %5955 = vmatprep.subr.bf16.mxu0 %v5011
        %5956 = vmatpush2.bf16.msra.mxu0 %v5010
        %5957 = vmatprep.subr.bf16.mxu0 %v5006
        %5958 = vmatpush2.bf16.msra.mxu0 %v5005
        %5959 = vmatprep.subr.bf16.mxu0 %v5001
        %5960 = vmatpush2.bf16.msra.mxu0 %v5000
        %5961 = vmatprep.subr.bf16.mxu0 %v4996
        %5962 = vmatpush2.bf16.msra.mxu0 %v4995
        %5963 = vmatprep.mubr.bf16.mxu0 %v3079
        %5964 = vmatmul.mubr.bf16.gmra.mxu0 %v3078
        %v5965 = vpop.f32.mrf.mxu0
        %v5966 = vadd.f32 %v5923, %v5965
        %v5967 = vpop.f32.mrf.mxu0
        %v5968 = vadd.f32 %v5925, %v5967
        %v5969 = vpop.f32.mrf.mxu0
        %v5970 = vadd.f32 %v5927, %v5969
        %v5971 = vpop.f32.mrf.mxu0
        %v5972 = vadd.f32 %v5929, %v5971
        %5973 = vdwg.mxu0
        %5974 = vmatprep.subr.bf16.mxu0 %v5071
        %5975 = vmatpush1.bf16.msra.mxu0 %v5070
        %5976 = vmatprep.subr.bf16.mxu0 %v5066
        %5977 = vmatpush1.bf16.msra.mxu0 %v5065
        %5978 = vmatprep.subr.bf16.mxu0 %v5061
        %5979 = vmatpush1.bf16.msra.mxu0 %v5060
        %5980 = vmatprep.subr.bf16.mxu0 %v5056
        %5981 = vmatpush1.bf16.msra.mxu0 %v5055
        %5982 = vmatprep.subr.bf16.mxu0 %v5051
        %5983 = vmatpush1.bf16.msra.mxu0 %v5050
        %5984 = vmatprep.subr.bf16.mxu0 %v5046
        %5985 = vmatpush1.bf16.msra.mxu0 %v5045
        %5986 = vmatprep.subr.bf16.mxu0 %v5041
        %5987 = vmatpush1.bf16.msra.mxu0 %v5040
        %5988 = vmatprep.subr.bf16.mxu0 %v5036
        %5989 = vmatpush1.bf16.msra.mxu0 %v5035
        %5990 = vmatprep.subr.bf16.mxu0 %v5111
        %5991 = vmatpush2.bf16.msra.mxu0 %v5110
        %5992 = vmatprep.subr.bf16.mxu0 %v5106
        %5993 = vmatpush2.bf16.msra.mxu0 %v5105
        %5994 = vmatprep.subr.bf16.mxu0 %v5101
        %5995 = vmatpush2.bf16.msra.mxu0 %v5100
        %5996 = vmatprep.subr.bf16.mxu0 %v5096
        %5997 = vmatpush2.bf16.msra.mxu0 %v5095
        %5998 = vmatprep.subr.bf16.mxu0 %v5091
        %5999 = vmatpush2.bf16.msra.mxu0 %v5090
        %6000 = vmatprep.subr.bf16.mxu0 %v5086
        %6001 = vmatpush2.bf16.msra.mxu0 %v5085
        %6002 = vmatprep.subr.bf16.mxu0 %v5081
        %6003 = vmatpush2.bf16.msra.mxu0 %v5080
        %6004 = vmatprep.subr.bf16.mxu0 %v5076
        %6005 = vmatpush2.bf16.msra.mxu0 %v5075
        %6006 = vmatprep.mubr.bf16.mxu0 %v3081
        %6007 = vmatmul.mubr.bf16.gmra.mxu0 %v3080
        %v6008 = vpop.f32.mrf.mxu0
        %v6009 = vadd.f32 %v5966, %v6008
        %v6010 = vpop.f32.mrf.mxu0
        %v6011 = vadd.f32 %v5968, %v6010
        %v6012 = vpop.f32.mrf.mxu0
        %v6013 = vadd.f32 %v5970, %v6012
        %v6014 = vpop.f32.mrf.mxu0
        %v6015 = vadd.f32 %v5972, %v6014
        %6016 = vdwg.mxu0
        %6017 = vmatprep.subr.bf16.mxu0 %v5151
        %6018 = vmatpush1.bf16.msra.mxu0 %v5150
        %6019 = vmatprep.subr.bf16.mxu0 %v5146
        %6020 = vmatpush1.bf16.msra.mxu0 %v5145
        %6021 = vmatprep.subr.bf16.mxu0 %v5141
        %6022 = vmatpush1.bf16.msra.mxu0 %v5140
        %6023 = vmatprep.subr.bf16.mxu0 %v5136
        %6024 = vmatpush1.bf16.msra.mxu0 %v5135
        %6025 = vmatprep.subr.bf16.mxu0 %v5131
        %6026 = vmatpush1.bf16.msra.mxu0 %v5130
        %6027 = vmatprep.subr.bf16.mxu0 %v5126
        %6028 = vmatpush1.bf16.msra.mxu0 %v5125
        %6029 = vmatprep.subr.bf16.mxu0 %v5121
        %6030 = vmatpush1.bf16.msra.mxu0 %v5120
        %6031 = vmatprep.subr.bf16.mxu0 %v5116
        %6032 = vmatpush1.bf16.msra.mxu0 %v5115
        %6033 = vmatprep.subr.bf16.mxu0 %v5191
        %6034 = vmatpush2.bf16.msra.mxu0 %v5190
        %6035 = vmatprep.subr.bf16.mxu0 %v5186
        %6036 = vmatpush2.bf16.msra.mxu0 %v5185
        %6037 = vmatprep.subr.bf16.mxu0 %v5181
        %6038 = vmatpush2.bf16.msra.mxu0 %v5180
        %6039 = vmatprep.subr.bf16.mxu0 %v5176
        %6040 = vmatpush2.bf16.msra.mxu0 %v5175
        %6041 = vmatprep.subr.bf16.mxu0 %v5171
        %6042 = vmatpush2.bf16.msra.mxu0 %v5170
        %6043 = vmatprep.subr.bf16.mxu0 %v5166
        %6044 = vmatpush2.bf16.msra.mxu0 %v5165
        %6045 = vmatprep.subr.bf16.mxu0 %v5161
        %6046 = vmatpush2.bf16.msra.mxu0 %v5160
        %6047 = vmatprep.subr.bf16.mxu0 %v5156
        %6048 = vmatpush2.bf16.msra.mxu0 %v5155
        %6049 = vmatprep.mubr.bf16.mxu0 %v3083
        %6050 = vmatmul.mubr.bf16.gmra.mxu0 %v3082
        %v6051 = vpop.f32.mrf.mxu0
        %v6052 = vadd.f32 %v6009, %v6051
        %v6053 = vpop.f32.mrf.mxu0
        %v6054 = vadd.f32 %v6011, %v6053
        %v6055 = vpop.f32.mrf.mxu0
        %v6056 = vadd.f32 %v6013, %v6055
        %v6057 = vpop.f32.mrf.mxu0
        %v6058 = vadd.f32 %v6015, %v6057
        %6059 = vdwg.mxu0
        %6060 = vmatprep.subr.bf16.mxu0 %v5231
        %6061 = vmatpush1.bf16.msra.mxu0 %v5230
        %6062 = vmatprep.subr.bf16.mxu0 %v5226
        %6063 = vmatpush1.bf16.msra.mxu0 %v5225
        %6064 = vmatprep.subr.bf16.mxu0 %v5221
        %6065 = vmatpush1.bf16.msra.mxu0 %v5220
        %6066 = vmatprep.subr.bf16.mxu0 %v5216
        %6067 = vmatpush1.bf16.msra.mxu0 %v5215
        %6068 = vmatprep.subr.bf16.mxu0 %v5211
        %6069 = vmatpush1.bf16.msra.mxu0 %v5210
        %6070 = vmatprep.subr.bf16.mxu0 %v5206
        %6071 = vmatpush1.bf16.msra.mxu0 %v5205
        %6072 = vmatprep.subr.bf16.mxu0 %v5201
        %6073 = vmatpush1.bf16.msra.mxu0 %v5200
        %6074 = vmatprep.subr.bf16.mxu0 %v5196
        %6075 = vmatpush1.bf16.msra.mxu0 %v5195
        %6076 = vmatprep.subr.bf16.mxu0 %v5271
        %6077 = vmatpush2.bf16.msra.mxu0 %v5270
        %6078 = vmatprep.subr.bf16.mxu0 %v5266
        %6079 = vmatpush2.bf16.msra.mxu0 %v5265
        %6080 = vmatprep.subr.bf16.mxu0 %v5261
        %6081 = vmatpush2.bf16.msra.mxu0 %v5260
        %6082 = vmatprep.subr.bf16.mxu0 %v5256
        %6083 = vmatpush2.bf16.msra.mxu0 %v5255
        %6084 = vmatprep.subr.bf16.mxu0 %v5251
        %6085 = vmatpush2.bf16.msra.mxu0 %v5250
        %6086 = vmatprep.subr.bf16.mxu0 %v5246
        %6087 = vmatpush2.bf16.msra.mxu0 %v5245
        %6088 = vmatprep.subr.bf16.mxu0 %v5241
        %6089 = vmatpush2.bf16.msra.mxu0 %v5240
        %6090 = vmatprep.subr.bf16.mxu0 %v5236
        %6091 = vmatpush2.bf16.msra.mxu0 %v5235
        %6092 = vmatprep.mubr.bf16.mxu0 %v3085
        %6093 = vmatmul.mubr.bf16.gmra.mxu0 %v3084
        %v6094 = vpop.f32.mrf.mxu0
        %v6095 = vadd.f32 %v6052, %v6094
        %v6096 = vpop.f32.mrf.mxu0
        %v6097 = vadd.f32 %v6054, %v6096
        %v6098 = vpop.f32.mrf.mxu0
        %v6099 = vadd.f32 %v6056, %v6098
        %v6100 = vpop.f32.mrf.mxu0
        %v6101 = vadd.f32 %v6058, %v6100
        %6102 = vdwg.mxu0
        %6103 = vmatprep.subr.bf16.mxu0 0
        %6104 = vmatpush1.bf16.msra.mxu0 %v4912
        %6105 = vmatprep.subr.bf16.mxu0 0
        %6106 = vmatpush1.bf16.msra.mxu0 %v4907
        %6107 = vmatprep.subr.bf16.mxu0 0
        %6108 = vmatpush1.bf16.msra.mxu0 %v4902
        %6109 = vmatprep.subr.bf16.mxu0 0
        %6110 = vmatpush1.bf16.msra.mxu0 %v4897
        %6111 = vmatprep.subr.bf16.mxu0 0
        %6112 = vmatpush1.bf16.msra.mxu0 %v4892
        %6113 = vmatprep.subr.bf16.mxu0 0
        %6114 = vmatpush1.bf16.msra.mxu0 %v4887
        %6115 = vmatprep.subr.bf16.mxu0 0
        %6116 = vmatpush1.bf16.msra.mxu0 %v4882
        %6117 = vmatprep.subr.bf16.mxu0 0
        %6118 = vmatpush1.bf16.msra.mxu0 %v4877
        %6119 = vmatprep.subr.bf16.mxu0 0
        %6120 = vmatpush2.bf16.msra.mxu0 %v4952
        %6121 = vmatprep.subr.bf16.mxu0 0
        %6122 = vmatpush2.bf16.msra.mxu0 %v4947
        %6123 = vmatprep.subr.bf16.mxu0 0
        %6124 = vmatpush2.bf16.msra.mxu0 %v4942
        %6125 = vmatprep.subr.bf16.mxu0 0
        %6126 = vmatpush2.bf16.msra.mxu0 %v4937
        %6127 = vmatprep.subr.bf16.mxu0 0
        %6128 = vmatpush2.bf16.msra.mxu0 %v4932
        %6129 = vmatprep.subr.bf16.mxu0 0
        %6130 = vmatpush2.bf16.msra.mxu0 %v4927
        %6131 = vmatprep.subr.bf16.mxu0 0
        %6132 = vmatpush2.bf16.msra.mxu0 %v4922
        %6133 = vmatprep.subr.bf16.mxu0 0
        %6134 = vmatpush2.bf16.msra.mxu0 %v4917
        %6135 = vmatprep.mubr.bf16.mxu0 %v3077
        %6136 = vmatmul.mubr.bf16.gmra.mxu0 %v3076
        %v6137 = vpop.f32.mrf.mxu0
        %v6138 = vadd.f32 %v3587, %v6137
        %v6139 = vpop.f32.mrf.mxu0
        %v6140 = vpop.f32.mrf.mxu0
        %v6141 = vadd.f32 %v3587, %v6140
        %v6142 = vpop.f32.mrf.mxu0
        %6143 = vdwg.mxu0
        %6144 = vmatprep.subr.bf16.mxu0 0
        %6145 = vmatpush1.bf16.msra.mxu0 %v4992
        %6146 = vmatprep.subr.bf16.mxu0 0
        %6147 = vmatpush1.bf16.msra.mxu0 %v4987
        %6148 = vmatprep.subr.bf16.mxu0 0
        %6149 = vmatpush1.bf16.msra.mxu0 %v4982
        %6150 = vmatprep.subr.bf16.mxu0 0
        %6151 = vmatpush1.bf16.msra.mxu0 %v4977
        %6152 = vmatprep.subr.bf16.mxu0 0
        %6153 = vmatpush1.bf16.msra.mxu0 %v4972
        %6154 = vmatprep.subr.bf16.mxu0 0
        %6155 = vmatpush1.bf16.msra.mxu0 %v4967
        %6156 = vmatprep.subr.bf16.mxu0 0
        %6157 = vmatpush1.bf16.msra.mxu0 %v4962
        %6158 = vmatprep.subr.bf16.mxu0 0
        %6159 = vmatpush1.bf16.msra.mxu0 %v4957
        %6160 = vmatprep.subr.bf16.mxu0 0
        %6161 = vmatpush2.bf16.msra.mxu0 %v5032
        %6162 = vmatprep.subr.bf16.mxu0 0
        %6163 = vmatpush2.bf16.msra.mxu0 %v5027
        %6164 = vmatprep.subr.bf16.mxu0 0
        %6165 = vmatpush2.bf16.msra.mxu0 %v5022
        %6166 = vmatprep.subr.bf16.mxu0 0
        %6167 = vmatpush2.bf16.msra.mxu0 %v5017
        %6168 = vmatprep.subr.bf16.mxu0 0
        %6169 = vmatpush2.bf16.msra.mxu0 %v5012
        %6170 = vmatprep.subr.bf16.mxu0 0
        %6171 = vmatpush2.bf16.msra.mxu0 %v5007
        %6172 = vmatprep.subr.bf16.mxu0 0
        %6173 = vmatpush2.bf16.msra.mxu0 %v5002
        %6174 = vmatprep.subr.bf16.mxu0 0
        %6175 = vmatpush2.bf16.msra.mxu0 %v4997
        %6176 = vmatprep.mubr.bf16.mxu0 %v3079
        %6177 = vmatmul.mubr.bf16.gmra.mxu0 %v3078
        %v6178 = vpop.f32.mrf.mxu0
        %v6179 = vadd.f32 %v6138, %v6178
        %v6180 = vpop.f32.mrf.mxu0
        %v6181 = vpop.f32.mrf.mxu0
        %v6182 = vadd.f32 %v6141, %v6181
        %v6183 = vpop.f32.mrf.mxu0
        %6184 = vdwg.mxu0
        %6185 = vmatprep.subr.bf16.mxu0 0
        %6186 = vmatpush1.bf16.msra.mxu0 %v5072
        %6187 = vmatprep.subr.bf16.mxu0 0
        %6188 = vmatpush1.bf16.msra.mxu0 %v5067
        %6189 = vmatprep.subr.bf16.mxu0 0
        %6190 = vmatpush1.bf16.msra.mxu0 %v5062
        %6191 = vmatprep.subr.bf16.mxu0 0
        %6192 = vmatpush1.bf16.msra.mxu0 %v5057
        %6193 = vmatprep.subr.bf16.mxu0 0
        %6194 = vmatpush1.bf16.msra.mxu0 %v5052
        %6195 = vmatprep.subr.bf16.mxu0 0
        %6196 = vmatpush1.bf16.msra.mxu0 %v5047
        %6197 = vmatprep.subr.bf16.mxu0 0
        %6198 = vmatpush1.bf16.msra.mxu0 %v5042
        %6199 = vmatprep.subr.bf16.mxu0 0
        %6200 = vmatpush1.bf16.msra.mxu0 %v5037
        %6201 = vmatprep.subr.bf16.mxu0 0
        %6202 = vmatpush2.bf16.msra.mxu0 %v5112
        %6203 = vmatprep.subr.bf16.mxu0 0
        %6204 = vmatpush2.bf16.msra.mxu0 %v5107
        %6205 = vmatprep.subr.bf16.mxu0 0
        %6206 = vmatpush2.bf16.msra.mxu0 %v5102
        %6207 = vmatprep.subr.bf16.mxu0 0
        %6208 = vmatpush2.bf16.msra.mxu0 %v5097
        %6209 = vmatprep.subr.bf16.mxu0 0
        %6210 = vmatpush2.bf16.msra.mxu0 %v5092
        %6211 = vmatprep.subr.bf16.mxu0 0
        %6212 = vmatpush2.bf16.msra.mxu0 %v5087
        %6213 = vmatprep.subr.bf16.mxu0 0
        %6214 = vmatpush2.bf16.msra.mxu0 %v5082
        %6215 = vmatprep.subr.bf16.mxu0 0
        %6216 = vmatpush2.bf16.msra.mxu0 %v5077
        %6217 = vmatprep.mubr.bf16.mxu0 %v3081
        %6218 = vmatmul.mubr.bf16.gmra.mxu0 %v3080
        %v6219 = vpop.f32.mrf.mxu0
        %v6220 = vadd.f32 %v6179, %v6219
        %v6221 = vpop.f32.mrf.mxu0
        %v6222 = vpop.f32.mrf.mxu0
        %v6223 = vadd.f32 %v6182, %v6222
        %v6224 = vpop.f32.mrf.mxu0
        %6225 = vdwg.mxu0
        %6226 = vmatprep.subr.bf16.mxu0 0
        %6227 = vmatpush1.bf16.msra.mxu0 %v5152
        %6228 = vmatprep.subr.bf16.mxu0 0
        %6229 = vmatpush1.bf16.msra.mxu0 %v5147
        %6230 = vmatprep.subr.bf16.mxu0 0
        %6231 = vmatpush1.bf16.msra.mxu0 %v5142
        %6232 = vmatprep.subr.bf16.mxu0 0
        %6233 = vmatpush1.bf16.msra.mxu0 %v5137
        %6234 = vmatprep.subr.bf16.mxu0 0
        %6235 = vmatpush1.bf16.msra.mxu0 %v5132
        %6236 = vmatprep.subr.bf16.mxu0 0
        %6237 = vmatpush1.bf16.msra.mxu0 %v5127
        %6238 = vmatprep.subr.bf16.mxu0 0
        %6239 = vmatpush1.bf16.msra.mxu0 %v5122
        %6240 = vmatprep.subr.bf16.mxu0 0
        %6241 = vmatpush1.bf16.msra.mxu0 %v5117
        %6242 = vmatprep.subr.bf16.mxu0 0
        %6243 = vmatpush2.bf16.msra.mxu0 %v5192
        %6244 = vmatprep.subr.bf16.mxu0 0
        %6245 = vmatpush2.bf16.msra.mxu0 %v5187
        %6246 = vmatprep.subr.bf16.mxu0 0
        %6247 = vmatpush2.bf16.msra.mxu0 %v5182
        %6248 = vmatprep.subr.bf16.mxu0 0
        %6249 = vmatpush2.bf16.msra.mxu0 %v5177
        %6250 = vmatprep.subr.bf16.mxu0 0
        %6251 = vmatpush2.bf16.msra.mxu0 %v5172
        %6252 = vmatprep.subr.bf16.mxu0 0
        %6253 = vmatpush2.bf16.msra.mxu0 %v5167
        %6254 = vmatprep.subr.bf16.mxu0 0
        %6255 = vmatpush2.bf16.msra.mxu0 %v5162
        %6256 = vmatprep.subr.bf16.mxu0 0
        %6257 = vmatpush2.bf16.msra.mxu0 %v5157
        %6258 = vmatprep.mubr.bf16.mxu0 %v3083
        %6259 = vmatmul.mubr.bf16.gmra.mxu0 %v3082
        %v6260 = vpop.f32.mrf.mxu0
        %v6261 = vadd.f32 %v6220, %v6260
        %v6262 = vpop.f32.mrf.mxu0
        %v6263 = vpop.f32.mrf.mxu0
        %v6264 = vadd.f32 %v6223, %v6263
        %v6265 = vpop.f32.mrf.mxu0
        %6266 = vdwg.mxu0
        %6267 = vmatprep.subr.bf16.mxu0 0
        %6268 = vmatpush1.bf16.msra.mxu0 %v5232
        %6269 = vmatprep.subr.bf16.mxu0 0
        %6270 = vmatpush1.bf16.msra.mxu0 %v5227
        %6271 = vmatprep.subr.bf16.mxu0 0
        %6272 = vmatpush1.bf16.msra.mxu0 %v5222
        %6273 = vmatprep.subr.bf16.mxu0 0
        %6274 = vmatpush1.bf16.msra.mxu0 %v5217
        %6275 = vmatprep.subr.bf16.mxu0 0
        %6276 = vmatpush1.bf16.msra.mxu0 %v5212
        %6277 = vmatprep.subr.bf16.mxu0 0
        %6278 = vmatpush1.bf16.msra.mxu0 %v5207
        %6279 = vmatprep.subr.bf16.mxu0 0
        %6280 = vmatpush1.bf16.msra.mxu0 %v5202
        %6281 = vmatprep.subr.bf16.mxu0 0
        %6282 = vmatpush1.bf16.msra.mxu0 %v5197
        %6283 = vmatprep.subr.bf16.mxu0 0
        %6284 = vmatpush2.bf16.msra.mxu0 %v5272
        %6285 = vmatprep.subr.bf16.mxu0 0
        %6286 = vmatpush2.bf16.msra.mxu0 %v5267
        %6287 = vmatprep.subr.bf16.mxu0 0
        %6288 = vmatpush2.bf16.msra.mxu0 %v5262
        %6289 = vmatprep.subr.bf16.mxu0 0
        %6290 = vmatpush2.bf16.msra.mxu0 %v5257
        %6291 = vmatprep.subr.bf16.mxu0 0
        %6292 = vmatpush2.bf16.msra.mxu0 %v5252
        %6293 = vmatprep.subr.bf16.mxu0 0
        %6294 = vmatpush2.bf16.msra.mxu0 %v5247
        %6295 = vmatprep.subr.bf16.mxu0 0
        %6296 = vmatpush2.bf16.msra.mxu0 %v5242
        %6297 = vmatprep.subr.bf16.mxu0 0
        %6298 = vmatpush2.bf16.msra.mxu0 %v5237
        %6299 = vmatprep.mubr.bf16.mxu0 %v3085
        %6300 = vmatmul.mubr.bf16.gmra.mxu0 %v3084
        %v6301 = vpop.f32.mrf.mxu0
        %v6302 = vadd.f32 %v6261, %v6301
        %v6303 = vpop.f32.mrf.mxu0
        %v6304 = vpop.f32.mrf.mxu0
        %v6305 = vadd.f32 %v6264, %v6304
        %v6306 = vpop.f32.mrf.mxu0
        %6307 = vdwg.mxu0
        %6308 = vst [vmem:[%s1220] sm:$0xff] %v5880
        %6309 = vst [vmem:[%s1220 + $0x8] sm:$0xff] %v5882
        %6310 = vst [vmem:[%s1220 + $0x10] sm:$0xff] %v6095
        %6311 = vst [vmem:[%s1220 + $0x18] sm:$0xff] %v6097
        %6312 = vst [vmem:[%s1220 + $0x20] sm:$0xff] %v6302
        %6313 = vst [vmem:[%s1220 + $0x28] sm:$0xff] %v5884
        %6314 = vst [vmem:[%s1220 + $0x30] sm:$0xff] %v5886
        %6315 = vst [vmem:[%s1220 + $0x38] sm:$0xff] %v6099
        %6316 = vst [vmem:[%s1220 + $0x40] sm:$0xff] %v6101
        %6317 = vst [vmem:[%s1220 + $0x48] sm:$0xff] %v6305
        %s6318 = sand.u32 %s139, 1
        %s6319 = sand.u32 %s139, 1
        %s6320 = smul.addr %s6319, 80
        %s6321 = scalar_lea.vmem [#allocation3], %s6320
        // Predicated region
        $region67: #{diffusion_forward.2} parent=61 // pred_check
          %p6322 = pneg %p149
        $region68: #{diffusion_forward.2} parent=61 // pred_check_branch
          %6324 = sbr.rel (%p6322) target = $region70
        $region69: #{diffusion_forward.2} parent=61 // pred_region
          %s6325 = smul.u32 5, %s16
          %s6326 = smul.addr %s6325, 8
          %s6327 = scalar_lea.vmem %s5, %s6326
          // Predicated region
          $region71: #{diffusion_forward.2} parent=69 // pred_check
            _
          $region72: #{diffusion_forward.2} parent=69 // pred_check_branch
            %6329 = sbr.rel (0) target = $region74
          $region73: #{diffusion_forward.2} parent=69 // pred_region
            // Predicated region
            $region75: #{diffusion_forward.2} parent=73 // pred_check
              _
            $region76: #{diffusion_forward.2} parent=73 // pred_check_branch
              %6331 = sbr.rel (0) target = $region78
            $region77: #{diffusion_forward.2} parent=73 // pred_region
              loop: start=0, step=1, limit=1
              $region79: #{diffusion_forward.2} parent=77 // loop_pre_header
                _
              $region80: #{diffusion_forward.2} parent=77 // loop_header
                %s6333 = sphi 0, %s6337
                %p6334 = scmp.ge.s32.totalorder %s6333, 1
                %s6338 = sphi %s6321, %s6321
                %s6339 = sphi %s6327, %s6327
              $region81: #{diffusion_forward.2} parent=77 // loop_header_branch
                %6336 = sbr.rel (%p6334) target = $region85
              $region82: #{diffusion_forward.2} parent=77 // loop_body
                %v6340 = vld [vmem:[%s6338] sm:$0xff]
                %6341 = vst [vmem:[%s6339] sm:$0xff] %v6340
                %v6342 = vld [vmem:[%s6338 + $0x8] sm:$0xff]
                %6343 = vst [vmem:[%s6339 + $0x8] sm:$0xff] %v6342
                %v6344 = vld [vmem:[%s6338 + $0x10] sm:$0xff]
                %6345 = vst [vmem:[%s6339 + $0x10] sm:$0xff] %v6344
                %v6346 = vld [vmem:[%s6338 + $0x18] sm:$0xff]
                %6347 = vst [vmem:[%s6339 + $0x18] sm:$0xff] %v6346
                %v6348 = vld [vmem:[%s6338 + $0x20] sm:$0xff]
                %6349 = vst [vmem:[%s6339 + $0x20] sm:$0xff] %v6348
                %v6350 = vld [vmem:[%s6338 + $0x28] sm:$0xff]
                %6351 = vst [vmem:[%s6339 + $0x50] sm:$0xff] %v6350
                %v6352 = vld [vmem:[%s6338 + $0x30] sm:$0xff]
                %6353 = vst [vmem:[%s6339 + $0x58] sm:$0xff] %v6352
                %v6354 = vld [vmem:[%s6338 + $0x38] sm:$0xff]
                %6355 = vst [vmem:[%s6339 + $0x60] sm:$0xff] %v6354
                %v6356 = vld [vmem:[%s6338 + $0x40] sm:$0xff]
                %6357 = vst [vmem:[%s6339 + $0x68] sm:$0xff] %v6356
                %v6358 = vld [vmem:[%s6338 + $0x48] sm:$0xff]
                %6359 = vst [vmem:[%s6339 + $0x70] sm:$0xff] %v6358
              $region83: #{diffusion_forward.2} parent=77 // loop_footer
                %s6337 = sadd.s32 1, %s6333
              $region84: #{diffusion_forward.2} parent=77 // loop_footer_branch
                %6332 = sbr.rel target = $region80
              $region85: #{diffusion_forward.2} parent=77 // loop_exit
                _
            $region78: #{diffusion_forward.2} parent=73 // pred_fallthru
              _
            // Predicated region
            $region86: #{diffusion_forward.2} parent=73 // pred_check
              _
            $region87: #{diffusion_forward.2} parent=73 // pred_check_branch
              %6361 = sbr.rel target = $region89
            $region88: #{diffusion_forward.2} parent=73 // pred_region
              _
            $region89: #{diffusion_forward.2} parent=73 // pred_fallthru
              _
          $region74: #{diffusion_forward.2} parent=69 // pred_fallthru
            _
          %6362 = vnop
        $region70: #{diffusion_forward.2} parent=61 // pred_fallthru
          _
      $region62: #{diffusion_forward.2} parent=5 // pred_fallthru
        _
      %p6363 = scmp.le.s32.totalorder 2, %s11
      // Predicated region
      $region90: #{diffusion_forward.2} parent=5 // pred_check
        %p6364 = pneg %p6363
      $region91: #{diffusion_forward.2} parent=5 // pred_check_branch
        %6366 = sbr.rel (%p6364) target = $region93
      $region92: #{diffusion_forward.2} parent=5 // pred_region
        %s6367 = ssub.s32 %s11, 2
        // Predicated region
        $region94: #{diffusion_forward.2} parent=92 // pred_check
          %p6368 = pneg %p155
        $region95: #{diffusion_forward.2} parent=92 // pred_check_branch
          %6370 = sbr.rel (%p6368) target = $region97
        $region96: #{diffusion_forward.2} parent=92 // pred_region
          %s6371 = sand.u32 %s140, 1
          %s6372 = sand.u32 %s140, 1
          %s6373 = smul.addr %s6372, 80
          %s6374 = scalar_lea.vmem [#allocation3], %s6373
        $region97: #{diffusion_forward.2} parent=92 // pred_fallthru
          _
      $region93: #{diffusion_forward.2} parent=5 // pred_fallthru
        _
    $region6: #{diffusion_forward.2} parent=1 // loop_footer
      %s15 = sadd.s32 1, %s11
    $region7: #{diffusion_forward.2} parent=1 // loop_footer_branch
      %10 = sbr.rel target = $region3
    $region8: #{diffusion_forward.2} parent=1 // loop_exit
      _

</llo_original>
